<compile_context>
chip_gen: v7x
topology: tpu7x:2x2x1
jax: 0.10.0
libtpu: 0.0.40
codegen_flags: <defaults>
</compile_context>

<pallas_src>
from functools import partial

import jax
import jax.numpy as jnp
import numpy as np
from jax.experimental import pallas as pl
from jax.experimental.pallas import tpu as pltpu


# ----------------------------------------------------------------------------
# Fused Pallas kernel: one grid step == one batch item, fully VMEM-resident.
# ----------------------------------------------------------------------------
def fused_resblock_down_kernel(xp_ref, wd_ref, bd_ref, w1_ref, w2_ref, w3_ref,
                               mask_ref, out_ref, hpad_ref,
                               *, S, Ho, Wo, lpad, eps):
    def inorm(z):
        # Instance norm over the spatial (lane) axis, per channel row.
        mean = jnp.mean(z, axis=1, keepdims=True)
        zc = z - mean
        var = jnp.mean(zc * zc, axis=1, keepdims=True)
        return zc * jax.lax.rsqrt(var + eps)

    # ---- down: Conv3d(Cin, Cout, k=2, s=2) as a single matmul (+ bias) -------
    # xp_ref[0]: (8*Cin, S) patch matrix, wd: (Cout, 8*Cin), bd: (Cout, 1)
    down = jnp.dot(wd_ref[...], xp_ref[0],
                   preferred_element_type=jnp.float32) + bd_ref[...]

    # ---- Conv3d(Cout, Cmid, 1) -> IN -> ReLU (bias cancelled by IN) ----------
    h = jnp.dot(w1_ref[...], down, preferred_element_type=jnp.float32)
    h = jnp.maximum(inorm(h), 0.0)
    cmid = h.shape[0]

    # ---- Conv3d(Cmid, Cmid, 3, p=1): 27 shifted+masked accumulated matmuls ---
    # h is written once into a zero-padded scratch row (lane-aligned interior);
    # each tap (kd,kh,kw) is a static lane-offset slice of that scratch.  Taps
    # whose source voxel is outside the volume (including flattened-index wrap)
    # are zeroed by the precomputed boundary masks.
    hpad_ref[...] = jnp.zeros_like(hpad_ref)
    hpad_ref[:, lpad:lpad + S] = h

    acc = jnp.zeros((cmid, S), jnp.float32)
    for kd in range(3):
        for kh in range(3):
            for kw in range(3):
                off = (kd - 1) * Ho * Wo + (kh - 1) * Wo + (kw - 1)
                tap = hpad_ref[:, lpad + off:lpad + off + S]
                rows = []
                if kd == 0:
                    rows.append(0)
                if kd == 2:
                    rows.append(1)
                if kh == 0:
                    rows.append(2)
                if kh == 2:
                    rows.append(3)
                if kw == 0:
                    rows.append(4)
                if kw == 2:
                    rows.append(5)
                if rows:
                    m = mask_ref[rows[0]:rows[0] + 1, :]
                    for r in rows[1:]:
                        m = m * mask_ref[r:r + 1, :]
                    tap = tap * m
                kidx = (kd * 3 + kh) * 3 + kw
                acc = acc + jnp.dot(w2_ref[kidx], tap,
                                    preferred_element_type=jnp.float32)
    h = jnp.maximum(inorm(acc), 0.0)

    # ---- Conv3d(Cmid, Cout, 1) -> IN, + residual(down), ReLU -----------------
    h = jnp.dot(w3_ref[...], h, preferred_element_type=jnp.float32)
    out_ref[0] = jnp.maximum(inorm(h) + down, 0.0)


# ----------------------------------------------------------------------------
# Wrapper: layout prep (weights + one input transpose) and the pallas_call.
# ----------------------------------------------------------------------------
def residual_block_down_forward(x_ncdhw, params, *, eps=1e-5):
    N, Cin, D, H, W = x_ncdhw.shape
    Cout = params["w_down"].shape[0]
    Cmid = Cout // 2
    assert D % 2 == 0 and H % 2 == 0 and W % 2 == 0, (D, H, W)
    Do, Ho, Wo = D // 2, H // 2, W // 2
    S = Do * Ho * Wo

    # Patch matrix for the k=2/s=2 down conv, channels-first:
    #   xp[n, ((kd*2+kh)*2+kw)*Cin + c, (do*Ho+ho)*Wo+wo] = x[n, c, 2do+kd, 2ho+kh, 2wo+kw]
    # Single wrapper-side transpose (same bytes as the input); everything
    # downstream of it stays in VMEM.
    xp = x_ncdhw.reshape(N, Cin, Do, 2, Ho, 2, Wo, 2)
    xp = jnp.transpose(xp, (0, 3, 5, 7, 1, 2, 4, 6)).reshape(N, 8 * Cin, S)

    # Weights in (C_out, K) @ (K, S) matmul form.
    wd = jnp.transpose(params["w_down"], (0, 2, 3, 4, 1)).reshape(Cout, 8 * Cin)
    bd = params["b_down"].reshape(Cout, 1)
    w1 = params["w1"].reshape(Cmid, Cout)
    w2 = jnp.transpose(params["w2"], (2, 3, 4, 0, 1)).reshape(27, Cmid, Cmid)
    w3 = params["w3"].reshape(Cout, Cmid)
    # NOTE: b1/b2/b3 are intentionally not passed -- InstanceNorm cancels them.

    # Boundary masks for the 27 conv taps (constants, folded by XLA):
    # rows = [d>=1, d<=Do-2, h>=1, h<=Ho-2, w>=1, w<=Wo-2] over the flat S axis.
    sidx = jnp.arange(S, dtype=jnp.int32)
    d_i = sidx // (Ho * Wo)
    h_i = (sidx // Wo) % Ho
    w_i = sidx % Wo
    masks = jnp.stack(
        [d_i >= 1, d_i <= Do - 2, h_i >= 1, h_i <= Ho - 2, w_i >= 1, w_i <= Wo - 2],
        axis=0).astype(jnp.float32)                       # (6, S)

    pad = Ho * Wo + Wo + 1                 # largest |flattened tap shift|
    lpad = ((pad + 127) // 128) * 128      # lane-aligned interior store offset

    kernel = partial(fused_resblock_down_kernel,
                     S=S, Ho=Ho, Wo=Wo, lpad=lpad, eps=eps)

    out = pl.pallas_call(
        kernel,
        out_shape=jax.ShapeDtypeStruct((N, Cout, S), jnp.float32),
        grid=(N,),
        in_specs=[
            pl.BlockSpec((1, 8 * Cin, S), lambda n: (n, 0, 0)),   # patches
            pl.BlockSpec((Cout, 8 * Cin), lambda n: (0, 0)),      # w_down
            pl.BlockSpec((Cout, 1), lambda n: (0, 0)),            # b_down
            pl.BlockSpec((Cmid, Cout), lambda n: (0, 0)),         # w1
            pl.BlockSpec((27, Cmid, Cmid), lambda n: (0, 0, 0)),  # w2 taps
            pl.BlockSpec((Cout, Cmid), lambda n: (0, 0)),         # w3
            pl.BlockSpec((6, S), lambda n: (0, 0)),               # boundary masks
        ],
        out_specs=pl.BlockSpec((1, Cout, S), lambda n: (n, 0, 0)),
        scratch_shapes=[pltpu.VMEM((Cmid, 2 * lpad + S), jnp.float32)],
        compiler_params=pltpu.CompilerParams(
            dimension_semantics=("parallel",)),
    )(xp, wd, bd, w1, w2, w3, masks)

    # (N, Cout, S) -> NCDHW: pure reshape, no transpose / extra copy.
    return out.reshape(N, Cout, Do, Ho, Wo)


# ----------------------------------------------------------------------------
# Pure-JAX reference (keeps the b1/b2/b3 biases to prove IN cancels them).
# ----------------------------------------------------------------------------
def _conv3d_ref(x, w, b, stride=1, pad=0):
    y = jax.lax.conv_general_dilated(
        x, w, window_strides=(stride,) * 3, padding=[(pad, pad)] * 3,
        dimension_numbers=("NCDHW", "OIDHW", "NCDHW"))
    return y + b[None, :, None, None, None]


def _inorm_ref(x, eps=1e-5):
    m = jnp.mean(x, axis=(2, 3, 4), keepdims=True)
    v = jnp.mean((x - m) ** 2, axis=(2, 3, 4), keepdims=True)
    return (x - m) * jax.lax.rsqrt(v + eps)


def forward_ref(x, p):
    d = _conv3d_ref(x, p["w_down"], p["b_down"], stride=2)
    h = jnp.maximum(_inorm_ref(_conv3d_ref(d, p["w1"], p["b1"])), 0.0)
    h = jnp.maximum(_inorm_ref(_conv3d_ref(h, p["w2"], p["b2"], pad=1)), 0.0)
    h = _inorm_ref(_conv3d_ref(h, p["w3"], p["b3"]))
    return jnp.maximum(h + d, 0.0)


# ----------------------------------------------------------------------------
def init_params(key, in_channels, out_channels):
    cmid = out_channels // 2
    ks = jax.random.split(key, 8)
    mk = lambda k, shape, scale: (scale * jax.random.normal(k, shape)).astype(jnp.float32)
    return {
        "w_down": mk(ks[0], (out_channels, in_channels, 2, 2, 2), 0.2),
        "b_down": mk(ks[1], (out_channels,), 0.1),
        "w1": mk(ks[2], (cmid, out_channels, 1, 1, 1), 0.2),
        "b1": mk(ks[3], (cmid,), 0.1),
        "w2": mk(ks[4], (cmid, cmid, 3, 3, 3), 0.2),
        "b2": mk(ks[5], (cmid,), 0.1),
        "w3": mk(ks[6], (out_channels, cmid, 1, 1, 1), 0.2),
        "b3": mk(ks[7], (out_channels,), 0.1),
    }


if __name__ == "__main__":
    key = jax.random.PRNGKey(0)
    k_x, k_p = jax.random.split(key)

    in_channels, out_channels = 4, 8
    N, D, H, W = 2, 16, 16, 16
    x = jax.random.normal(k_x, (N, in_channels, D, H, W), dtype=jnp.float32)
    params = init_params(k_p, in_channels, out_channels)

    fwd = jax.jit(residual_block_down_forward)
    out = jax.block_until_ready(fwd(x, params))
    assert out.shape == (N, out_channels, D // 2, H // 2, W // 2), out.shape

    ref = jax.block_until_ready(forward_ref(x, params))
    np.testing.assert_allclose(np.asarray(out), np.asarray(ref), atol=1e-2, rtol=1e-2)

    print("KERNEL_OK")
</pallas_src>

<mosaic_0001>
module attributes {stable_mosaic.version = 11 : i64} {
  func.func @fused_resblock_down_kernel(%arg0: i32, %arg1: memref<1x32x512xf32, #tpu.memory_space<vmem>>, %arg2: memref<8x32xf32, #tpu.memory_space<vmem>>, %arg3: memref<8x1xf32, #tpu.memory_space<vmem>>, %arg4: memref<4x8xf32, #tpu.memory_space<vmem>>, %arg5: memref<27x4x4xf32, #tpu.memory_space<vmem>>, %arg6: memref<8x4xf32, #tpu.memory_space<vmem>>, %arg7: memref<6x512xf32, #tpu.memory_space<vmem>>, %arg8: memref<1x8x512xf32, #tpu.memory_space<vmem>>, %arg9: memref<4x768xf32, #tpu.memory_space<vmem>>) attributes {dimension_semantics = [#tpu.dimension_semantics<parallel>], iteration_bounds = array<i64: 2>, scalar_prefetch = 0 : i64, scratch_operands = 1 : i64, tpu.core_type = #tpu.core_type<tc>, window_params = [{transform_indices = @transform_0, window_bounds = array<i64: 1, 32, 512>}, {pipeline_mode = #tpu.pipeline_mode<synchronous>, transform_indices = @transform_1, window_bounds = array<i64: 8, 32>}, {pipeline_mode = #tpu.pipeline_mode<synchronous>, transform_indices = @transform_2, window_bounds = array<i64: 8, 1>}, {pipeline_mode = #tpu.pipeline_mode<synchronous>, transform_indices = @transform_3, window_bounds = array<i64: 4, 8>}, {pipeline_mode = #tpu.pipeline_mode<synchronous>, transform_indices = @transform_4, window_bounds = array<i64: 27, 4, 4>}, {pipeline_mode = #tpu.pipeline_mode<synchronous>, transform_indices = @transform_5, window_bounds = array<i64: 8, 4>}, {pipeline_mode = #tpu.pipeline_mode<synchronous>, transform_indices = @transform_6, window_bounds = array<i64: 6, 512>}, {transform_indices = @transform_7, window_bounds = array<i64: 1, 8, 512>}]} {
    %c0 = arith.constant 0 : index
    %c0_0 = arith.constant 0 : index
    %0 = vector.load %arg2[%c0, %c0_0] : memref<8x32xf32, #tpu.memory_space<vmem>>, vector<8x32xf32>
    %c0_1 = arith.constant 0 : index
    %c0_2 = arith.constant 0 : index
    %c0_3 = arith.constant 0 : index
    %1 = vector.load %arg1[%c0_1, %c0_2, %c0_3] : memref<1x32x512xf32, #tpu.memory_space<vmem>>, vector<1x32x512xf32>
    %2 = vector.shape_cast %1 : vector<1x32x512xf32> to vector<32x512xf32>
    %cst = arith.constant dense<0.000000e+00> : vector<8x512xf32>
    %3 = tpu.matmul %0, %2, %cst {dimension_numbers = #tpu.dot_dimension_numbers<[1], [0], [0], [1], [0, 0, 1, 1], [], []>} : vector<8x32xf32>, vector<32x512xf32>, vector<8x512xf32> -> vector<8x512xf32>
    %c0_4 = arith.constant 0 : index
    %c0_5 = arith.constant 0 : index
    %4 = vector.load %arg3[%c0_4, %c0_5] : memref<8x1xf32, #tpu.memory_space<vmem>>, vector<8x1xf32>
    %5 = vector.broadcast %4 : vector<8x1xf32> to vector<8x512xf32>
    %6 = arith.addf %3, %5 : vector<8x512xf32>
    %c0_6 = arith.constant 0 : index
    %c0_7 = arith.constant 0 : index
    %7 = vector.load %arg4[%c0_6, %c0_7] : memref<4x8xf32, #tpu.memory_space<vmem>>, vector<4x8xf32>
    %cst_8 = arith.constant dense<0.000000e+00> : vector<4x512xf32>
    %8 = tpu.matmul %7, %6, %cst_8 {dimension_numbers = #tpu.dot_dimension_numbers<[1], [0], [0], [1], [0, 0, 1, 1], [], []>} : vector<4x8xf32>, vector<8x512xf32>, vector<4x512xf32> -> vector<4x512xf32>
    %cst_9 = arith.constant dense<0.000000e+00> : vector<4xf32>
    %9 = vector.multi_reduction <add>, %8, %cst_9 [1] : vector<4x512xf32> to vector<4xf32>
    %10 = vector.shape_cast %9 : vector<4xf32> to vector<4x1xf32>
    %cst_10 = arith.constant 5.120000e+02 : f32
    %11 = vector.broadcast %cst_10 : f32 to vector<4x1xf32>
    %12 = arith.divf %10, %11 : vector<4x1xf32>
    %13 = vector.broadcast %12 : vector<4x1xf32> to vector<4x512xf32>
    %14 = arith.subf %8, %13 : vector<4x512xf32>
    %15 = arith.mulf %14, %14 : vector<4x512xf32>
    %cst_11 = arith.constant dense<0.000000e+00> : vector<4xf32>
    %16 = vector.multi_reduction <add>, %15, %cst_11 [1] : vector<4x512xf32> to vector<4xf32>
    %17 = vector.shape_cast %16 : vector<4xf32> to vector<4x1xf32>
    %cst_12 = arith.constant 5.120000e+02 : f32
    %18 = vector.broadcast %cst_12 : f32 to vector<4x1xf32>
    %19 = arith.divf %17, %18 : vector<4x1xf32>
    %cst_13 = arith.constant 9.99999974E-6 : f32
    %20 = vector.broadcast %cst_13 : f32 to vector<4x1xf32>
    %21 = arith.addf %19, %20 : vector<4x1xf32>
    %22 = math.rsqrt %21 : vector<4x1xf32>
    %23 = vector.broadcast %22 : vector<4x1xf32> to vector<4x512xf32>
    %24 = arith.mulf %14, %23 : vector<4x512xf32>
    %cst_14 = arith.constant 0.000000e+00 : f32
    %25 = vector.broadcast %cst_14 : f32 to vector<4x512xf32>
    %26 = arith.maximumf %24, %25 : vector<4x512xf32>
    %cst_15 = arith.constant 0.000000e+00 : f32
    %27 = vector.broadcast %cst_15 : f32 to vector<4x768xf32>
    %c0_16 = arith.constant 0 : index
    %c0_17 = arith.constant 0 : index
    %28 = vector.load %arg9[%c0_16, %c0_17] : memref<4x768xf32, #tpu.memory_space<vmem>>, vector<4x768xf32>
    tpu.vector_store %arg9[%c0_16, %c0_17], %27 {strides = array<i32>} : memref<4x768xf32, #tpu.memory_space<vmem>>, vector<4x768xf32>,
    %c0_18 = arith.constant 0 : index
    %c128 = arith.constant 128 : index
    %29 = vector.load %arg9[%c0_18, %c128] : memref<4x768xf32, #tpu.memory_space<vmem>>, vector<4x512xf32>
    tpu.vector_store %arg9[%c0_18, %c128], %26 {strides = array<i32>} : memref<4x768xf32, #tpu.memory_space<vmem>>, vector<4x512xf32>,
    %cst_19 = arith.constant 0.000000e+00 : f32
    %30 = vector.broadcast %cst_19 : f32 to vector<4x512xf32>
    %c0_20 = arith.constant 0 : index
    %c55 = arith.constant 55 : index
    %31 = vector.load %arg9[%c0_20, %c55] : memref<4x768xf32, #tpu.memory_space<vmem>>, vector<4x512xf32>
    %c0_21 = arith.constant 0 : index
    %c0_22 = arith.constant 0 : index
    %32 = vector.load %arg7[%c0_21, %c0_22] : memref<6x512xf32, #tpu.memory_space<vmem>>, vector<1x512xf32>
    %c2 = arith.constant 2 : index
    %c0_23 = arith.constant 0 : index
    %33 = vector.load %arg7[%c2, %c0_23] : memref<6x512xf32, #tpu.memory_space<vmem>>, vector<1x512xf32>
    %34 = arith.mulf %32, %33 : vector<1x512xf32>
    %c4 = arith.constant 4 : index
    %c0_24 = arith.constant 0 : index
    %35 = vector.load %arg7[%c4, %c0_24] : memref<6x512xf32, #tpu.memory_space<vmem>>, vector<1x512xf32>
    %36 = arith.mulf %34, %35 : vector<1x512xf32>
    %37 = vector.broadcast %36 : vector<1x512xf32> to vector<4x512xf32>
    %38 = arith.mulf %31, %37 : vector<4x512xf32>
    %c0_25 = arith.constant 0 : index
    %c0_26 = arith.constant 0 : index
    %c0_27 = arith.constant 0 : index
    %39 = vector.load %arg5[%c0_25, %c0_26, %c0_27] : memref<27x4x4xf32, #tpu.memory_space<vmem>>, vector<1x4x4xf32>
    %40 = vector.shape_cast %39 : vector<1x4x4xf32> to vector<4x4xf32>
    %cst_28 = arith.constant dense<0.000000e+00> : vector<4x512xf32>
    %41 = tpu.matmul %40, %38, %cst_28 {dimension_numbers = #tpu.dot_dimension_numbers<[1], [0], [0], [1], [0, 0, 1, 1], [], []>} : vector<4x4xf32>, vector<4x512xf32>, vector<4x512xf32> -> vector<4x512xf32>
    %42 = arith.addf %30, %41 : vector<4x512xf32>
    %c0_29 = arith.constant 0 : index
    %c56 = arith.constant 56 : index
    %43 = vector.load %arg9[%c0_29, %c56] : memref<4x768xf32, #tpu.memory_space<vmem>>, vector<4x512xf32>
    %c0_30 = arith.constant 0 : index
    %c0_31 = arith.constant 0 : index
    %44 = vector.load %arg7[%c0_30, %c0_31] : memref<6x512xf32, #tpu.memory_space<vmem>>, vector<1x512xf32>
    %c2_32 = arith.constant 2 : index
    %c0_33 = arith.constant 0 : index
    %45 = vector.load %arg7[%c2_32, %c0_33] : memref<6x512xf32, #tpu.memory_space<vmem>>, vector<1x512xf32>
    %46 = arith.mulf %44, %45 : vector<1x512xf32>
    %47 = vector.broadcast %46 : vector<1x512xf32> to vector<4x512xf32>
    %48 = arith.mulf %43, %47 : vector<4x512xf32>
    %c1 = arith.constant 1 : index
    %c0_34 = arith.constant 0 : index
    %c0_35 = arith.constant 0 : index
    %49 = vector.load %arg5[%c1, %c0_34, %c0_35] : memref<27x4x4xf32, #tpu.memory_space<vmem>>, vector<1x4x4xf32>
    %50 = vector.shape_cast %49 : vector<1x4x4xf32> to vector<4x4xf32>
    %cst_36 = arith.constant dense<0.000000e+00> : vector<4x512xf32>
    %51 = tpu.matmul %50, %48, %cst_36 {dimension_numbers = #tpu.dot_dimension_numbers<[1], [0], [0], [1], [0, 0, 1, 1], [], []>} : vector<4x4xf32>, vector<4x512xf32>, vector<4x512xf32> -> vector<4x512xf32>
    %52 = arith.addf %42, %51 : vector<4x512xf32>
    %c0_37 = arith.constant 0 : index
    %c57 = arith.constant 57 : index
    %53 = vector.load %arg9[%c0_37, %c57] : memref<4x768xf32, #tpu.memory_space<vmem>>, vector<4x512xf32>
    %c0_38 = arith.constant 0 : index
    %c0_39 = arith.constant 0 : index
    %54 = vector.load %arg7[%c0_38, %c0_39] : memref<6x512xf32, #tpu.memory_space<vmem>>, vector<1x512xf32>
    %c2_40 = arith.constant 2 : index
    %c0_41 = arith.constant 0 : index
    %55 = vector.load %arg7[%c2_40, %c0_41] : memref<6x512xf32, #tpu.memory_space<vmem>>, vector<1x512xf32>
    %56 = arith.mulf %54, %55 : vector<1x512xf32>
    %c5 = arith.constant 5 : index
    %c0_42 = arith.constant 0 : index
    %57 = vector.load %arg7[%c5, %c0_42] : memref<6x512xf32, #tpu.memory_space<vmem>>, vector<1x512xf32>
    %58 = arith.mulf %56, %57 : vector<1x512xf32>
    %59 = vector.broadcast %58 : vector<1x512xf32> to vector<4x512xf32>
    %60 = arith.mulf %53, %59 : vector<4x512xf32>
    %c2_43 = arith.constant 2 : index
    %c0_44 = arith.constant 0 : index
    %c0_45 = arith.constant 0 : index
    %61 = vector.load %arg5[%c2_43, %c0_44, %c0_45] : memref<27x4x4xf32, #tpu.memory_space<vmem>>, vector<1x4x4xf32>
    %62 = vector.shape_cast %61 : vector<1x4x4xf32> to vector<4x4xf32>
    %cst_46 = arith.constant dense<0.000000e+00> : vector<4x512xf32>
    %63 = tpu.matmul %62, %60, %cst_46 {dimension_numbers = #tpu.dot_dimension_numbers<[1], [0], [0], [1], [0, 0, 1, 1], [], []>} : vector<4x4xf32>, vector<4x512xf32>, vector<4x512xf32> -> vector<4x512xf32>
    %64 = arith.addf %52, %63 : vector<4x512xf32>
    %c0_47 = arith.constant 0 : index
    %c63 = arith.constant 63 : index
    %65 = vector.load %arg9[%c0_47, %c63] : memref<4x768xf32, #tpu.memory_space<vmem>>, vector<4x512xf32>
    %c0_48 = arith.constant 0 : index
    %c0_49 = arith.constant 0 : index
    %66 = vector.load %arg7[%c0_48, %c0_49] : memref<6x512xf32, #tpu.memory_space<vmem>>, vector<1x512xf32>
    %c4_50 = arith.constant 4 : index
    %c0_51 = arith.constant 0 : index
    %67 = vector.load %arg7[%c4_50, %c0_51] : memref<6x512xf32, #tpu.memory_space<vmem>>, vector<1x512xf32>
    %68 = arith.mulf %66, %67 : vector<1x512xf32>
    %69 = vector.broadcast %68 : vector<1x512xf32> to vector<4x512xf32>
    %70 = arith.mulf %65, %69 : vector<4x512xf32>
    %c3 = arith.constant 3 : index
    %c0_52 = arith.constant 0 : index
    %c0_53 = arith.constant 0 : index
    %71 = vector.load %arg5[%c3, %c0_52, %c0_53] : memref<27x4x4xf32, #tpu.memory_space<vmem>>, vector<1x4x4xf32>
    %72 = vector.shape_cast %71 : vector<1x4x4xf32> to vector<4x4xf32>
    %cst_54 = arith.constant dense<0.000000e+00> : vector<4x512xf32>
    %73 = tpu.matmul %72, %70, %cst_54 {dimension_numbers = #tpu.dot_dimension_numbers<[1], [0], [0], [1], [0, 0, 1, 1], [], []>} : vector<4x4xf32>, vector<4x512xf32>, vector<4x512xf32> -> vector<4x512xf32>
    %74 = arith.addf %64, %73 : vector<4x512xf32>
    %c0_55 = arith.constant 0 : index
    %c64 = arith.constant 64 : index
    %75 = vector.load %arg9[%c0_55, %c64] : memref<4x768xf32, #tpu.memory_space<vmem>>, vector<4x512xf32>
    %c0_56 = arith.constant 0 : index
    %c0_57 = arith.constant 0 : index
    %76 = vector.load %arg7[%c0_56, %c0_57] : memref<6x512xf32, #tpu.memory_space<vmem>>, vector<1x512xf32>
    %77 = vector.broadcast %76 : vector<1x512xf32> to vector<4x512xf32>
    %78 = arith.mulf %75, %77 : vector<4x512xf32>
    %c4_58 = arith.constant 4 : index
    %c0_59 = arith.constant 0 : index
    %c0_60 = arith.constant 0 : index
    %79 = vector.load %arg5[%c4_58, %c0_59, %c0_60] : memref<27x4x4xf32, #tpu.memory_space<vmem>>, vector<1x4x4xf32>
    %80 = vector.shape_cast %79 : vector<1x4x4xf32> to vector<4x4xf32>
    %cst_61 = arith.constant dense<0.000000e+00> : vector<4x512xf32>
    %81 = tpu.matmul %80, %78, %cst_61 {dimension_numbers = #tpu.dot_dimension_numbers<[1], [0], [0], [1], [0, 0, 1, 1], [], []>} : vector<4x4xf32>, vector<4x512xf32>, vector<4x512xf32> -> vector<4x512xf32>
    %82 = arith.addf %74, %81 : vector<4x512xf32>
    %c0_62 = arith.constant 0 : index
    %c65 = arith.constant 65 : index
    %83 = vector.load %arg9[%c0_62, %c65] : memref<4x768xf32, #tpu.memory_space<vmem>>, vector<4x512xf32>
    %c0_63 = arith.constant 0 : index
    %c0_64 = arith.constant 0 : index
    %84 = vector.load %arg7[%c0_63, %c0_64] : memref<6x512xf32, #tpu.memory_space<vmem>>, vector<1x512xf32>
    %c5_65 = arith.constant 5 : index
    %c0_66 = arith.constant 0 : index
    %85 = vector.load %arg7[%c5_65, %c0_66] : memref<6x512xf32, #tpu.memory_space<vmem>>, vector<1x512xf32>
    %86 = arith.mulf %84, %85 : vector<1x512xf32>
    %87 = vector.broadcast %86 : vector<1x512xf32> to vector<4x512xf32>
    %88 = arith.mulf %83, %87 : vector<4x512xf32>
    %c5_67 = arith.constant 5 : index
    %c0_68 = arith.constant 0 : index
    %c0_69 = arith.constant 0 : index
    %89 = vector.load %arg5[%c5_67, %c0_68, %c0_69] : memref<27x4x4xf32, #tpu.memory_space<vmem>>, vector<1x4x4xf32>
    %90 = vector.shape_cast %89 : vector<1x4x4xf32> to vector<4x4xf32>
    %cst_70 = arith.constant dense<0.000000e+00> : vector<4x512xf32>
    %91 = tpu.matmul %90, %88, %cst_70 {dimension_numbers = #tpu.dot_dimension_numbers<[1], [0], [0], [1], [0, 0, 1, 1], [], []>} : vector<4x4xf32>, vector<4x512xf32>, vector<4x512xf32> -> vector<4x512xf32>
    %92 = arith.addf %82, %91 : vector<4x512xf32>
    %c0_71 = arith.constant 0 : index
    %c71 = arith.constant 71 : index
    %93 = vector.load %arg9[%c0_71, %c71] : memref<4x768xf32, #tpu.memory_space<vmem>>, vector<4x512xf32>
    %c0_72 = arith.constant 0 : index
    %c0_73 = arith.constant 0 : index
    %94 = vector.load %arg7[%c0_72, %c0_73] : memref<6x512xf32, #tpu.memory_space<vmem>>, vector<1x512xf32>
    %c3_74 = arith.constant 3 : index
    %c0_75 = arith.constant 0 : index
    %95 = vector.load %arg7[%c3_74, %c0_75] : memref<6x512xf32, #tpu.memory_space<vmem>>, vector<1x512xf32>
    %96 = arith.mulf %94, %95 : vector<1x512xf32>
    %c4_76 = arith.constant 4 : index
    %c0_77 = arith.constant 0 : index
    %97 = vector.load %arg7[%c4_76, %c0_77] : memref<6x512xf32, #tpu.memory_space<vmem>>, vector<1x512xf32>
    %98 = arith.mulf %96, %97 : vector<1x512xf32>
    %99 = vector.broadcast %98 : vector<1x512xf32> to vector<4x512xf32>
    %100 = arith.mulf %93, %99 : vector<4x512xf32>
    %c6 = arith.constant 6 : index
    %c0_78 = arith.constant 0 : index
    %c0_79 = arith.constant 0 : index
    %101 = vector.load %arg5[%c6, %c0_78, %c0_79] : memref<27x4x4xf32, #tpu.memory_space<vmem>>, vector<1x4x4xf32>
    %102 = vector.shape_cast %101 : vector<1x4x4xf32> to vector<4x4xf32>
    %cst_80 = arith.constant dense<0.000000e+00> : vector<4x512xf32>
    %103 = tpu.matmul %102, %100, %cst_80 {dimension_numbers = #tpu.dot_dimension_numbers<[1], [0], [0], [1], [0, 0, 1, 1], [], []>} : vector<4x4xf32>, vector<4x512xf32>, vector<4x512xf32> -> vector<4x512xf32>
    %104 = arith.addf %92, %103 : vector<4x512xf32>
    %c0_81 = arith.constant 0 : index
    %c72 = arith.constant 72 : index
    %105 = vector.load %arg9[%c0_81, %c72] : memref<4x768xf32, #tpu.memory_space<vmem>>, vector<4x512xf32>
    %c0_82 = arith.constant 0 : index
    %c0_83 = arith.constant 0 : index
    %106 = vector.load %arg7[%c0_82, %c0_83] : memref<6x512xf32, #tpu.memory_space<vmem>>, vector<1x512xf32>
    %c3_84 = arith.constant 3 : index
    %c0_85 = arith.constant 0 : index
    %107 = vector.load %arg7[%c3_84, %c0_85] : memref<6x512xf32, #tpu.memory_space<vmem>>, vector<1x512xf32>
    %108 = arith.mulf %106, %107 : vector<1x512xf32>
    %109 = vector.broadcast %108 : vector<1x512xf32> to vector<4x512xf32>
    %110 = arith.mulf %105, %109 : vector<4x512xf32>
    %c7 = arith.constant 7 : index
    %c0_86 = arith.constant 0 : index
    %c0_87 = arith.constant 0 : index
    %111 = vector.load %arg5[%c7, %c0_86, %c0_87] : memref<27x4x4xf32, #tpu.memory_space<vmem>>, vector<1x4x4xf32>
    %112 = vector.shape_cast %111 : vector<1x4x4xf32> to vector<4x4xf32>
    %cst_88 = arith.constant dense<0.000000e+00> : vector<4x512xf32>
    %113 = tpu.matmul %112, %110, %cst_88 {dimension_numbers = #tpu.dot_dimension_numbers<[1], [0], [0], [1], [0, 0, 1, 1], [], []>} : vector<4x4xf32>, vector<4x512xf32>, vector<4x512xf32> -> vector<4x512xf32>
    %114 = arith.addf %104, %113 : vector<4x512xf32>
    %c0_89 = arith.constant 0 : index
    %c73 = arith.constant 73 : index
    %115 = vector.load %arg9[%c0_89, %c73] : memref<4x768xf32, #tpu.memory_space<vmem>>, vector<4x512xf32>
    %c0_90 = arith.constant 0 : index
    %c0_91 = arith.constant 0 : index
    %116 = vector.load %arg7[%c0_90, %c0_91] : memref<6x512xf32, #tpu.memory_space<vmem>>, vector<1x512xf32>
    %c3_92 = arith.constant 3 : index
    %c0_93 = arith.constant 0 : index
    %117 = vector.load %arg7[%c3_92, %c0_93] : memref<6x512xf32, #tpu.memory_space<vmem>>, vector<1x512xf32>
    %118 = arith.mulf %116, %117 : vector<1x512xf32>
    %c5_94 = arith.constant 5 : index
    %c0_95 = arith.constant 0 : index
    %119 = vector.load %arg7[%c5_94, %c0_95] : memref<6x512xf32, #tpu.memory_space<vmem>>, vector<1x512xf32>
    %120 = arith.mulf %118, %119 : vector<1x512xf32>
    %121 = vector.broadcast %120 : vector<1x512xf32> to vector<4x512xf32>
    %122 = arith.mulf %115, %121 : vector<4x512xf32>
    %c8 = arith.constant 8 : index
    %c0_96 = arith.constant 0 : index
    %c0_97 = arith.constant 0 : index
    %123 = vector.load %arg5[%c8, %c0_96, %c0_97] : memref<27x4x4xf32, #tpu.memory_space<vmem>>, vector<1x4x4xf32>
    %124 = vector.shape_cast %123 : vector<1x4x4xf32> to vector<4x4xf32>
    %cst_98 = arith.constant dense<0.000000e+00> : vector<4x512xf32>
    %125 = tpu.matmul %124, %122, %cst_98 {dimension_numbers = #tpu.dot_dimension_numbers<[1], [0], [0], [1], [0, 0, 1, 1], [], []>} : vector<4x4xf32>, vector<4x512xf32>, vector<4x512xf32> -> vector<4x512xf32>
    %126 = arith.addf %114, %125 : vector<4x512xf32>
    %c0_99 = arith.constant 0 : index
    %c119 = arith.constant 119 : index
    %127 = vector.load %arg9[%c0_99, %c119] : memref<4x768xf32, #tpu.memory_space<vmem>>, vector<4x512xf32>
    %c2_100 = arith.constant 2 : index
    %c0_101 = arith.constant 0 : index
    %128 = vector.load %arg7[%c2_100, %c0_101] : memref<6x512xf32, #tpu.memory_space<vmem>>, vector<1x512xf32>
    %c4_102 = arith.constant 4 : index
    %c0_103 = arith.constant 0 : index
    %129 = vector.load %arg7[%c4_102, %c0_103] : memref<6x512xf32, #tpu.memory_space<vmem>>, vector<1x512xf32>
    %130 = arith.mulf %128, %129 : vector<1x512xf32>
    %131 = vector.broadcast %130 : vector<1x512xf32> to vector<4x512xf32>
    %132 = arith.mulf %127, %131 : vector<4x512xf32>
    %c9 = arith.constant 9 : index
    %c0_104 = arith.constant 0 : index
    %c0_105 = arith.constant 0 : index
    %133 = vector.load %arg5[%c9, %c0_104, %c0_105] : memref<27x4x4xf32, #tpu.memory_space<vmem>>, vector<1x4x4xf32>
    %134 = vector.shape_cast %133 : vector<1x4x4xf32> to vector<4x4xf32>
    %cst_106 = arith.constant dense<0.000000e+00> : vector<4x512xf32>
    %135 = tpu.matmul %134, %132, %cst_106 {dimension_numbers = #tpu.dot_dimension_numbers<[1], [0], [0], [1], [0, 0, 1, 1], [], []>} : vector<4x4xf32>, vector<4x512xf32>, vector<4x512xf32> -> vector<4x512xf32>
    %136 = arith.addf %126, %135 : vector<4x512xf32>
    %c0_107 = arith.constant 0 : index
    %c120 = arith.constant 120 : index
    %137 = vector.load %arg9[%c0_107, %c120] : memref<4x768xf32, #tpu.memory_space<vmem>>, vector<4x512xf32>
    %c2_108 = arith.constant 2 : index
    %c0_109 = arith.constant 0 : index
    %138 = vector.load %arg7[%c2_108, %c0_109] : memref<6x512xf32, #tpu.memory_space<vmem>>, vector<1x512xf32>
    %139 = vector.broadcast %138 : vector<1x512xf32> to vector<4x512xf32>
    %140 = arith.mulf %137, %139 : vector<4x512xf32>
    %c10 = arith.constant 10 : index
    %c0_110 = arith.constant 0 : index
    %c0_111 = arith.constant 0 : index
    %141 = vector.load %arg5[%c10, %c0_110, %c0_111] : memref<27x4x4xf32, #tpu.memory_space<vmem>>, vector<1x4x4xf32>
    %142 = vector.shape_cast %141 : vector<1x4x4xf32> to vector<4x4xf32>
    %cst_112 = arith.constant dense<0.000000e+00> : vector<4x512xf32>
    %143 = tpu.matmul %142, %140, %cst_112 {dimension_numbers = #tpu.dot_dimension_numbers<[1], [0], [0], [1], [0, 0, 1, 1], [], []>} : vector<4x4xf32>, vector<4x512xf32>, vector<4x512xf32> -> vector<4x512xf32>
    %144 = arith.addf %136, %143 : vector<4x512xf32>
    %c0_113 = arith.constant 0 : index
    %c121 = arith.constant 121 : index
    %145 = vector.load %arg9[%c0_113, %c121] : memref<4x768xf32, #tpu.memory_space<vmem>>, vector<4x512xf32>
    %c2_114 = arith.constant 2 : index
    %c0_115 = arith.constant 0 : index
    %146 = vector.load %arg7[%c2_114, %c0_115] : memref<6x512xf32, #tpu.memory_space<vmem>>, vector<1x512xf32>
    %c5_116 = arith.constant 5 : index
    %c0_117 = arith.constant 0 : index
    %147 = vector.load %arg7[%c5_116, %c0_117] : memref<6x512xf32, #tpu.memory_space<vmem>>, vector<1x512xf32>
    %148 = arith.mulf %146, %147 : vector<1x512xf32>
    %149 = vector.broadcast %148 : vector<1x512xf32> to vector<4x512xf32>
    %150 = arith.mulf %145, %149 : vector<4x512xf32>
    %c11 = arith.constant 11 : index
    %c0_118 = arith.constant 0 : index
    %c0_119 = arith.constant 0 : index
    %151 = vector.load %arg5[%c11, %c0_118, %c0_119] : memref<27x4x4xf32, #tpu.memory_space<vmem>>, vector<1x4x4xf32>
    %152 = vector.shape_cast %151 : vector<1x4x4xf32> to vector<4x4xf32>
    %cst_120 = arith.constant dense<0.000000e+00> : vector<4x512xf32>
    %153 = tpu.matmul %152, %150, %cst_120 {dimension_numbers = #tpu.dot_dimension_numbers<[1], [0], [0], [1], [0, 0, 1, 1], [], []>} : vector<4x4xf32>, vector<4x512xf32>, vector<4x512xf32> -> vector<4x512xf32>
    %154 = arith.addf %144, %153 : vector<4x512xf32>
    %c0_121 = arith.constant 0 : index
    %c127 = arith.constant 127 : index
    %155 = vector.load %arg9[%c0_121, %c127] : memref<4x768xf32, #tpu.memory_space<vmem>>, vector<4x512xf32>
    %c4_122 = arith.constant 4 : index
    %c0_123 = arith.constant 0 : index
    %156 = vector.load %arg7[%c4_122, %c0_123] : memref<6x512xf32, #tpu.memory_space<vmem>>, vector<1x512xf32>
    %157 = vector.broadcast %156 : vector<1x512xf32> to vector<4x512xf32>
    %158 = arith.mulf %155, %157 : vector<4x512xf32>
    %c12 = arith.constant 12 : index
    %c0_124 = arith.constant 0 : index
    %c0_125 = arith.constant 0 : index
    %159 = vector.load %arg5[%c12, %c0_124, %c0_125] : memref<27x4x4xf32, #tpu.memory_space<vmem>>, vector<1x4x4xf32>
    %160 = vector.shape_cast %159 : vector<1x4x4xf32> to vector<4x4xf32>
    %cst_126 = arith.constant dense<0.000000e+00> : vector<4x512xf32>
    %161 = tpu.matmul %160, %158, %cst_126 {dimension_numbers = #tpu.dot_dimension_numbers<[1], [0], [0], [1], [0, 0, 1, 1], [], []>} : vector<4x4xf32>, vector<4x512xf32>, vector<4x512xf32> -> vector<4x512xf32>
    %162 = arith.addf %154, %161 : vector<4x512xf32>
    %c0_127 = arith.constant 0 : index
    %c128_128 = arith.constant 128 : index
    %163 = vector.load %arg9[%c0_127, %c128_128] : memref<4x768xf32, #tpu.memory_space<vmem>>, vector<4x512xf32>
    %c13 = arith.constant 13 : index
    %c0_129 = arith.constant 0 : index
    %c0_130 = arith.constant 0 : index
    %164 = vector.load %arg5[%c13, %c0_129, %c0_130] : memref<27x4x4xf32, #tpu.memory_space<vmem>>, vector<1x4x4xf32>
    %165 = vector.shape_cast %164 : vector<1x4x4xf32> to vector<4x4xf32>
    %cst_131 = arith.constant dense<0.000000e+00> : vector<4x512xf32>
    %166 = tpu.matmul %165, %163, %cst_131 {dimension_numbers = #tpu.dot_dimension_numbers<[1], [0], [0], [1], [0, 0, 1, 1], [], []>} : vector<4x4xf32>, vector<4x512xf32>, vector<4x512xf32> -> vector<4x512xf32>
    %167 = arith.addf %162, %166 : vector<4x512xf32>
    %c0_132 = arith.constant 0 : index
    %c129 = arith.constant 129 : index
    %168 = vector.load %arg9[%c0_132, %c129] : memref<4x768xf32, #tpu.memory_space<vmem>>, vector<4x512xf32>
    %c5_133 = arith.constant 5 : index
    %c0_134 = arith.constant 0 : index
    %169 = vector.load %arg7[%c5_133, %c0_134] : memref<6x512xf32, #tpu.memory_space<vmem>>, vector<1x512xf32>
    %170 = vector.broadcast %169 : vector<1x512xf32> to vector<4x512xf32>
    %171 = arith.mulf %168, %170 : vector<4x512xf32>
    %c14 = arith.constant 14 : index
    %c0_135 = arith.constant 0 : index
    %c0_136 = arith.constant 0 : index
    %172 = vector.load %arg5[%c14, %c0_135, %c0_136] : memref<27x4x4xf32, #tpu.memory_space<vmem>>, vector<1x4x4xf32>
    %173 = vector.shape_cast %172 : vector<1x4x4xf32> to vector<4x4xf32>
    %cst_137 = arith.constant dense<0.000000e+00> : vector<4x512xf32>
    %174 = tpu.matmul %173, %171, %cst_137 {dimension_numbers = #tpu.dot_dimension_numbers<[1], [0], [0], [1], [0, 0, 1, 1], [], []>} : vector<4x4xf32>, vector<4x512xf32>, vector<4x512xf32> -> vector<4x512xf32>
    %175 = arith.addf %167, %174 : vector<4x512xf32>
    %c0_138 = arith.constant 0 : index
    %c135 = arith.constant 135 : index
    %176 = vector.load %arg9[%c0_138, %c135] : memref<4x768xf32, #tpu.memory_space<vmem>>, vector<4x512xf32>
    %c3_139 = arith.constant 3 : index
    %c0_140 = arith.constant 0 : index
    %177 = vector.load %arg7[%c3_139, %c0_140] : memref<6x512xf32, #tpu.memory_space<vmem>>, vector<1x512xf32>
    %c4_141 = arith.constant 4 : index
    %c0_142 = arith.constant 0 : index
    %178 = vector.load %arg7[%c4_141, %c0_142] : memref<6x512xf32, #tpu.memory_space<vmem>>, vector<1x512xf32>
    %179 = arith.mulf %177, %178 : vector<1x512xf32>
    %180 = vector.broadcast %179 : vector<1x512xf32> to vector<4x512xf32>
    %181 = arith.mulf %176, %180 : vector<4x512xf32>
    %c15 = arith.constant 15 : index
    %c0_143 = arith.constant 0 : index
    %c0_144 = arith.constant 0 : index
    %182 = vector.load %arg5[%c15, %c0_143, %c0_144] : memref<27x4x4xf32, #tpu.memory_space<vmem>>, vector<1x4x4xf32>
    %183 = vector.shape_cast %182 : vector<1x4x4xf32> to vector<4x4xf32>
    %cst_145 = arith.constant dense<0.000000e+00> : vector<4x512xf32>
    %184 = tpu.matmul %183, %181, %cst_145 {dimension_numbers = #tpu.dot_dimension_numbers<[1], [0], [0], [1], [0, 0, 1, 1], [], []>} : vector<4x4xf32>, vector<4x512xf32>, vector<4x512xf32> -> vector<4x512xf32>
    %185 = arith.addf %175, %184 : vector<4x512xf32>
    %c0_146 = arith.constant 0 : index
    %c136 = arith.constant 136 : index
    %186 = vector.load %arg9[%c0_146, %c136] : memref<4x768xf32, #tpu.memory_space<vmem>>, vector<4x512xf32>
    %c3_147 = arith.constant 3 : index
    %c0_148 = arith.constant 0 : index
    %187 = vector.load %arg7[%c3_147, %c0_148] : memref<6x512xf32, #tpu.memory_space<vmem>>, vector<1x512xf32>
    %188 = vector.broadcast %187 : vector<1x512xf32> to vector<4x512xf32>
    %189 = arith.mulf %186, %188 : vector<4x512xf32>
    %c16 = arith.constant 16 : index
    %c0_149 = arith.constant 0 : index
    %c0_150 = arith.constant 0 : index
    %190 = vector.load %arg5[%c16, %c0_149, %c0_150] : memref<27x4x4xf32, #tpu.memory_space<vmem>>, vector<1x4x4xf32>
    %191 = vector.shape_cast %190 : vector<1x4x4xf32> to vector<4x4xf32>
    %cst_151 = arith.constant dense<0.000000e+00> : vector<4x512xf32>
    %192 = tpu.matmul %191, %189, %cst_151 {dimension_numbers = #tpu.dot_dimension_numbers<[1], [0], [0], [1], [0, 0, 1, 1], [], []>} : vector<4x4xf32>, vector<4x512xf32>, vector<4x512xf32> -> vector<4x512xf32>
    %193 = arith.addf %185, %192 : vector<4x512xf32>
    %c0_152 = arith.constant 0 : index
    %c137 = arith.constant 137 : index
    %194 = vector.load %arg9[%c0_152, %c137] : memref<4x768xf32, #tpu.memory_space<vmem>>, vector<4x512xf32>
    %c3_153 = arith.constant 3 : index
    %c0_154 = arith.constant 0 : index
    %195 = vector.load %arg7[%c3_153, %c0_154] : memref<6x512xf32, #tpu.memory_space<vmem>>, vector<1x512xf32>
    %c5_155 = arith.constant 5 : index
    %c0_156 = arith.constant 0 : index
    %196 = vector.load %arg7[%c5_155, %c0_156] : memref<6x512xf32, #tpu.memory_space<vmem>>, vector<1x512xf32>
    %197 = arith.mulf %195, %196 : vector<1x512xf32>
    %198 = vector.broadcast %197 : vector<1x512xf32> to vector<4x512xf32>
    %199 = arith.mulf %194, %198 : vector<4x512xf32>
    %c17 = arith.constant 17 : index
    %c0_157 = arith.constant 0 : index
    %c0_158 = arith.constant 0 : index
    %200 = vector.load %arg5[%c17, %c0_157, %c0_158] : memref<27x4x4xf32, #tpu.memory_space<vmem>>, vector<1x4x4xf32>
    %201 = vector.shape_cast %200 : vector<1x4x4xf32> to vector<4x4xf32>
    %cst_159 = arith.constant dense<0.000000e+00> : vector<4x512xf32>
    %202 = tpu.matmul %201, %199, %cst_159 {dimension_numbers = #tpu.dot_dimension_numbers<[1], [0], [0], [1], [0, 0, 1, 1], [], []>} : vector<4x4xf32>, vector<4x512xf32>, vector<4x512xf32> -> vector<4x512xf32>
    %203 = arith.addf %193, %202 : vector<4x512xf32>
    %c0_160 = arith.constant 0 : index
    %c183 = arith.constant 183 : index
    %204 = vector.load %arg9[%c0_160, %c183] : memref<4x768xf32, #tpu.memory_space<vmem>>, vector<4x512xf32>
    %c1_161 = arith.constant 1 : index
    %c0_162 = arith.constant 0 : index
    %205 = vector.load %arg7[%c1_161, %c0_162] : memref<6x512xf32, #tpu.memory_space<vmem>>, vector<1x512xf32>
    %c2_163 = arith.constant 2 : index
    %c0_164 = arith.constant 0 : index
    %206 = vector.load %arg7[%c2_163, %c0_164] : memref<6x512xf32, #tpu.memory_space<vmem>>, vector<1x512xf32>
    %207 = arith.mulf %205, %206 : vector<1x512xf32>
    %c4_165 = arith.constant 4 : index
    %c0_166 = arith.constant 0 : index
    %208 = vector.load %arg7[%c4_165, %c0_166] : memref<6x512xf32, #tpu.memory_space<vmem>>, vector<1x512xf32>
    %209 = arith.mulf %207, %208 : vector<1x512xf32>
    %210 = vector.broadcast %209 : vector<1x512xf32> to vector<4x512xf32>
    %211 = arith.mulf %204, %210 : vector<4x512xf32>
    %c18 = arith.constant 18 : index
    %c0_167 = arith.constant 0 : index
    %c0_168 = arith.constant 0 : index
    %212 = vector.load %arg5[%c18, %c0_167, %c0_168] : memref<27x4x4xf32, #tpu.memory_space<vmem>>, vector<1x4x4xf32>
    %213 = vector.shape_cast %212 : vector<1x4x4xf32> to vector<4x4xf32>
    %cst_169 = arith.constant dense<0.000000e+00> : vector<4x512xf32>
    %214 = tpu.matmul %213, %211, %cst_169 {dimension_numbers = #tpu.dot_dimension_numbers<[1], [0], [0], [1], [0, 0, 1, 1], [], []>} : vector<4x4xf32>, vector<4x512xf32>, vector<4x512xf32> -> vector<4x512xf32>
    %215 = arith.addf %203, %214 : vector<4x512xf32>
    %c0_170 = arith.constant 0 : index
    %c184 = arith.constant 184 : index
    %216 = vector.load %arg9[%c0_170, %c184] : memref<4x768xf32, #tpu.memory_space<vmem>>, vector<4x512xf32>
    %c1_171 = arith.constant 1 : index
    %c0_172 = arith.constant 0 : index
    %217 = vector.load %arg7[%c1_171, %c0_172] : memref<6x512xf32, #tpu.memory_space<vmem>>, vector<1x512xf32>
    %c2_173 = arith.constant 2 : index
    %c0_174 = arith.constant 0 : index
    %218 = vector.load %arg7[%c2_173, %c0_174] : memref<6x512xf32, #tpu.memory_space<vmem>>, vector<1x512xf32>
    %219 = arith.mulf %217, %218 : vector<1x512xf32>
    %220 = vector.broadcast %219 : vector<1x512xf32> to vector<4x512xf32>
    %221 = arith.mulf %216, %220 : vector<4x512xf32>
    %c19 = arith.constant 19 : index
    %c0_175 = arith.constant 0 : index
    %c0_176 = arith.constant 0 : index
    %222 = vector.load %arg5[%c19, %c0_175, %c0_176] : memref<27x4x4xf32, #tpu.memory_space<vmem>>, vector<1x4x4xf32>
    %223 = vector.shape_cast %222 : vector<1x4x4xf32> to vector<4x4xf32>
    %cst_177 = arith.constant dense<0.000000e+00> : vector<4x512xf32>
    %224 = tpu.matmul %223, %221, %cst_177 {dimension_numbers = #tpu.dot_dimension_numbers<[1], [0], [0], [1], [0, 0, 1, 1], [], []>} : vector<4x4xf32>, vector<4x512xf32>, vector<4x512xf32> -> vector<4x512xf32>
    %225 = arith.addf %215, %224 : vector<4x512xf32>
    %c0_178 = arith.constant 0 : index
    %c185 = arith.constant 185 : index
    %226 = vector.load %arg9[%c0_178, %c185] : memref<4x768xf32, #tpu.memory_space<vmem>>, vector<4x512xf32>
    %c1_179 = arith.constant 1 : index
    %c0_180 = arith.constant 0 : index
    %227 = vector.load %arg7[%c1_179, %c0_180] : memref<6x512xf32, #tpu.memory_space<vmem>>, vector<1x512xf32>
    %c2_181 = arith.constant 2 : index
    %c0_182 = arith.constant 0 : index
    %228 = vector.load %arg7[%c2_181, %c0_182] : memref<6x512xf32, #tpu.memory_space<vmem>>, vector<1x512xf32>
    %229 = arith.mulf %227, %228 : vector<1x512xf32>
    %c5_183 = arith.constant 5 : index
    %c0_184 = arith.constant 0 : index
    %230 = vector.load %arg7[%c5_183, %c0_184] : memref<6x512xf32, #tpu.memory_space<vmem>>, vector<1x512xf32>
    %231 = arith.mulf %229, %230 : vector<1x512xf32>
    %232 = vector.broadcast %231 : vector<1x512xf32> to vector<4x512xf32>
    %233 = arith.mulf %226, %232 : vector<4x512xf32>
    %c20 = arith.constant 20 : index
    %c0_185 = arith.constant 0 : index
    %c0_186 = arith.constant 0 : index
    %234 = vector.load %arg5[%c20, %c0_185, %c0_186] : memref<27x4x4xf32, #tpu.memory_space<vmem>>, vector<1x4x4xf32>
    %235 = vector.shape_cast %234 : vector<1x4x4xf32> to vector<4x4xf32>
    %cst_187 = arith.constant dense<0.000000e+00> : vector<4x512xf32>
    %236 = tpu.matmul %235, %233, %cst_187 {dimension_numbers = #tpu.dot_dimension_numbers<[1], [0], [0], [1], [0, 0, 1, 1], [], []>} : vector<4x4xf32>, vector<4x512xf32>, vector<4x512xf32> -> vector<4x512xf32>
    %237 = arith.addf %225, %236 : vector<4x512xf32>
    %c0_188 = arith.constant 0 : index
    %c191 = arith.constant 191 : index
    %238 = vector.load %arg9[%c0_188, %c191] : memref<4x768xf32, #tpu.memory_space<vmem>>, vector<4x512xf32>
    %c1_189 = arith.constant 1 : index
    %c0_190 = arith.constant 0 : index
    %239 = vector.load %arg7[%c1_189, %c0_190] : memref<6x512xf32, #tpu.memory_space<vmem>>, vector<1x512xf32>
    %c4_191 = arith.constant 4 : index
    %c0_192 = arith.constant 0 : index
    %240 = vector.load %arg7[%c4_191, %c0_192] : memref<6x512xf32, #tpu.memory_space<vmem>>, vector<1x512xf32>
    %241 = arith.mulf %239, %240 : vector<1x512xf32>
    %242 = vector.broadcast %241 : vector<1x512xf32> to vector<4x512xf32>
    %243 = arith.mulf %238, %242 : vector<4x512xf32>
    %c21 = arith.constant 21 : index
    %c0_193 = arith.constant 0 : index
    %c0_194 = arith.constant 0 : index
    %244 = vector.load %arg5[%c21, %c0_193, %c0_194] : memref<27x4x4xf32, #tpu.memory_space<vmem>>, vector<1x4x4xf32>
    %245 = vector.shape_cast %244 : vector<1x4x4xf32> to vector<4x4xf32>
    %cst_195 = arith.constant dense<0.000000e+00> : vector<4x512xf32>
    %246 = tpu.matmul %245, %243, %cst_195 {dimension_numbers = #tpu.dot_dimension_numbers<[1], [0], [0], [1], [0, 0, 1, 1], [], []>} : vector<4x4xf32>, vector<4x512xf32>, vector<4x512xf32> -> vector<4x512xf32>
    %247 = arith.addf %237, %246 : vector<4x512xf32>
    %c0_196 = arith.constant 0 : index
    %c192 = arith.constant 192 : index
    %248 = vector.load %arg9[%c0_196, %c192] : memref<4x768xf32, #tpu.memory_space<vmem>>, vector<4x512xf32>
    %c1_197 = arith.constant 1 : index
    %c0_198 = arith.constant 0 : index
    %249 = vector.load %arg7[%c1_197, %c0_198] : memref<6x512xf32, #tpu.memory_space<vmem>>, vector<1x512xf32>
    %250 = vector.broadcast %249 : vector<1x512xf32> to vector<4x512xf32>
    %251 = arith.mulf %248, %250 : vector<4x512xf32>
    %c22 = arith.constant 22 : index
    %c0_199 = arith.constant 0 : index
    %c0_200 = arith.constant 0 : index
    %252 = vector.load %arg5[%c22, %c0_199, %c0_200] : memref<27x4x4xf32, #tpu.memory_space<vmem>>, vector<1x4x4xf32>
    %253 = vector.shape_cast %252 : vector<1x4x4xf32> to vector<4x4xf32>
    %cst_201 = arith.constant dense<0.000000e+00> : vector<4x512xf32>
    %254 = tpu.matmul %253, %251, %cst_201 {dimension_numbers = #tpu.dot_dimension_numbers<[1], [0], [0], [1], [0, 0, 1, 1], [], []>} : vector<4x4xf32>, vector<4x512xf32>, vector<4x512xf32> -> vector<4x512xf32>
    %255 = arith.addf %247, %254 : vector<4x512xf32>
    %c0_202 = arith.constant 0 : index
    %c193 = arith.constant 193 : index
    %256 = vector.load %arg9[%c0_202, %c193] : memref<4x768xf32, #tpu.memory_space<vmem>>, vector<4x512xf32>
    %c1_203 = arith.constant 1 : index
    %c0_204 = arith.constant 0 : index
    %257 = vector.load %arg7[%c1_203, %c0_204] : memref<6x512xf32, #tpu.memory_space<vmem>>, vector<1x512xf32>
    %c5_205 = arith.constant 5 : index
    %c0_206 = arith.constant 0 : index
    %258 = vector.load %arg7[%c5_205, %c0_206] : memref<6x512xf32, #tpu.memory_space<vmem>>, vector<1x512xf32>
    %259 = arith.mulf %257, %258 : vector<1x512xf32>
    %260 = vector.broadcast %259 : vector<1x512xf32> to vector<4x512xf32>
    %261 = arith.mulf %256, %260 : vector<4x512xf32>
    %c23 = arith.constant 23 : index
    %c0_207 = arith.constant 0 : index
    %c0_208 = arith.constant 0 : index
    %262 = vector.load %arg5[%c23, %c0_207, %c0_208] : memref<27x4x4xf32, #tpu.memory_space<vmem>>, vector<1x4x4xf32>
    %263 = vector.shape_cast %262 : vector<1x4x4xf32> to vector<4x4xf32>
    %cst_209 = arith.constant dense<0.000000e+00> : vector<4x512xf32>
    %264 = tpu.matmul %263, %261, %cst_209 {dimension_numbers = #tpu.dot_dimension_numbers<[1], [0], [0], [1], [0, 0, 1, 1], [], []>} : vector<4x4xf32>, vector<4x512xf32>, vector<4x512xf32> -> vector<4x512xf32>
    %265 = arith.addf %255, %264 : vector<4x512xf32>
    %c0_210 = arith.constant 0 : index
    %c199 = arith.constant 199 : index
    %266 = vector.load %arg9[%c0_210, %c199] : memref<4x768xf32, #tpu.memory_space<vmem>>, vector<4x512xf32>
    %c1_211 = arith.constant 1 : index
    %c0_212 = arith.constant 0 : index
    %267 = vector.load %arg7[%c1_211, %c0_212] : memref<6x512xf32, #tpu.memory_space<vmem>>, vector<1x512xf32>
    %c3_213 = arith.constant 3 : index
    %c0_214 = arith.constant 0 : index
    %268 = vector.load %arg7[%c3_213, %c0_214] : memref<6x512xf32, #tpu.memory_space<vmem>>, vector<1x512xf32>
    %269 = arith.mulf %267, %268 : vector<1x512xf32>
    %c4_215 = arith.constant 4 : index
    %c0_216 = arith.constant 0 : index
    %270 = vector.load %arg7[%c4_215, %c0_216] : memref<6x512xf32, #tpu.memory_space<vmem>>, vector<1x512xf32>
    %271 = arith.mulf %269, %270 : vector<1x512xf32>
    %272 = vector.broadcast %271 : vector<1x512xf32> to vector<4x512xf32>
    %273 = arith.mulf %266, %272 : vector<4x512xf32>
    %c24 = arith.constant 24 : index
    %c0_217 = arith.constant 0 : index
    %c0_218 = arith.constant 0 : index
    %274 = vector.load %arg5[%c24, %c0_217, %c0_218] : memref<27x4x4xf32, #tpu.memory_space<vmem>>, vector<1x4x4xf32>
    %275 = vector.shape_cast %274 : vector<1x4x4xf32> to vector<4x4xf32>
    %cst_219 = arith.constant dense<0.000000e+00> : vector<4x512xf32>
    %276 = tpu.matmul %275, %273, %cst_219 {dimension_numbers = #tpu.dot_dimension_numbers<[1], [0], [0], [1], [0, 0, 1, 1], [], []>} : vector<4x4xf32>, vector<4x512xf32>, vector<4x512xf32> -> vector<4x512xf32>
    %277 = arith.addf %265, %276 : vector<4x512xf32>
    %c0_220 = arith.constant 0 : index
    %c200 = arith.constant 200 : index
    %278 = vector.load %arg9[%c0_220, %c200] : memref<4x768xf32, #tpu.memory_space<vmem>>, vector<4x512xf32>
    %c1_221 = arith.constant 1 : index
    %c0_222 = arith.constant 0 : index
    %279 = vector.load %arg7[%c1_221, %c0_222] : memref<6x512xf32, #tpu.memory_space<vmem>>, vector<1x512xf32>
    %c3_223 = arith.constant 3 : index
    %c0_224 = arith.constant 0 : index
    %280 = vector.load %arg7[%c3_223, %c0_224] : memref<6x512xf32, #tpu.memory_space<vmem>>, vector<1x512xf32>
    %281 = arith.mulf %279, %280 : vector<1x512xf32>
    %282 = vector.broadcast %281 : vector<1x512xf32> to vector<4x512xf32>
    %283 = arith.mulf %278, %282 : vector<4x512xf32>
    %c25 = arith.constant 25 : index
    %c0_225 = arith.constant 0 : index
    %c0_226 = arith.constant 0 : index
    %284 = vector.load %arg5[%c25, %c0_225, %c0_226] : memref<27x4x4xf32, #tpu.memory_space<vmem>>, vector<1x4x4xf32>
    %285 = vector.shape_cast %284 : vector<1x4x4xf32> to vector<4x4xf32>
    %cst_227 = arith.constant dense<0.000000e+00> : vector<4x512xf32>
    %286 = tpu.matmul %285, %283, %cst_227 {dimension_numbers = #tpu.dot_dimension_numbers<[1], [0], [0], [1], [0, 0, 1, 1], [], []>} : vector<4x4xf32>, vector<4x512xf32>, vector<4x512xf32> -> vector<4x512xf32>
    %287 = arith.addf %277, %286 : vector<4x512xf32>
    %c0_228 = arith.constant 0 : index
    %c201 = arith.constant 201 : index
    %288 = vector.load %arg9[%c0_228, %c201] : memref<4x768xf32, #tpu.memory_space<vmem>>, vector<4x512xf32>
    %c1_229 = arith.constant 1 : index
    %c0_230 = arith.constant 0 : index
    %289 = vector.load %arg7[%c1_229, %c0_230] : memref<6x512xf32, #tpu.memory_space<vmem>>, vector<1x512xf32>
    %c3_231 = arith.constant 3 : index
    %c0_232 = arith.constant 0 : index
    %290 = vector.load %arg7[%c3_231, %c0_232] : memref<6x512xf32, #tpu.memory_space<vmem>>, vector<1x512xf32>
    %291 = arith.mulf %289, %290 : vector<1x512xf32>
    %c5_233 = arith.constant 5 : index
    %c0_234 = arith.constant 0 : index
    %292 = vector.load %arg7[%c5_233, %c0_234] : memref<6x512xf32, #tpu.memory_space<vmem>>, vector<1x512xf32>
    %293 = arith.mulf %291, %292 : vector<1x512xf32>
    %294 = vector.broadcast %293 : vector<1x512xf32> to vector<4x512xf32>
    %295 = arith.mulf %288, %294 : vector<4x512xf32>
    %c26 = arith.constant 26 : index
    %c0_235 = arith.constant 0 : index
    %c0_236 = arith.constant 0 : index
    %296 = vector.load %arg5[%c26, %c0_235, %c0_236] : memref<27x4x4xf32, #tpu.memory_space<vmem>>, vector<1x4x4xf32>
    %297 = vector.shape_cast %296 : vector<1x4x4xf32> to vector<4x4xf32>
    %cst_237 = arith.constant dense<0.000000e+00> : vector<4x512xf32>
    %298 = tpu.matmul %297, %295, %cst_237 {dimension_numbers = #tpu.dot_dimension_numbers<[1], [0], [0], [1], [0, 0, 1, 1], [], []>} : vector<4x4xf32>, vector<4x512xf32>, vector<4x512xf32> -> vector<4x512xf32>
    %299 = arith.addf %287, %298 : vector<4x512xf32>
    %cst_238 = arith.constant dense<0.000000e+00> : vector<4xf32>
    %300 = vector.multi_reduction <add>, %299, %cst_238 [1] : vector<4x512xf32> to vector<4xf32>
    %301 = vector.shape_cast %300 : vector<4xf32> to vector<4x1xf32>
    %cst_239 = arith.constant 5.120000e+02 : f32
    %302 = vector.broadcast %cst_239 : f32 to vector<4x1xf32>
    %303 = arith.divf %301, %302 : vector<4x1xf32>
    %304 = vector.broadcast %303 : vector<4x1xf32> to vector<4x512xf32>
    %305 = arith.subf %299, %304 : vector<4x512xf32>
    %306 = arith.mulf %305, %305 : vector<4x512xf32>
    %cst_240 = arith.constant dense<0.000000e+00> : vector<4xf32>
    %307 = vector.multi_reduction <add>, %306, %cst_240 [1] : vector<4x512xf32> to vector<4xf32>
    %308 = vector.shape_cast %307 : vector<4xf32> to vector<4x1xf32>
    %cst_241 = arith.constant 5.120000e+02 : f32
    %309 = vector.broadcast %cst_241 : f32 to vector<4x1xf32>
    %310 = arith.divf %308, %309 : vector<4x1xf32>
    %cst_242 = arith.constant 9.99999974E-6 : f32
    %311 = vector.broadcast %cst_242 : f32 to vector<4x1xf32>
    %312 = arith.addf %310, %311 : vector<4x1xf32>
    %313 = math.rsqrt %312 : vector<4x1xf32>
    %314 = vector.broadcast %313 : vector<4x1xf32> to vector<4x512xf32>
    %315 = arith.mulf %305, %314 : vector<4x512xf32>
    %cst_243 = arith.constant 0.000000e+00 : f32
    %316 = vector.broadcast %cst_243 : f32 to vector<4x512xf32>
    %317 = arith.maximumf %315, %316 : vector<4x512xf32>
    %c0_244 = arith.constant 0 : index
    %c0_245 = arith.constant 0 : index
    %318 = vector.load %arg6[%c0_244, %c0_245] : memref<8x4xf32, #tpu.memory_space<vmem>>, vector<8x4xf32>
    %cst_246 = arith.constant dense<0.000000e+00> : vector<8x512xf32>
    %319 = tpu.matmul %318, %317, %cst_246 {dimension_numbers = #tpu.dot_dimension_numbers<[1], [0], [0], [1], [0, 0, 1, 1], [], []>} : vector<8x4xf32>, vector<4x512xf32>, vector<8x512xf32> -> vector<8x512xf32>
    %cst_247 = arith.constant dense<0.000000e+00> : vector<8xf32>
    %320 = vector.multi_reduction <add>, %319, %cst_247 [1] : vector<8x512xf32> to vector<8xf32>
    %321 = vector.shape_cast %320 : vector<8xf32> to vector<8x1xf32>
    %cst_248 = arith.constant 5.120000e+02 : f32
    %322 = vector.broadcast %cst_248 : f32 to vector<8x1xf32>
    %323 = arith.divf %321, %322 : vector<8x1xf32>
    %324 = vector.broadcast %323 : vector<8x1xf32> to vector<8x512xf32>
    %325 = arith.subf %319, %324 : vector<8x512xf32>
    %326 = arith.mulf %325, %325 : vector<8x512xf32>
    %cst_249 = arith.constant dense<0.000000e+00> : vector<8xf32>
    %327 = vector.multi_reduction <add>, %326, %cst_249 [1] : vector<8x512xf32> to vector<8xf32>
    %328 = vector.shape_cast %327 : vector<8xf32> to vector<8x1xf32>
    %cst_250 = arith.constant 5.120000e+02 : f32
    %329 = vector.broadcast %cst_250 : f32 to vector<8x1xf32>
    %330 = arith.divf %328, %329 : vector<8x1xf32>
    %cst_251 = arith.constant 9.99999974E-6 : f32
    %331 = vector.broadcast %cst_251 : f32 to vector<8x1xf32>
    %332 = arith.addf %330, %331 : vector<8x1xf32>
    %333 = math.rsqrt %332 : vector<8x1xf32>
    %334 = vector.broadcast %333 : vector<8x1xf32> to vector<8x512xf32>
    %335 = arith.mulf %325, %334 : vector<8x512xf32>
    %336 = arith.addf %335, %6 : vector<8x512xf32>
    %cst_252 = arith.constant 0.000000e+00 : f32
    %337 = vector.broadcast %cst_252 : f32 to vector<8x512xf32>
    %338 = arith.maximumf %336, %337 : vector<8x512xf32>
    %c0_253 = arith.constant 0 : index
    %c0_254 = arith.constant 0 : index
    %c0_255 = arith.constant 0 : index
    %339 = vector.load %arg8[%c0_253, %c0_254, %c0_255] : memref<1x8x512xf32, #tpu.memory_space<vmem>>, vector<1x8x512xf32>
    %340 = vector.shape_cast %339 : vector<1x8x512xf32> to vector<8x512xf32>
    %341 = vector.shape_cast %338 : vector<8x512xf32> to vector<1x8x512xf32>
    tpu.vector_store %arg8[%c0_253, %c0_254, %c0_255], %341 {strides = array<i32>} : memref<1x8x512xf32, #tpu.memory_space<vmem>>, vector<1x8x512xf32>,
    return
  }
  func.func @transform_0(%arg0: i32) -> (i32, i32, i32) {
    %c0_i32 = arith.constant 0 : i32
    %c0_i32_0 = arith.constant 0 : i32
    %c0_i32_1 = arith.constant 0 : i32
    return %arg0, %c0_i32, %c0_i32_0 : i32, i32, i32
  }
  func.func @transform_1(%arg0: i32) -> (i32, i32) {
    %c0_i32 = arith.constant 0 : i32
    %c0_i32_0 = arith.constant 0 : i32
    %c0_i32_1 = arith.constant 0 : i32
    return %c0_i32, %c0_i32_0 : i32, i32
  }
  func.func @transform_2(%arg0: i32) -> (i32, i32) {
    %c0_i32 = arith.constant 0 : i32
    %c0_i32_0 = arith.constant 0 : i32
    %c0_i32_1 = arith.constant 0 : i32
    return %c0_i32, %c0_i32_0 : i32, i32
  }
  func.func @transform_3(%arg0: i32) -> (i32, i32) {
    %c0_i32 = arith.constant 0 : i32
    %c0_i32_0 = arith.constant 0 : i32
    %c0_i32_1 = arith.constant 0 : i32
    return %c0_i32, %c0_i32_0 : i32, i32
  }
  func.func @transform_4(%arg0: i32) -> (i32, i32, i32) {
    %c0_i32 = arith.constant 0 : i32
    %c0_i32_0 = arith.constant 0 : i32
    %c0_i32_1 = arith.constant 0 : i32
    %c0_i32_2 = arith.constant 0 : i32
    return %c0_i32, %c0_i32_0, %c0_i32_1 : i32, i32, i32
  }
  func.func @transform_5(%arg0: i32) -> (i32, i32) {
    %c0_i32 = arith.constant 0 : i32
    %c0_i32_0 = arith.constant 0 : i32
    %c0_i32_1 = arith.constant 0 : i32
    return %c0_i32, %c0_i32_0 : i32, i32
  }
  func.func @transform_6(%arg0: i32) -> (i32, i32) {
    %c0_i32 = arith.constant 0 : i32
    %c0_i32_0 = arith.constant 0 : i32
    %c0_i32_1 = arith.constant 0 : i32
    return %c0_i32, %c0_i32_0 : i32, i32
  }
  func.func @transform_7(%arg0: i32) -> (i32, i32, i32) {
    %c0_i32 = arith.constant 0 : i32
    %c0_i32_0 = arith.constant 0 : i32
    %c0_i32_1 = arith.constant 0 : i32
    return %arg0, %c0_i32, %c0_i32_0 : i32, i32, i32
  }
}

</mosaic_0001>

<llo_original>
// kernel: residual_block_down_forward.1
$region0: #{residual_block_down_forward.1}
  #allocation0 [shape = 'u32[]', space=smem, size = 0x4, offset = 0x4, fixed_abs, tag = 'smem constant byte address 0x4 - core index']
  #allocation1 [shape = 'u32[144,128]{1,0:T(1,128)}', space=vmem, size = 0x12000, scoped, tag = 'internal scratch']
  #allocation2 [shape = 'f32[4,768]{1,0:T(4,128)}', space=vmem, size = 0x3000, scoped, tag = 'scratch operand']
  %s0 = inlined_call_operand.vmem [shape: f32[2,32,512], index: 0, kind: input, shape index: {}]
  %s1 = inlined_call_operand.vmem [shape: f32[8,32], index: 1, kind: input, shape index: {}]
  %s2 = inlined_call_operand.vmem [shape: f32[8,1], index: 2, kind: input, shape index: {}]
  %s3 = inlined_call_operand.vmem [shape: f32[4,8], index: 3, kind: input, shape index: {}]
  %s4 = inlined_call_operand.vmem [shape: f32[27,4,4], index: 4, kind: input, shape index: {}]
  %s5 = inlined_call_operand.vmem [shape: f32[8,4], index: 5, kind: input, shape index: {}]
  %s6 = inlined_call_operand.vmem [shape: f32[6,512], index: 6, kind: input, shape index: {}]
  %s7 = inlined_call_operand.vmem [shape: f32[2,8,512], index: 7, kind: output, shape index: {}]
  %s8 = sld [smem:[#allocation0]]
  $region61: #{residual_block_down_forward.1} parent=0
    _
  %s10 = ssub.s32 1, %s8
  %s11 = scalar_select 0, %s10, %s8
  loop: start=0, step=1, limit=4
  $region2: #{residual_block_down_forward.1} parent=0 // loop_pre_header
    _
  $region3: #{residual_block_down_forward.1} parent=0 // loop_header
    %s13 = sphi 0, %s17
    %p14 = scmp.ge.s32.totalorder %s13, 4
    %s23 = sphi 0, %s25
    %s26 = sphi 0, %s23
    %s27 = sphi 0, %s26
    %s43 = sphi 0, %s27
    %s47 = sphi 0, %s47
    %s49 = sphi 0, %s47
    %s50 = sphi 0, %s49
    %s64 = sphi 0, %s50
    %s68 = sphi 0, %s68
    %s70 = sphi 0, %s68
    %s71 = sphi 0, %s70
    %s85 = sphi 0, %s71
    %s89 = sphi 0, %s89
    %s91 = sphi 0, %s89
    %s92 = sphi 0, %s91
    %s106 = sphi 0, %s92
    %s110 = sphi 0, %s110
    %s112 = sphi 0, %s110
    %s113 = sphi 0, %s112
    %s127 = sphi 0, %s113
    %s131 = sphi 0, %s131
    %s133 = sphi 0, %s131
    %s134 = sphi 0, %s133
    %s148 = sphi 0, %s134
    %s152 = sphi 0, %s152
    %s154 = sphi 0, %s152
    %s155 = sphi 0, %s154
    %s169 = sphi 0, %s155
    %s175 = sphi 0, %s177
    %s178 = sphi 0, %s175
    %s179 = sphi 0, %s178
    %s195 = sphi 0, %s179
  $region4: #{residual_block_down_forward.1} parent=0 // loop_header_branch
    %16 = sbr.rel (%p14) target = $region8
  $region5: #{residual_block_down_forward.1} parent=0 // loop_body
    %s18 = ssub.s32 %s13, 1
    %s19 = ssub.s32 %s13, 2
    %s20 = sadd.s32 %s13, 1
    %s21 = ssub.s32 %s13, %s20
    %p22 = scmp.eq.s32.totalorder %s21, 0
    %s24 = sadd.s32 %s23, 1
    %s25 = scalar_select %p22, %s23, %s24
    %p28 = pneg %p22
    %p29 = scmp.eq.s32.totalorder %s13, 1
    %p30 = por %p28, %p29
    %p31 = scmp.ne.s32.totalorder %s23, %s26
    %p32 = scmp.eq.s32.totalorder %s13, 0
    %p33 = por %p31, %p32
    %p34 = scmp.ne.s32.totalorder %s23, %s26
    %p35 = scmp.eq.s32.totalorder %s18, 1
    %p36 = por %p34, %p35
    %p37 = scmp.ne.s32.totalorder %s26, %s27
    %p38 = scmp.eq.s32.totalorder %s18, 0
    %p39 = por %p37, %p38
    %p40 = scmp.ne.s32.totalorder %s26, %s27
    %p41 = scmp.eq.s32.totalorder %s19, 1
    %p42 = por %p40, %p41
    %p44 = scmp.ne.s32.totalorder %s27, %s43
    %p45 = scmp.eq.s32.totalorder %s19, 0
    %p46 = por %p44, %p45
    %s48 = sadd.s32 %s47, 1
    %p51 = scmp.eq.s32.totalorder %s13, 1
    %p52 = scmp.ne.s32.totalorder %s47, %s49
    %p53 = scmp.eq.s32.totalorder %s13, 0
    %p54 = por %p52, %p53
    %p55 = scmp.ne.s32.totalorder %s47, %s49
    %p56 = scmp.eq.s32.totalorder %s18, 1
    %p57 = por %p55, %p56
    %p58 = scmp.ne.s32.totalorder %s49, %s50
    %p59 = scmp.eq.s32.totalorder %s18, 0
    %p60 = por %p58, %p59
    %p61 = scmp.ne.s32.totalorder %s49, %s50
    %p62 = scmp.eq.s32.totalorder %s19, 1
    %p63 = por %p61, %p62
    %p65 = scmp.ne.s32.totalorder %s50, %s64
    %p66 = scmp.eq.s32.totalorder %s19, 0
    %p67 = por %p65, %p66
    %s69 = sadd.s32 %s68, 1
    %p72 = scmp.eq.s32.totalorder %s13, 1
    %p73 = scmp.ne.s32.totalorder %s68, %s70
    %p74 = scmp.eq.s32.totalorder %s13, 0
    %p75 = por %p73, %p74
    %p76 = scmp.ne.s32.totalorder %s68, %s70
    %p77 = scmp.eq.s32.totalorder %s18, 1
    %p78 = por %p76, %p77
    %p79 = scmp.ne.s32.totalorder %s70, %s71
    %p80 = scmp.eq.s32.totalorder %s18, 0
    %p81 = por %p79, %p80
    %p82 = scmp.ne.s32.totalorder %s70, %s71
    %p83 = scmp.eq.s32.totalorder %s19, 1
    %p84 = por %p82, %p83
    %p86 = scmp.ne.s32.totalorder %s71, %s85
    %p87 = scmp.eq.s32.totalorder %s19, 0
    %p88 = por %p86, %p87
    %s90 = sadd.s32 %s89, 1
    %p93 = scmp.eq.s32.totalorder %s13, 1
    %p94 = scmp.ne.s32.totalorder %s89, %s91
    %p95 = scmp.eq.s32.totalorder %s13, 0
    %p96 = por %p94, %p95
    %p97 = scmp.ne.s32.totalorder %s89, %s91
    %p98 = scmp.eq.s32.totalorder %s18, 1
    %p99 = por %p97, %p98
    %p100 = scmp.ne.s32.totalorder %s91, %s92
    %p101 = scmp.eq.s32.totalorder %s18, 0
    %p102 = por %p100, %p101
    %p103 = scmp.ne.s32.totalorder %s91, %s92
    %p104 = scmp.eq.s32.totalorder %s19, 1
    %p105 = por %p103, %p104
    %p107 = scmp.ne.s32.totalorder %s92, %s106
    %p108 = scmp.eq.s32.totalorder %s19, 0
    %p109 = por %p107, %p108
    %s111 = sadd.s32 %s110, 1
    %p114 = scmp.eq.s32.totalorder %s13, 1
    %p115 = scmp.ne.s32.totalorder %s110, %s112
    %p116 = scmp.eq.s32.totalorder %s13, 0
    %p117 = por %p115, %p116
    %p118 = scmp.ne.s32.totalorder %s110, %s112
    %p119 = scmp.eq.s32.totalorder %s18, 1
    %p120 = por %p118, %p119
    %p121 = scmp.ne.s32.totalorder %s112, %s113
    %p122 = scmp.eq.s32.totalorder %s18, 0
    %p123 = por %p121, %p122
    %p124 = scmp.ne.s32.totalorder %s112, %s113
    %p125 = scmp.eq.s32.totalorder %s19, 1
    %p126 = por %p124, %p125
    %p128 = scmp.ne.s32.totalorder %s113, %s127
    %p129 = scmp.eq.s32.totalorder %s19, 0
    %p130 = por %p128, %p129
    %s132 = sadd.s32 %s131, 1
    %p135 = scmp.eq.s32.totalorder %s13, 1
    %p136 = scmp.ne.s32.totalorder %s131, %s133
    %p137 = scmp.eq.s32.totalorder %s13, 0
    %p138 = por %p136, %p137
    %p139 = scmp.ne.s32.totalorder %s131, %s133
    %p140 = scmp.eq.s32.totalorder %s18, 1
    %p141 = por %p139, %p140
    %p142 = scmp.ne.s32.totalorder %s133, %s134
    %p143 = scmp.eq.s32.totalorder %s18, 0
    %p144 = por %p142, %p143
    %p145 = scmp.ne.s32.totalorder %s133, %s134
    %p146 = scmp.eq.s32.totalorder %s19, 1
    %p147 = por %p145, %p146
    %p149 = scmp.ne.s32.totalorder %s134, %s148
    %p150 = scmp.eq.s32.totalorder %s19, 0
    %p151 = por %p149, %p150
    %s153 = sadd.s32 %s152, 1
    %p156 = scmp.eq.s32.totalorder %s13, 1
    %p157 = scmp.ne.s32.totalorder %s152, %s154
    %p158 = scmp.eq.s32.totalorder %s13, 0
    %p159 = por %p157, %p158
    %p160 = scmp.ne.s32.totalorder %s152, %s154
    %p161 = scmp.eq.s32.totalorder %s18, 1
    %p162 = por %p160, %p161
    %p163 = scmp.ne.s32.totalorder %s154, %s155
    %p164 = scmp.eq.s32.totalorder %s18, 0
    %p165 = por %p163, %p164
    %p166 = scmp.ne.s32.totalorder %s154, %s155
    %p167 = scmp.eq.s32.totalorder %s19, 1
    %p168 = por %p166, %p167
    %p170 = scmp.ne.s32.totalorder %s155, %s169
    %p171 = scmp.eq.s32.totalorder %s19, 0
    %p172 = por %p170, %p171
    %s173 = ssub.s32 %s13, %s20
    %p174 = scmp.eq.s32.totalorder %s173, 0
    %s176 = sadd.s32 %s175, 1
    %s177 = scalar_select %p174, %s175, %s176
    %p180 = pneg %p174
    %p181 = scmp.eq.s32.totalorder %s13, 1
    %p182 = por %p180, %p181
    %p183 = scmp.ne.s32.totalorder %s175, %s178
    %p184 = scmp.eq.s32.totalorder %s13, 0
    %p185 = por %p183, %p184
    %p186 = scmp.ne.s32.totalorder %s175, %s178
    %p187 = scmp.eq.s32.totalorder %s18, 1
    %p188 = por %p186, %p187
    %p189 = scmp.ne.s32.totalorder %s178, %s179
    %p190 = scmp.eq.s32.totalorder %s18, 0
    %p191 = por %p189, %p190
    %p192 = scmp.ne.s32.totalorder %s178, %s179
    %p193 = scmp.eq.s32.totalorder %s19, 1
    %p194 = por %p192, %p193
    %p196 = scmp.ne.s32.totalorder %s179, %s195
    %p197 = scmp.eq.s32.totalorder %s19, 0
    %p198 = por %p196, %p197
    %p199 = scmp.le.s32.totalorder 1, %s13
    %p200 = scmp.lt.s32.totalorder %s13, 3
    %p201 = pnand %p199, %p200
    %p202 = pneg %p201
    // Predicated region
    $region9: #{residual_block_down_forward.1} parent=5 // pred_check
      _
    $region10: #{residual_block_down_forward.1} parent=5 // pred_check_branch
      %204 = sbr.rel (%p201) target = $region12
    $region11: #{residual_block_down_forward.1} parent=5 // pred_region
      %s205 = ssub.s32 %s13, 1
      // Predicated region
      $region13: #{residual_block_down_forward.1} parent=11 // pred_check
        %p206 = pneg %p60
      $region14: #{residual_block_down_forward.1} parent=11 // pred_check_branch
        %208 = sbr.rel (%p206) target = $region16
      $region15: #{residual_block_down_forward.1} parent=11 // pred_region
        _
      $region16: #{residual_block_down_forward.1} parent=11 // pred_fallthru
        _
      // Predicated region
      $region17: #{residual_block_down_forward.1} parent=11 // pred_check
        %p209 = pneg %p81
      $region18: #{residual_block_down_forward.1} parent=11 // pred_check_branch
        %211 = sbr.rel (%p209) target = $region20
      $region19: #{residual_block_down_forward.1} parent=11 // pred_region
        _
      $region20: #{residual_block_down_forward.1} parent=11 // pred_fallthru
        _
      // Predicated region
      $region21: #{residual_block_down_forward.1} parent=11 // pred_check
        %p212 = pneg %p102
      $region22: #{residual_block_down_forward.1} parent=11 // pred_check_branch
        %214 = sbr.rel (%p212) target = $region24
      $region23: #{residual_block_down_forward.1} parent=11 // pred_region
        _
      $region24: #{residual_block_down_forward.1} parent=11 // pred_fallthru
        _
      // Predicated region
      $region25: #{residual_block_down_forward.1} parent=11 // pred_check
        %p215 = pneg %p123
      $region26: #{residual_block_down_forward.1} parent=11 // pred_check_branch
        %217 = sbr.rel (%p215) target = $region28
      $region27: #{residual_block_down_forward.1} parent=11 // pred_region
        _
      $region28: #{residual_block_down_forward.1} parent=11 // pred_fallthru
        _
      // Predicated region
      $region29: #{residual_block_down_forward.1} parent=11 // pred_check
        %p218 = pneg %p144
      $region30: #{residual_block_down_forward.1} parent=11 // pred_check_branch
        %220 = sbr.rel (%p218) target = $region32
      $region31: #{residual_block_down_forward.1} parent=11 // pred_region
        _
      $region32: #{residual_block_down_forward.1} parent=11 // pred_fallthru
        _
      // Predicated region
      $region33: #{residual_block_down_forward.1} parent=11 // pred_check
        %p221 = pneg %p165
      $region34: #{residual_block_down_forward.1} parent=11 // pred_check_branch
        %223 = sbr.rel (%p221) target = $region36
      $region35: #{residual_block_down_forward.1} parent=11 // pred_region
        _
      $region36: #{residual_block_down_forward.1} parent=11 // pred_fallthru
        _
    $region12: #{residual_block_down_forward.1} parent=5 // pred_fallthru
      _
    %p224 = scmp.lt.s32.totalorder %s13, 2
    // Predicated region
    $region37: #{residual_block_down_forward.1} parent=5 // pred_check
      %p225 = pneg %p224
    $region38: #{residual_block_down_forward.1} parent=5 // pred_check_branch
      %227 = sbr.rel (%p225) target = $region40
    $region39: #{residual_block_down_forward.1} parent=5 // pred_region
      // Predicated region
      $region41: #{residual_block_down_forward.1} parent=39 // pred_check
        %p228 = pneg %p33
      $region42: #{residual_block_down_forward.1} parent=39 // pred_check_branch
        %230 = sbr.rel (%p228) target = $region44
      $region43: #{residual_block_down_forward.1} parent=39 // pred_region
        %p231 = scmp.lt.s32.totalorder %s13, 1
        %s232 = scalar_select %p231, %s13, 1
        %s233 = smul.addr %s232, 16
        %s234 = smul.addr %s233, 8
        %s235 = scalar_lea.vmem %s0, %s234
      $region44: #{residual_block_down_forward.1} parent=39 // pred_fallthru
        _
    $region40: #{residual_block_down_forward.1} parent=5 // pred_fallthru
      _
    %p236 = scmp.le.s32.totalorder 1, %s13
    %p237 = scmp.lt.s32.totalorder %s13, 3
    %p238 = pnand %p236, %p237
    %p239 = pneg %p238
    // Predicated region
    $region45: #{residual_block_down_forward.1} parent=5 // pred_check
      _
    $region46: #{residual_block_down_forward.1} parent=5 // pred_check_branch
      %241 = sbr.rel (%p238) target = $region48
    $region47: #{residual_block_down_forward.1} parent=5 // pred_region
      %s242 = ssub.s32 %s13, 1
      %p243 = scmp.lt.s32.totalorder %s18, 1
      %s244 = scalar_select %p243, %s18, 1
      %s245 = smul.addr %s244, 16
      %s246 = smul.addr %s245, 8
      %s247 = scalar_lea.vmem %s0, %s246
      %p248 = pneg %p39
      %p249 = pneg %p36
      %p250 = pneg %p60
      %p251 = pneg %p57
      %p252 = pneg %p81
      %p253 = pneg %p78
      %p254 = pneg %p102
      %p255 = pneg %p99
      %p256 = pneg %p123
      %p257 = pneg %p120
      %p258 = pneg %p144
      %p259 = pneg %p141
      %p260 = pneg %p165
      %p261 = pneg %p162
      %p262 = pneg %p191
      %p263 = pneg %p188
      %p264 = scmp.lt.s32.totalorder %s18, 1
      %s265 = scalar_select %p264, %s18, 1
      %s266 = smul.addr %s265, 4
      %s267 = smul.addr %s266, 8
      %s268 = scalar_lea.vmem %s7, %s267
      %p269 = scmp.lt.s32.totalorder %s18, 1
      %s270 = scalar_select %p269, %s18, 1
      %s271 = smul.addr %s270, 16
      %s272 = smul.addr %s271, 8
      %s273 = scalar_lea.vmem %s0, %s272
      %p274 = scmp.lt.s32.totalorder %s18, 1
      %s275 = scalar_select %p274, %s18, 1
      %s276 = smul.addr %s275, 4
      %s277 = smul.addr %s276, 8
      %s278 = scalar_lea.vmem %s7, %s277
      %v279 = vld [vmem:[%s1] sm:$0xff]
      %v280 = vld [vmem:[%s273] sm:$0xff]
      %v281 = vld [vmem:[%s273 + $0x8] sm:$0xff]
      %v282 = vld [vmem:[%s273 + $0x10] sm:$0xff]
      %v283 = vld [vmem:[%s273 + $0x18] sm:$0xff]
      %v284 = vld [vmem:[%s273 + $0x20] sm:$0xff]
      %v285 = vld [vmem:[%s273 + $0x28] sm:$0xff]
      %v286 = vld [vmem:[%s273 + $0x30] sm:$0xff]
      %v287 = vld [vmem:[%s273 + $0x38] sm:$0xff]
      %v288 = vld [vmem:[%s273 + $0x40] sm:$0xff]
      %v289 = vld [vmem:[%s273 + $0x48] sm:$0xff]
      %v290 = vld [vmem:[%s273 + $0x50] sm:$0xff]
      %v291 = vld [vmem:[%s273 + $0x58] sm:$0xff]
      %v292 = vld [vmem:[%s273 + $0x60] sm:$0xff]
      %v293 = vld [vmem:[%s273 + $0x68] sm:$0xff]
      %v294 = vld [vmem:[%s273 + $0x70] sm:$0xff]
      %v295 = vld [vmem:[%s273 + $0x78] sm:$0xff]
      %v296 = vld [vmem:[%s2] sm:$0xff]
      %298 = vset.pattern.permute.xlu0 0
      %299 = vperm.xlu0 %298, %v296
      %v300 = vpop.permute.xlu0 %299
      %vm302 = vcmask 261120
      %v304 = vsel %vm302, %v279, 0
      %306 = vmatprep.subr.mxu0 %v281
      %307 = vmatpush1.msra.mxu0 %v280
      %308 = vmatprep.subr.mxu0 %v285
      %309 = vmatpush1.msra.mxu0 %v284
      %310 = vmatprep.subr.mxu0 %v289
      %311 = vmatpush1.msra.mxu0 %v288
      %312 = vmatprep.subr.mxu0 %v293
      %313 = vmatpush1.msra.mxu0 %v292
      %314 = vmatprep.subr.mxu0 0.0
      %315 = vmatpush1.msra.mxu0 0.0
      %316 = vmatprep.subr.mxu0 0.0
      %317 = vmatpush1.msra.mxu0 0.0
      %318 = vmatprep.subr.mxu0 0.0
      %319 = vmatpush1.msra.mxu0 0.0
      %320 = vmatprep.subr.mxu0 0.0
      %321 = vmatpush1.msra.mxu0 0.0
      %322 = vmatprep.subr.mxu0 0.0
      %323 = vmatpush1.msra.mxu0 0.0
      %324 = vmatprep.subr.mxu0 0.0
      %325 = vmatpush1.msra.mxu0 0.0
      %326 = vmatprep.subr.mxu0 0.0
      %327 = vmatpush1.msra.mxu0 0.0
      %328 = vmatprep.subr.mxu0 0.0
      %329 = vmatpush1.msra.mxu0 0.0
      %330 = vmatprep.subr.mxu0 0.0
      %331 = vmatpush1.msra.mxu0 0.0
      %332 = vmatprep.subr.mxu0 0.0
      %333 = vmatpush1.msra.mxu0 0.0
      %334 = vmatprep.subr.mxu0 0.0
      %335 = vmatpush1.msra.mxu0 0.0
      %336 = vmatprep.subr.mxu0 0.0
      %337 = vmatpush1.msra.mxu0 0.0
      %338 = vmatprep.subr.mxu0 0.0
      %339 = vmatpush1.msra.mxu0 0.0
      %340 = vmatprep.subr.mxu0 0.0
      %341 = vmatpush1.msra.mxu0 0.0
      %342 = vmatprep.subr.mxu0 0.0
      %343 = vmatpush1.msra.mxu0 0.0
      %344 = vmatprep.subr.mxu0 0.0
      %345 = vmatpush1.msra.mxu0 0.0
      %346 = vmatprep.subr.mxu0 0.0
      %347 = vmatpush1.msra.mxu0 0.0
      %348 = vmatprep.subr.mxu0 0.0
      %349 = vmatpush1.msra.mxu0 0.0
      %350 = vmatprep.subr.mxu0 0.0
      %351 = vmatpush1.msra.mxu0 0.0
      %352 = vmatprep.subr.mxu0 0.0
      %353 = vmatpush1.msra.mxu0 0.0
      %354 = vmatprep.subr.mxu0 0.0
      %355 = vmatpush1.msra.mxu0 0.0
      %356 = vmatprep.subr.mxu0 0.0
      %357 = vmatpush1.msra.mxu0 0.0
      %358 = vmatprep.subr.mxu0 0.0
      %359 = vmatpush1.msra.mxu0 0.0
      %360 = vmatprep.subr.mxu0 0.0
      %361 = vmatpush1.msra.mxu0 0.0
      %362 = vmatprep.subr.mxu0 0.0
      %363 = vmatpush1.msra.mxu0 0.0
      %364 = vmatprep.subr.mxu0 0.0
      %365 = vmatpush1.msra.mxu0 0.0
      %366 = vmatprep.subr.mxu0 0.0
      %367 = vmatpush1.msra.mxu0 0.0
      %368 = vmatprep.subr.mxu0 0.0
      %369 = vmatpush1.msra.mxu0 0.0
      %370 = vmatprep.mubr.f32.mxu0 0.0
      %371 = vmatmul.mubr.f32.gmra.mrb[0].mxu0 %v304
      %v372 = vpop.f32.mrb[0].mxu0
      %v373 = vadd.f32 %v300, %v372
      %v374 = vpop.f32.mrb[0].mxu0
      %v375 = vadd.f32 %v300, %v374
      %376 = vdwg.mxu0
      %377 = vmatprep.subr.mxu0 %v283
      %378 = vmatpush1.msra.mxu0 %v282
      %379 = vmatprep.subr.mxu0 %v287
      %380 = vmatpush1.msra.mxu0 %v286
      %381 = vmatprep.subr.mxu0 %v291
      %382 = vmatpush1.msra.mxu0 %v290
      %383 = vmatprep.subr.mxu0 %v295
      %384 = vmatpush1.msra.mxu0 %v294
      %385 = vmatprep.subr.mxu0 0.0
      %386 = vmatpush1.msra.mxu0 0.0
      %387 = vmatprep.subr.mxu0 0.0
      %388 = vmatpush1.msra.mxu0 0.0
      %389 = vmatprep.subr.mxu0 0.0
      %390 = vmatpush1.msra.mxu0 0.0
      %391 = vmatprep.subr.mxu0 0.0
      %392 = vmatpush1.msra.mxu0 0.0
      %393 = vmatprep.subr.mxu0 0.0
      %394 = vmatpush1.msra.mxu0 0.0
      %395 = vmatprep.subr.mxu0 0.0
      %396 = vmatpush1.msra.mxu0 0.0
      %397 = vmatprep.subr.mxu0 0.0
      %398 = vmatpush1.msra.mxu0 0.0
      %399 = vmatprep.subr.mxu0 0.0
      %400 = vmatpush1.msra.mxu0 0.0
      %401 = vmatprep.subr.mxu0 0.0
      %402 = vmatpush1.msra.mxu0 0.0
      %403 = vmatprep.subr.mxu0 0.0
      %404 = vmatpush1.msra.mxu0 0.0
      %405 = vmatprep.subr.mxu0 0.0
      %406 = vmatpush1.msra.mxu0 0.0
      %407 = vmatprep.subr.mxu0 0.0
      %408 = vmatpush1.msra.mxu0 0.0
      %409 = vmatprep.subr.mxu0 0.0
      %410 = vmatpush1.msra.mxu0 0.0
      %411 = vmatprep.subr.mxu0 0.0
      %412 = vmatpush1.msra.mxu0 0.0
      %413 = vmatprep.subr.mxu0 0.0
      %414 = vmatpush1.msra.mxu0 0.0
      %415 = vmatprep.subr.mxu0 0.0
      %416 = vmatpush1.msra.mxu0 0.0
      %417 = vmatprep.subr.mxu0 0.0
      %418 = vmatpush1.msra.mxu0 0.0
      %419 = vmatprep.subr.mxu0 0.0
      %420 = vmatpush1.msra.mxu0 0.0
      %421 = vmatprep.subr.mxu0 0.0
      %422 = vmatpush1.msra.mxu0 0.0
      %423 = vmatprep.subr.mxu0 0.0
      %424 = vmatpush1.msra.mxu0 0.0
      %425 = vmatprep.subr.mxu0 0.0
      %426 = vmatpush1.msra.mxu0 0.0
      %427 = vmatprep.subr.mxu0 0.0
      %428 = vmatpush1.msra.mxu0 0.0
      %429 = vmatprep.subr.mxu0 0.0
      %430 = vmatpush1.msra.mxu0 0.0
      %431 = vmatprep.subr.mxu0 0.0
      %432 = vmatpush1.msra.mxu0 0.0
      %433 = vmatprep.subr.mxu0 0.0
      %434 = vmatpush1.msra.mxu0 0.0
      %435 = vmatprep.subr.mxu0 0.0
      %436 = vmatpush1.msra.mxu0 0.0
      %437 = vmatprep.subr.mxu0 0.0
      %438 = vmatpush1.msra.mxu0 0.0
      %439 = vmatprep.subr.mxu0 0.0
      %440 = vmatpush1.msra.mxu0 0.0
      %441 = vmatprep.mubr.f32.mxu0 0.0
      %442 = vmatmul.mubr.f32.gmra.mrb[0].mxu0 %v304
      %v443 = vpop.f32.mrb[0].mxu0
      %v444 = vadd.f32 %v300, %v443
      %v445 = vpop.f32.mrb[0].mxu0
      %v446 = vadd.f32 %v300, %v445
      %447 = vdwg.mxu0
      %v448 = vld [vmem:[%s3] sm:$0xf]
      %vm449 = vcmask 64512
      %v451 = vsel %vm449, %v448, 0
      %453 = vmatprep.subr.mxu0 %v375
      %454 = vmatpush1.msra.mxu0 %v373
      %455 = vmatprep.subr.mxu0 0.0
      %456 = vmatpush1.msra.mxu0 0.0
      %457 = vmatprep.subr.mxu0 0.0
      %458 = vmatpush1.msra.mxu0 0.0
      %459 = vmatprep.subr.mxu0 0.0
      %460 = vmatpush1.msra.mxu0 0.0
      %461 = vmatprep.subr.mxu0 0.0
      %462 = vmatpush1.msra.mxu0 0.0
      %463 = vmatprep.subr.mxu0 0.0
      %464 = vmatpush1.msra.mxu0 0.0
      %465 = vmatprep.subr.mxu0 0.0
      %466 = vmatpush1.msra.mxu0 0.0
      %467 = vmatprep.subr.mxu0 0.0
      %468 = vmatpush1.msra.mxu0 0.0
      %469 = vmatprep.subr.mxu0 0.0
      %470 = vmatpush1.msra.mxu0 0.0
      %471 = vmatprep.subr.mxu0 0.0
      %472 = vmatpush1.msra.mxu0 0.0
      %473 = vmatprep.subr.mxu0 0.0
      %474 = vmatpush1.msra.mxu0 0.0
      %475 = vmatprep.subr.mxu0 0.0
      %476 = vmatpush1.msra.mxu0 0.0
      %477 = vmatprep.subr.mxu0 0.0
      %478 = vmatpush1.msra.mxu0 0.0
      %479 = vmatprep.subr.mxu0 0.0
      %480 = vmatpush1.msra.mxu0 0.0
      %481 = vmatprep.subr.mxu0 0.0
      %482 = vmatpush1.msra.mxu0 0.0
      %483 = vmatprep.subr.mxu0 0.0
      %484 = vmatpush1.msra.mxu0 0.0
      %485 = vmatprep.subr.mxu0 0.0
      %486 = vmatpush1.msra.mxu0 0.0
      %487 = vmatprep.subr.mxu0 0.0
      %488 = vmatpush1.msra.mxu0 0.0
      %489 = vmatprep.subr.mxu0 0.0
      %490 = vmatpush1.msra.mxu0 0.0
      %491 = vmatprep.subr.mxu0 0.0
      %492 = vmatpush1.msra.mxu0 0.0
      %493 = vmatprep.subr.mxu0 0.0
      %494 = vmatpush1.msra.mxu0 0.0
      %495 = vmatprep.subr.mxu0 0.0
      %496 = vmatpush1.msra.mxu0 0.0
      %497 = vmatprep.subr.mxu0 0.0
      %498 = vmatpush1.msra.mxu0 0.0
      %499 = vmatprep.subr.mxu0 0.0
      %500 = vmatpush1.msra.mxu0 0.0
      %501 = vmatprep.subr.mxu0 0.0
      %502 = vmatpush1.msra.mxu0 0.0
      %503 = vmatprep.subr.mxu0 0.0
      %504 = vmatpush1.msra.mxu0 0.0
      %505 = vmatprep.subr.mxu0 0.0
      %506 = vmatpush1.msra.mxu0 0.0
      %507 = vmatprep.subr.mxu0 0.0
      %508 = vmatpush1.msra.mxu0 0.0
      %509 = vmatprep.subr.mxu0 0.0
      %510 = vmatpush1.msra.mxu0 0.0
      %511 = vmatprep.subr.mxu0 0.0
      %512 = vmatpush1.msra.mxu0 0.0
      %513 = vmatprep.subr.mxu0 0.0
      %514 = vmatpush1.msra.mxu0 0.0
      %515 = vmatprep.subr.mxu0 0.0
      %516 = vmatpush1.msra.mxu0 0.0
      %517 = vmatprep.mubr.f32.mxu0 0.0
      %518 = vmatmul.mubr.f32.gmra.mrb[0].mxu0 %v451
      %v519 = vpop.f32.mrb[0].mxu0
      %v520 = vadd.f32 0.0, %v519
      %v521 = vpop.f32.mrb[0].mxu0
      %v522 = vadd.f32 0.0, %v521
      %523 = vdwg.mxu0
      %524 = vmatprep.subr.mxu0 %v446
      %525 = vmatpush1.msra.mxu0 %v444
      %526 = vmatprep.subr.mxu0 0.0
      %527 = vmatpush1.msra.mxu0 0.0
      %528 = vmatprep.subr.mxu0 0.0
      %529 = vmatpush1.msra.mxu0 0.0
      %530 = vmatprep.subr.mxu0 0.0
      %531 = vmatpush1.msra.mxu0 0.0
      %532 = vmatprep.subr.mxu0 0.0
      %533 = vmatpush1.msra.mxu0 0.0
      %534 = vmatprep.subr.mxu0 0.0
      %535 = vmatpush1.msra.mxu0 0.0
      %536 = vmatprep.subr.mxu0 0.0
      %537 = vmatpush1.msra.mxu0 0.0
      %538 = vmatprep.subr.mxu0 0.0
      %539 = vmatpush1.msra.mxu0 0.0
      %540 = vmatprep.subr.mxu0 0.0
      %541 = vmatpush1.msra.mxu0 0.0
      %542 = vmatprep.subr.mxu0 0.0
      %543 = vmatpush1.msra.mxu0 0.0
      %544 = vmatprep.subr.mxu0 0.0
      %545 = vmatpush1.msra.mxu0 0.0
      %546 = vmatprep.subr.mxu0 0.0
      %547 = vmatpush1.msra.mxu0 0.0
      %548 = vmatprep.subr.mxu0 0.0
      %549 = vmatpush1.msra.mxu0 0.0
      %550 = vmatprep.subr.mxu0 0.0
      %551 = vmatpush1.msra.mxu0 0.0
      %552 = vmatprep.subr.mxu0 0.0
      %553 = vmatpush1.msra.mxu0 0.0
      %554 = vmatprep.subr.mxu0 0.0
      %555 = vmatpush1.msra.mxu0 0.0
      %556 = vmatprep.subr.mxu0 0.0
      %557 = vmatpush1.msra.mxu0 0.0
      %558 = vmatprep.subr.mxu0 0.0
      %559 = vmatpush1.msra.mxu0 0.0
      %560 = vmatprep.subr.mxu0 0.0
      %561 = vmatpush1.msra.mxu0 0.0
      %562 = vmatprep.subr.mxu0 0.0
      %563 = vmatpush1.msra.mxu0 0.0
      %564 = vmatprep.subr.mxu0 0.0
      %565 = vmatpush1.msra.mxu0 0.0
      %566 = vmatprep.subr.mxu0 0.0
      %567 = vmatpush1.msra.mxu0 0.0
      %568 = vmatprep.subr.mxu0 0.0
      %569 = vmatpush1.msra.mxu0 0.0
      %570 = vmatprep.subr.mxu0 0.0
      %571 = vmatpush1.msra.mxu0 0.0
      %572 = vmatprep.subr.mxu0 0.0
      %573 = vmatpush1.msra.mxu0 0.0
      %574 = vmatprep.subr.mxu0 0.0
      %575 = vmatpush1.msra.mxu0 0.0
      %576 = vmatprep.subr.mxu0 0.0
      %577 = vmatpush1.msra.mxu0 0.0
      %578 = vmatprep.subr.mxu0 0.0
      %579 = vmatpush1.msra.mxu0 0.0
      %580 = vmatprep.subr.mxu0 0.0
      %581 = vmatpush1.msra.mxu0 0.0
      %582 = vmatprep.subr.mxu0 0.0
      %583 = vmatpush1.msra.mxu0 0.0
      %584 = vmatprep.subr.mxu0 0.0
      %585 = vmatpush1.msra.mxu0 0.0
      %586 = vmatprep.subr.mxu0 0.0
      %587 = vmatpush1.msra.mxu0 0.0
      %588 = vmatprep.mubr.f32.mxu0 0.0
      %589 = vmatmul.mubr.f32.gmra.mrb[0].mxu0 %v451
      %v590 = vpop.f32.mrb[0].mxu0
      %v591 = vadd.f32 0.0, %v590
      %v592 = vpop.f32.mrb[0].mxu0
      %v593 = vadd.f32 0.0, %v592
      %594 = vdwg.mxu0
      %vm595 = vcmask 1043456
      %v596 = vsel %vm595, %v520, 0.0
      %v597 = vsel %vm595, %v522, 0.0
      %v598 = vadd.f32 %v596, %v597
      %v599 = vsel %vm595, %v591, 0.0
      %v600 = vadd.f32 %v598, %v599
      %v601 = vsel %vm595, %v593, 0.0
      %v602 = vadd.f32 %v600, %v601
      %603 = vadd.xlane.f32.xlu0 %v602
      %v604 = vpop.xlane.xlu0 %603
      %v605 = vrcp.pop 512.0
      %v606 = vmul.f32 %v604, %v605
      %v607 = vsub.f32 %v520, %v606
      %v608 = vsub.f32 %v522, %v606
      %v609 = vsub.f32 %v591, %v606
      %v610 = vsub.f32 %v593, %v606
      %v611 = vmul.f32 %v607, %v607
      %v612 = vmul.f32 %v608, %v608
      %v613 = vmul.f32 %v609, %v609
      %v614 = vmul.f32 %v610, %v610
      %v615 = vsel %vm595, %v611, 0.0
      %v616 = vsel %vm595, %v612, 0.0
      %v617 = vadd.f32 %v615, %v616
      %v618 = vsel %vm595, %v613, 0.0
      %v619 = vadd.f32 %v617, %v618
      %v620 = vsel %vm595, %v614, 0.0
      %v621 = vadd.f32 %v619, %v620
      %622 = vadd.xlane.f32.xlu0 %v621
      %v623 = vpop.xlane.xlu0 %622
      %v624 = vmul.f32 %v623, %v605
      %v625 = vadd.f32 %v624, 1e-05
      %v626 = vrsqrt.pop %v625
      %v627 = vmul.f32 %v607, %v626
      %v628 = vmul.f32 %v608, %v626
      %v629 = vmul.f32 %v609, %v626
      %v630 = vmul.f32 %v610, %v626
      %v631 = vmax.f32 %v627, 0.0
      %v632 = vmax.f32 %v628, 0.0
      %v633 = vmax.f32 %v629, 0.0
      %v634 = vmax.f32 %v630, 0.0
      %635 = vst [vmem:[#allocation2] sm:$0xff] 0.0
      %636 = vst [vmem:[#allocation2 + $0x8] sm:$0xff] 0.0
      %637 = vst [vmem:[#allocation2 + $0x10] sm:$0xff] 0.0
      %v642 = vcombine.low %v631, %v632
      %v643 = vcombine.low %v633, %v634
      %646 = vst [vmem:[#allocation2 + $0x4] sm:$0xff] %v642
      %647 = vst [vmem:[#allocation2 + $0xc] sm:$0xff] %v643
      %v648 = vld [vmem:[#allocation2] sm:$0xff]
      %v649 = vld [vmem:[#allocation2 + $0x8] sm:$0xff]
      %v650 = vld [vmem:[#allocation2 + $0x10] sm:$0xf]
      %v651 = vld [vmem:[%s6] ss:$8 sm:$0xf]
      %s652 = scalar_lea.vmem %s6, 2
      %v653 = vld [vmem:[%s652] ss:$8 sm:$0xf]
      %v654 = vmul.f32 %v651, %v653
      %s655 = scalar_lea.vmem %s6, 4
      %v656 = vld [vmem:[%s655] ss:$8 sm:$0xf]
      %v657 = vmul.f32 %v654, %v656
      %v659 = vlaneseq
      %v660 = vshrl.u32 %v659, 7
      %v661 = vsub.s32 0, %v660
      %v662 = vrot.slane %v657, %v661
      %v663 = vlaneseq
      %v664 = vshrl.u32 %v663, 7
      %v665 = vsub.s32 1, %v664
      %v666 = vrot.slane %v657, %v665
      %v667 = vlaneseq
      %v668 = vshrl.u32 %v667, 7
      %v669 = vsub.s32 2, %v668
      %v670 = vrot.slane %v657, %v669
      %v671 = vlaneseq
      %v672 = vshrl.u32 %v671, 7
      %v673 = vsub.s32 3, %v672
      %v674 = vrot.slane %v657, %v673
      %v675 = vcombine.low %v662, %v666
      %v676 = vcombine.low %v670, %v674
      %677 = vrot.lane.b32.xlu0 %v675, 55
      %v678 = vpop.permute.xlu0 %677
      %679 = vrot.lane.b32.xlu0 %v676, 55
      %v680 = vpop.permute.xlu0 %679
      %v681 = vrot.slane %v678, 4
      %v682 = vrot.slane %v680, 4
      %vm683 = vcmask 449536
      %v684 = vsel %vm683, %v681, %v678
      %v685 = vsel %vm595, %v681, %v682
      %v686 = vsel %vm683, %v685, %v680
      %v690 = vmul.f32 %v648, %v684
      %v691 = vmul.f32 %v649, %v686
      %v692 = vmul.f32 %v650, %v682
      %v693 = vld [vmem:[%s4] sm:$0xf]
      %v695 = vlaneseq
      %v696 = vshrl.u32 %v695, 7
      %v697 = vsub.s32 0, %v696
      %v698 = vrot.slane %v654, %v697
      %v699 = vlaneseq
      %v700 = vshrl.u32 %v699, 7
      %v701 = vsub.s32 1, %v700
      %v702 = vrot.slane %v654, %v701
      %v703 = vlaneseq
      %v704 = vshrl.u32 %v703, 7
      %v705 = vsub.s32 2, %v704
      %v706 = vrot.slane %v654, %v705
      %v707 = vlaneseq
      %v708 = vshrl.u32 %v707, 7
      %v709 = vsub.s32 3, %v708
      %v710 = vrot.slane %v654, %v709
      %v711 = vcombine.low %v698, %v702
      %v712 = vcombine.low %v706, %v710
      %713 = vrot.lane.b32.xlu0 %v711, 56
      %v714 = vpop.permute.xlu0 %713
      %715 = vrot.lane.b32.xlu0 %v712, 56
      %v716 = vpop.permute.xlu0 %715
      %v717 = vrot.slane %v714, 4
      %v718 = vrot.slane %v716, 4
      %vm719 = vcmask 457728
      %v720 = vsel %vm719, %v717, %v714
      %v721 = vsel %vm595, %v717, %v718
      %v722 = vsel %vm719, %v721, %v716
      %v726 = vmul.f32 %v648, %v720
      %v727 = vmul.f32 %v649, %v722
      %v728 = vmul.f32 %v650, %v718
      %s729 = scalar_lea.vmem %s4, 4
      %v730 = vld [vmem:[%s729] sm:$0xf]
      %v734 = vcombine.high %v726, %v726
      %v735 = vcombine.high %v727, %v727
      %736 = vrot.lane.b32.xlu0 %v726, 72
      %v737 = vpop.permute.xlu0 %736
      %738 = vrot.lane.b32.xlu0 %v734, 72
      %v739 = vpop.permute.xlu0 %738
      %740 = vrot.lane.b32.xlu0 %v727, 72
      %v741 = vpop.permute.xlu0 %740
      %742 = vrot.lane.b32.xlu0 %v735, 72
      %v743 = vpop.permute.xlu0 %742
      %744 = vrot.lane.b32.xlu0 %v728, 72
      %v745 = vpop.permute.xlu0 %744
      %vm746 = vcmask 588800
      %v747 = vsel %vm746, %v737, %v739
      %v748 = vsel %vm746, %v739, %v741
      %v749 = vsel %vm746, %v741, %v743
      %v750 = vsel %vm746, %v743, %v745
      %vm751 = vcmask 31744
      %v753 = vsel %vm751, %v730, 0
      %v755 = vsel %vm595, %v747, 0
      %v757 = vsel %vm595, %v748, 0
      %v759 = vsel %vm595, %v749, 0
      %v761 = vsel %vm595, %v750, 0
      %763 = vmatprep.subr.mxu0 %v757
      %764 = vmatpush1.msra.mxu0 %v755
      %765 = vmatprep.subr.mxu0 0.0
      %766 = vmatpush1.msra.mxu0 0.0
      %767 = vmatprep.subr.mxu0 0.0
      %768 = vmatpush1.msra.mxu0 0.0
      %769 = vmatprep.subr.mxu0 0.0
      %770 = vmatpush1.msra.mxu0 0.0
      %771 = vmatprep.subr.mxu0 0.0
      %772 = vmatpush1.msra.mxu0 0.0
      %773 = vmatprep.subr.mxu0 0.0
      %774 = vmatpush1.msra.mxu0 0.0
      %775 = vmatprep.subr.mxu0 0.0
      %776 = vmatpush1.msra.mxu0 0.0
      %777 = vmatprep.subr.mxu0 0.0
      %778 = vmatpush1.msra.mxu0 0.0
      %779 = vmatprep.subr.mxu0 0.0
      %780 = vmatpush1.msra.mxu0 0.0
      %781 = vmatprep.subr.mxu0 0.0
      %782 = vmatpush1.msra.mxu0 0.0
      %783 = vmatprep.subr.mxu0 0.0
      %784 = vmatpush1.msra.mxu0 0.0
      %785 = vmatprep.subr.mxu0 0.0
      %786 = vmatpush1.msra.mxu0 0.0
      %787 = vmatprep.subr.mxu0 0.0
      %788 = vmatpush1.msra.mxu0 0.0
      %789 = vmatprep.subr.mxu0 0.0
      %790 = vmatpush1.msra.mxu0 0.0
      %791 = vmatprep.subr.mxu0 0.0
      %792 = vmatpush1.msra.mxu0 0.0
      %793 = vmatprep.subr.mxu0 0.0
      %794 = vmatpush1.msra.mxu0 0.0
      %795 = vmatprep.subr.mxu0 0.0
      %796 = vmatpush1.msra.mxu0 0.0
      %797 = vmatprep.subr.mxu0 0.0
      %798 = vmatpush1.msra.mxu0 0.0
      %799 = vmatprep.subr.mxu0 0.0
      %800 = vmatpush1.msra.mxu0 0.0
      %801 = vmatprep.subr.mxu0 0.0
      %802 = vmatpush1.msra.mxu0 0.0
      %803 = vmatprep.subr.mxu0 0.0
      %804 = vmatpush1.msra.mxu0 0.0
      %805 = vmatprep.subr.mxu0 0.0
      %806 = vmatpush1.msra.mxu0 0.0
      %807 = vmatprep.subr.mxu0 0.0
      %808 = vmatpush1.msra.mxu0 0.0
      %809 = vmatprep.subr.mxu0 0.0
      %810 = vmatpush1.msra.mxu0 0.0
      %811 = vmatprep.subr.mxu0 0.0
      %812 = vmatpush1.msra.mxu0 0.0
      %813 = vmatprep.subr.mxu0 0.0
      %814 = vmatpush1.msra.mxu0 0.0
      %815 = vmatprep.subr.mxu0 0.0
      %816 = vmatpush1.msra.mxu0 0.0
      %817 = vmatprep.subr.mxu0 0.0
      %818 = vmatpush1.msra.mxu0 0.0
      %819 = vmatprep.subr.mxu0 0.0
      %820 = vmatpush1.msra.mxu0 0.0
      %821 = vmatprep.subr.mxu0 0.0
      %822 = vmatpush1.msra.mxu0 0.0
      %823 = vmatprep.subr.mxu0 0.0
      %824 = vmatpush1.msra.mxu0 0.0
      %825 = vmatprep.subr.mxu0 0.0
      %826 = vmatpush1.msra.mxu0 0.0
      %827 = vmatprep.mubr.f32.mxu0 0.0
      %828 = vmatmul.mubr.f32.gmra.mrb[0].mxu0 %v753
      %v829 = vpop.f32.mrb[0].mxu0
      %v830 = vadd.f32 0.0, %v829
      %v831 = vpop.f32.mrb[0].mxu0
      %v832 = vadd.f32 0.0, %v831
      %833 = vdwg.mxu0
      %834 = vmatprep.subr.mxu0 %v761
      %835 = vmatpush1.msra.mxu0 %v759
      %836 = vmatprep.subr.mxu0 0.0
      %837 = vmatpush1.msra.mxu0 0.0
      %838 = vmatprep.subr.mxu0 0.0
      %839 = vmatpush1.msra.mxu0 0.0
      %840 = vmatprep.subr.mxu0 0.0
      %841 = vmatpush1.msra.mxu0 0.0
      %842 = vmatprep.subr.mxu0 0.0
      %843 = vmatpush1.msra.mxu0 0.0
      %844 = vmatprep.subr.mxu0 0.0
      %845 = vmatpush1.msra.mxu0 0.0
      %846 = vmatprep.subr.mxu0 0.0
      %847 = vmatpush1.msra.mxu0 0.0
      %848 = vmatprep.subr.mxu0 0.0
      %849 = vmatpush1.msra.mxu0 0.0
      %850 = vmatprep.subr.mxu0 0.0
      %851 = vmatpush1.msra.mxu0 0.0
      %852 = vmatprep.subr.mxu0 0.0
      %853 = vmatpush1.msra.mxu0 0.0
      %854 = vmatprep.subr.mxu0 0.0
      %855 = vmatpush1.msra.mxu0 0.0
      %856 = vmatprep.subr.mxu0 0.0
      %857 = vmatpush1.msra.mxu0 0.0
      %858 = vmatprep.subr.mxu0 0.0
      %859 = vmatpush1.msra.mxu0 0.0
      %860 = vmatprep.subr.mxu0 0.0
      %861 = vmatpush1.msra.mxu0 0.0
      %862 = vmatprep.subr.mxu0 0.0
      %863 = vmatpush1.msra.mxu0 0.0
      %864 = vmatprep.subr.mxu0 0.0
      %865 = vmatpush1.msra.mxu0 0.0
      %866 = vmatprep.subr.mxu0 0.0
      %867 = vmatpush1.msra.mxu0 0.0
      %868 = vmatprep.subr.mxu0 0.0
      %869 = vmatpush1.msra.mxu0 0.0
      %870 = vmatprep.subr.mxu0 0.0
      %871 = vmatpush1.msra.mxu0 0.0
      %872 = vmatprep.subr.mxu0 0.0
      %873 = vmatpush1.msra.mxu0 0.0
      %874 = vmatprep.subr.mxu0 0.0
      %875 = vmatpush1.msra.mxu0 0.0
      %876 = vmatprep.subr.mxu0 0.0
      %877 = vmatpush1.msra.mxu0 0.0
      %878 = vmatprep.subr.mxu0 0.0
      %879 = vmatpush1.msra.mxu0 0.0
      %880 = vmatprep.subr.mxu0 0.0
      %881 = vmatpush1.msra.mxu0 0.0
      %882 = vmatprep.subr.mxu0 0.0
      %883 = vmatpush1.msra.mxu0 0.0
      %884 = vmatprep.subr.mxu0 0.0
      %885 = vmatpush1.msra.mxu0 0.0
      %886 = vmatprep.subr.mxu0 0.0
      %887 = vmatpush1.msra.mxu0 0.0
      %888 = vmatprep.subr.mxu0 0.0
      %889 = vmatpush1.msra.mxu0 0.0
      %890 = vmatprep.subr.mxu0 0.0
      %891 = vmatpush1.msra.mxu0 0.0
      %892 = vmatprep.subr.mxu0 0.0
      %893 = vmatpush1.msra.mxu0 0.0
      %894 = vmatprep.subr.mxu0 0.0
      %895 = vmatpush1.msra.mxu0 0.0
      %896 = vmatprep.subr.mxu0 0.0
      %897 = vmatpush1.msra.mxu0 0.0
      %898 = vmatprep.mubr.f32.mxu0 0.0
      %899 = vmatmul.mubr.f32.gmra.mrb[0].mxu0 %v753
      %v900 = vpop.f32.mrb[0].mxu0
      %v901 = vadd.f32 0.0, %v900
      %v902 = vpop.f32.mrb[0].mxu0
      %v903 = vadd.f32 0.0, %v902
      %904 = vdwg.mxu0
      %v908 = vcombine.high %v690, %v690
      %v909 = vcombine.high %v691, %v691
      %910 = vrot.lane.b32.xlu0 %v690, 73
      %v911 = vpop.permute.xlu0 %910
      %912 = vrot.lane.b32.xlu0 %v908, 73
      %v913 = vpop.permute.xlu0 %912
      %914 = vrot.lane.b32.xlu0 %v691, 73
      %v915 = vpop.permute.xlu0 %914
      %916 = vrot.lane.b32.xlu0 %v909, 73
      %v917 = vpop.permute.xlu0 %916
      %918 = vrot.lane.b32.xlu0 %v692, 73
      %v919 = vpop.permute.xlu0 %918
      %vm920 = vcmask 596992
      %v921 = vsel %vm920, %v911, %v913
      %v922 = vsel %vm920, %v913, %v915
      %v923 = vsel %vm920, %v915, %v917
      %v924 = vsel %vm920, %v917, %v919
      %v926 = vsel %vm751, %v693, 0
      %v928 = vsel %vm595, %v921, 0
      %v930 = vsel %vm595, %v922, 0
      %v932 = vsel %vm595, %v923, 0
      %v934 = vsel %vm595, %v924, 0
      %936 = vmatprep.subr.mxu0 %v930
      %937 = vmatpush1.msra.mxu0 %v928
      %938 = vmatprep.subr.mxu0 0.0
      %939 = vmatpush1.msra.mxu0 0.0
      %940 = vmatprep.subr.mxu0 0.0
      %941 = vmatpush1.msra.mxu0 0.0
      %942 = vmatprep.subr.mxu0 0.0
      %943 = vmatpush1.msra.mxu0 0.0
      %944 = vmatprep.subr.mxu0 0.0
      %945 = vmatpush1.msra.mxu0 0.0
      %946 = vmatprep.subr.mxu0 0.0
      %947 = vmatpush1.msra.mxu0 0.0
      %948 = vmatprep.subr.mxu0 0.0
      %949 = vmatpush1.msra.mxu0 0.0
      %950 = vmatprep.subr.mxu0 0.0
      %951 = vmatpush1.msra.mxu0 0.0
      %952 = vmatprep.subr.mxu0 0.0
      %953 = vmatpush1.msra.mxu0 0.0
      %954 = vmatprep.subr.mxu0 0.0
      %955 = vmatpush1.msra.mxu0 0.0
      %956 = vmatprep.subr.mxu0 0.0
      %957 = vmatpush1.msra.mxu0 0.0
      %958 = vmatprep.subr.mxu0 0.0
      %959 = vmatpush1.msra.mxu0 0.0
      %960 = vmatprep.subr.mxu0 0.0
      %961 = vmatpush1.msra.mxu0 0.0
      %962 = vmatprep.subr.mxu0 0.0
      %963 = vmatpush1.msra.mxu0 0.0
      %964 = vmatprep.subr.mxu0 0.0
      %965 = vmatpush1.msra.mxu0 0.0
      %966 = vmatprep.subr.mxu0 0.0
      %967 = vmatpush1.msra.mxu0 0.0
      %968 = vmatprep.subr.mxu0 0.0
      %969 = vmatpush1.msra.mxu0 0.0
      %970 = vmatprep.subr.mxu0 0.0
      %971 = vmatpush1.msra.mxu0 0.0
      %972 = vmatprep.subr.mxu0 0.0
      %973 = vmatpush1.msra.mxu0 0.0
      %974 = vmatprep.subr.mxu0 0.0
      %975 = vmatpush1.msra.mxu0 0.0
      %976 = vmatprep.subr.mxu0 0.0
      %977 = vmatpush1.msra.mxu0 0.0
      %978 = vmatprep.subr.mxu0 0.0
      %979 = vmatpush1.msra.mxu0 0.0
      %980 = vmatprep.subr.mxu0 0.0
      %981 = vmatpush1.msra.mxu0 0.0
      %982 = vmatprep.subr.mxu0 0.0
      %983 = vmatpush1.msra.mxu0 0.0
      %984 = vmatprep.subr.mxu0 0.0
      %985 = vmatpush1.msra.mxu0 0.0
      %986 = vmatprep.subr.mxu0 0.0
      %987 = vmatpush1.msra.mxu0 0.0
      %988 = vmatprep.subr.mxu0 0.0
      %989 = vmatpush1.msra.mxu0 0.0
      %990 = vmatprep.subr.mxu0 0.0
      %991 = vmatpush1.msra.mxu0 0.0
      %992 = vmatprep.subr.mxu0 0.0
      %993 = vmatpush1.msra.mxu0 0.0
      %994 = vmatprep.subr.mxu0 0.0
      %995 = vmatpush1.msra.mxu0 0.0
      %996 = vmatprep.subr.mxu0 0.0
      %997 = vmatpush1.msra.mxu0 0.0
      %998 = vmatprep.subr.mxu0 0.0
      %999 = vmatpush1.msra.mxu0 0.0
      %1000 = vmatprep.mubr.f32.mxu0 0.0
      %1001 = vmatmul.mubr.f32.gmra.mrb[0].mxu0 %v926
      %v1002 = vpop.f32.mrb[0].mxu0
      %v1003 = vadd.f32 %v830, %v1002
      %v1004 = vpop.f32.mrb[0].mxu0
      %v1005 = vadd.f32 %v832, %v1004
      %1006 = vdwg.mxu0
      %1007 = vmatprep.subr.mxu0 %v934
      %1008 = vmatpush1.msra.mxu0 %v932
      %1009 = vmatprep.subr.mxu0 0.0
      %1010 = vmatpush1.msra.mxu0 0.0
      %1011 = vmatprep.subr.mxu0 0.0
      %1012 = vmatpush1.msra.mxu0 0.0
      %1013 = vmatprep.subr.mxu0 0.0
      %1014 = vmatpush1.msra.mxu0 0.0
      %1015 = vmatprep.subr.mxu0 0.0
      %1016 = vmatpush1.msra.mxu0 0.0
      %1017 = vmatprep.subr.mxu0 0.0
      %1018 = vmatpush1.msra.mxu0 0.0
      %1019 = vmatprep.subr.mxu0 0.0
      %1020 = vmatpush1.msra.mxu0 0.0
      %1021 = vmatprep.subr.mxu0 0.0
      %1022 = vmatpush1.msra.mxu0 0.0
      %1023 = vmatprep.subr.mxu0 0.0
      %1024 = vmatpush1.msra.mxu0 0.0
      %1025 = vmatprep.subr.mxu0 0.0
      %1026 = vmatpush1.msra.mxu0 0.0
      %1027 = vmatprep.subr.mxu0 0.0
      %1028 = vmatpush1.msra.mxu0 0.0
      %1029 = vmatprep.subr.mxu0 0.0
      %1030 = vmatpush1.msra.mxu0 0.0
      %1031 = vmatprep.subr.mxu0 0.0
      %1032 = vmatpush1.msra.mxu0 0.0
      %1033 = vmatprep.subr.mxu0 0.0
      %1034 = vmatpush1.msra.mxu0 0.0
      %1035 = vmatprep.subr.mxu0 0.0
      %1036 = vmatpush1.msra.mxu0 0.0
      %1037 = vmatprep.subr.mxu0 0.0
      %1038 = vmatpush1.msra.mxu0 0.0
      %1039 = vmatprep.subr.mxu0 0.0
      %1040 = vmatpush1.msra.mxu0 0.0
      %1041 = vmatprep.subr.mxu0 0.0
      %1042 = vmatpush1.msra.mxu0 0.0
      %1043 = vmatprep.subr.mxu0 0.0
      %1044 = vmatpush1.msra.mxu0 0.0
      %1045 = vmatprep.subr.mxu0 0.0
      %1046 = vmatpush1.msra.mxu0 0.0
      %1047 = vmatprep.subr.mxu0 0.0
      %1048 = vmatpush1.msra.mxu0 0.0
      %1049 = vmatprep.subr.mxu0 0.0
      %1050 = vmatpush1.msra.mxu0 0.0
      %1051 = vmatprep.subr.mxu0 0.0
      %1052 = vmatpush1.msra.mxu0 0.0
      %1053 = vmatprep.subr.mxu0 0.0
      %1054 = vmatpush1.msra.mxu0 0.0
      %1055 = vmatprep.subr.mxu0 0.0
      %1056 = vmatpush1.msra.mxu0 0.0
      %1057 = vmatprep.subr.mxu0 0.0
      %1058 = vmatpush1.msra.mxu0 0.0
      %1059 = vmatprep.subr.mxu0 0.0
      %1060 = vmatpush1.msra.mxu0 0.0
      %1061 = vmatprep.subr.mxu0 0.0
      %1062 = vmatpush1.msra.mxu0 0.0
      %1063 = vmatprep.subr.mxu0 0.0
      %1064 = vmatpush1.msra.mxu0 0.0
      %1065 = vmatprep.subr.mxu0 0.0
      %1066 = vmatpush1.msra.mxu0 0.0
      %1067 = vmatprep.subr.mxu0 0.0
      %1068 = vmatpush1.msra.mxu0 0.0
      %1069 = vmatprep.subr.mxu0 0.0
      %1070 = vmatpush1.msra.mxu0 0.0
      %1071 = vmatprep.mubr.f32.mxu0 0.0
      %1072 = vmatmul.mubr.f32.gmra.mrb[0].mxu0 %v926
      %v1073 = vpop.f32.mrb[0].mxu0
      %v1074 = vadd.f32 %v901, %v1073
      %v1075 = vpop.f32.mrb[0].mxu0
      %v1076 = vadd.f32 %v903, %v1075
      %1077 = vdwg.mxu0
      %v1078 = vld [vmem:[#allocation2] sm:$0xff]
      %v1079 = vld [vmem:[#allocation2 + $0x8] sm:$0xff]
      %v1080 = vld [vmem:[#allocation2 + $0x10] sm:$0xf]
      %s1081 = scalar_lea.vmem %s6, 5
      %v1082 = vld [vmem:[%s1081] ss:$8 sm:$0xf]
      %v1083 = vmul.f32 %v654, %v1082
      %v1085 = vlaneseq
      %v1086 = vshrl.u32 %v1085, 7
      %v1087 = vsub.s32 0, %v1086
      %v1088 = vrot.slane %v1083, %v1087
      %v1089 = vlaneseq
      %v1090 = vshrl.u32 %v1089, 7
      %v1091 = vsub.s32 1, %v1090
      %v1092 = vrot.slane %v1083, %v1091
      %v1093 = vlaneseq
      %v1094 = vshrl.u32 %v1093, 7
      %v1095 = vsub.s32 2, %v1094
      %v1096 = vrot.slane %v1083, %v1095
      %v1097 = vlaneseq
      %v1098 = vshrl.u32 %v1097, 7
      %v1099 = vsub.s32 3, %v1098
      %v1100 = vrot.slane %v1083, %v1099
      %v1101 = vcombine.low %v1088, %v1092
      %v1102 = vcombine.low %v1096, %v1100
      %1103 = vrot.lane.b32.xlu0 %v1101, 57
      %v1104 = vpop.permute.xlu0 %1103
      %1105 = vrot.lane.b32.xlu0 %v1102, 57
      %v1106 = vpop.permute.xlu0 %1105
      %v1107 = vrot.slane %v1104, 4
      %v1108 = vrot.slane %v1106, 4
      %vm1109 = vcmask 465920
      %v1110 = vsel %vm1109, %v1107, %v1104
      %v1111 = vsel %vm595, %v1107, %v1108
      %v1112 = vsel %vm1109, %v1111, %v1106
      %v1116 = vmul.f32 %v1078, %v1110
      %v1117 = vmul.f32 %v1079, %v1112
      %v1118 = vmul.f32 %v1080, %v1108
      %s1119 = scalar_lea.vmem %s4, 8
      %v1120 = vld [vmem:[%s1119] sm:$0xf]
      %v1124 = vcombine.high %v1116, %v1116
      %v1125 = vcombine.high %v1117, %v1117
      %1126 = vrot.lane.b32.xlu0 %v1116, 71
      %v1127 = vpop.permute.xlu0 %1126
      %1128 = vrot.lane.b32.xlu0 %v1124, 71
      %v1129 = vpop.permute.xlu0 %1128
      %1130 = vrot.lane.b32.xlu0 %v1117, 71
      %v1131 = vpop.permute.xlu0 %1130
      %1132 = vrot.lane.b32.xlu0 %v1125, 71
      %v1133 = vpop.permute.xlu0 %1132
      %1134 = vrot.lane.b32.xlu0 %v1118, 71
      %v1135 = vpop.permute.xlu0 %1134
      %vm1136 = vcmask 580608
      %v1137 = vsel %vm1136, %v1127, %v1129
      %v1138 = vsel %vm1136, %v1129, %v1131
      %v1139 = vsel %vm1136, %v1131, %v1133
      %v1140 = vsel %vm1136, %v1133, %v1135
      %v1142 = vsel %vm751, %v1120, 0
      %v1144 = vsel %vm595, %v1137, 0
      %v1146 = vsel %vm595, %v1138, 0
      %v1148 = vsel %vm595, %v1139, 0
      %v1150 = vsel %vm595, %v1140, 0
      %1152 = vmatprep.subr.mxu0 %v1146
      %1153 = vmatpush1.msra.mxu0 %v1144
      %1154 = vmatprep.subr.mxu0 0.0
      %1155 = vmatpush1.msra.mxu0 0.0
      %1156 = vmatprep.subr.mxu0 0.0
      %1157 = vmatpush1.msra.mxu0 0.0
      %1158 = vmatprep.subr.mxu0 0.0
      %1159 = vmatpush1.msra.mxu0 0.0
      %1160 = vmatprep.subr.mxu0 0.0
      %1161 = vmatpush1.msra.mxu0 0.0
      %1162 = vmatprep.subr.mxu0 0.0
      %1163 = vmatpush1.msra.mxu0 0.0
      %1164 = vmatprep.subr.mxu0 0.0
      %1165 = vmatpush1.msra.mxu0 0.0
      %1166 = vmatprep.subr.mxu0 0.0
      %1167 = vmatpush1.msra.mxu0 0.0
      %1168 = vmatprep.subr.mxu0 0.0
      %1169 = vmatpush1.msra.mxu0 0.0
      %1170 = vmatprep.subr.mxu0 0.0
      %1171 = vmatpush1.msra.mxu0 0.0
      %1172 = vmatprep.subr.mxu0 0.0
      %1173 = vmatpush1.msra.mxu0 0.0
      %1174 = vmatprep.subr.mxu0 0.0
      %1175 = vmatpush1.msra.mxu0 0.0
      %1176 = vmatprep.subr.mxu0 0.0
      %1177 = vmatpush1.msra.mxu0 0.0
      %1178 = vmatprep.subr.mxu0 0.0
      %1179 = vmatpush1.msra.mxu0 0.0
      %1180 = vmatprep.subr.mxu0 0.0
      %1181 = vmatpush1.msra.mxu0 0.0
      %1182 = vmatprep.subr.mxu0 0.0
      %1183 = vmatpush1.msra.mxu0 0.0
      %1184 = vmatprep.subr.mxu0 0.0
      %1185 = vmatpush1.msra.mxu0 0.0
      %1186 = vmatprep.subr.mxu0 0.0
      %1187 = vmatpush1.msra.mxu0 0.0
      %1188 = vmatprep.subr.mxu0 0.0
      %1189 = vmatpush1.msra.mxu0 0.0
      %1190 = vmatprep.subr.mxu0 0.0
      %1191 = vmatpush1.msra.mxu0 0.0
      %1192 = vmatprep.subr.mxu0 0.0
      %1193 = vmatpush1.msra.mxu0 0.0
      %1194 = vmatprep.subr.mxu0 0.0
      %1195 = vmatpush1.msra.mxu0 0.0
      %1196 = vmatprep.subr.mxu0 0.0
      %1197 = vmatpush1.msra.mxu0 0.0
      %1198 = vmatprep.subr.mxu0 0.0
      %1199 = vmatpush1.msra.mxu0 0.0
      %1200 = vmatprep.subr.mxu0 0.0
      %1201 = vmatpush1.msra.mxu0 0.0
      %1202 = vmatprep.subr.mxu0 0.0
      %1203 = vmatpush1.msra.mxu0 0.0
      %1204 = vmatprep.subr.mxu0 0.0
      %1205 = vmatpush1.msra.mxu0 0.0
      %1206 = vmatprep.subr.mxu0 0.0
      %1207 = vmatpush1.msra.mxu0 0.0
      %1208 = vmatprep.subr.mxu0 0.0
      %1209 = vmatpush1.msra.mxu0 0.0
      %1210 = vmatprep.subr.mxu0 0.0
      %1211 = vmatpush1.msra.mxu0 0.0
      %1212 = vmatprep.subr.mxu0 0.0
      %1213 = vmatpush1.msra.mxu0 0.0
      %1214 = vmatprep.subr.mxu0 0.0
      %1215 = vmatpush1.msra.mxu0 0.0
      %1216 = vmatprep.mubr.f32.mxu0 0.0
      %1217 = vmatmul.mubr.f32.gmra.mrb[0].mxu0 %v1142
      %v1218 = vpop.f32.mrb[0].mxu0
      %v1219 = vadd.f32 0.0, %v1218
      %v1220 = vpop.f32.mrb[0].mxu0
      %v1221 = vadd.f32 0.0, %v1220
      %1222 = vdwg.mxu0
      %1223 = vmatprep.subr.mxu0 %v1150
      %1224 = vmatpush1.msra.mxu0 %v1148
      %1225 = vmatprep.subr.mxu0 0.0
      %1226 = vmatpush1.msra.mxu0 0.0
      %1227 = vmatprep.subr.mxu0 0.0
      %1228 = vmatpush1.msra.mxu0 0.0
      %1229 = vmatprep.subr.mxu0 0.0
      %1230 = vmatpush1.msra.mxu0 0.0
      %1231 = vmatprep.subr.mxu0 0.0
      %1232 = vmatpush1.msra.mxu0 0.0
      %1233 = vmatprep.subr.mxu0 0.0
      %1234 = vmatpush1.msra.mxu0 0.0
      %1235 = vmatprep.subr.mxu0 0.0
      %1236 = vmatpush1.msra.mxu0 0.0
      %1237 = vmatprep.subr.mxu0 0.0
      %1238 = vmatpush1.msra.mxu0 0.0
      %1239 = vmatprep.subr.mxu0 0.0
      %1240 = vmatpush1.msra.mxu0 0.0
      %1241 = vmatprep.subr.mxu0 0.0
      %1242 = vmatpush1.msra.mxu0 0.0
      %1243 = vmatprep.subr.mxu0 0.0
      %1244 = vmatpush1.msra.mxu0 0.0
      %1245 = vmatprep.subr.mxu0 0.0
      %1246 = vmatpush1.msra.mxu0 0.0
      %1247 = vmatprep.subr.mxu0 0.0
      %1248 = vmatpush1.msra.mxu0 0.0
      %1249 = vmatprep.subr.mxu0 0.0
      %1250 = vmatpush1.msra.mxu0 0.0
      %1251 = vmatprep.subr.mxu0 0.0
      %1252 = vmatpush1.msra.mxu0 0.0
      %1253 = vmatprep.subr.mxu0 0.0
      %1254 = vmatpush1.msra.mxu0 0.0
      %1255 = vmatprep.subr.mxu0 0.0
      %1256 = vmatpush1.msra.mxu0 0.0
      %1257 = vmatprep.subr.mxu0 0.0
      %1258 = vmatpush1.msra.mxu0 0.0
      %1259 = vmatprep.subr.mxu0 0.0
      %1260 = vmatpush1.msra.mxu0 0.0
      %1261 = vmatprep.subr.mxu0 0.0
      %1262 = vmatpush1.msra.mxu0 0.0
      %1263 = vmatprep.subr.mxu0 0.0
      %1264 = vmatpush1.msra.mxu0 0.0
      %1265 = vmatprep.subr.mxu0 0.0
      %1266 = vmatpush1.msra.mxu0 0.0
      %1267 = vmatprep.subr.mxu0 0.0
      %1268 = vmatpush1.msra.mxu0 0.0
      %1269 = vmatprep.subr.mxu0 0.0
      %1270 = vmatpush1.msra.mxu0 0.0
      %1271 = vmatprep.subr.mxu0 0.0
      %1272 = vmatpush1.msra.mxu0 0.0
      %1273 = vmatprep.subr.mxu0 0.0
      %1274 = vmatpush1.msra.mxu0 0.0
      %1275 = vmatprep.subr.mxu0 0.0
      %1276 = vmatpush1.msra.mxu0 0.0
      %1277 = vmatprep.subr.mxu0 0.0
      %1278 = vmatpush1.msra.mxu0 0.0
      %1279 = vmatprep.subr.mxu0 0.0
      %1280 = vmatpush1.msra.mxu0 0.0
      %1281 = vmatprep.subr.mxu0 0.0
      %1282 = vmatpush1.msra.mxu0 0.0
      %1283 = vmatprep.subr.mxu0 0.0
      %1284 = vmatpush1.msra.mxu0 0.0
      %1285 = vmatprep.subr.mxu0 0.0
      %1286 = vmatpush1.msra.mxu0 0.0
      %1287 = vmatprep.mubr.f32.mxu0 0.0
      %1288 = vmatmul.mubr.f32.gmra.mrb[0].mxu0 %v1142
      %v1289 = vpop.f32.mrb[0].mxu0
      %v1290 = vadd.f32 0.0, %v1289
      %v1291 = vpop.f32.mrb[0].mxu0
      %v1292 = vadd.f32 0.0, %v1291
      %1293 = vdwg.mxu0
      %v1294 = vadd.f32 %v1003, %v1219
      %v1295 = vadd.f32 %v1005, %v1221
      %v1296 = vadd.f32 %v1074, %v1290
      %v1297 = vadd.f32 %v1076, %v1292
      %v1298 = vld [vmem:[#allocation2] sm:$0xff]
      %v1299 = vld [vmem:[#allocation2 + $0x8] sm:$0xff]
      %v1300 = vld [vmem:[#allocation2 + $0x10] sm:$0xf]
      %v1301 = vmul.f32 %v651, %v656
      %v1303 = vlaneseq
      %v1304 = vshrl.u32 %v1303, 7
      %v1305 = vsub.s32 0, %v1304
      %v1306 = vrot.slane %v1301, %v1305
      %v1307 = vlaneseq
      %v1308 = vshrl.u32 %v1307, 7
      %v1309 = vsub.s32 1, %v1308
      %v1310 = vrot.slane %v1301, %v1309
      %v1311 = vlaneseq
      %v1312 = vshrl.u32 %v1311, 7
      %v1313 = vsub.s32 2, %v1312
      %v1314 = vrot.slane %v1301, %v1313
      %v1315 = vlaneseq
      %v1316 = vshrl.u32 %v1315, 7
      %v1317 = vsub.s32 3, %v1316
      %v1318 = vrot.slane %v1301, %v1317
      %v1319 = vcombine.low %v1306, %v1310
      %v1320 = vcombine.low %v1314, %v1318
      %1321 = vrot.lane.b32.xlu0 %v1319, 63
      %v1322 = vpop.permute.xlu0 %1321
      %1323 = vrot.lane.b32.xlu0 %v1320, 63
      %v1324 = vpop.permute.xlu0 %1323
      %v1325 = vrot.slane %v1322, 4
      %v1326 = vrot.slane %v1324, 4
      %vm1327 = vcmask 515072
      %v1328 = vsel %vm1327, %v1325, %v1322
      %v1329 = vsel %vm595, %v1325, %v1326
      %v1330 = vsel %vm1327, %v1329, %v1324
      %v1334 = vmul.f32 %v1298, %v1328
      %v1335 = vmul.f32 %v1299, %v1330
      %v1336 = vmul.f32 %v1300, %v1326
      %s1337 = scalar_lea.vmem %s4, 12
      %v1338 = vld [vmem:[%s1337] sm:$0xf]
      %v1342 = vcombine.high %v1334, %v1334
      %v1343 = vcombine.high %v1335, %v1335
      %1344 = vrot.lane.b32.xlu0 %v1334, 65
      %v1345 = vpop.permute.xlu0 %1344
      %1346 = vrot.lane.b32.xlu0 %v1342, 65
      %v1347 = vpop.permute.xlu0 %1346
      %1348 = vrot.lane.b32.xlu0 %v1335, 65
      %v1349 = vpop.permute.xlu0 %1348
      %1350 = vrot.lane.b32.xlu0 %v1343, 65
      %v1351 = vpop.permute.xlu0 %1350
      %1352 = vrot.lane.b32.xlu0 %v1336, 65
      %v1353 = vpop.permute.xlu0 %1352
      %vm1354 = vcmask 531456
      %v1355 = vsel %vm1354, %v1345, %v1347
      %v1356 = vsel %vm1354, %v1347, %v1349
      %v1357 = vsel %vm1354, %v1349, %v1351
      %v1358 = vsel %vm1354, %v1351, %v1353
      %v1360 = vsel %vm751, %v1338, 0
      %v1362 = vsel %vm595, %v1355, 0
      %v1364 = vsel %vm595, %v1356, 0
      %v1366 = vsel %vm595, %v1357, 0
      %v1368 = vsel %vm595, %v1358, 0
      %1370 = vmatprep.subr.mxu0 %v1364
      %1371 = vmatpush1.msra.mxu0 %v1362
      %1372 = vmatprep.subr.mxu0 0.0
      %1373 = vmatpush1.msra.mxu0 0.0
      %1374 = vmatprep.subr.mxu0 0.0
      %1375 = vmatpush1.msra.mxu0 0.0
      %1376 = vmatprep.subr.mxu0 0.0
      %1377 = vmatpush1.msra.mxu0 0.0
      %1378 = vmatprep.subr.mxu0 0.0
      %1379 = vmatpush1.msra.mxu0 0.0
      %1380 = vmatprep.subr.mxu0 0.0
      %1381 = vmatpush1.msra.mxu0 0.0
      %1382 = vmatprep.subr.mxu0 0.0
      %1383 = vmatpush1.msra.mxu0 0.0
      %1384 = vmatprep.subr.mxu0 0.0
      %1385 = vmatpush1.msra.mxu0 0.0
      %1386 = vmatprep.subr.mxu0 0.0
      %1387 = vmatpush1.msra.mxu0 0.0
      %1388 = vmatprep.subr.mxu0 0.0
      %1389 = vmatpush1.msra.mxu0 0.0
      %1390 = vmatprep.subr.mxu0 0.0
      %1391 = vmatpush1.msra.mxu0 0.0
      %1392 = vmatprep.subr.mxu0 0.0
      %1393 = vmatpush1.msra.mxu0 0.0
      %1394 = vmatprep.subr.mxu0 0.0
      %1395 = vmatpush1.msra.mxu0 0.0
      %1396 = vmatprep.subr.mxu0 0.0
      %1397 = vmatpush1.msra.mxu0 0.0
      %1398 = vmatprep.subr.mxu0 0.0
      %1399 = vmatpush1.msra.mxu0 0.0
      %1400 = vmatprep.subr.mxu0 0.0
      %1401 = vmatpush1.msra.mxu0 0.0
      %1402 = vmatprep.subr.mxu0 0.0
      %1403 = vmatpush1.msra.mxu0 0.0
      %1404 = vmatprep.subr.mxu0 0.0
      %1405 = vmatpush1.msra.mxu0 0.0
      %1406 = vmatprep.subr.mxu0 0.0
      %1407 = vmatpush1.msra.mxu0 0.0
      %1408 = vmatprep.subr.mxu0 0.0
      %1409 = vmatpush1.msra.mxu0 0.0
      %1410 = vmatprep.subr.mxu0 0.0
      %1411 = vmatpush1.msra.mxu0 0.0
      %1412 = vmatprep.subr.mxu0 0.0
      %1413 = vmatpush1.msra.mxu0 0.0
      %1414 = vmatprep.subr.mxu0 0.0
      %1415 = vmatpush1.msra.mxu0 0.0
      %1416 = vmatprep.subr.mxu0 0.0
      %1417 = vmatpush1.msra.mxu0 0.0
      %1418 = vmatprep.subr.mxu0 0.0
      %1419 = vmatpush1.msra.mxu0 0.0
      %1420 = vmatprep.subr.mxu0 0.0
      %1421 = vmatpush1.msra.mxu0 0.0
      %1422 = vmatprep.subr.mxu0 0.0
      %1423 = vmatpush1.msra.mxu0 0.0
      %1424 = vmatprep.subr.mxu0 0.0
      %1425 = vmatpush1.msra.mxu0 0.0
      %1426 = vmatprep.subr.mxu0 0.0
      %1427 = vmatpush1.msra.mxu0 0.0
      %1428 = vmatprep.subr.mxu0 0.0
      %1429 = vmatpush1.msra.mxu0 0.0
      %1430 = vmatprep.subr.mxu0 0.0
      %1431 = vmatpush1.msra.mxu0 0.0
      %1432 = vmatprep.subr.mxu0 0.0
      %1433 = vmatpush1.msra.mxu0 0.0
      %1434 = vmatprep.mubr.f32.mxu0 0.0
      %1435 = vmatmul.mubr.f32.gmra.mrb[0].mxu0 %v1360
      %v1436 = vpop.f32.mrb[0].mxu0
      %v1437 = vadd.f32 0.0, %v1436
      %v1438 = vpop.f32.mrb[0].mxu0
      %v1439 = vadd.f32 0.0, %v1438
      %1440 = vdwg.mxu0
      %1441 = vmatprep.subr.mxu0 %v1368
      %1442 = vmatpush1.msra.mxu0 %v1366
      %1443 = vmatprep.subr.mxu0 0.0
      %1444 = vmatpush1.msra.mxu0 0.0
      %1445 = vmatprep.subr.mxu0 0.0
      %1446 = vmatpush1.msra.mxu0 0.0
      %1447 = vmatprep.subr.mxu0 0.0
      %1448 = vmatpush1.msra.mxu0 0.0
      %1449 = vmatprep.subr.mxu0 0.0
      %1450 = vmatpush1.msra.mxu0 0.0
      %1451 = vmatprep.subr.mxu0 0.0
      %1452 = vmatpush1.msra.mxu0 0.0
      %1453 = vmatprep.subr.mxu0 0.0
      %1454 = vmatpush1.msra.mxu0 0.0
      %1455 = vmatprep.subr.mxu0 0.0
      %1456 = vmatpush1.msra.mxu0 0.0
      %1457 = vmatprep.subr.mxu0 0.0
      %1458 = vmatpush1.msra.mxu0 0.0
      %1459 = vmatprep.subr.mxu0 0.0
      %1460 = vmatpush1.msra.mxu0 0.0
      %1461 = vmatprep.subr.mxu0 0.0
      %1462 = vmatpush1.msra.mxu0 0.0
      %1463 = vmatprep.subr.mxu0 0.0
      %1464 = vmatpush1.msra.mxu0 0.0
      %1465 = vmatprep.subr.mxu0 0.0
      %1466 = vmatpush1.msra.mxu0 0.0
      %1467 = vmatprep.subr.mxu0 0.0
      %1468 = vmatpush1.msra.mxu0 0.0
      %1469 = vmatprep.subr.mxu0 0.0
      %1470 = vmatpush1.msra.mxu0 0.0
      %1471 = vmatprep.subr.mxu0 0.0
      %1472 = vmatpush1.msra.mxu0 0.0
      %1473 = vmatprep.subr.mxu0 0.0
      %1474 = vmatpush1.msra.mxu0 0.0
      %1475 = vmatprep.subr.mxu0 0.0
      %1476 = vmatpush1.msra.mxu0 0.0
      %1477 = vmatprep.subr.mxu0 0.0
      %1478 = vmatpush1.msra.mxu0 0.0
      %1479 = vmatprep.subr.mxu0 0.0
      %1480 = vmatpush1.msra.mxu0 0.0
      %1481 = vmatprep.subr.mxu0 0.0
      %1482 = vmatpush1.msra.mxu0 0.0
      %1483 = vmatprep.subr.mxu0 0.0
      %1484 = vmatpush1.msra.mxu0 0.0
      %1485 = vmatprep.subr.mxu0 0.0
      %1486 = vmatpush1.msra.mxu0 0.0
      %1487 = vmatprep.subr.mxu0 0.0
      %1488 = vmatpush1.msra.mxu0 0.0
      %1489 = vmatprep.subr.mxu0 0.0
      %1490 = vmatpush1.msra.mxu0 0.0
      %1491 = vmatprep.subr.mxu0 0.0
      %1492 = vmatpush1.msra.mxu0 0.0
      %1493 = vmatprep.subr.mxu0 0.0
      %1494 = vmatpush1.msra.mxu0 0.0
      %1495 = vmatprep.subr.mxu0 0.0
      %1496 = vmatpush1.msra.mxu0 0.0
      %1497 = vmatprep.subr.mxu0 0.0
      %1498 = vmatpush1.msra.mxu0 0.0
      %1499 = vmatprep.subr.mxu0 0.0
      %1500 = vmatpush1.msra.mxu0 0.0
      %1501 = vmatprep.subr.mxu0 0.0
      %1502 = vmatpush1.msra.mxu0 0.0
      %1503 = vmatprep.subr.mxu0 0.0
      %1504 = vmatpush1.msra.mxu0 0.0
      %1505 = vmatprep.mubr.f32.mxu0 0.0
      %1506 = vmatmul.mubr.f32.gmra.mrb[0].mxu0 %v1360
      %v1507 = vpop.f32.mrb[0].mxu0
      %v1508 = vadd.f32 0.0, %v1507
      %v1509 = vpop.f32.mrb[0].mxu0
      %v1510 = vadd.f32 0.0, %v1509
      %1511 = vdwg.mxu0
      %v1512 = vadd.f32 %v1294, %v1437
      %v1513 = vadd.f32 %v1295, %v1439
      %v1514 = vadd.f32 %v1296, %v1508
      %v1515 = vadd.f32 %v1297, %v1510
      %v1516 = vld [vmem:[#allocation2] sm:$0xff]
      %v1517 = vld [vmem:[#allocation2 + $0x8] sm:$0xff]
      %v1518 = vld [vmem:[#allocation2 + $0x10] sm:$0xf]
      %v1520 = vlaneseq
      %v1521 = vshrl.u32 %v1520, 7
      %v1522 = vsub.s32 0, %v1521
      %v1523 = vrot.slane %v651, %v1522
      %v1524 = vlaneseq
      %v1525 = vshrl.u32 %v1524, 7
      %v1526 = vsub.s32 1, %v1525
      %v1527 = vrot.slane %v651, %v1526
      %v1528 = vlaneseq
      %v1529 = vshrl.u32 %v1528, 7
      %v1530 = vsub.s32 2, %v1529
      %v1531 = vrot.slane %v651, %v1530
      %v1532 = vlaneseq
      %v1533 = vshrl.u32 %v1532, 7
      %v1534 = vsub.s32 3, %v1533
      %v1535 = vrot.slane %v651, %v1534
      %v1536 = vcombine.low %v1523, %v1527
      %v1537 = vcombine.low %v1531, %v1535
      %1538 = vrot.lane.b32.xlu0 %v1536, 64
      %v1539 = vpop.permute.xlu0 %1538
      %1540 = vrot.lane.b32.xlu0 %v1537, 64
      %v1541 = vpop.permute.xlu0 %1540
      %v1542 = vrot.slane %v1539, 4
      %v1543 = vrot.slane %v1541, 4
      %vm1544 = vcmask 523264
      %v1545 = vsel %vm1544, %v1542, %v1539
      %v1546 = vsel %vm595, %v1542, %v1543
      %v1547 = vsel %vm1544, %v1546, %v1541
      %v1551 = vmul.f32 %v1516, %v1545
      %v1552 = vmul.f32 %v1517, %v1547
      %v1553 = vmul.f32 %v1518, %v1543
      %s1554 = scalar_lea.vmem %s4, 16
      %v1555 = vld [vmem:[%s1554] sm:$0xf]
      %v1559 = vcombine.high %v1551, %v1551
      %v1560 = vcombine.high %v1552, %v1552
      %1561 = vrot.lane.b32.xlu0 %v1551, 64
      %v1562 = vpop.permute.xlu0 %1561
      %1563 = vrot.lane.b32.xlu0 %v1559, 64
      %v1564 = vpop.permute.xlu0 %1563
      %1565 = vrot.lane.b32.xlu0 %v1552, 64
      %v1566 = vpop.permute.xlu0 %1565
      %1567 = vrot.lane.b32.xlu0 %v1560, 64
      %v1568 = vpop.permute.xlu0 %1567
      %1569 = vrot.lane.b32.xlu0 %v1553, 64
      %v1570 = vpop.permute.xlu0 %1569
      %v1571 = vsel %vm1544, %v1562, %v1564
      %v1572 = vsel %vm1544, %v1564, %v1566
      %v1573 = vsel %vm1544, %v1566, %v1568
      %v1574 = vsel %vm1544, %v1568, %v1570
      %v1576 = vsel %vm751, %v1555, 0
      %v1578 = vsel %vm595, %v1571, 0
      %v1580 = vsel %vm595, %v1572, 0
      %v1582 = vsel %vm595, %v1573, 0
      %v1584 = vsel %vm595, %v1574, 0
      %1586 = vmatprep.subr.mxu0 %v1580
      %1587 = vmatpush1.msra.mxu0 %v1578
      %1588 = vmatprep.subr.mxu0 0.0
      %1589 = vmatpush1.msra.mxu0 0.0
      %1590 = vmatprep.subr.mxu0 0.0
      %1591 = vmatpush1.msra.mxu0 0.0
      %1592 = vmatprep.subr.mxu0 0.0
      %1593 = vmatpush1.msra.mxu0 0.0
      %1594 = vmatprep.subr.mxu0 0.0
      %1595 = vmatpush1.msra.mxu0 0.0
      %1596 = vmatprep.subr.mxu0 0.0
      %1597 = vmatpush1.msra.mxu0 0.0
      %1598 = vmatprep.subr.mxu0 0.0
      %1599 = vmatpush1.msra.mxu0 0.0
      %1600 = vmatprep.subr.mxu0 0.0
      %1601 = vmatpush1.msra.mxu0 0.0
      %1602 = vmatprep.subr.mxu0 0.0
      %1603 = vmatpush1.msra.mxu0 0.0
      %1604 = vmatprep.subr.mxu0 0.0
      %1605 = vmatpush1.msra.mxu0 0.0
      %1606 = vmatprep.subr.mxu0 0.0
      %1607 = vmatpush1.msra.mxu0 0.0
      %1608 = vmatprep.subr.mxu0 0.0
      %1609 = vmatpush1.msra.mxu0 0.0
      %1610 = vmatprep.subr.mxu0 0.0
      %1611 = vmatpush1.msra.mxu0 0.0
      %1612 = vmatprep.subr.mxu0 0.0
      %1613 = vmatpush1.msra.mxu0 0.0
      %1614 = vmatprep.subr.mxu0 0.0
      %1615 = vmatpush1.msra.mxu0 0.0
      %1616 = vmatprep.subr.mxu0 0.0
      %1617 = vmatpush1.msra.mxu0 0.0
      %1618 = vmatprep.subr.mxu0 0.0
      %1619 = vmatpush1.msra.mxu0 0.0
      %1620 = vmatprep.subr.mxu0 0.0
      %1621 = vmatpush1.msra.mxu0 0.0
      %1622 = vmatprep.subr.mxu0 0.0
      %1623 = vmatpush1.msra.mxu0 0.0
      %1624 = vmatprep.subr.mxu0 0.0
      %1625 = vmatpush1.msra.mxu0 0.0
      %1626 = vmatprep.subr.mxu0 0.0
      %1627 = vmatpush1.msra.mxu0 0.0
      %1628 = vmatprep.subr.mxu0 0.0
      %1629 = vmatpush1.msra.mxu0 0.0
      %1630 = vmatprep.subr.mxu0 0.0
      %1631 = vmatpush1.msra.mxu0 0.0
      %1632 = vmatprep.subr.mxu0 0.0
      %1633 = vmatpush1.msra.mxu0 0.0
      %1634 = vmatprep.subr.mxu0 0.0
      %1635 = vmatpush1.msra.mxu0 0.0
      %1636 = vmatprep.subr.mxu0 0.0
      %1637 = vmatpush1.msra.mxu0 0.0
      %1638 = vmatprep.subr.mxu0 0.0
      %1639 = vmatpush1.msra.mxu0 0.0
      %1640 = vmatprep.subr.mxu0 0.0
      %1641 = vmatpush1.msra.mxu0 0.0
      %1642 = vmatprep.subr.mxu0 0.0
      %1643 = vmatpush1.msra.mxu0 0.0
      %1644 = vmatprep.subr.mxu0 0.0
      %1645 = vmatpush1.msra.mxu0 0.0
      %1646 = vmatprep.subr.mxu0 0.0
      %1647 = vmatpush1.msra.mxu0 0.0
      %1648 = vmatprep.subr.mxu0 0.0
      %1649 = vmatpush1.msra.mxu0 0.0
      %1650 = vmatprep.mubr.f32.mxu0 0.0
      %1651 = vmatmul.mubr.f32.gmra.mrb[0].mxu0 %v1576
      %v1652 = vpop.f32.mrb[0].mxu0
      %v1653 = vadd.f32 0.0, %v1652
      %v1654 = vpop.f32.mrb[0].mxu0
      %v1655 = vadd.f32 0.0, %v1654
      %1656 = vdwg.mxu0
      %1657 = vmatprep.subr.mxu0 %v1584
      %1658 = vmatpush1.msra.mxu0 %v1582
      %1659 = vmatprep.subr.mxu0 0.0
      %1660 = vmatpush1.msra.mxu0 0.0
      %1661 = vmatprep.subr.mxu0 0.0
      %1662 = vmatpush1.msra.mxu0 0.0
      %1663 = vmatprep.subr.mxu0 0.0
      %1664 = vmatpush1.msra.mxu0 0.0
      %1665 = vmatprep.subr.mxu0 0.0
      %1666 = vmatpush1.msra.mxu0 0.0
      %1667 = vmatprep.subr.mxu0 0.0
      %1668 = vmatpush1.msra.mxu0 0.0
      %1669 = vmatprep.subr.mxu0 0.0
      %1670 = vmatpush1.msra.mxu0 0.0
      %1671 = vmatprep.subr.mxu0 0.0
      %1672 = vmatpush1.msra.mxu0 0.0
      %1673 = vmatprep.subr.mxu0 0.0
      %1674 = vmatpush1.msra.mxu0 0.0
      %1675 = vmatprep.subr.mxu0 0.0
      %1676 = vmatpush1.msra.mxu0 0.0
      %1677 = vmatprep.subr.mxu0 0.0
      %1678 = vmatpush1.msra.mxu0 0.0
      %1679 = vmatprep.subr.mxu0 0.0
      %1680 = vmatpush1.msra.mxu0 0.0
      %1681 = vmatprep.subr.mxu0 0.0
      %1682 = vmatpush1.msra.mxu0 0.0
      %1683 = vmatprep.subr.mxu0 0.0
      %1684 = vmatpush1.msra.mxu0 0.0
      %1685 = vmatprep.subr.mxu0 0.0
      %1686 = vmatpush1.msra.mxu0 0.0
      %1687 = vmatprep.subr.mxu0 0.0
      %1688 = vmatpush1.msra.mxu0 0.0
      %1689 = vmatprep.subr.mxu0 0.0
      %1690 = vmatpush1.msra.mxu0 0.0
      %1691 = vmatprep.subr.mxu0 0.0
      %1692 = vmatpush1.msra.mxu0 0.0
      %1693 = vmatprep.subr.mxu0 0.0
      %1694 = vmatpush1.msra.mxu0 0.0
      %1695 = vmatprep.subr.mxu0 0.0
      %1696 = vmatpush1.msra.mxu0 0.0
      %1697 = vmatprep.subr.mxu0 0.0
      %1698 = vmatpush1.msra.mxu0 0.0
      %1699 = vmatprep.subr.mxu0 0.0
      %1700 = vmatpush1.msra.mxu0 0.0
      %1701 = vmatprep.subr.mxu0 0.0
      %1702 = vmatpush1.msra.mxu0 0.0
      %1703 = vmatprep.subr.mxu0 0.0
      %1704 = vmatpush1.msra.mxu0 0.0
      %1705 = vmatprep.subr.mxu0 0.0
      %1706 = vmatpush1.msra.mxu0 0.0
      %1707 = vmatprep.subr.mxu0 0.0
      %1708 = vmatpush1.msra.mxu0 0.0
      %1709 = vmatprep.subr.mxu0 0.0
      %1710 = vmatpush1.msra.mxu0 0.0
      %1711 = vmatprep.subr.mxu0 0.0
      %1712 = vmatpush1.msra.mxu0 0.0
      %1713 = vmatprep.subr.mxu0 0.0
      %1714 = vmatpush1.msra.mxu0 0.0
      %1715 = vmatprep.subr.mxu0 0.0
      %1716 = vmatpush1.msra.mxu0 0.0
      %1717 = vmatprep.subr.mxu0 0.0
      %1718 = vmatpush1.msra.mxu0 0.0
      %1719 = vmatprep.subr.mxu0 0.0
      %1720 = vmatpush1.msra.mxu0 0.0
      %1721 = vmatprep.mubr.f32.mxu0 0.0
      %1722 = vmatmul.mubr.f32.gmra.mrb[0].mxu0 %v1576
      %v1723 = vpop.f32.mrb[0].mxu0
      %v1724 = vadd.f32 0.0, %v1723
      %v1725 = vpop.f32.mrb[0].mxu0
      %v1726 = vadd.f32 0.0, %v1725
      %1727 = vdwg.mxu0
      %v1728 = vadd.f32 %v1512, %v1653
      %v1729 = vadd.f32 %v1513, %v1655
      %v1730 = vadd.f32 %v1514, %v1724
      %v1731 = vadd.f32 %v1515, %v1726
      %v1732 = vld [vmem:[#allocation2] sm:$0xff]
      %v1733 = vld [vmem:[#allocation2 + $0x8] sm:$0xff]
      %v1734 = vld [vmem:[#allocation2 + $0x10] sm:$0xf]
      %v1735 = vmul.f32 %v651, %v1082
      %v1737 = vlaneseq
      %v1738 = vshrl.u32 %v1737, 7
      %v1739 = vsub.s32 0, %v1738
      %v1740 = vrot.slane %v1735, %v1739
      %v1741 = vlaneseq
      %v1742 = vshrl.u32 %v1741, 7
      %v1743 = vsub.s32 1, %v1742
      %v1744 = vrot.slane %v1735, %v1743
      %v1745 = vlaneseq
      %v1746 = vshrl.u32 %v1745, 7
      %v1747 = vsub.s32 2, %v1746
      %v1748 = vrot.slane %v1735, %v1747
      %v1749 = vlaneseq
      %v1750 = vshrl.u32 %v1749, 7
      %v1751 = vsub.s32 3, %v1750
      %v1752 = vrot.slane %v1735, %v1751
      %v1753 = vcombine.low %v1740, %v1744
      %v1754 = vcombine.low %v1748, %v1752
      %1755 = vrot.lane.b32.xlu0 %v1753, 65
      %v1756 = vpop.permute.xlu0 %1755
      %1757 = vrot.lane.b32.xlu0 %v1754, 65
      %v1758 = vpop.permute.xlu0 %1757
      %v1759 = vrot.slane %v1756, 4
      %v1760 = vrot.slane %v1758, 4
      %v1761 = vsel %vm1354, %v1759, %v1756
      %v1762 = vsel %vm595, %v1759, %v1760
      %v1763 = vsel %vm1354, %v1762, %v1758
      %v1767 = vmul.f32 %v1732, %v1761
      %v1768 = vmul.f32 %v1733, %v1763
      %v1769 = vmul.f32 %v1734, %v1760
      %s1770 = scalar_lea.vmem %s4, 20
      %v1771 = vld [vmem:[%s1770] sm:$0xf]
      %v1775 = vcombine.high %v1767, %v1767
      %v1776 = vcombine.high %v1768, %v1768
      %1777 = vrot.lane.b32.xlu0 %v1767, 63
      %v1778 = vpop.permute.xlu0 %1777
      %1779 = vrot.lane.b32.xlu0 %v1775, 63
      %v1780 = vpop.permute.xlu0 %1779
      %1781 = vrot.lane.b32.xlu0 %v1768, 63
      %v1782 = vpop.permute.xlu0 %1781
      %1783 = vrot.lane.b32.xlu0 %v1776, 63
      %v1784 = vpop.permute.xlu0 %1783
      %1785 = vrot.lane.b32.xlu0 %v1769, 63
      %v1786 = vpop.permute.xlu0 %1785
      %v1787 = vsel %vm1327, %v1778, %v1780
      %v1788 = vsel %vm1327, %v1780, %v1782
      %v1789 = vsel %vm1327, %v1782, %v1784
      %v1790 = vsel %vm1327, %v1784, %v1786
      %v1792 = vsel %vm751, %v1771, 0
      %v1794 = vsel %vm595, %v1787, 0
      %v1796 = vsel %vm595, %v1788, 0
      %v1798 = vsel %vm595, %v1789, 0
      %v1800 = vsel %vm595, %v1790, 0
      %1802 = vmatprep.subr.mxu0 %v1796
      %1803 = vmatpush1.msra.mxu0 %v1794
      %1804 = vmatprep.subr.mxu0 0.0
      %1805 = vmatpush1.msra.mxu0 0.0
      %1806 = vmatprep.subr.mxu0 0.0
      %1807 = vmatpush1.msra.mxu0 0.0
      %1808 = vmatprep.subr.mxu0 0.0
      %1809 = vmatpush1.msra.mxu0 0.0
      %1810 = vmatprep.subr.mxu0 0.0
      %1811 = vmatpush1.msra.mxu0 0.0
      %1812 = vmatprep.subr.mxu0 0.0
      %1813 = vmatpush1.msra.mxu0 0.0
      %1814 = vmatprep.subr.mxu0 0.0
      %1815 = vmatpush1.msra.mxu0 0.0
      %1816 = vmatprep.subr.mxu0 0.0
      %1817 = vmatpush1.msra.mxu0 0.0
      %1818 = vmatprep.subr.mxu0 0.0
      %1819 = vmatpush1.msra.mxu0 0.0
      %1820 = vmatprep.subr.mxu0 0.0
      %1821 = vmatpush1.msra.mxu0 0.0
      %1822 = vmatprep.subr.mxu0 0.0
      %1823 = vmatpush1.msra.mxu0 0.0
      %1824 = vmatprep.subr.mxu0 0.0
      %1825 = vmatpush1.msra.mxu0 0.0
      %1826 = vmatprep.subr.mxu0 0.0
      %1827 = vmatpush1.msra.mxu0 0.0
      %1828 = vmatprep.subr.mxu0 0.0
      %1829 = vmatpush1.msra.mxu0 0.0
      %1830 = vmatprep.subr.mxu0 0.0
      %1831 = vmatpush1.msra.mxu0 0.0
      %1832 = vmatprep.subr.mxu0 0.0
      %1833 = vmatpush1.msra.mxu0 0.0
      %1834 = vmatprep.subr.mxu0 0.0
      %1835 = vmatpush1.msra.mxu0 0.0
      %1836 = vmatprep.subr.mxu0 0.0
      %1837 = vmatpush1.msra.mxu0 0.0
      %1838 = vmatprep.subr.mxu0 0.0
      %1839 = vmatpush1.msra.mxu0 0.0
      %1840 = vmatprep.subr.mxu0 0.0
      %1841 = vmatpush1.msra.mxu0 0.0
      %1842 = vmatprep.subr.mxu0 0.0
      %1843 = vmatpush1.msra.mxu0 0.0
      %1844 = vmatprep.subr.mxu0 0.0
      %1845 = vmatpush1.msra.mxu0 0.0
      %1846 = vmatprep.subr.mxu0 0.0
      %1847 = vmatpush1.msra.mxu0 0.0
      %1848 = vmatprep.subr.mxu0 0.0
      %1849 = vmatpush1.msra.mxu0 0.0
      %1850 = vmatprep.subr.mxu0 0.0
      %1851 = vmatpush1.msra.mxu0 0.0
      %1852 = vmatprep.subr.mxu0 0.0
      %1853 = vmatpush1.msra.mxu0 0.0
      %1854 = vmatprep.subr.mxu0 0.0
      %1855 = vmatpush1.msra.mxu0 0.0
      %1856 = vmatprep.subr.mxu0 0.0
      %1857 = vmatpush1.msra.mxu0 0.0
      %1858 = vmatprep.subr.mxu0 0.0
      %1859 = vmatpush1.msra.mxu0 0.0
      %1860 = vmatprep.subr.mxu0 0.0
      %1861 = vmatpush1.msra.mxu0 0.0
      %1862 = vmatprep.subr.mxu0 0.0
      %1863 = vmatpush1.msra.mxu0 0.0
      %1864 = vmatprep.subr.mxu0 0.0
      %1865 = vmatpush1.msra.mxu0 0.0
      %1866 = vmatprep.mubr.f32.mxu0 0.0
      %1867 = vmatmul.mubr.f32.gmra.mrb[0].mxu0 %v1792
      %v1868 = vpop.f32.mrb[0].mxu0
      %v1869 = vadd.f32 0.0, %v1868
      %v1870 = vpop.f32.mrb[0].mxu0
      %v1871 = vadd.f32 0.0, %v1870
      %1872 = vdwg.mxu0
      %1873 = vmatprep.subr.mxu0 %v1800
      %1874 = vmatpush1.msra.mxu0 %v1798
      %1875 = vmatprep.subr.mxu0 0.0
      %1876 = vmatpush1.msra.mxu0 0.0
      %1877 = vmatprep.subr.mxu0 0.0
      %1878 = vmatpush1.msra.mxu0 0.0
      %1879 = vmatprep.subr.mxu0 0.0
      %1880 = vmatpush1.msra.mxu0 0.0
      %1881 = vmatprep.subr.mxu0 0.0
      %1882 = vmatpush1.msra.mxu0 0.0
      %1883 = vmatprep.subr.mxu0 0.0
      %1884 = vmatpush1.msra.mxu0 0.0
      %1885 = vmatprep.subr.mxu0 0.0
      %1886 = vmatpush1.msra.mxu0 0.0
      %1887 = vmatprep.subr.mxu0 0.0
      %1888 = vmatpush1.msra.mxu0 0.0
      %1889 = vmatprep.subr.mxu0 0.0
      %1890 = vmatpush1.msra.mxu0 0.0
      %1891 = vmatprep.subr.mxu0 0.0
      %1892 = vmatpush1.msra.mxu0 0.0
      %1893 = vmatprep.subr.mxu0 0.0
      %1894 = vmatpush1.msra.mxu0 0.0
      %1895 = vmatprep.subr.mxu0 0.0
      %1896 = vmatpush1.msra.mxu0 0.0
      %1897 = vmatprep.subr.mxu0 0.0
      %1898 = vmatpush1.msra.mxu0 0.0
      %1899 = vmatprep.subr.mxu0 0.0
      %1900 = vmatpush1.msra.mxu0 0.0
      %1901 = vmatprep.subr.mxu0 0.0
      %1902 = vmatpush1.msra.mxu0 0.0
      %1903 = vmatprep.subr.mxu0 0.0
      %1904 = vmatpush1.msra.mxu0 0.0
      %1905 = vmatprep.subr.mxu0 0.0
      %1906 = vmatpush1.msra.mxu0 0.0
      %1907 = vmatprep.subr.mxu0 0.0
      %1908 = vmatpush1.msra.mxu0 0.0
      %1909 = vmatprep.subr.mxu0 0.0
      %1910 = vmatpush1.msra.mxu0 0.0
      %1911 = vmatprep.subr.mxu0 0.0
      %1912 = vmatpush1.msra.mxu0 0.0
      %1913 = vmatprep.subr.mxu0 0.0
      %1914 = vmatpush1.msra.mxu0 0.0
      %1915 = vmatprep.subr.mxu0 0.0
      %1916 = vmatpush1.msra.mxu0 0.0
      %1917 = vmatprep.subr.mxu0 0.0
      %1918 = vmatpush1.msra.mxu0 0.0
      %1919 = vmatprep.subr.mxu0 0.0
      %1920 = vmatpush1.msra.mxu0 0.0
      %1921 = vmatprep.subr.mxu0 0.0
      %1922 = vmatpush1.msra.mxu0 0.0
      %1923 = vmatprep.subr.mxu0 0.0
      %1924 = vmatpush1.msra.mxu0 0.0
      %1925 = vmatprep.subr.mxu0 0.0
      %1926 = vmatpush1.msra.mxu0 0.0
      %1927 = vmatprep.subr.mxu0 0.0
      %1928 = vmatpush1.msra.mxu0 0.0
      %1929 = vmatprep.subr.mxu0 0.0
      %1930 = vmatpush1.msra.mxu0 0.0
      %1931 = vmatprep.subr.mxu0 0.0
      %1932 = vmatpush1.msra.mxu0 0.0
      %1933 = vmatprep.subr.mxu0 0.0
      %1934 = vmatpush1.msra.mxu0 0.0
      %1935 = vmatprep.subr.mxu0 0.0
      %1936 = vmatpush1.msra.mxu0 0.0
      %1937 = vmatprep.mubr.f32.mxu0 0.0
      %1938 = vmatmul.mubr.f32.gmra.mrb[0].mxu0 %v1792
      %v1939 = vpop.f32.mrb[0].mxu0
      %v1940 = vadd.f32 0.0, %v1939
      %v1941 = vpop.f32.mrb[0].mxu0
      %v1942 = vadd.f32 0.0, %v1941
      %1943 = vdwg.mxu0
      %v1944 = vadd.f32 %v1728, %v1869
      %v1945 = vadd.f32 %v1729, %v1871
      %v1946 = vadd.f32 %v1730, %v1940
      %v1947 = vadd.f32 %v1731, %v1942
      %v1948 = vld [vmem:[#allocation2] sm:$0xff]
      %v1949 = vld [vmem:[#allocation2 + $0x8] sm:$0xff]
      %v1950 = vld [vmem:[#allocation2 + $0x10] sm:$0xf]
      %s1951 = scalar_lea.vmem %s6, 3
      %v1952 = vld [vmem:[%s1951] ss:$8 sm:$0xf]
      %v1953 = vmul.f32 %v651, %v1952
      %v1954 = vmul.f32 %v1953, %v656
      %v1956 = vlaneseq
      %v1957 = vshrl.u32 %v1956, 7
      %v1958 = vsub.s32 0, %v1957
      %v1959 = vrot.slane %v1954, %v1958
      %v1960 = vlaneseq
      %v1961 = vshrl.u32 %v1960, 7
      %v1962 = vsub.s32 1, %v1961
      %v1963 = vrot.slane %v1954, %v1962
      %v1964 = vlaneseq
      %v1965 = vshrl.u32 %v1964, 7
      %v1966 = vsub.s32 2, %v1965
      %v1967 = vrot.slane %v1954, %v1966
      %v1968 = vlaneseq
      %v1969 = vshrl.u32 %v1968, 7
      %v1970 = vsub.s32 3, %v1969
      %v1971 = vrot.slane %v1954, %v1970
      %v1972 = vcombine.low %v1959, %v1963
      %v1973 = vcombine.low %v1967, %v1971
      %1974 = vrot.lane.b32.xlu0 %v1972, 71
      %v1975 = vpop.permute.xlu0 %1974
      %1976 = vrot.lane.b32.xlu0 %v1973, 71
      %v1977 = vpop.permute.xlu0 %1976
      %v1978 = vrot.slane %v1975, 4
      %v1979 = vrot.slane %v1977, 4
      %v1980 = vsel %vm1136, %v1978, %v1975
      %v1981 = vsel %vm595, %v1978, %v1979
      %v1982 = vsel %vm1136, %v1981, %v1977
      %v1986 = vmul.f32 %v1948, %v1980
      %v1987 = vmul.f32 %v1949, %v1982
      %v1988 = vmul.f32 %v1950, %v1979
      %s1989 = scalar_lea.vmem %s4, 24
      %v1990 = vld [vmem:[%s1989] sm:$0xf]
      %v1994 = vcombine.high %v1986, %v1986
      %v1995 = vcombine.high %v1987, %v1987
      %1996 = vrot.lane.b32.xlu0 %v1986, 57
      %v1997 = vpop.permute.xlu0 %1996
      %1998 = vrot.lane.b32.xlu0 %v1994, 57
      %v1999 = vpop.permute.xlu0 %1998
      %2000 = vrot.lane.b32.xlu0 %v1987, 57
      %v2001 = vpop.permute.xlu0 %2000
      %2002 = vrot.lane.b32.xlu0 %v1995, 57
      %v2003 = vpop.permute.xlu0 %2002
      %2004 = vrot.lane.b32.xlu0 %v1988, 57
      %v2005 = vpop.permute.xlu0 %2004
      %v2006 = vsel %vm1109, %v1997, %v1999
      %v2007 = vsel %vm1109, %v1999, %v2001
      %v2008 = vsel %vm1109, %v2001, %v2003
      %v2009 = vsel %vm1109, %v2003, %v2005
      %v2011 = vsel %vm751, %v1990, 0
      %v2013 = vsel %vm595, %v2006, 0
      %v2015 = vsel %vm595, %v2007, 0
      %v2017 = vsel %vm595, %v2008, 0
      %v2019 = vsel %vm595, %v2009, 0
      %2021 = vmatprep.subr.mxu0 %v2015
      %2022 = vmatpush1.msra.mxu0 %v2013
      %2023 = vmatprep.subr.mxu0 0.0
      %2024 = vmatpush1.msra.mxu0 0.0
      %2025 = vmatprep.subr.mxu0 0.0
      %2026 = vmatpush1.msra.mxu0 0.0
      %2027 = vmatprep.subr.mxu0 0.0
      %2028 = vmatpush1.msra.mxu0 0.0
      %2029 = vmatprep.subr.mxu0 0.0
      %2030 = vmatpush1.msra.mxu0 0.0
      %2031 = vmatprep.subr.mxu0 0.0
      %2032 = vmatpush1.msra.mxu0 0.0
      %2033 = vmatprep.subr.mxu0 0.0
      %2034 = vmatpush1.msra.mxu0 0.0
      %2035 = vmatprep.subr.mxu0 0.0
      %2036 = vmatpush1.msra.mxu0 0.0
      %2037 = vmatprep.subr.mxu0 0.0
      %2038 = vmatpush1.msra.mxu0 0.0
      %2039 = vmatprep.subr.mxu0 0.0
      %2040 = vmatpush1.msra.mxu0 0.0
      %2041 = vmatprep.subr.mxu0 0.0
      %2042 = vmatpush1.msra.mxu0 0.0
      %2043 = vmatprep.subr.mxu0 0.0
      %2044 = vmatpush1.msra.mxu0 0.0
      %2045 = vmatprep.subr.mxu0 0.0
      %2046 = vmatpush1.msra.mxu0 0.0
      %2047 = vmatprep.subr.mxu0 0.0
      %2048 = vmatpush1.msra.mxu0 0.0
      %2049 = vmatprep.subr.mxu0 0.0
      %2050 = vmatpush1.msra.mxu0 0.0
      %2051 = vmatprep.subr.mxu0 0.0
      %2052 = vmatpush1.msra.mxu0 0.0
      %2053 = vmatprep.subr.mxu0 0.0
      %2054 = vmatpush1.msra.mxu0 0.0
      %2055 = vmatprep.subr.mxu0 0.0
      %2056 = vmatpush1.msra.mxu0 0.0
      %2057 = vmatprep.subr.mxu0 0.0
      %2058 = vmatpush1.msra.mxu0 0.0
      %2059 = vmatprep.subr.mxu0 0.0
      %2060 = vmatpush1.msra.mxu0 0.0
      %2061 = vmatprep.subr.mxu0 0.0
      %2062 = vmatpush1.msra.mxu0 0.0
      %2063 = vmatprep.subr.mxu0 0.0
      %2064 = vmatpush1.msra.mxu0 0.0
      %2065 = vmatprep.subr.mxu0 0.0
      %2066 = vmatpush1.msra.mxu0 0.0
      %2067 = vmatprep.subr.mxu0 0.0
      %2068 = vmatpush1.msra.mxu0 0.0
      %2069 = vmatprep.subr.mxu0 0.0
      %2070 = vmatpush1.msra.mxu0 0.0
      %2071 = vmatprep.subr.mxu0 0.0
      %2072 = vmatpush1.msra.mxu0 0.0
      %2073 = vmatprep.subr.mxu0 0.0
      %2074 = vmatpush1.msra.mxu0 0.0
      %2075 = vmatprep.subr.mxu0 0.0
      %2076 = vmatpush1.msra.mxu0 0.0
      %2077 = vmatprep.subr.mxu0 0.0
      %2078 = vmatpush1.msra.mxu0 0.0
      %2079 = vmatprep.subr.mxu0 0.0
      %2080 = vmatpush1.msra.mxu0 0.0
      %2081 = vmatprep.subr.mxu0 0.0
      %2082 = vmatpush1.msra.mxu0 0.0
      %2083 = vmatprep.subr.mxu0 0.0
      %2084 = vmatpush1.msra.mxu0 0.0
      %2085 = vmatprep.mubr.f32.mxu0 0.0
      %2086 = vmatmul.mubr.f32.gmra.mrb[0].mxu0 %v2011
      %v2087 = vpop.f32.mrb[0].mxu0
      %v2088 = vadd.f32 0.0, %v2087
      %v2089 = vpop.f32.mrb[0].mxu0
      %v2090 = vadd.f32 0.0, %v2089
      %2091 = vdwg.mxu0
      %2092 = vmatprep.subr.mxu0 %v2019
      %2093 = vmatpush1.msra.mxu0 %v2017
      %2094 = vmatprep.subr.mxu0 0.0
      %2095 = vmatpush1.msra.mxu0 0.0
      %2096 = vmatprep.subr.mxu0 0.0
      %2097 = vmatpush1.msra.mxu0 0.0
      %2098 = vmatprep.subr.mxu0 0.0
      %2099 = vmatpush1.msra.mxu0 0.0
      %2100 = vmatprep.subr.mxu0 0.0
      %2101 = vmatpush1.msra.mxu0 0.0
      %2102 = vmatprep.subr.mxu0 0.0
      %2103 = vmatpush1.msra.mxu0 0.0
      %2104 = vmatprep.subr.mxu0 0.0
      %2105 = vmatpush1.msra.mxu0 0.0
      %2106 = vmatprep.subr.mxu0 0.0
      %2107 = vmatpush1.msra.mxu0 0.0
      %2108 = vmatprep.subr.mxu0 0.0
      %2109 = vmatpush1.msra.mxu0 0.0
      %2110 = vmatprep.subr.mxu0 0.0
      %2111 = vmatpush1.msra.mxu0 0.0
      %2112 = vmatprep.subr.mxu0 0.0
      %2113 = vmatpush1.msra.mxu0 0.0
      %2114 = vmatprep.subr.mxu0 0.0
      %2115 = vmatpush1.msra.mxu0 0.0
      %2116 = vmatprep.subr.mxu0 0.0
      %2117 = vmatpush1.msra.mxu0 0.0
      %2118 = vmatprep.subr.mxu0 0.0
      %2119 = vmatpush1.msra.mxu0 0.0
      %2120 = vmatprep.subr.mxu0 0.0
      %2121 = vmatpush1.msra.mxu0 0.0
      %2122 = vmatprep.subr.mxu0 0.0
      %2123 = vmatpush1.msra.mxu0 0.0
      %2124 = vmatprep.subr.mxu0 0.0
      %2125 = vmatpush1.msra.mxu0 0.0
      %2126 = vmatprep.subr.mxu0 0.0
      %2127 = vmatpush1.msra.mxu0 0.0
      %2128 = vmatprep.subr.mxu0 0.0
      %2129 = vmatpush1.msra.mxu0 0.0
      %2130 = vmatprep.subr.mxu0 0.0
      %2131 = vmatpush1.msra.mxu0 0.0
      %2132 = vmatprep.subr.mxu0 0.0
      %2133 = vmatpush1.msra.mxu0 0.0
      %2134 = vmatprep.subr.mxu0 0.0
      %2135 = vmatpush1.msra.mxu0 0.0
      %2136 = vmatprep.subr.mxu0 0.0
      %2137 = vmatpush1.msra.mxu0 0.0
      %2138 = vmatprep.subr.mxu0 0.0
      %2139 = vmatpush1.msra.mxu0 0.0
      %2140 = vmatprep.subr.mxu0 0.0
      %2141 = vmatpush1.msra.mxu0 0.0
      %2142 = vmatprep.subr.mxu0 0.0
      %2143 = vmatpush1.msra.mxu0 0.0
      %2144 = vmatprep.subr.mxu0 0.0
      %2145 = vmatpush1.msra.mxu0 0.0
      %2146 = vmatprep.subr.mxu0 0.0
      %2147 = vmatpush1.msra.mxu0 0.0
      %2148 = vmatprep.subr.mxu0 0.0
      %2149 = vmatpush1.msra.mxu0 0.0
      %2150 = vmatprep.subr.mxu0 0.0
      %2151 = vmatpush1.msra.mxu0 0.0
      %2152 = vmatprep.subr.mxu0 0.0
      %2153 = vmatpush1.msra.mxu0 0.0
      %2154 = vmatprep.subr.mxu0 0.0
      %2155 = vmatpush1.msra.mxu0 0.0
      %2156 = vmatprep.mubr.f32.mxu0 0.0
      %2157 = vmatmul.mubr.f32.gmra.mrb[0].mxu0 %v2011
      %v2158 = vpop.f32.mrb[0].mxu0
      %v2159 = vadd.f32 0.0, %v2158
      %v2160 = vpop.f32.mrb[0].mxu0
      %v2161 = vadd.f32 0.0, %v2160
      %2162 = vdwg.mxu0
      %v2163 = vadd.f32 %v1944, %v2088
      %v2164 = vadd.f32 %v1945, %v2090
      %v2165 = vadd.f32 %v1946, %v2159
      %v2166 = vadd.f32 %v1947, %v2161
      %v2167 = vld [vmem:[#allocation2] sm:$0xff]
      %v2168 = vld [vmem:[#allocation2 + $0x8] sm:$0xff]
      %v2169 = vld [vmem:[#allocation2 + $0x10] sm:$0xf]
      %v2171 = vlaneseq
      %v2172 = vshrl.u32 %v2171, 7
      %v2173 = vsub.s32 0, %v2172
      %v2174 = vrot.slane %v1953, %v2173
      %v2175 = vlaneseq
      %v2176 = vshrl.u32 %v2175, 7
      %v2177 = vsub.s32 1, %v2176
      %v2178 = vrot.slane %v1953, %v2177
      %v2179 = vlaneseq
      %v2180 = vshrl.u32 %v2179, 7
      %v2181 = vsub.s32 2, %v2180
      %v2182 = vrot.slane %v1953, %v2181
      %v2183 = vlaneseq
      %v2184 = vshrl.u32 %v2183, 7
      %v2185 = vsub.s32 3, %v2184
      %v2186 = vrot.slane %v1953, %v2185
      %v2187 = vcombine.low %v2174, %v2178
      %v2188 = vcombine.low %v2182, %v2186
      %2189 = vrot.lane.b32.xlu0 %v2187, 72
      %v2190 = vpop.permute.xlu0 %2189
      %2191 = vrot.lane.b32.xlu0 %v2188, 72
      %v2192 = vpop.permute.xlu0 %2191
      %v2193 = vrot.slane %v2190, 4
      %v2194 = vrot.slane %v2192, 4
      %v2195 = vsel %vm746, %v2193, %v2190
      %v2196 = vsel %vm595, %v2193, %v2194
      %v2197 = vsel %vm746, %v2196, %v2192
      %v2201 = vmul.f32 %v2167, %v2195
      %v2202 = vmul.f32 %v2168, %v2197
      %v2203 = vmul.f32 %v2169, %v2194
      %s2204 = scalar_lea.vmem %s4, 28
      %v2205 = vld [vmem:[%s2204] sm:$0xf]
      %v2209 = vcombine.high %v2201, %v2201
      %v2210 = vcombine.high %v2202, %v2202
      %2211 = vrot.lane.b32.xlu0 %v2201, 56
      %v2212 = vpop.permute.xlu0 %2211
      %2213 = vrot.lane.b32.xlu0 %v2209, 56
      %v2214 = vpop.permute.xlu0 %2213
      %2215 = vrot.lane.b32.xlu0 %v2202, 56
      %v2216 = vpop.permute.xlu0 %2215
      %2217 = vrot.lane.b32.xlu0 %v2210, 56
      %v2218 = vpop.permute.xlu0 %2217
      %2219 = vrot.lane.b32.xlu0 %v2203, 56
      %v2220 = vpop.permute.xlu0 %2219
      %v2221 = vsel %vm719, %v2212, %v2214
      %v2222 = vsel %vm719, %v2214, %v2216
      %v2223 = vsel %vm719, %v2216, %v2218
      %v2224 = vsel %vm719, %v2218, %v2220
      %v2226 = vsel %vm751, %v2205, 0
      %v2228 = vsel %vm595, %v2221, 0
      %v2230 = vsel %vm595, %v2222, 0
      %v2232 = vsel %vm595, %v2223, 0
      %v2234 = vsel %vm595, %v2224, 0
      %2236 = vmatprep.subr.mxu0 %v2230
      %2237 = vmatpush1.msra.mxu0 %v2228
      %2238 = vmatprep.subr.mxu0 0.0
      %2239 = vmatpush1.msra.mxu0 0.0
      %2240 = vmatprep.subr.mxu0 0.0
      %2241 = vmatpush1.msra.mxu0 0.0
      %2242 = vmatprep.subr.mxu0 0.0
      %2243 = vmatpush1.msra.mxu0 0.0
      %2244 = vmatprep.subr.mxu0 0.0
      %2245 = vmatpush1.msra.mxu0 0.0
      %2246 = vmatprep.subr.mxu0 0.0
      %2247 = vmatpush1.msra.mxu0 0.0
      %2248 = vmatprep.subr.mxu0 0.0
      %2249 = vmatpush1.msra.mxu0 0.0
      %2250 = vmatprep.subr.mxu0 0.0
      %2251 = vmatpush1.msra.mxu0 0.0
      %2252 = vmatprep.subr.mxu0 0.0
      %2253 = vmatpush1.msra.mxu0 0.0
      %2254 = vmatprep.subr.mxu0 0.0
      %2255 = vmatpush1.msra.mxu0 0.0
      %2256 = vmatprep.subr.mxu0 0.0
      %2257 = vmatpush1.msra.mxu0 0.0
      %2258 = vmatprep.subr.mxu0 0.0
      %2259 = vmatpush1.msra.mxu0 0.0
      %2260 = vmatprep.subr.mxu0 0.0
      %2261 = vmatpush1.msra.mxu0 0.0
      %2262 = vmatprep.subr.mxu0 0.0
      %2263 = vmatpush1.msra.mxu0 0.0
      %2264 = vmatprep.subr.mxu0 0.0
      %2265 = vmatpush1.msra.mxu0 0.0
      %2266 = vmatprep.subr.mxu0 0.0
      %2267 = vmatpush1.msra.mxu0 0.0
      %2268 = vmatprep.subr.mxu0 0.0
      %2269 = vmatpush1.msra.mxu0 0.0
      %2270 = vmatprep.subr.mxu0 0.0
      %2271 = vmatpush1.msra.mxu0 0.0
      %2272 = vmatprep.subr.mxu0 0.0
      %2273 = vmatpush1.msra.mxu0 0.0
      %2274 = vmatprep.subr.mxu0 0.0
      %2275 = vmatpush1.msra.mxu0 0.0
      %2276 = vmatprep.subr.mxu0 0.0
      %2277 = vmatpush1.msra.mxu0 0.0
      %2278 = vmatprep.subr.mxu0 0.0
      %2279 = vmatpush1.msra.mxu0 0.0
      %2280 = vmatprep.subr.mxu0 0.0
      %2281 = vmatpush1.msra.mxu0 0.0
      %2282 = vmatprep.subr.mxu0 0.0
      %2283 = vmatpush1.msra.mxu0 0.0
      %2284 = vmatprep.subr.mxu0 0.0
      %2285 = vmatpush1.msra.mxu0 0.0
      %2286 = vmatprep.subr.mxu0 0.0
      %2287 = vmatpush1.msra.mxu0 0.0
      %2288 = vmatprep.subr.mxu0 0.0
      %2289 = vmatpush1.msra.mxu0 0.0
      %2290 = vmatprep.subr.mxu0 0.0
      %2291 = vmatpush1.msra.mxu0 0.0
      %2292 = vmatprep.subr.mxu0 0.0
      %2293 = vmatpush1.msra.mxu0 0.0
      %2294 = vmatprep.subr.mxu0 0.0
      %2295 = vmatpush1.msra.mxu0 0.0
      %2296 = vmatprep.subr.mxu0 0.0
      %2297 = vmatpush1.msra.mxu0 0.0
      %2298 = vmatprep.subr.mxu0 0.0
      %2299 = vmatpush1.msra.mxu0 0.0
      %2300 = vmatprep.mubr.f32.mxu0 0.0
      %2301 = vmatmul.mubr.f32.gmra.mrb[0].mxu0 %v2226
      %v2302 = vpop.f32.mrb[0].mxu0
      %v2303 = vadd.f32 0.0, %v2302
      %v2304 = vpop.f32.mrb[0].mxu0
      %v2305 = vadd.f32 0.0, %v2304
      %2306 = vdwg.mxu0
      %2307 = vmatprep.subr.mxu0 %v2234
      %2308 = vmatpush1.msra.mxu0 %v2232
      %2309 = vmatprep.subr.mxu0 0.0
      %2310 = vmatpush1.msra.mxu0 0.0
      %2311 = vmatprep.subr.mxu0 0.0
      %2312 = vmatpush1.msra.mxu0 0.0
      %2313 = vmatprep.subr.mxu0 0.0
      %2314 = vmatpush1.msra.mxu0 0.0
      %2315 = vmatprep.subr.mxu0 0.0
      %2316 = vmatpush1.msra.mxu0 0.0
      %2317 = vmatprep.subr.mxu0 0.0
      %2318 = vmatpush1.msra.mxu0 0.0
      %2319 = vmatprep.subr.mxu0 0.0
      %2320 = vmatpush1.msra.mxu0 0.0
      %2321 = vmatprep.subr.mxu0 0.0
      %2322 = vmatpush1.msra.mxu0 0.0
      %2323 = vmatprep.subr.mxu0 0.0
      %2324 = vmatpush1.msra.mxu0 0.0
      %2325 = vmatprep.subr.mxu0 0.0
      %2326 = vmatpush1.msra.mxu0 0.0
      %2327 = vmatprep.subr.mxu0 0.0
      %2328 = vmatpush1.msra.mxu0 0.0
      %2329 = vmatprep.subr.mxu0 0.0
      %2330 = vmatpush1.msra.mxu0 0.0
      %2331 = vmatprep.subr.mxu0 0.0
      %2332 = vmatpush1.msra.mxu0 0.0
      %2333 = vmatprep.subr.mxu0 0.0
      %2334 = vmatpush1.msra.mxu0 0.0
      %2335 = vmatprep.subr.mxu0 0.0
      %2336 = vmatpush1.msra.mxu0 0.0
      %2337 = vmatprep.subr.mxu0 0.0
      %2338 = vmatpush1.msra.mxu0 0.0
      %2339 = vmatprep.subr.mxu0 0.0
      %2340 = vmatpush1.msra.mxu0 0.0
      %2341 = vmatprep.subr.mxu0 0.0
      %2342 = vmatpush1.msra.mxu0 0.0
      %2343 = vmatprep.subr.mxu0 0.0
      %2344 = vmatpush1.msra.mxu0 0.0
      %2345 = vmatprep.subr.mxu0 0.0
      %2346 = vmatpush1.msra.mxu0 0.0
      %2347 = vmatprep.subr.mxu0 0.0
      %2348 = vmatpush1.msra.mxu0 0.0
      %2349 = vmatprep.subr.mxu0 0.0
      %2350 = vmatpush1.msra.mxu0 0.0
      %2351 = vmatprep.subr.mxu0 0.0
      %2352 = vmatpush1.msra.mxu0 0.0
      %2353 = vmatprep.subr.mxu0 0.0
      %2354 = vmatpush1.msra.mxu0 0.0
      %2355 = vmatprep.subr.mxu0 0.0
      %2356 = vmatpush1.msra.mxu0 0.0
      %2357 = vmatprep.subr.mxu0 0.0
      %2358 = vmatpush1.msra.mxu0 0.0
      %2359 = vmatprep.subr.mxu0 0.0
      %2360 = vmatpush1.msra.mxu0 0.0
      %2361 = vmatprep.subr.mxu0 0.0
      %2362 = vmatpush1.msra.mxu0 0.0
      %2363 = vmatprep.subr.mxu0 0.0
      %2364 = vmatpush1.msra.mxu0 0.0
      %2365 = vmatprep.subr.mxu0 0.0
      %2366 = vmatpush1.msra.mxu0 0.0
      %2367 = vmatprep.subr.mxu0 0.0
      %2368 = vmatpush1.msra.mxu0 0.0
      %2369 = vmatprep.subr.mxu0 0.0
      %2370 = vmatpush1.msra.mxu0 0.0
      %2371 = vmatprep.mubr.f32.mxu0 0.0
      %2372 = vmatmul.mubr.f32.gmra.mrb[0].mxu0 %v2226
      %v2373 = vpop.f32.mrb[0].mxu0
      %v2374 = vadd.f32 0.0, %v2373
      %v2375 = vpop.f32.mrb[0].mxu0
      %v2376 = vadd.f32 0.0, %v2375
      %2377 = vdwg.mxu0
      %v2378 = vadd.f32 %v2163, %v2303
      %v2379 = vadd.f32 %v2164, %v2305
      %v2380 = vadd.f32 %v2165, %v2374
      %v2381 = vadd.f32 %v2166, %v2376
      %v2382 = vld [vmem:[#allocation2] sm:$0xff]
      %v2383 = vld [vmem:[#allocation2 + $0x8] sm:$0xff]
      %v2384 = vld [vmem:[#allocation2 + $0x10] sm:$0xf]
      %v2385 = vmul.f32 %v1953, %v1082
      %v2387 = vlaneseq
      %v2388 = vshrl.u32 %v2387, 7
      %v2389 = vsub.s32 0, %v2388
      %v2390 = vrot.slane %v2385, %v2389
      %v2391 = vlaneseq
      %v2392 = vshrl.u32 %v2391, 7
      %v2393 = vsub.s32 1, %v2392
      %v2394 = vrot.slane %v2385, %v2393
      %v2395 = vlaneseq
      %v2396 = vshrl.u32 %v2395, 7
      %v2397 = vsub.s32 2, %v2396
      %v2398 = vrot.slane %v2385, %v2397
      %v2399 = vlaneseq
      %v2400 = vshrl.u32 %v2399, 7
      %v2401 = vsub.s32 3, %v2400
      %v2402 = vrot.slane %v2385, %v2401
      %v2403 = vcombine.low %v2390, %v2394
      %v2404 = vcombine.low %v2398, %v2402
      %2405 = vrot.lane.b32.xlu0 %v2403, 73
      %v2406 = vpop.permute.xlu0 %2405
      %2407 = vrot.lane.b32.xlu0 %v2404, 73
      %v2408 = vpop.permute.xlu0 %2407
      %v2409 = vrot.slane %v2406, 4
      %v2410 = vrot.slane %v2408, 4
      %v2411 = vsel %vm920, %v2409, %v2406
      %v2412 = vsel %vm595, %v2409, %v2410
      %v2413 = vsel %vm920, %v2412, %v2408
      %v2417 = vmul.f32 %v2382, %v2411
      %v2418 = vmul.f32 %v2383, %v2413
      %v2419 = vmul.f32 %v2384, %v2410
      %s2420 = scalar_lea.vmem %s4, 32
      %v2421 = vld [vmem:[%s2420] sm:$0xf]
      %v2425 = vcombine.high %v2417, %v2417
      %v2426 = vcombine.high %v2418, %v2418
      %2427 = vrot.lane.b32.xlu0 %v2417, 55
      %v2428 = vpop.permute.xlu0 %2427
      %2429 = vrot.lane.b32.xlu0 %v2425, 55
      %v2430 = vpop.permute.xlu0 %2429
      %2431 = vrot.lane.b32.xlu0 %v2418, 55
      %v2432 = vpop.permute.xlu0 %2431
      %2433 = vrot.lane.b32.xlu0 %v2426, 55
      %v2434 = vpop.permute.xlu0 %2433
      %2435 = vrot.lane.b32.xlu0 %v2419, 55
      %v2436 = vpop.permute.xlu0 %2435
      %v2437 = vsel %vm683, %v2428, %v2430
      %v2438 = vsel %vm683, %v2430, %v2432
      %v2439 = vsel %vm683, %v2432, %v2434
      %v2440 = vsel %vm683, %v2434, %v2436
      %v2442 = vsel %vm751, %v2421, 0
      %v2444 = vsel %vm595, %v2437, 0
      %v2446 = vsel %vm595, %v2438, 0
      %v2448 = vsel %vm595, %v2439, 0
      %v2450 = vsel %vm595, %v2440, 0
      %2452 = vmatprep.subr.mxu0 %v2446
      %2453 = vmatpush1.msra.mxu0 %v2444
      %2454 = vmatprep.subr.mxu0 0.0
      %2455 = vmatpush1.msra.mxu0 0.0
      %2456 = vmatprep.subr.mxu0 0.0
      %2457 = vmatpush1.msra.mxu0 0.0
      %2458 = vmatprep.subr.mxu0 0.0
      %2459 = vmatpush1.msra.mxu0 0.0
      %2460 = vmatprep.subr.mxu0 0.0
      %2461 = vmatpush1.msra.mxu0 0.0
      %2462 = vmatprep.subr.mxu0 0.0
      %2463 = vmatpush1.msra.mxu0 0.0
      %2464 = vmatprep.subr.mxu0 0.0
      %2465 = vmatpush1.msra.mxu0 0.0
      %2466 = vmatprep.subr.mxu0 0.0
      %2467 = vmatpush1.msra.mxu0 0.0
      %2468 = vmatprep.subr.mxu0 0.0
      %2469 = vmatpush1.msra.mxu0 0.0
      %2470 = vmatprep.subr.mxu0 0.0
      %2471 = vmatpush1.msra.mxu0 0.0
      %2472 = vmatprep.subr.mxu0 0.0
      %2473 = vmatpush1.msra.mxu0 0.0
      %2474 = vmatprep.subr.mxu0 0.0
      %2475 = vmatpush1.msra.mxu0 0.0
      %2476 = vmatprep.subr.mxu0 0.0
      %2477 = vmatpush1.msra.mxu0 0.0
      %2478 = vmatprep.subr.mxu0 0.0
      %2479 = vmatpush1.msra.mxu0 0.0
      %2480 = vmatprep.subr.mxu0 0.0
      %2481 = vmatpush1.msra.mxu0 0.0
      %2482 = vmatprep.subr.mxu0 0.0
      %2483 = vmatpush1.msra.mxu0 0.0
      %2484 = vmatprep.subr.mxu0 0.0
      %2485 = vmatpush1.msra.mxu0 0.0
      %2486 = vmatprep.subr.mxu0 0.0
      %2487 = vmatpush1.msra.mxu0 0.0
      %2488 = vmatprep.subr.mxu0 0.0
      %2489 = vmatpush1.msra.mxu0 0.0
      %2490 = vmatprep.subr.mxu0 0.0
      %2491 = vmatpush1.msra.mxu0 0.0
      %2492 = vmatprep.subr.mxu0 0.0
      %2493 = vmatpush1.msra.mxu0 0.0
      %2494 = vmatprep.subr.mxu0 0.0
      %2495 = vmatpush1.msra.mxu0 0.0
      %2496 = vmatprep.subr.mxu0 0.0
      %2497 = vmatpush1.msra.mxu0 0.0
      %2498 = vmatprep.subr.mxu0 0.0
      %2499 = vmatpush1.msra.mxu0 0.0
      %2500 = vmatprep.subr.mxu0 0.0
      %2501 = vmatpush1.msra.mxu0 0.0
      %2502 = vmatprep.subr.mxu0 0.0
      %2503 = vmatpush1.msra.mxu0 0.0
      %2504 = vmatprep.subr.mxu0 0.0
      %2505 = vmatpush1.msra.mxu0 0.0
      %2506 = vmatprep.subr.mxu0 0.0
      %2507 = vmatpush1.msra.mxu0 0.0
      %2508 = vmatprep.subr.mxu0 0.0
      %2509 = vmatpush1.msra.mxu0 0.0
      %2510 = vmatprep.subr.mxu0 0.0
      %2511 = vmatpush1.msra.mxu0 0.0
      %2512 = vmatprep.subr.mxu0 0.0
      %2513 = vmatpush1.msra.mxu0 0.0
      %2514 = vmatprep.subr.mxu0 0.0
      %2515 = vmatpush1.msra.mxu0 0.0
      %2516 = vmatprep.mubr.f32.mxu0 0.0
      %2517 = vmatmul.mubr.f32.gmra.mrb[0].mxu0 %v2442
      %v2518 = vpop.f32.mrb[0].mxu0
      %v2519 = vadd.f32 0.0, %v2518
      %v2520 = vpop.f32.mrb[0].mxu0
      %v2521 = vadd.f32 0.0, %v2520
      %2522 = vdwg.mxu0
      %2523 = vmatprep.subr.mxu0 %v2450
      %2524 = vmatpush1.msra.mxu0 %v2448
      %2525 = vmatprep.subr.mxu0 0.0
      %2526 = vmatpush1.msra.mxu0 0.0
      %2527 = vmatprep.subr.mxu0 0.0
      %2528 = vmatpush1.msra.mxu0 0.0
      %2529 = vmatprep.subr.mxu0 0.0
      %2530 = vmatpush1.msra.mxu0 0.0
      %2531 = vmatprep.subr.mxu0 0.0
      %2532 = vmatpush1.msra.mxu0 0.0
      %2533 = vmatprep.subr.mxu0 0.0
      %2534 = vmatpush1.msra.mxu0 0.0
      %2535 = vmatprep.subr.mxu0 0.0
      %2536 = vmatpush1.msra.mxu0 0.0
      %2537 = vmatprep.subr.mxu0 0.0
      %2538 = vmatpush1.msra.mxu0 0.0
      %2539 = vmatprep.subr.mxu0 0.0
      %2540 = vmatpush1.msra.mxu0 0.0
      %2541 = vmatprep.subr.mxu0 0.0
      %2542 = vmatpush1.msra.mxu0 0.0
      %2543 = vmatprep.subr.mxu0 0.0
      %2544 = vmatpush1.msra.mxu0 0.0
      %2545 = vmatprep.subr.mxu0 0.0
      %2546 = vmatpush1.msra.mxu0 0.0
      %2547 = vmatprep.subr.mxu0 0.0
      %2548 = vmatpush1.msra.mxu0 0.0
      %2549 = vmatprep.subr.mxu0 0.0
      %2550 = vmatpush1.msra.mxu0 0.0
      %2551 = vmatprep.subr.mxu0 0.0
      %2552 = vmatpush1.msra.mxu0 0.0
      %2553 = vmatprep.subr.mxu0 0.0
      %2554 = vmatpush1.msra.mxu0 0.0
      %2555 = vmatprep.subr.mxu0 0.0
      %2556 = vmatpush1.msra.mxu0 0.0
      %2557 = vmatprep.subr.mxu0 0.0
      %2558 = vmatpush1.msra.mxu0 0.0
      %2559 = vmatprep.subr.mxu0 0.0
      %2560 = vmatpush1.msra.mxu0 0.0
      %2561 = vmatprep.subr.mxu0 0.0
      %2562 = vmatpush1.msra.mxu0 0.0
      %2563 = vmatprep.subr.mxu0 0.0
      %2564 = vmatpush1.msra.mxu0 0.0
      %2565 = vmatprep.subr.mxu0 0.0
      %2566 = vmatpush1.msra.mxu0 0.0
      %2567 = vmatprep.subr.mxu0 0.0
      %2568 = vmatpush1.msra.mxu0 0.0
      %2569 = vmatprep.subr.mxu0 0.0
      %2570 = vmatpush1.msra.mxu0 0.0
      %2571 = vmatprep.subr.mxu0 0.0
      %2572 = vmatpush1.msra.mxu0 0.0
      %2573 = vmatprep.subr.mxu0 0.0
      %2574 = vmatpush1.msra.mxu0 0.0
      %2575 = vmatprep.subr.mxu0 0.0
      %2576 = vmatpush1.msra.mxu0 0.0
      %2577 = vmatprep.subr.mxu0 0.0
      %2578 = vmatpush1.msra.mxu0 0.0
      %2579 = vmatprep.subr.mxu0 0.0
      %2580 = vmatpush1.msra.mxu0 0.0
      %2581 = vmatprep.subr.mxu0 0.0
      %2582 = vmatpush1.msra.mxu0 0.0
      %2583 = vmatprep.subr.mxu0 0.0
      %2584 = vmatpush1.msra.mxu0 0.0
      %2585 = vmatprep.subr.mxu0 0.0
      %2586 = vmatpush1.msra.mxu0 0.0
      %2587 = vmatprep.mubr.f32.mxu0 0.0
      %2588 = vmatmul.mubr.f32.gmra.mrb[0].mxu0 %v2442
      %v2589 = vpop.f32.mrb[0].mxu0
      %v2590 = vadd.f32 0.0, %v2589
      %v2591 = vpop.f32.mrb[0].mxu0
      %v2592 = vadd.f32 0.0, %v2591
      %2593 = vdwg.mxu0
      %v2594 = vadd.f32 %v2378, %v2519
      %v2595 = vadd.f32 %v2379, %v2521
      %v2596 = vadd.f32 %v2380, %v2590
      %v2597 = vadd.f32 %v2381, %v2592
      %v2598 = vld [vmem:[#allocation2] sm:$0xff]
      %v2599 = vld [vmem:[#allocation2 + $0x8] sm:$0xff]
      %v2600 = vld [vmem:[#allocation2 + $0x10] sm:$0xf]
      %v2601 = vmul.f32 %v653, %v656
      %v2603 = vlaneseq
      %v2604 = vshrl.u32 %v2603, 7
      %v2605 = vsub.s32 0, %v2604
      %v2606 = vrot.slane %v2601, %v2605
      %v2607 = vlaneseq
      %v2608 = vshrl.u32 %v2607, 7
      %v2609 = vsub.s32 1, %v2608
      %v2610 = vrot.slane %v2601, %v2609
      %v2611 = vlaneseq
      %v2612 = vshrl.u32 %v2611, 7
      %v2613 = vsub.s32 2, %v2612
      %v2614 = vrot.slane %v2601, %v2613
      %v2615 = vlaneseq
      %v2616 = vshrl.u32 %v2615, 7
      %v2617 = vsub.s32 3, %v2616
      %v2618 = vrot.slane %v2601, %v2617
      %v2619 = vcombine.low %v2606, %v2610
      %v2620 = vcombine.low %v2614, %v2618
      %2621 = vrot.lane.b32.xlu0 %v2619, 119
      %v2622 = vpop.permute.xlu0 %2621
      %2623 = vrot.lane.b32.xlu0 %v2620, 119
      %v2624 = vpop.permute.xlu0 %2623
      %v2625 = vrot.slane %v2622, 4
      %v2626 = vrot.slane %v2624, 4
      %vm2627 = vcmask 973824
      %v2628 = vsel %vm2627, %v2625, %v2622
      %v2629 = vsel %vm595, %v2625, %v2626
      %v2630 = vsel %vm2627, %v2629, %v2624
      %v2634 = vmul.f32 %v2598, %v2628
      %v2635 = vmul.f32 %v2599, %v2630
      %v2636 = vmul.f32 %v2600, %v2626
      %s2637 = scalar_lea.vmem %s4, 36
      %v2638 = vld [vmem:[%s2637] sm:$0xf]
      %v2642 = vcombine.high %v2634, %v2634
      %v2643 = vcombine.high %v2635, %v2635
      %2644 = vrot.lane.b32.xlu0 %v2634, 9
      %v2645 = vpop.permute.xlu0 %2644
      %2646 = vrot.lane.b32.xlu0 %v2642, 9
      %v2647 = vpop.permute.xlu0 %2646
      %2648 = vrot.lane.b32.xlu0 %v2635, 9
      %v2649 = vpop.permute.xlu0 %2648
      %2650 = vrot.lane.b32.xlu0 %v2643, 9
      %v2651 = vpop.permute.xlu0 %2650
      %2652 = vrot.lane.b32.xlu0 %v2636, 9
      %v2653 = vpop.permute.xlu0 %2652
      %vm2654 = vcmask 72704
      %v2655 = vsel %vm2654, %v2645, %v2647
      %v2656 = vsel %vm2654, %v2647, %v2649
      %v2657 = vsel %vm2654, %v2649, %v2651
      %v2658 = vsel %vm2654, %v2651, %v2653
      %v2660 = vsel %vm751, %v2638, 0
      %v2662 = vsel %vm595, %v2655, 0
      %v2664 = vsel %vm595, %v2656, 0
      %v2666 = vsel %vm595, %v2657, 0
      %v2668 = vsel %vm595, %v2658, 0
      %2670 = vmatprep.subr.mxu0 %v2664
      %2671 = vmatpush1.msra.mxu0 %v2662
      %2672 = vmatprep.subr.mxu0 0.0
      %2673 = vmatpush1.msra.mxu0 0.0
      %2674 = vmatprep.subr.mxu0 0.0
      %2675 = vmatpush1.msra.mxu0 0.0
      %2676 = vmatprep.subr.mxu0 0.0
      %2677 = vmatpush1.msra.mxu0 0.0
      %2678 = vmatprep.subr.mxu0 0.0
      %2679 = vmatpush1.msra.mxu0 0.0
      %2680 = vmatprep.subr.mxu0 0.0
      %2681 = vmatpush1.msra.mxu0 0.0
      %2682 = vmatprep.subr.mxu0 0.0
      %2683 = vmatpush1.msra.mxu0 0.0
      %2684 = vmatprep.subr.mxu0 0.0
      %2685 = vmatpush1.msra.mxu0 0.0
      %2686 = vmatprep.subr.mxu0 0.0
      %2687 = vmatpush1.msra.mxu0 0.0
      %2688 = vmatprep.subr.mxu0 0.0
      %2689 = vmatpush1.msra.mxu0 0.0
      %2690 = vmatprep.subr.mxu0 0.0
      %2691 = vmatpush1.msra.mxu0 0.0
      %2692 = vmatprep.subr.mxu0 0.0
      %2693 = vmatpush1.msra.mxu0 0.0
      %2694 = vmatprep.subr.mxu0 0.0
      %2695 = vmatpush1.msra.mxu0 0.0
      %2696 = vmatprep.subr.mxu0 0.0
      %2697 = vmatpush1.msra.mxu0 0.0
      %2698 = vmatprep.subr.mxu0 0.0
      %2699 = vmatpush1.msra.mxu0 0.0
      %2700 = vmatprep.subr.mxu0 0.0
      %2701 = vmatpush1.msra.mxu0 0.0
      %2702 = vmatprep.subr.mxu0 0.0
      %2703 = vmatpush1.msra.mxu0 0.0
      %2704 = vmatprep.subr.mxu0 0.0
      %2705 = vmatpush1.msra.mxu0 0.0
      %2706 = vmatprep.subr.mxu0 0.0
      %2707 = vmatpush1.msra.mxu0 0.0
      %2708 = vmatprep.subr.mxu0 0.0
      %2709 = vmatpush1.msra.mxu0 0.0
      %2710 = vmatprep.subr.mxu0 0.0
      %2711 = vmatpush1.msra.mxu0 0.0
      %2712 = vmatprep.subr.mxu0 0.0
      %2713 = vmatpush1.msra.mxu0 0.0
      %2714 = vmatprep.subr.mxu0 0.0
      %2715 = vmatpush1.msra.mxu0 0.0
      %2716 = vmatprep.subr.mxu0 0.0
      %2717 = vmatpush1.msra.mxu0 0.0
      %2718 = vmatprep.subr.mxu0 0.0
      %2719 = vmatpush1.msra.mxu0 0.0
      %2720 = vmatprep.subr.mxu0 0.0
      %2721 = vmatpush1.msra.mxu0 0.0
      %2722 = vmatprep.subr.mxu0 0.0
      %2723 = vmatpush1.msra.mxu0 0.0
      %2724 = vmatprep.subr.mxu0 0.0
      %2725 = vmatpush1.msra.mxu0 0.0
      %2726 = vmatprep.subr.mxu0 0.0
      %2727 = vmatpush1.msra.mxu0 0.0
      %2728 = vmatprep.subr.mxu0 0.0
      %2729 = vmatpush1.msra.mxu0 0.0
      %2730 = vmatprep.subr.mxu0 0.0
      %2731 = vmatpush1.msra.mxu0 0.0
      %2732 = vmatprep.subr.mxu0 0.0
      %2733 = vmatpush1.msra.mxu0 0.0
      %2734 = vmatprep.mubr.f32.mxu0 0.0
      %2735 = vmatmul.mubr.f32.gmra.mrb[0].mxu0 %v2660
      %v2736 = vpop.f32.mrb[0].mxu0
      %v2737 = vadd.f32 0.0, %v2736
      %v2738 = vpop.f32.mrb[0].mxu0
      %v2739 = vadd.f32 0.0, %v2738
      %2740 = vdwg.mxu0
      %2741 = vmatprep.subr.mxu0 %v2668
      %2742 = vmatpush1.msra.mxu0 %v2666
      %2743 = vmatprep.subr.mxu0 0.0
      %2744 = vmatpush1.msra.mxu0 0.0
      %2745 = vmatprep.subr.mxu0 0.0
      %2746 = vmatpush1.msra.mxu0 0.0
      %2747 = vmatprep.subr.mxu0 0.0
      %2748 = vmatpush1.msra.mxu0 0.0
      %2749 = vmatprep.subr.mxu0 0.0
      %2750 = vmatpush1.msra.mxu0 0.0
      %2751 = vmatprep.subr.mxu0 0.0
      %2752 = vmatpush1.msra.mxu0 0.0
      %2753 = vmatprep.subr.mxu0 0.0
      %2754 = vmatpush1.msra.mxu0 0.0
      %2755 = vmatprep.subr.mxu0 0.0
      %2756 = vmatpush1.msra.mxu0 0.0
      %2757 = vmatprep.subr.mxu0 0.0
      %2758 = vmatpush1.msra.mxu0 0.0
      %2759 = vmatprep.subr.mxu0 0.0
      %2760 = vmatpush1.msra.mxu0 0.0
      %2761 = vmatprep.subr.mxu0 0.0
      %2762 = vmatpush1.msra.mxu0 0.0
      %2763 = vmatprep.subr.mxu0 0.0
      %2764 = vmatpush1.msra.mxu0 0.0
      %2765 = vmatprep.subr.mxu0 0.0
      %2766 = vmatpush1.msra.mxu0 0.0
      %2767 = vmatprep.subr.mxu0 0.0
      %2768 = vmatpush1.msra.mxu0 0.0
      %2769 = vmatprep.subr.mxu0 0.0
      %2770 = vmatpush1.msra.mxu0 0.0
      %2771 = vmatprep.subr.mxu0 0.0
      %2772 = vmatpush1.msra.mxu0 0.0
      %2773 = vmatprep.subr.mxu0 0.0
      %2774 = vmatpush1.msra.mxu0 0.0
      %2775 = vmatprep.subr.mxu0 0.0
      %2776 = vmatpush1.msra.mxu0 0.0
      %2777 = vmatprep.subr.mxu0 0.0
      %2778 = vmatpush1.msra.mxu0 0.0
      %2779 = vmatprep.subr.mxu0 0.0
      %2780 = vmatpush1.msra.mxu0 0.0
      %2781 = vmatprep.subr.mxu0 0.0
      %2782 = vmatpush1.msra.mxu0 0.0
      %2783 = vmatprep.subr.mxu0 0.0
      %2784 = vmatpush1.msra.mxu0 0.0
      %2785 = vmatprep.subr.mxu0 0.0
      %2786 = vmatpush1.msra.mxu0 0.0
      %2787 = vmatprep.subr.mxu0 0.0
      %2788 = vmatpush1.msra.mxu0 0.0
      %2789 = vmatprep.subr.mxu0 0.0
      %2790 = vmatpush1.msra.mxu0 0.0
      %2791 = vmatprep.subr.mxu0 0.0
      %2792 = vmatpush1.msra.mxu0 0.0
      %2793 = vmatprep.subr.mxu0 0.0
      %2794 = vmatpush1.msra.mxu0 0.0
      %2795 = vmatprep.subr.mxu0 0.0
      %2796 = vmatpush1.msra.mxu0 0.0
      %2797 = vmatprep.subr.mxu0 0.0
      %2798 = vmatpush1.msra.mxu0 0.0
      %2799 = vmatprep.subr.mxu0 0.0
      %2800 = vmatpush1.msra.mxu0 0.0
      %2801 = vmatprep.subr.mxu0 0.0
      %2802 = vmatpush1.msra.mxu0 0.0
      %2803 = vmatprep.subr.mxu0 0.0
      %2804 = vmatpush1.msra.mxu0 0.0
      %2805 = vmatprep.mubr.f32.mxu0 0.0
      %2806 = vmatmul.mubr.f32.gmra.mrb[0].mxu0 %v2660
      %v2807 = vpop.f32.mrb[0].mxu0
      %v2808 = vadd.f32 0.0, %v2807
      %v2809 = vpop.f32.mrb[0].mxu0
      %v2810 = vadd.f32 0.0, %v2809
      %2811 = vdwg.mxu0
      %v2812 = vadd.f32 %v2594, %v2737
      %v2813 = vadd.f32 %v2595, %v2739
      %v2814 = vadd.f32 %v2596, %v2808
      %v2815 = vadd.f32 %v2597, %v2810
      %v2816 = vld [vmem:[#allocation2] sm:$0xff]
      %v2817 = vld [vmem:[#allocation2 + $0x8] sm:$0xff]
      %v2818 = vld [vmem:[#allocation2 + $0x10] sm:$0xf]
      %v2820 = vlaneseq
      %v2821 = vshrl.u32 %v2820, 7
      %v2822 = vsub.s32 0, %v2821
      %v2823 = vrot.slane %v653, %v2822
      %v2824 = vlaneseq
      %v2825 = vshrl.u32 %v2824, 7
      %v2826 = vsub.s32 1, %v2825
      %v2827 = vrot.slane %v653, %v2826
      %v2828 = vlaneseq
      %v2829 = vshrl.u32 %v2828, 7
      %v2830 = vsub.s32 2, %v2829
      %v2831 = vrot.slane %v653, %v2830
      %v2832 = vlaneseq
      %v2833 = vshrl.u32 %v2832, 7
      %v2834 = vsub.s32 3, %v2833
      %v2835 = vrot.slane %v653, %v2834
      %v2836 = vcombine.low %v2823, %v2827
      %v2837 = vcombine.low %v2831, %v2835
      %2838 = vrot.lane.b32.xlu0 %v2836, 120
      %v2839 = vpop.permute.xlu0 %2838
      %2840 = vrot.lane.b32.xlu0 %v2837, 120
      %v2841 = vpop.permute.xlu0 %2840
      %v2842 = vrot.slane %v2839, 4
      %v2843 = vrot.slane %v2841, 4
      %vm2844 = vcmask 982016
      %v2845 = vsel %vm2844, %v2842, %v2839
      %v2846 = vsel %vm595, %v2842, %v2843
      %v2847 = vsel %vm2844, %v2846, %v2841
      %v2851 = vmul.f32 %v2816, %v2845
      %v2852 = vmul.f32 %v2817, %v2847
      %v2853 = vmul.f32 %v2818, %v2843
      %s2854 = scalar_lea.vmem %s4, 40
      %v2855 = vld [vmem:[%s2854] sm:$0xf]
      %v2859 = vcombine.high %v2851, %v2851
      %v2860 = vcombine.high %v2852, %v2852
      %2861 = vrot.lane.b32.xlu0 %v2851, 8
      %v2862 = vpop.permute.xlu0 %2861
      %2863 = vrot.lane.b32.xlu0 %v2859, 8
      %v2864 = vpop.permute.xlu0 %2863
      %2865 = vrot.lane.b32.xlu0 %v2852, 8
      %v2866 = vpop.permute.xlu0 %2865
      %2867 = vrot.lane.b32.xlu0 %v2860, 8
      %v2868 = vpop.permute.xlu0 %2867
      %2869 = vrot.lane.b32.xlu0 %v2853, 8
      %v2870 = vpop.permute.xlu0 %2869
      %v2871 = vsel %vm449, %v2862, %v2864
      %v2872 = vsel %vm449, %v2864, %v2866
      %v2873 = vsel %vm449, %v2866, %v2868
      %v2874 = vsel %vm449, %v2868, %v2870
      %v2876 = vsel %vm751, %v2855, 0
      %v2878 = vsel %vm595, %v2871, 0
      %v2880 = vsel %vm595, %v2872, 0
      %v2882 = vsel %vm595, %v2873, 0
      %v2884 = vsel %vm595, %v2874, 0
      %2886 = vmatprep.subr.mxu0 %v2880
      %2887 = vmatpush1.msra.mxu0 %v2878
      %2888 = vmatprep.subr.mxu0 0.0
      %2889 = vmatpush1.msra.mxu0 0.0
      %2890 = vmatprep.subr.mxu0 0.0
      %2891 = vmatpush1.msra.mxu0 0.0
      %2892 = vmatprep.subr.mxu0 0.0
      %2893 = vmatpush1.msra.mxu0 0.0
      %2894 = vmatprep.subr.mxu0 0.0
      %2895 = vmatpush1.msra.mxu0 0.0
      %2896 = vmatprep.subr.mxu0 0.0
      %2897 = vmatpush1.msra.mxu0 0.0
      %2898 = vmatprep.subr.mxu0 0.0
      %2899 = vmatpush1.msra.mxu0 0.0
      %2900 = vmatprep.subr.mxu0 0.0
      %2901 = vmatpush1.msra.mxu0 0.0
      %2902 = vmatprep.subr.mxu0 0.0
      %2903 = vmatpush1.msra.mxu0 0.0
      %2904 = vmatprep.subr.mxu0 0.0
      %2905 = vmatpush1.msra.mxu0 0.0
      %2906 = vmatprep.subr.mxu0 0.0
      %2907 = vmatpush1.msra.mxu0 0.0
      %2908 = vmatprep.subr.mxu0 0.0
      %2909 = vmatpush1.msra.mxu0 0.0
      %2910 = vmatprep.subr.mxu0 0.0
      %2911 = vmatpush1.msra.mxu0 0.0
      %2912 = vmatprep.subr.mxu0 0.0
      %2913 = vmatpush1.msra.mxu0 0.0
      %2914 = vmatprep.subr.mxu0 0.0
      %2915 = vmatpush1.msra.mxu0 0.0
      %2916 = vmatprep.subr.mxu0 0.0
      %2917 = vmatpush1.msra.mxu0 0.0
      %2918 = vmatprep.subr.mxu0 0.0
      %2919 = vmatpush1.msra.mxu0 0.0
      %2920 = vmatprep.subr.mxu0 0.0
      %2921 = vmatpush1.msra.mxu0 0.0
      %2922 = vmatprep.subr.mxu0 0.0
      %2923 = vmatpush1.msra.mxu0 0.0
      %2924 = vmatprep.subr.mxu0 0.0
      %2925 = vmatpush1.msra.mxu0 0.0
      %2926 = vmatprep.subr.mxu0 0.0
      %2927 = vmatpush1.msra.mxu0 0.0
      %2928 = vmatprep.subr.mxu0 0.0
      %2929 = vmatpush1.msra.mxu0 0.0
      %2930 = vmatprep.subr.mxu0 0.0
      %2931 = vmatpush1.msra.mxu0 0.0
      %2932 = vmatprep.subr.mxu0 0.0
      %2933 = vmatpush1.msra.mxu0 0.0
      %2934 = vmatprep.subr.mxu0 0.0
      %2935 = vmatpush1.msra.mxu0 0.0
      %2936 = vmatprep.subr.mxu0 0.0
      %2937 = vmatpush1.msra.mxu0 0.0
      %2938 = vmatprep.subr.mxu0 0.0
      %2939 = vmatpush1.msra.mxu0 0.0
      %2940 = vmatprep.subr.mxu0 0.0
      %2941 = vmatpush1.msra.mxu0 0.0
      %2942 = vmatprep.subr.mxu0 0.0
      %2943 = vmatpush1.msra.mxu0 0.0
      %2944 = vmatprep.subr.mxu0 0.0
      %2945 = vmatpush1.msra.mxu0 0.0
      %2946 = vmatprep.subr.mxu0 0.0
      %2947 = vmatpush1.msra.mxu0 0.0
      %2948 = vmatprep.subr.mxu0 0.0
      %2949 = vmatpush1.msra.mxu0 0.0
      %2950 = vmatprep.mubr.f32.mxu0 0.0
      %2951 = vmatmul.mubr.f32.gmra.mrb[0].mxu0 %v2876
      %v2952 = vpop.f32.mrb[0].mxu0
      %v2953 = vadd.f32 0.0, %v2952
      %v2954 = vpop.f32.mrb[0].mxu0
      %v2955 = vadd.f32 0.0, %v2954
      %2956 = vdwg.mxu0
      %2957 = vmatprep.subr.mxu0 %v2884
      %2958 = vmatpush1.msra.mxu0 %v2882
      %2959 = vmatprep.subr.mxu0 0.0
      %2960 = vmatpush1.msra.mxu0 0.0
      %2961 = vmatprep.subr.mxu0 0.0
      %2962 = vmatpush1.msra.mxu0 0.0
      %2963 = vmatprep.subr.mxu0 0.0
      %2964 = vmatpush1.msra.mxu0 0.0
      %2965 = vmatprep.subr.mxu0 0.0
      %2966 = vmatpush1.msra.mxu0 0.0
      %2967 = vmatprep.subr.mxu0 0.0
      %2968 = vmatpush1.msra.mxu0 0.0
      %2969 = vmatprep.subr.mxu0 0.0
      %2970 = vmatpush1.msra.mxu0 0.0
      %2971 = vmatprep.subr.mxu0 0.0
      %2972 = vmatpush1.msra.mxu0 0.0
      %2973 = vmatprep.subr.mxu0 0.0
      %2974 = vmatpush1.msra.mxu0 0.0
      %2975 = vmatprep.subr.mxu0 0.0
      %2976 = vmatpush1.msra.mxu0 0.0
      %2977 = vmatprep.subr.mxu0 0.0
      %2978 = vmatpush1.msra.mxu0 0.0
      %2979 = vmatprep.subr.mxu0 0.0
      %2980 = vmatpush1.msra.mxu0 0.0
      %2981 = vmatprep.subr.mxu0 0.0
      %2982 = vmatpush1.msra.mxu0 0.0
      %2983 = vmatprep.subr.mxu0 0.0
      %2984 = vmatpush1.msra.mxu0 0.0
      %2985 = vmatprep.subr.mxu0 0.0
      %2986 = vmatpush1.msra.mxu0 0.0
      %2987 = vmatprep.subr.mxu0 0.0
      %2988 = vmatpush1.msra.mxu0 0.0
      %2989 = vmatprep.subr.mxu0 0.0
      %2990 = vmatpush1.msra.mxu0 0.0
      %2991 = vmatprep.subr.mxu0 0.0
      %2992 = vmatpush1.msra.mxu0 0.0
      %2993 = vmatprep.subr.mxu0 0.0
      %2994 = vmatpush1.msra.mxu0 0.0
      %2995 = vmatprep.subr.mxu0 0.0
      %2996 = vmatpush1.msra.mxu0 0.0
      %2997 = vmatprep.subr.mxu0 0.0
      %2998 = vmatpush1.msra.mxu0 0.0
      %2999 = vmatprep.subr.mxu0 0.0
      %3000 = vmatpush1.msra.mxu0 0.0
      %3001 = vmatprep.subr.mxu0 0.0
      %3002 = vmatpush1.msra.mxu0 0.0
      %3003 = vmatprep.subr.mxu0 0.0
      %3004 = vmatpush1.msra.mxu0 0.0
      %3005 = vmatprep.subr.mxu0 0.0
      %3006 = vmatpush1.msra.mxu0 0.0
      %3007 = vmatprep.subr.mxu0 0.0
      %3008 = vmatpush1.msra.mxu0 0.0
      %3009 = vmatprep.subr.mxu0 0.0
      %3010 = vmatpush1.msra.mxu0 0.0
      %3011 = vmatprep.subr.mxu0 0.0
      %3012 = vmatpush1.msra.mxu0 0.0
      %3013 = vmatprep.subr.mxu0 0.0
      %3014 = vmatpush1.msra.mxu0 0.0
      %3015 = vmatprep.subr.mxu0 0.0
      %3016 = vmatpush1.msra.mxu0 0.0
      %3017 = vmatprep.subr.mxu0 0.0
      %3018 = vmatpush1.msra.mxu0 0.0
      %3019 = vmatprep.subr.mxu0 0.0
      %3020 = vmatpush1.msra.mxu0 0.0
      %3021 = vmatprep.mubr.f32.mxu0 0.0
      %3022 = vmatmul.mubr.f32.gmra.mrb[0].mxu0 %v2876
      %v3023 = vpop.f32.mrb[0].mxu0
      %v3024 = vadd.f32 0.0, %v3023
      %v3025 = vpop.f32.mrb[0].mxu0
      %v3026 = vadd.f32 0.0, %v3025
      %3027 = vdwg.mxu0
      %v3028 = vadd.f32 %v2812, %v2953
      %v3029 = vadd.f32 %v2813, %v2955
      %v3030 = vadd.f32 %v2814, %v3024
      %v3031 = vadd.f32 %v2815, %v3026
      %v3032 = vld [vmem:[#allocation2] sm:$0xff]
      %v3033 = vld [vmem:[#allocation2 + $0x8] sm:$0xff]
      %v3034 = vld [vmem:[#allocation2 + $0x10] sm:$0xf]
      %v3035 = vmul.f32 %v653, %v1082
      %v3037 = vlaneseq
      %v3038 = vshrl.u32 %v3037, 7
      %v3039 = vsub.s32 0, %v3038
      %v3040 = vrot.slane %v3035, %v3039
      %v3041 = vlaneseq
      %v3042 = vshrl.u32 %v3041, 7
      %v3043 = vsub.s32 1, %v3042
      %v3044 = vrot.slane %v3035, %v3043
      %v3045 = vlaneseq
      %v3046 = vshrl.u32 %v3045, 7
      %v3047 = vsub.s32 2, %v3046
      %v3048 = vrot.slane %v3035, %v3047
      %v3049 = vlaneseq
      %v3050 = vshrl.u32 %v3049, 7
      %v3051 = vsub.s32 3, %v3050
      %v3052 = vrot.slane %v3035, %v3051
      %v3053 = vcombine.low %v3040, %v3044
      %v3054 = vcombine.low %v3048, %v3052
      %3055 = vrot.lane.b32.xlu0 %v3053, 121
      %v3056 = vpop.permute.xlu0 %3055
      %3057 = vrot.lane.b32.xlu0 %v3054, 121
      %v3058 = vpop.permute.xlu0 %3057
      %v3059 = vrot.slane %v3056, 4
      %v3060 = vrot.slane %v3058, 4
      %vm3061 = vcmask 990208
      %v3062 = vsel %vm3061, %v3059, %v3056
      %v3063 = vsel %vm595, %v3059, %v3060
      %v3064 = vsel %vm3061, %v3063, %v3058
      %v3068 = vmul.f32 %v3032, %v3062
      %v3069 = vmul.f32 %v3033, %v3064
      %v3070 = vmul.f32 %v3034, %v3060
      %s3071 = scalar_lea.vmem %s4, 44
      %v3072 = vld [vmem:[%s3071] sm:$0xf]
      %v3076 = vcombine.high %v3068, %v3068
      %v3077 = vcombine.high %v3069, %v3069
      %3078 = vrot.lane.b32.xlu0 %v3068, 7
      %v3079 = vpop.permute.xlu0 %3078
      %3080 = vrot.lane.b32.xlu0 %v3076, 7
      %v3081 = vpop.permute.xlu0 %3080
      %3082 = vrot.lane.b32.xlu0 %v3069, 7
      %v3083 = vpop.permute.xlu0 %3082
      %3084 = vrot.lane.b32.xlu0 %v3077, 7
      %v3085 = vpop.permute.xlu0 %3084
      %3086 = vrot.lane.b32.xlu0 %v3070, 7
      %v3087 = vpop.permute.xlu0 %3086
      %vm3088 = vcmask 56320
      %v3089 = vsel %vm3088, %v3079, %v3081
      %v3090 = vsel %vm3088, %v3081, %v3083
      %v3091 = vsel %vm3088, %v3083, %v3085
      %v3092 = vsel %vm3088, %v3085, %v3087
      %v3094 = vsel %vm751, %v3072, 0
      %v3096 = vsel %vm595, %v3089, 0
      %v3098 = vsel %vm595, %v3090, 0
      %v3100 = vsel %vm595, %v3091, 0
      %v3102 = vsel %vm595, %v3092, 0
      %3104 = vmatprep.subr.mxu0 %v3098
      %3105 = vmatpush1.msra.mxu0 %v3096
      %3106 = vmatprep.subr.mxu0 0.0
      %3107 = vmatpush1.msra.mxu0 0.0
      %3108 = vmatprep.subr.mxu0 0.0
      %3109 = vmatpush1.msra.mxu0 0.0
      %3110 = vmatprep.subr.mxu0 0.0
      %3111 = vmatpush1.msra.mxu0 0.0
      %3112 = vmatprep.subr.mxu0 0.0
      %3113 = vmatpush1.msra.mxu0 0.0
      %3114 = vmatprep.subr.mxu0 0.0
      %3115 = vmatpush1.msra.mxu0 0.0
      %3116 = vmatprep.subr.mxu0 0.0
      %3117 = vmatpush1.msra.mxu0 0.0
      %3118 = vmatprep.subr.mxu0 0.0
      %3119 = vmatpush1.msra.mxu0 0.0
      %3120 = vmatprep.subr.mxu0 0.0
      %3121 = vmatpush1.msra.mxu0 0.0
      %3122 = vmatprep.subr.mxu0 0.0
      %3123 = vmatpush1.msra.mxu0 0.0
      %3124 = vmatprep.subr.mxu0 0.0
      %3125 = vmatpush1.msra.mxu0 0.0
      %3126 = vmatprep.subr.mxu0 0.0
      %3127 = vmatpush1.msra.mxu0 0.0
      %3128 = vmatprep.subr.mxu0 0.0
      %3129 = vmatpush1.msra.mxu0 0.0
      %3130 = vmatprep.subr.mxu0 0.0
      %3131 = vmatpush1.msra.mxu0 0.0
      %3132 = vmatprep.subr.mxu0 0.0
      %3133 = vmatpush1.msra.mxu0 0.0
      %3134 = vmatprep.subr.mxu0 0.0
      %3135 = vmatpush1.msra.mxu0 0.0
      %3136 = vmatprep.subr.mxu0 0.0
      %3137 = vmatpush1.msra.mxu0 0.0
      %3138 = vmatprep.subr.mxu0 0.0
      %3139 = vmatpush1.msra.mxu0 0.0
      %3140 = vmatprep.subr.mxu0 0.0
      %3141 = vmatpush1.msra.mxu0 0.0
      %3142 = vmatprep.subr.mxu0 0.0
      %3143 = vmatpush1.msra.mxu0 0.0
      %3144 = vmatprep.subr.mxu0 0.0
      %3145 = vmatpush1.msra.mxu0 0.0
      %3146 = vmatprep.subr.mxu0 0.0
      %3147 = vmatpush1.msra.mxu0 0.0
      %3148 = vmatprep.subr.mxu0 0.0
      %3149 = vmatpush1.msra.mxu0 0.0
      %3150 = vmatprep.subr.mxu0 0.0
      %3151 = vmatpush1.msra.mxu0 0.0
      %3152 = vmatprep.subr.mxu0 0.0
      %3153 = vmatpush1.msra.mxu0 0.0
      %3154 = vmatprep.subr.mxu0 0.0
      %3155 = vmatpush1.msra.mxu0 0.0
      %3156 = vmatprep.subr.mxu0 0.0
      %3157 = vmatpush1.msra.mxu0 0.0
      %3158 = vmatprep.subr.mxu0 0.0
      %3159 = vmatpush1.msra.mxu0 0.0
      %3160 = vmatprep.subr.mxu0 0.0
      %3161 = vmatpush1.msra.mxu0 0.0
      %3162 = vmatprep.subr.mxu0 0.0
      %3163 = vmatpush1.msra.mxu0 0.0
      %3164 = vmatprep.subr.mxu0 0.0
      %3165 = vmatpush1.msra.mxu0 0.0
      %3166 = vmatprep.subr.mxu0 0.0
      %3167 = vmatpush1.msra.mxu0 0.0
      %3168 = vmatprep.mubr.f32.mxu0 0.0
      %3169 = vmatmul.mubr.f32.gmra.mrb[0].mxu0 %v3094
      %v3170 = vpop.f32.mrb[0].mxu0
      %v3171 = vadd.f32 0.0, %v3170
      %v3172 = vpop.f32.mrb[0].mxu0
      %v3173 = vadd.f32 0.0, %v3172
      %3174 = vdwg.mxu0
      %3175 = vmatprep.subr.mxu0 %v3102
      %3176 = vmatpush1.msra.mxu0 %v3100
      %3177 = vmatprep.subr.mxu0 0.0
      %3178 = vmatpush1.msra.mxu0 0.0
      %3179 = vmatprep.subr.mxu0 0.0
      %3180 = vmatpush1.msra.mxu0 0.0
      %3181 = vmatprep.subr.mxu0 0.0
      %3182 = vmatpush1.msra.mxu0 0.0
      %3183 = vmatprep.subr.mxu0 0.0
      %3184 = vmatpush1.msra.mxu0 0.0
      %3185 = vmatprep.subr.mxu0 0.0
      %3186 = vmatpush1.msra.mxu0 0.0
      %3187 = vmatprep.subr.mxu0 0.0
      %3188 = vmatpush1.msra.mxu0 0.0
      %3189 = vmatprep.subr.mxu0 0.0
      %3190 = vmatpush1.msra.mxu0 0.0
      %3191 = vmatprep.subr.mxu0 0.0
      %3192 = vmatpush1.msra.mxu0 0.0
      %3193 = vmatprep.subr.mxu0 0.0
      %3194 = vmatpush1.msra.mxu0 0.0
      %3195 = vmatprep.subr.mxu0 0.0
      %3196 = vmatpush1.msra.mxu0 0.0
      %3197 = vmatprep.subr.mxu0 0.0
      %3198 = vmatpush1.msra.mxu0 0.0
      %3199 = vmatprep.subr.mxu0 0.0
      %3200 = vmatpush1.msra.mxu0 0.0
      %3201 = vmatprep.subr.mxu0 0.0
      %3202 = vmatpush1.msra.mxu0 0.0
      %3203 = vmatprep.subr.mxu0 0.0
      %3204 = vmatpush1.msra.mxu0 0.0
      %3205 = vmatprep.subr.mxu0 0.0
      %3206 = vmatpush1.msra.mxu0 0.0
      %3207 = vmatprep.subr.mxu0 0.0
      %3208 = vmatpush1.msra.mxu0 0.0
      %3209 = vmatprep.subr.mxu0 0.0
      %3210 = vmatpush1.msra.mxu0 0.0
      %3211 = vmatprep.subr.mxu0 0.0
      %3212 = vmatpush1.msra.mxu0 0.0
      %3213 = vmatprep.subr.mxu0 0.0
      %3214 = vmatpush1.msra.mxu0 0.0
      %3215 = vmatprep.subr.mxu0 0.0
      %3216 = vmatpush1.msra.mxu0 0.0
      %3217 = vmatprep.subr.mxu0 0.0
      %3218 = vmatpush1.msra.mxu0 0.0
      %3219 = vmatprep.subr.mxu0 0.0
      %3220 = vmatpush1.msra.mxu0 0.0
      %3221 = vmatprep.subr.mxu0 0.0
      %3222 = vmatpush1.msra.mxu0 0.0
      %3223 = vmatprep.subr.mxu0 0.0
      %3224 = vmatpush1.msra.mxu0 0.0
      %3225 = vmatprep.subr.mxu0 0.0
      %3226 = vmatpush1.msra.mxu0 0.0
      %3227 = vmatprep.subr.mxu0 0.0
      %3228 = vmatpush1.msra.mxu0 0.0
      %3229 = vmatprep.subr.mxu0 0.0
      %3230 = vmatpush1.msra.mxu0 0.0
      %3231 = vmatprep.subr.mxu0 0.0
      %3232 = vmatpush1.msra.mxu0 0.0
      %3233 = vmatprep.subr.mxu0 0.0
      %3234 = vmatpush1.msra.mxu0 0.0
      %3235 = vmatprep.subr.mxu0 0.0
      %3236 = vmatpush1.msra.mxu0 0.0
      %3237 = vmatprep.subr.mxu0 0.0
      %3238 = vmatpush1.msra.mxu0 0.0
      %3239 = vmatprep.mubr.f32.mxu0 0.0
      %3240 = vmatmul.mubr.f32.gmra.mrb[0].mxu0 %v3094
      %v3241 = vpop.f32.mrb[0].mxu0
      %v3242 = vadd.f32 0.0, %v3241
      %v3243 = vpop.f32.mrb[0].mxu0
      %v3244 = vadd.f32 0.0, %v3243
      %3245 = vdwg.mxu0
      %v3246 = vadd.f32 %v3028, %v3171
      %v3247 = vadd.f32 %v3029, %v3173
      %v3248 = vadd.f32 %v3030, %v3242
      %v3249 = vadd.f32 %v3031, %v3244
      %v3250 = vld [vmem:[#allocation2] sm:$0xff]
      %v3251 = vld [vmem:[#allocation2 + $0x8] sm:$0xff]
      %v3252 = vld [vmem:[#allocation2 + $0x10] sm:$0xf]
      %v3254 = vlaneseq
      %v3255 = vshrl.u32 %v3254, 7
      %v3256 = vsub.s32 0, %v3255
      %v3257 = vrot.slane %v656, %v3256
      %v3258 = vlaneseq
      %v3259 = vshrl.u32 %v3258, 7
      %v3260 = vsub.s32 1, %v3259
      %v3261 = vrot.slane %v656, %v3260
      %v3262 = vlaneseq
      %v3263 = vshrl.u32 %v3262, 7
      %v3264 = vsub.s32 2, %v3263
      %v3265 = vrot.slane %v656, %v3264
      %v3266 = vlaneseq
      %v3267 = vshrl.u32 %v3266, 7
      %v3268 = vsub.s32 3, %v3267
      %v3269 = vrot.slane %v656, %v3268
      %v3270 = vcombine.low %v3257, %v3261
      %v3271 = vcombine.low %v3265, %v3269
      %3272 = vrot.lane.b32.xlu0 %v3270, 127
      %v3273 = vpop.permute.xlu0 %3272
      %3274 = vrot.lane.b32.xlu0 %v3271, 127
      %v3275 = vpop.permute.xlu0 %3274
      %v3276 = vrot.slane %v3273, 4
      %v3277 = vrot.slane %v3275, 4
      %vm3278 = vcmask 1039360
      %v3279 = vsel %vm3278, %v3276, %v3273
      %v3280 = vsel %vm595, %v3276, %v3277
      %v3281 = vsel %vm3278, %v3280, %v3275
      %v3285 = vmul.f32 %v3250, %v3279
      %v3286 = vmul.f32 %v3251, %v3281
      %v3287 = vmul.f32 %v3252, %v3277
      %s3288 = scalar_lea.vmem %s4, 48
      %v3289 = vld [vmem:[%s3288] sm:$0xf]
      %v3293 = vcombine.high %v3285, %v3285
      %v3294 = vcombine.high %v3286, %v3286
      %3295 = vrot.lane.b32.xlu0 %v3285, 1
      %v3296 = vpop.permute.xlu0 %3295
      %3297 = vrot.lane.b32.xlu0 %v3293, 1
      %v3298 = vpop.permute.xlu0 %3297
      %3299 = vrot.lane.b32.xlu0 %v3286, 1
      %v3300 = vpop.permute.xlu0 %3299
      %3301 = vrot.lane.b32.xlu0 %v3294, 1
      %v3302 = vpop.permute.xlu0 %3301
      %3303 = vrot.lane.b32.xlu0 %v3287, 1
      %v3304 = vpop.permute.xlu0 %3303
      %vm3305 = vcmask 7168
      %v3306 = vsel %vm3305, %v3296, %v3298
      %v3307 = vsel %vm3305, %v3298, %v3300
      %v3308 = vsel %vm3305, %v3300, %v3302
      %v3309 = vsel %vm3305, %v3302, %v3304
      %v3311 = vsel %vm751, %v3289, 0
      %v3313 = vsel %vm595, %v3306, 0
      %v3315 = vsel %vm595, %v3307, 0
      %v3317 = vsel %vm595, %v3308, 0
      %v3319 = vsel %vm595, %v3309, 0
      %3321 = vmatprep.subr.mxu0 %v3315
      %3322 = vmatpush1.msra.mxu0 %v3313
      %3323 = vmatprep.subr.mxu0 0.0
      %3324 = vmatpush1.msra.mxu0 0.0
      %3325 = vmatprep.subr.mxu0 0.0
      %3326 = vmatpush1.msra.mxu0 0.0
      %3327 = vmatprep.subr.mxu0 0.0
      %3328 = vmatpush1.msra.mxu0 0.0
      %3329 = vmatprep.subr.mxu0 0.0
      %3330 = vmatpush1.msra.mxu0 0.0
      %3331 = vmatprep.subr.mxu0 0.0
      %3332 = vmatpush1.msra.mxu0 0.0
      %3333 = vmatprep.subr.mxu0 0.0
      %3334 = vmatpush1.msra.mxu0 0.0
      %3335 = vmatprep.subr.mxu0 0.0
      %3336 = vmatpush1.msra.mxu0 0.0
      %3337 = vmatprep.subr.mxu0 0.0
      %3338 = vmatpush1.msra.mxu0 0.0
      %3339 = vmatprep.subr.mxu0 0.0
      %3340 = vmatpush1.msra.mxu0 0.0
      %3341 = vmatprep.subr.mxu0 0.0
      %3342 = vmatpush1.msra.mxu0 0.0
      %3343 = vmatprep.subr.mxu0 0.0
      %3344 = vmatpush1.msra.mxu0 0.0
      %3345 = vmatprep.subr.mxu0 0.0
      %3346 = vmatpush1.msra.mxu0 0.0
      %3347 = vmatprep.subr.mxu0 0.0
      %3348 = vmatpush1.msra.mxu0 0.0
      %3349 = vmatprep.subr.mxu0 0.0
      %3350 = vmatpush1.msra.mxu0 0.0
      %3351 = vmatprep.subr.mxu0 0.0
      %3352 = vmatpush1.msra.mxu0 0.0
      %3353 = vmatprep.subr.mxu0 0.0
      %3354 = vmatpush1.msra.mxu0 0.0
      %3355 = vmatprep.subr.mxu0 0.0
      %3356 = vmatpush1.msra.mxu0 0.0
      %3357 = vmatprep.subr.mxu0 0.0
      %3358 = vmatpush1.msra.mxu0 0.0
      %3359 = vmatprep.subr.mxu0 0.0
      %3360 = vmatpush1.msra.mxu0 0.0
      %3361 = vmatprep.subr.mxu0 0.0
      %3362 = vmatpush1.msra.mxu0 0.0
      %3363 = vmatprep.subr.mxu0 0.0
      %3364 = vmatpush1.msra.mxu0 0.0
      %3365 = vmatprep.subr.mxu0 0.0
      %3366 = vmatpush1.msra.mxu0 0.0
      %3367 = vmatprep.subr.mxu0 0.0
      %3368 = vmatpush1.msra.mxu0 0.0
      %3369 = vmatprep.subr.mxu0 0.0
      %3370 = vmatpush1.msra.mxu0 0.0
      %3371 = vmatprep.subr.mxu0 0.0
      %3372 = vmatpush1.msra.mxu0 0.0
      %3373 = vmatprep.subr.mxu0 0.0
      %3374 = vmatpush1.msra.mxu0 0.0
      %3375 = vmatprep.subr.mxu0 0.0
      %3376 = vmatpush1.msra.mxu0 0.0
      %3377 = vmatprep.subr.mxu0 0.0
      %3378 = vmatpush1.msra.mxu0 0.0
      %3379 = vmatprep.subr.mxu0 0.0
      %3380 = vmatpush1.msra.mxu0 0.0
      %3381 = vmatprep.subr.mxu0 0.0
      %3382 = vmatpush1.msra.mxu0 0.0
      %3383 = vmatprep.subr.mxu0 0.0
      %3384 = vmatpush1.msra.mxu0 0.0
      %3385 = vmatprep.mubr.f32.mxu0 0.0
      %3386 = vmatmul.mubr.f32.gmra.mrb[0].mxu0 %v3311
      %v3387 = vpop.f32.mrb[0].mxu0
      %v3388 = vadd.f32 0.0, %v3387
      %v3389 = vpop.f32.mrb[0].mxu0
      %v3390 = vadd.f32 0.0, %v3389
      %3391 = vdwg.mxu0
      %3392 = vmatprep.subr.mxu0 %v3319
      %3393 = vmatpush1.msra.mxu0 %v3317
      %3394 = vmatprep.subr.mxu0 0.0
      %3395 = vmatpush1.msra.mxu0 0.0
      %3396 = vmatprep.subr.mxu0 0.0
      %3397 = vmatpush1.msra.mxu0 0.0
      %3398 = vmatprep.subr.mxu0 0.0
      %3399 = vmatpush1.msra.mxu0 0.0
      %3400 = vmatprep.subr.mxu0 0.0
      %3401 = vmatpush1.msra.mxu0 0.0
      %3402 = vmatprep.subr.mxu0 0.0
      %3403 = vmatpush1.msra.mxu0 0.0
      %3404 = vmatprep.subr.mxu0 0.0
      %3405 = vmatpush1.msra.mxu0 0.0
      %3406 = vmatprep.subr.mxu0 0.0
      %3407 = vmatpush1.msra.mxu0 0.0
      %3408 = vmatprep.subr.mxu0 0.0
      %3409 = vmatpush1.msra.mxu0 0.0
      %3410 = vmatprep.subr.mxu0 0.0
      %3411 = vmatpush1.msra.mxu0 0.0
      %3412 = vmatprep.subr.mxu0 0.0
      %3413 = vmatpush1.msra.mxu0 0.0
      %3414 = vmatprep.subr.mxu0 0.0
      %3415 = vmatpush1.msra.mxu0 0.0
      %3416 = vmatprep.subr.mxu0 0.0
      %3417 = vmatpush1.msra.mxu0 0.0
      %3418 = vmatprep.subr.mxu0 0.0
      %3419 = vmatpush1.msra.mxu0 0.0
      %3420 = vmatprep.subr.mxu0 0.0
      %3421 = vmatpush1.msra.mxu0 0.0
      %3422 = vmatprep.subr.mxu0 0.0
      %3423 = vmatpush1.msra.mxu0 0.0
      %3424 = vmatprep.subr.mxu0 0.0
      %3425 = vmatpush1.msra.mxu0 0.0
      %3426 = vmatprep.subr.mxu0 0.0
      %3427 = vmatpush1.msra.mxu0 0.0
      %3428 = vmatprep.subr.mxu0 0.0
      %3429 = vmatpush1.msra.mxu0 0.0
      %3430 = vmatprep.subr.mxu0 0.0
      %3431 = vmatpush1.msra.mxu0 0.0
      %3432 = vmatprep.subr.mxu0 0.0
      %3433 = vmatpush1.msra.mxu0 0.0
      %3434 = vmatprep.subr.mxu0 0.0
      %3435 = vmatpush1.msra.mxu0 0.0
      %3436 = vmatprep.subr.mxu0 0.0
      %3437 = vmatpush1.msra.mxu0 0.0
      %3438 = vmatprep.subr.mxu0 0.0
      %3439 = vmatpush1.msra.mxu0 0.0
      %3440 = vmatprep.subr.mxu0 0.0
      %3441 = vmatpush1.msra.mxu0 0.0
      %3442 = vmatprep.subr.mxu0 0.0
      %3443 = vmatpush1.msra.mxu0 0.0
      %3444 = vmatprep.subr.mxu0 0.0
      %3445 = vmatpush1.msra.mxu0 0.0
      %3446 = vmatprep.subr.mxu0 0.0
      %3447 = vmatpush1.msra.mxu0 0.0
      %3448 = vmatprep.subr.mxu0 0.0
      %3449 = vmatpush1.msra.mxu0 0.0
      %3450 = vmatprep.subr.mxu0 0.0
      %3451 = vmatpush1.msra.mxu0 0.0
      %3452 = vmatprep.subr.mxu0 0.0
      %3453 = vmatpush1.msra.mxu0 0.0
      %3454 = vmatprep.subr.mxu0 0.0
      %3455 = vmatpush1.msra.mxu0 0.0
      %3456 = vmatprep.mubr.f32.mxu0 0.0
      %3457 = vmatmul.mubr.f32.gmra.mrb[0].mxu0 %v3311
      %v3458 = vpop.f32.mrb[0].mxu0
      %v3459 = vadd.f32 0.0, %v3458
      %v3460 = vpop.f32.mrb[0].mxu0
      %v3461 = vadd.f32 0.0, %v3460
      %3462 = vdwg.mxu0
      %v3463 = vadd.f32 %v3246, %v3388
      %v3464 = vadd.f32 %v3247, %v3390
      %v3465 = vadd.f32 %v3248, %v3459
      %v3466 = vadd.f32 %v3249, %v3461
      %v3467 = vld [vmem:[#allocation2 + $0x4] sm:$0xff]
      %v3468 = vld [vmem:[#allocation2 + $0xc] sm:$0xff]
      %s3469 = scalar_lea.vmem %s4, 52
      %v3470 = vld [vmem:[%s3469] sm:$0xf]
      %v3473 = vcombine.high %v3467, %v3467
      %v3474 = vcombine.high %v3468, %v3468
      %v3476 = vsel %vm751, %v3470, 0
      %v3478 = vsel %vm595, %v3467, 0
      %v3480 = vsel %vm595, %v3473, 0
      %v3482 = vsel %vm595, %v3468, 0
      %v3484 = vsel %vm595, %v3474, 0
      %3486 = vmatprep.subr.mxu0 %v3480
      %3487 = vmatpush1.msra.mxu0 %v3478
      %3488 = vmatprep.subr.mxu0 0.0
      %3489 = vmatpush1.msra.mxu0 0.0
      %3490 = vmatprep.subr.mxu0 0.0
      %3491 = vmatpush1.msra.mxu0 0.0
      %3492 = vmatprep.subr.mxu0 0.0
      %3493 = vmatpush1.msra.mxu0 0.0
      %3494 = vmatprep.subr.mxu0 0.0
      %3495 = vmatpush1.msra.mxu0 0.0
      %3496 = vmatprep.subr.mxu0 0.0
      %3497 = vmatpush1.msra.mxu0 0.0
      %3498 = vmatprep.subr.mxu0 0.0
      %3499 = vmatpush1.msra.mxu0 0.0
      %3500 = vmatprep.subr.mxu0 0.0
      %3501 = vmatpush1.msra.mxu0 0.0
      %3502 = vmatprep.subr.mxu0 0.0
      %3503 = vmatpush1.msra.mxu0 0.0
      %3504 = vmatprep.subr.mxu0 0.0
      %3505 = vmatpush1.msra.mxu0 0.0
      %3506 = vmatprep.subr.mxu0 0.0
      %3507 = vmatpush1.msra.mxu0 0.0
      %3508 = vmatprep.subr.mxu0 0.0
      %3509 = vmatpush1.msra.mxu0 0.0
      %3510 = vmatprep.subr.mxu0 0.0
      %3511 = vmatpush1.msra.mxu0 0.0
      %3512 = vmatprep.subr.mxu0 0.0
      %3513 = vmatpush1.msra.mxu0 0.0
      %3514 = vmatprep.subr.mxu0 0.0
      %3515 = vmatpush1.msra.mxu0 0.0
      %3516 = vmatprep.subr.mxu0 0.0
      %3517 = vmatpush1.msra.mxu0 0.0
      %3518 = vmatprep.subr.mxu0 0.0
      %3519 = vmatpush1.msra.mxu0 0.0
      %3520 = vmatprep.subr.mxu0 0.0
      %3521 = vmatpush1.msra.mxu0 0.0
      %3522 = vmatprep.subr.mxu0 0.0
      %3523 = vmatpush1.msra.mxu0 0.0
      %3524 = vmatprep.subr.mxu0 0.0
      %3525 = vmatpush1.msra.mxu0 0.0
      %3526 = vmatprep.subr.mxu0 0.0
      %3527 = vmatpush1.msra.mxu0 0.0
      %3528 = vmatprep.subr.mxu0 0.0
      %3529 = vmatpush1.msra.mxu0 0.0
      %3530 = vmatprep.subr.mxu0 0.0
      %3531 = vmatpush1.msra.mxu0 0.0
      %3532 = vmatprep.subr.mxu0 0.0
      %3533 = vmatpush1.msra.mxu0 0.0
      %3534 = vmatprep.subr.mxu0 0.0
      %3535 = vmatpush1.msra.mxu0 0.0
      %3536 = vmatprep.subr.mxu0 0.0
      %3537 = vmatpush1.msra.mxu0 0.0
      %3538 = vmatprep.subr.mxu0 0.0
      %3539 = vmatpush1.msra.mxu0 0.0
      %3540 = vmatprep.subr.mxu0 0.0
      %3541 = vmatpush1.msra.mxu0 0.0
      %3542 = vmatprep.subr.mxu0 0.0
      %3543 = vmatpush1.msra.mxu0 0.0
      %3544 = vmatprep.subr.mxu0 0.0
      %3545 = vmatpush1.msra.mxu0 0.0
      %3546 = vmatprep.subr.mxu0 0.0
      %3547 = vmatpush1.msra.mxu0 0.0
      %3548 = vmatprep.subr.mxu0 0.0
      %3549 = vmatpush1.msra.mxu0 0.0
      %3550 = vmatprep.mubr.f32.mxu0 0.0
      %3551 = vmatmul.mubr.f32.gmra.mrb[0].mxu0 %v3476
      %v3552 = vpop.f32.mrb[0].mxu0
      %v3553 = vadd.f32 0.0, %v3552
      %v3554 = vpop.f32.mrb[0].mxu0
      %v3555 = vadd.f32 0.0, %v3554
      %3556 = vdwg.mxu0
      %3557 = vmatprep.subr.mxu0 %v3484
      %3558 = vmatpush1.msra.mxu0 %v3482
      %3559 = vmatprep.subr.mxu0 0.0
      %3560 = vmatpush1.msra.mxu0 0.0
      %3561 = vmatprep.subr.mxu0 0.0
      %3562 = vmatpush1.msra.mxu0 0.0
      %3563 = vmatprep.subr.mxu0 0.0
      %3564 = vmatpush1.msra.mxu0 0.0
      %3565 = vmatprep.subr.mxu0 0.0
      %3566 = vmatpush1.msra.mxu0 0.0
      %3567 = vmatprep.subr.mxu0 0.0
      %3568 = vmatpush1.msra.mxu0 0.0
      %3569 = vmatprep.subr.mxu0 0.0
      %3570 = vmatpush1.msra.mxu0 0.0
      %3571 = vmatprep.subr.mxu0 0.0
      %3572 = vmatpush1.msra.mxu0 0.0
      %3573 = vmatprep.subr.mxu0 0.0
      %3574 = vmatpush1.msra.mxu0 0.0
      %3575 = vmatprep.subr.mxu0 0.0
      %3576 = vmatpush1.msra.mxu0 0.0
      %3577 = vmatprep.subr.mxu0 0.0
      %3578 = vmatpush1.msra.mxu0 0.0
      %3579 = vmatprep.subr.mxu0 0.0
      %3580 = vmatpush1.msra.mxu0 0.0
      %3581 = vmatprep.subr.mxu0 0.0
      %3582 = vmatpush1.msra.mxu0 0.0
      %3583 = vmatprep.subr.mxu0 0.0
      %3584 = vmatpush1.msra.mxu0 0.0
      %3585 = vmatprep.subr.mxu0 0.0
      %3586 = vmatpush1.msra.mxu0 0.0
      %3587 = vmatprep.subr.mxu0 0.0
      %3588 = vmatpush1.msra.mxu0 0.0
      %3589 = vmatprep.subr.mxu0 0.0
      %3590 = vmatpush1.msra.mxu0 0.0
      %3591 = vmatprep.subr.mxu0 0.0
      %3592 = vmatpush1.msra.mxu0 0.0
      %3593 = vmatprep.subr.mxu0 0.0
      %3594 = vmatpush1.msra.mxu0 0.0
      %3595 = vmatprep.subr.mxu0 0.0
      %3596 = vmatpush1.msra.mxu0 0.0
      %3597 = vmatprep.subr.mxu0 0.0
      %3598 = vmatpush1.msra.mxu0 0.0
      %3599 = vmatprep.subr.mxu0 0.0
      %3600 = vmatpush1.msra.mxu0 0.0
      %3601 = vmatprep.subr.mxu0 0.0
      %3602 = vmatpush1.msra.mxu0 0.0
      %3603 = vmatprep.subr.mxu0 0.0
      %3604 = vmatpush1.msra.mxu0 0.0
      %3605 = vmatprep.subr.mxu0 0.0
      %3606 = vmatpush1.msra.mxu0 0.0
      %3607 = vmatprep.subr.mxu0 0.0
      %3608 = vmatpush1.msra.mxu0 0.0
      %3609 = vmatprep.subr.mxu0 0.0
      %3610 = vmatpush1.msra.mxu0 0.0
      %3611 = vmatprep.subr.mxu0 0.0
      %3612 = vmatpush1.msra.mxu0 0.0
      %3613 = vmatprep.subr.mxu0 0.0
      %3614 = vmatpush1.msra.mxu0 0.0
      %3615 = vmatprep.subr.mxu0 0.0
      %3616 = vmatpush1.msra.mxu0 0.0
      %3617 = vmatprep.subr.mxu0 0.0
      %3618 = vmatpush1.msra.mxu0 0.0
      %3619 = vmatprep.subr.mxu0 0.0
      %3620 = vmatpush1.msra.mxu0 0.0
      %3621 = vmatprep.mubr.f32.mxu0 0.0
      %3622 = vmatmul.mubr.f32.gmra.mrb[0].mxu0 %v3476
      %v3623 = vpop.f32.mrb[0].mxu0
      %v3624 = vadd.f32 0.0, %v3623
      %v3625 = vpop.f32.mrb[0].mxu0
      %v3626 = vadd.f32 0.0, %v3625
      %3627 = vdwg.mxu0
      %v3628 = vadd.f32 %v3463, %v3553
      %v3629 = vadd.f32 %v3464, %v3555
      %v3630 = vadd.f32 %v3465, %v3624
      %v3631 = vadd.f32 %v3466, %v3626
      %v3632 = vld [vmem:[#allocation2 + $0x4] sm:$0xff]
      %v3633 = vld [vmem:[#allocation2 + $0xc] sm:$0xff]
      %v3634 = vld [vmem:[#allocation2 + $0x14] sm:$0xf]
      %v3636 = vlaneseq
      %v3637 = vshrl.u32 %v3636, 7
      %v3638 = vsub.s32 0, %v3637
      %v3639 = vrot.slane %v1082, %v3638
      %v3640 = vlaneseq
      %v3641 = vshrl.u32 %v3640, 7
      %v3642 = vsub.s32 1, %v3641
      %v3643 = vrot.slane %v1082, %v3642
      %v3644 = vlaneseq
      %v3645 = vshrl.u32 %v3644, 7
      %v3646 = vsub.s32 2, %v3645
      %v3647 = vrot.slane %v1082, %v3646
      %v3648 = vlaneseq
      %v3649 = vshrl.u32 %v3648, 7
      %v3650 = vsub.s32 3, %v3649
      %v3651 = vrot.slane %v1082, %v3650
      %v3652 = vcombine.low %v3639, %v3643
      %v3653 = vcombine.low %v3647, %v3651
      %3654 = vrot.lane.b32.xlu0 %v3652, 1
      %v3655 = vpop.permute.xlu0 %3654
      %3656 = vrot.lane.b32.xlu0 %v3653, 1
      %v3657 = vpop.permute.xlu0 %3656
      %v3658 = vrot.slane %v3655, 4
      %v3659 = vrot.slane %v3657, 4
      %v3660 = vsel %vm3305, %v3658, %v3655
      %v3661 = vsel %vm595, %v3658, %v3659
      %v3662 = vsel %vm3305, %v3661, %v3657
      %v3666 = vmul.f32 %v3632, %v3660
      %v3667 = vmul.f32 %v3633, %v3662
      %v3668 = vmul.f32 %v3634, %v3659
      %s3669 = scalar_lea.vmem %s4, 56
      %v3670 = vld [vmem:[%s3669] sm:$0xf]
      %v3674 = vcombine.high %v3666, %v3666
      %v3675 = vcombine.high %v3667, %v3667
      %3676 = vrot.lane.b32.xlu0 %v3666, 127
      %v3677 = vpop.permute.xlu0 %3676
      %3678 = vrot.lane.b32.xlu0 %v3674, 127
      %v3679 = vpop.permute.xlu0 %3678
      %3680 = vrot.lane.b32.xlu0 %v3667, 127
      %v3681 = vpop.permute.xlu0 %3680
      %3682 = vrot.lane.b32.xlu0 %v3675, 127
      %v3683 = vpop.permute.xlu0 %3682
      %3684 = vrot.lane.b32.xlu0 %v3668, 127
      %v3685 = vpop.permute.xlu0 %3684
      %v3686 = vsel %vm3278, %v3677, %v3679
      %v3687 = vsel %vm3278, %v3679, %v3681
      %v3688 = vsel %vm3278, %v3681, %v3683
      %v3689 = vsel %vm3278, %v3683, %v3685
      %v3691 = vsel %vm751, %v3670, 0
      %v3693 = vsel %vm595, %v3686, 0
      %v3695 = vsel %vm595, %v3687, 0
      %v3697 = vsel %vm595, %v3688, 0
      %v3699 = vsel %vm595, %v3689, 0
      %3701 = vmatprep.subr.mxu0 %v3695
      %3702 = vmatpush1.msra.mxu0 %v3693
      %3703 = vmatprep.subr.mxu0 0.0
      %3704 = vmatpush1.msra.mxu0 0.0
      %3705 = vmatprep.subr.mxu0 0.0
      %3706 = vmatpush1.msra.mxu0 0.0
      %3707 = vmatprep.subr.mxu0 0.0
      %3708 = vmatpush1.msra.mxu0 0.0
      %3709 = vmatprep.subr.mxu0 0.0
      %3710 = vmatpush1.msra.mxu0 0.0
      %3711 = vmatprep.subr.mxu0 0.0
      %3712 = vmatpush1.msra.mxu0 0.0
      %3713 = vmatprep.subr.mxu0 0.0
      %3714 = vmatpush1.msra.mxu0 0.0
      %3715 = vmatprep.subr.mxu0 0.0
      %3716 = vmatpush1.msra.mxu0 0.0
      %3717 = vmatprep.subr.mxu0 0.0
      %3718 = vmatpush1.msra.mxu0 0.0
      %3719 = vmatprep.subr.mxu0 0.0
      %3720 = vmatpush1.msra.mxu0 0.0
      %3721 = vmatprep.subr.mxu0 0.0
      %3722 = vmatpush1.msra.mxu0 0.0
      %3723 = vmatprep.subr.mxu0 0.0
      %3724 = vmatpush1.msra.mxu0 0.0
      %3725 = vmatprep.subr.mxu0 0.0
      %3726 = vmatpush1.msra.mxu0 0.0
      %3727 = vmatprep.subr.mxu0 0.0
      %3728 = vmatpush1.msra.mxu0 0.0
      %3729 = vmatprep.subr.mxu0 0.0
      %3730 = vmatpush1.msra.mxu0 0.0
      %3731 = vmatprep.subr.mxu0 0.0
      %3732 = vmatpush1.msra.mxu0 0.0
      %3733 = vmatprep.subr.mxu0 0.0
      %3734 = vmatpush1.msra.mxu0 0.0
      %3735 = vmatprep.subr.mxu0 0.0
      %3736 = vmatpush1.msra.mxu0 0.0
      %3737 = vmatprep.subr.mxu0 0.0
      %3738 = vmatpush1.msra.mxu0 0.0
      %3739 = vmatprep.subr.mxu0 0.0
      %3740 = vmatpush1.msra.mxu0 0.0
      %3741 = vmatprep.subr.mxu0 0.0
      %3742 = vmatpush1.msra.mxu0 0.0
      %3743 = vmatprep.subr.mxu0 0.0
      %3744 = vmatpush1.msra.mxu0 0.0
      %3745 = vmatprep.subr.mxu0 0.0
      %3746 = vmatpush1.msra.mxu0 0.0
      %3747 = vmatprep.subr.mxu0 0.0
      %3748 = vmatpush1.msra.mxu0 0.0
      %3749 = vmatprep.subr.mxu0 0.0
      %3750 = vmatpush1.msra.mxu0 0.0
      %3751 = vmatprep.subr.mxu0 0.0
      %3752 = vmatpush1.msra.mxu0 0.0
      %3753 = vmatprep.subr.mxu0 0.0
      %3754 = vmatpush1.msra.mxu0 0.0
      %3755 = vmatprep.subr.mxu0 0.0
      %3756 = vmatpush1.msra.mxu0 0.0
      %3757 = vmatprep.subr.mxu0 0.0
      %3758 = vmatpush1.msra.mxu0 0.0
      %3759 = vmatprep.subr.mxu0 0.0
      %3760 = vmatpush1.msra.mxu0 0.0
      %3761 = vmatprep.subr.mxu0 0.0
      %3762 = vmatpush1.msra.mxu0 0.0
      %3763 = vmatprep.subr.mxu0 0.0
      %3764 = vmatpush1.msra.mxu0 0.0
      %3765 = vmatprep.mubr.f32.mxu0 0.0
      %3766 = vmatmul.mubr.f32.gmra.mrb[0].mxu0 %v3691
      %v3767 = vpop.f32.mrb[0].mxu0
      %v3768 = vadd.f32 0.0, %v3767
      %v3769 = vpop.f32.mrb[0].mxu0
      %v3770 = vadd.f32 0.0, %v3769
      %3771 = vdwg.mxu0
      %3772 = vmatprep.subr.mxu0 %v3699
      %3773 = vmatpush1.msra.mxu0 %v3697
      %3774 = vmatprep.subr.mxu0 0.0
      %3775 = vmatpush1.msra.mxu0 0.0
      %3776 = vmatprep.subr.mxu0 0.0
      %3777 = vmatpush1.msra.mxu0 0.0
      %3778 = vmatprep.subr.mxu0 0.0
      %3779 = vmatpush1.msra.mxu0 0.0
      %3780 = vmatprep.subr.mxu0 0.0
      %3781 = vmatpush1.msra.mxu0 0.0
      %3782 = vmatprep.subr.mxu0 0.0
      %3783 = vmatpush1.msra.mxu0 0.0
      %3784 = vmatprep.subr.mxu0 0.0
      %3785 = vmatpush1.msra.mxu0 0.0
      %3786 = vmatprep.subr.mxu0 0.0
      %3787 = vmatpush1.msra.mxu0 0.0
      %3788 = vmatprep.subr.mxu0 0.0
      %3789 = vmatpush1.msra.mxu0 0.0
      %3790 = vmatprep.subr.mxu0 0.0
      %3791 = vmatpush1.msra.mxu0 0.0
      %3792 = vmatprep.subr.mxu0 0.0
      %3793 = vmatpush1.msra.mxu0 0.0
      %3794 = vmatprep.subr.mxu0 0.0
      %3795 = vmatpush1.msra.mxu0 0.0
      %3796 = vmatprep.subr.mxu0 0.0
      %3797 = vmatpush1.msra.mxu0 0.0
      %3798 = vmatprep.subr.mxu0 0.0
      %3799 = vmatpush1.msra.mxu0 0.0
      %3800 = vmatprep.subr.mxu0 0.0
      %3801 = vmatpush1.msra.mxu0 0.0
      %3802 = vmatprep.subr.mxu0 0.0
      %3803 = vmatpush1.msra.mxu0 0.0
      %3804 = vmatprep.subr.mxu0 0.0
      %3805 = vmatpush1.msra.mxu0 0.0
      %3806 = vmatprep.subr.mxu0 0.0
      %3807 = vmatpush1.msra.mxu0 0.0
      %3808 = vmatprep.subr.mxu0 0.0
      %3809 = vmatpush1.msra.mxu0 0.0
      %3810 = vmatprep.subr.mxu0 0.0
      %3811 = vmatpush1.msra.mxu0 0.0
      %3812 = vmatprep.subr.mxu0 0.0
      %3813 = vmatpush1.msra.mxu0 0.0
      %3814 = vmatprep.subr.mxu0 0.0
      %3815 = vmatpush1.msra.mxu0 0.0
      %3816 = vmatprep.subr.mxu0 0.0
      %3817 = vmatpush1.msra.mxu0 0.0
      %3818 = vmatprep.subr.mxu0 0.0
      %3819 = vmatpush1.msra.mxu0 0.0
      %3820 = vmatprep.subr.mxu0 0.0
      %3821 = vmatpush1.msra.mxu0 0.0
      %3822 = vmatprep.subr.mxu0 0.0
      %3823 = vmatpush1.msra.mxu0 0.0
      %3824 = vmatprep.subr.mxu0 0.0
      %3825 = vmatpush1.msra.mxu0 0.0
      %3826 = vmatprep.subr.mxu0 0.0
      %3827 = vmatpush1.msra.mxu0 0.0
      %3828 = vmatprep.subr.mxu0 0.0
      %3829 = vmatpush1.msra.mxu0 0.0
      %3830 = vmatprep.subr.mxu0 0.0
      %3831 = vmatpush1.msra.mxu0 0.0
      %3832 = vmatprep.subr.mxu0 0.0
      %3833 = vmatpush1.msra.mxu0 0.0
      %3834 = vmatprep.subr.mxu0 0.0
      %3835 = vmatpush1.msra.mxu0 0.0
      %3836 = vmatprep.mubr.f32.mxu0 0.0
      %3837 = vmatmul.mubr.f32.gmra.mrb[0].mxu0 %v3691
      %v3838 = vpop.f32.mrb[0].mxu0
      %v3839 = vadd.f32 0.0, %v3838
      %v3840 = vpop.f32.mrb[0].mxu0
      %v3841 = vadd.f32 0.0, %v3840
      %3842 = vdwg.mxu0
      %v3843 = vadd.f32 %v3628, %v3768
      %v3844 = vadd.f32 %v3629, %v3770
      %v3845 = vadd.f32 %v3630, %v3839
      %v3846 = vadd.f32 %v3631, %v3841
      %v3847 = vld [vmem:[#allocation2 + $0x4] sm:$0xff]
      %v3848 = vld [vmem:[#allocation2 + $0xc] sm:$0xff]
      %v3849 = vld [vmem:[#allocation2 + $0x14] sm:$0xf]
      %v3850 = vmul.f32 %v1952, %v656
      %v3852 = vlaneseq
      %v3853 = vshrl.u32 %v3852, 7
      %v3854 = vsub.s32 0, %v3853
      %v3855 = vrot.slane %v3850, %v3854
      %v3856 = vlaneseq
      %v3857 = vshrl.u32 %v3856, 7
      %v3858 = vsub.s32 1, %v3857
      %v3859 = vrot.slane %v3850, %v3858
      %v3860 = vlaneseq
      %v3861 = vshrl.u32 %v3860, 7
      %v3862 = vsub.s32 2, %v3861
      %v3863 = vrot.slane %v3850, %v3862
      %v3864 = vlaneseq
      %v3865 = vshrl.u32 %v3864, 7
      %v3866 = vsub.s32 3, %v3865
      %v3867 = vrot.slane %v3850, %v3866
      %v3868 = vcombine.low %v3855, %v3859
      %v3869 = vcombine.low %v3863, %v3867
      %3870 = vrot.lane.b32.xlu0 %v3868, 7
      %v3871 = vpop.permute.xlu0 %3870
      %3872 = vrot.lane.b32.xlu0 %v3869, 7
      %v3873 = vpop.permute.xlu0 %3872
      %v3874 = vrot.slane %v3871, 4
      %v3875 = vrot.slane %v3873, 4
      %v3876 = vsel %vm3088, %v3874, %v3871
      %v3877 = vsel %vm595, %v3874, %v3875
      %v3878 = vsel %vm3088, %v3877, %v3873
      %v3882 = vmul.f32 %v3847, %v3876
      %v3883 = vmul.f32 %v3848, %v3878
      %v3884 = vmul.f32 %v3849, %v3875
      %s3885 = scalar_lea.vmem %s4, 60
      %v3886 = vld [vmem:[%s3885] sm:$0xf]
      %v3890 = vcombine.high %v3882, %v3882
      %v3891 = vcombine.high %v3883, %v3883
      %3892 = vrot.lane.b32.xlu0 %v3882, 121
      %v3893 = vpop.permute.xlu0 %3892
      %3894 = vrot.lane.b32.xlu0 %v3890, 121
      %v3895 = vpop.permute.xlu0 %3894
      %3896 = vrot.lane.b32.xlu0 %v3883, 121
      %v3897 = vpop.permute.xlu0 %3896
      %3898 = vrot.lane.b32.xlu0 %v3891, 121
      %v3899 = vpop.permute.xlu0 %3898
      %3900 = vrot.lane.b32.xlu0 %v3884, 121
      %v3901 = vpop.permute.xlu0 %3900
      %v3902 = vsel %vm3061, %v3893, %v3895
      %v3903 = vsel %vm3061, %v3895, %v3897
      %v3904 = vsel %vm3061, %v3897, %v3899
      %v3905 = vsel %vm3061, %v3899, %v3901
      %v3907 = vsel %vm751, %v3886, 0
      %v3909 = vsel %vm595, %v3902, 0
      %v3911 = vsel %vm595, %v3903, 0
      %v3913 = vsel %vm595, %v3904, 0
      %v3915 = vsel %vm595, %v3905, 0
      %3917 = vmatprep.subr.mxu0 %v3911
      %3918 = vmatpush1.msra.mxu0 %v3909
      %3919 = vmatprep.subr.mxu0 0.0
      %3920 = vmatpush1.msra.mxu0 0.0
      %3921 = vmatprep.subr.mxu0 0.0
      %3922 = vmatpush1.msra.mxu0 0.0
      %3923 = vmatprep.subr.mxu0 0.0
      %3924 = vmatpush1.msra.mxu0 0.0
      %3925 = vmatprep.subr.mxu0 0.0
      %3926 = vmatpush1.msra.mxu0 0.0
      %3927 = vmatprep.subr.mxu0 0.0
      %3928 = vmatpush1.msra.mxu0 0.0
      %3929 = vmatprep.subr.mxu0 0.0
      %3930 = vmatpush1.msra.mxu0 0.0
      %3931 = vmatprep.subr.mxu0 0.0
      %3932 = vmatpush1.msra.mxu0 0.0
      %3933 = vmatprep.subr.mxu0 0.0
      %3934 = vmatpush1.msra.mxu0 0.0
      %3935 = vmatprep.subr.mxu0 0.0
      %3936 = vmatpush1.msra.mxu0 0.0
      %3937 = vmatprep.subr.mxu0 0.0
      %3938 = vmatpush1.msra.mxu0 0.0
      %3939 = vmatprep.subr.mxu0 0.0
      %3940 = vmatpush1.msra.mxu0 0.0
      %3941 = vmatprep.subr.mxu0 0.0
      %3942 = vmatpush1.msra.mxu0 0.0
      %3943 = vmatprep.subr.mxu0 0.0
      %3944 = vmatpush1.msra.mxu0 0.0
      %3945 = vmatprep.subr.mxu0 0.0
      %3946 = vmatpush1.msra.mxu0 0.0
      %3947 = vmatprep.subr.mxu0 0.0
      %3948 = vmatpush1.msra.mxu0 0.0
      %3949 = vmatprep.subr.mxu0 0.0
      %3950 = vmatpush1.msra.mxu0 0.0
      %3951 = vmatprep.subr.mxu0 0.0
      %3952 = vmatpush1.msra.mxu0 0.0
      %3953 = vmatprep.subr.mxu0 0.0
      %3954 = vmatpush1.msra.mxu0 0.0
      %3955 = vmatprep.subr.mxu0 0.0
      %3956 = vmatpush1.msra.mxu0 0.0
      %3957 = vmatprep.subr.mxu0 0.0
      %3958 = vmatpush1.msra.mxu0 0.0
      %3959 = vmatprep.subr.mxu0 0.0
      %3960 = vmatpush1.msra.mxu0 0.0
      %3961 = vmatprep.subr.mxu0 0.0
      %3962 = vmatpush1.msra.mxu0 0.0
      %3963 = vmatprep.subr.mxu0 0.0
      %3964 = vmatpush1.msra.mxu0 0.0
      %3965 = vmatprep.subr.mxu0 0.0
      %3966 = vmatpush1.msra.mxu0 0.0
      %3967 = vmatprep.subr.mxu0 0.0
      %3968 = vmatpush1.msra.mxu0 0.0
      %3969 = vmatprep.subr.mxu0 0.0
      %3970 = vmatpush1.msra.mxu0 0.0
      %3971 = vmatprep.subr.mxu0 0.0
      %3972 = vmatpush1.msra.mxu0 0.0
      %3973 = vmatprep.subr.mxu0 0.0
      %3974 = vmatpush1.msra.mxu0 0.0
      %3975 = vmatprep.subr.mxu0 0.0
      %3976 = vmatpush1.msra.mxu0 0.0
      %3977 = vmatprep.subr.mxu0 0.0
      %3978 = vmatpush1.msra.mxu0 0.0
      %3979 = vmatprep.subr.mxu0 0.0
      %3980 = vmatpush1.msra.mxu0 0.0
      %3981 = vmatprep.mubr.f32.mxu0 0.0
      %3982 = vmatmul.mubr.f32.gmra.mrb[0].mxu0 %v3907
      %v3983 = vpop.f32.mrb[0].mxu0
      %v3984 = vadd.f32 0.0, %v3983
      %v3985 = vpop.f32.mrb[0].mxu0
      %v3986 = vadd.f32 0.0, %v3985
      %3987 = vdwg.mxu0
      %3988 = vmatprep.subr.mxu0 %v3915
      %3989 = vmatpush1.msra.mxu0 %v3913
      %3990 = vmatprep.subr.mxu0 0.0
      %3991 = vmatpush1.msra.mxu0 0.0
      %3992 = vmatprep.subr.mxu0 0.0
      %3993 = vmatpush1.msra.mxu0 0.0
      %3994 = vmatprep.subr.mxu0 0.0
      %3995 = vmatpush1.msra.mxu0 0.0
      %3996 = vmatprep.subr.mxu0 0.0
      %3997 = vmatpush1.msra.mxu0 0.0
      %3998 = vmatprep.subr.mxu0 0.0
      %3999 = vmatpush1.msra.mxu0 0.0
      %4000 = vmatprep.subr.mxu0 0.0
      %4001 = vmatpush1.msra.mxu0 0.0
      %4002 = vmatprep.subr.mxu0 0.0
      %4003 = vmatpush1.msra.mxu0 0.0
      %4004 = vmatprep.subr.mxu0 0.0
      %4005 = vmatpush1.msra.mxu0 0.0
      %4006 = vmatprep.subr.mxu0 0.0
      %4007 = vmatpush1.msra.mxu0 0.0
      %4008 = vmatprep.subr.mxu0 0.0
      %4009 = vmatpush1.msra.mxu0 0.0
      %4010 = vmatprep.subr.mxu0 0.0
      %4011 = vmatpush1.msra.mxu0 0.0
      %4012 = vmatprep.subr.mxu0 0.0
      %4013 = vmatpush1.msra.mxu0 0.0
      %4014 = vmatprep.subr.mxu0 0.0
      %4015 = vmatpush1.msra.mxu0 0.0
      %4016 = vmatprep.subr.mxu0 0.0
      %4017 = vmatpush1.msra.mxu0 0.0
      %4018 = vmatprep.subr.mxu0 0.0
      %4019 = vmatpush1.msra.mxu0 0.0
      %4020 = vmatprep.subr.mxu0 0.0
      %4021 = vmatpush1.msra.mxu0 0.0
      %4022 = vmatprep.subr.mxu0 0.0
      %4023 = vmatpush1.msra.mxu0 0.0
      %4024 = vmatprep.subr.mxu0 0.0
      %4025 = vmatpush1.msra.mxu0 0.0
      %4026 = vmatprep.subr.mxu0 0.0
      %4027 = vmatpush1.msra.mxu0 0.0
      %4028 = vmatprep.subr.mxu0 0.0
      %4029 = vmatpush1.msra.mxu0 0.0
      %4030 = vmatprep.subr.mxu0 0.0
      %4031 = vmatpush1.msra.mxu0 0.0
      %4032 = vmatprep.subr.mxu0 0.0
      %4033 = vmatpush1.msra.mxu0 0.0
      %4034 = vmatprep.subr.mxu0 0.0
      %4035 = vmatpush1.msra.mxu0 0.0
      %4036 = vmatprep.subr.mxu0 0.0
      %4037 = vmatpush1.msra.mxu0 0.0
      %4038 = vmatprep.subr.mxu0 0.0
      %4039 = vmatpush1.msra.mxu0 0.0
      %4040 = vmatprep.subr.mxu0 0.0
      %4041 = vmatpush1.msra.mxu0 0.0
      %4042 = vmatprep.subr.mxu0 0.0
      %4043 = vmatpush1.msra.mxu0 0.0
      %4044 = vmatprep.subr.mxu0 0.0
      %4045 = vmatpush1.msra.mxu0 0.0
      %4046 = vmatprep.subr.mxu0 0.0
      %4047 = vmatpush1.msra.mxu0 0.0
      %4048 = vmatprep.subr.mxu0 0.0
      %4049 = vmatpush1.msra.mxu0 0.0
      %4050 = vmatprep.subr.mxu0 0.0
      %4051 = vmatpush1.msra.mxu0 0.0
      %4052 = vmatprep.mubr.f32.mxu0 0.0
      %4053 = vmatmul.mubr.f32.gmra.mrb[0].mxu0 %v3907
      %v4054 = vpop.f32.mrb[0].mxu0
      %v4055 = vadd.f32 0.0, %v4054
      %v4056 = vpop.f32.mrb[0].mxu0
      %v4057 = vadd.f32 0.0, %v4056
      %4058 = vdwg.mxu0
      %v4059 = vadd.f32 %v3843, %v3984
      %v4060 = vadd.f32 %v3844, %v3986
      %v4061 = vadd.f32 %v3845, %v4055
      %v4062 = vadd.f32 %v3846, %v4057
      %v4063 = vld [vmem:[#allocation2 + $0x4] sm:$0xff]
      %v4064 = vld [vmem:[#allocation2 + $0xc] sm:$0xff]
      %v4065 = vld [vmem:[#allocation2 + $0x14] sm:$0xf]
      %v4067 = vlaneseq
      %v4068 = vshrl.u32 %v4067, 7
      %v4069 = vsub.s32 0, %v4068
      %v4070 = vrot.slane %v1952, %v4069
      %v4071 = vlaneseq
      %v4072 = vshrl.u32 %v4071, 7
      %v4073 = vsub.s32 1, %v4072
      %v4074 = vrot.slane %v1952, %v4073
      %v4075 = vlaneseq
      %v4076 = vshrl.u32 %v4075, 7
      %v4077 = vsub.s32 2, %v4076
      %v4078 = vrot.slane %v1952, %v4077
      %v4079 = vlaneseq
      %v4080 = vshrl.u32 %v4079, 7
      %v4081 = vsub.s32 3, %v4080
      %v4082 = vrot.slane %v1952, %v4081
      %v4083 = vcombine.low %v4070, %v4074
      %v4084 = vcombine.low %v4078, %v4082
      %4085 = vrot.lane.b32.xlu0 %v4083, 8
      %v4086 = vpop.permute.xlu0 %4085
      %4087 = vrot.lane.b32.xlu0 %v4084, 8
      %v4088 = vpop.permute.xlu0 %4087
      %v4089 = vrot.slane %v4086, 4
      %v4090 = vrot.slane %v4088, 4
      %v4091 = vsel %vm449, %v4089, %v4086
      %v4092 = vsel %vm595, %v4089, %v4090
      %v4093 = vsel %vm449, %v4092, %v4088
      %v4097 = vmul.f32 %v4063, %v4091
      %v4098 = vmul.f32 %v4064, %v4093
      %v4099 = vmul.f32 %v4065, %v4090
      %s4100 = scalar_lea.vmem %s4, 64
      %v4101 = vld [vmem:[%s4100] sm:$0xf]
      %v4105 = vcombine.high %v4097, %v4097
      %v4106 = vcombine.high %v4098, %v4098
      %4107 = vrot.lane.b32.xlu0 %v4097, 120
      %v4108 = vpop.permute.xlu0 %4107
      %4109 = vrot.lane.b32.xlu0 %v4105, 120
      %v4110 = vpop.permute.xlu0 %4109
      %4111 = vrot.lane.b32.xlu0 %v4098, 120
      %v4112 = vpop.permute.xlu0 %4111
      %4113 = vrot.lane.b32.xlu0 %v4106, 120
      %v4114 = vpop.permute.xlu0 %4113
      %4115 = vrot.lane.b32.xlu0 %v4099, 120
      %v4116 = vpop.permute.xlu0 %4115
      %v4117 = vsel %vm2844, %v4108, %v4110
      %v4118 = vsel %vm2844, %v4110, %v4112
      %v4119 = vsel %vm2844, %v4112, %v4114
      %v4120 = vsel %vm2844, %v4114, %v4116
      %v4122 = vsel %vm751, %v4101, 0
      %v4124 = vsel %vm595, %v4117, 0
      %v4126 = vsel %vm595, %v4118, 0
      %v4128 = vsel %vm595, %v4119, 0
      %v4130 = vsel %vm595, %v4120, 0
      %4132 = vmatprep.subr.mxu0 %v4126
      %4133 = vmatpush1.msra.mxu0 %v4124
      %4134 = vmatprep.subr.mxu0 0.0
      %4135 = vmatpush1.msra.mxu0 0.0
      %4136 = vmatprep.subr.mxu0 0.0
      %4137 = vmatpush1.msra.mxu0 0.0
      %4138 = vmatprep.subr.mxu0 0.0
      %4139 = vmatpush1.msra.mxu0 0.0
      %4140 = vmatprep.subr.mxu0 0.0
      %4141 = vmatpush1.msra.mxu0 0.0
      %4142 = vmatprep.subr.mxu0 0.0
      %4143 = vmatpush1.msra.mxu0 0.0
      %4144 = vmatprep.subr.mxu0 0.0
      %4145 = vmatpush1.msra.mxu0 0.0
      %4146 = vmatprep.subr.mxu0 0.0
      %4147 = vmatpush1.msra.mxu0 0.0
      %4148 = vmatprep.subr.mxu0 0.0
      %4149 = vmatpush1.msra.mxu0 0.0
      %4150 = vmatprep.subr.mxu0 0.0
      %4151 = vmatpush1.msra.mxu0 0.0
      %4152 = vmatprep.subr.mxu0 0.0
      %4153 = vmatpush1.msra.mxu0 0.0
      %4154 = vmatprep.subr.mxu0 0.0
      %4155 = vmatpush1.msra.mxu0 0.0
      %4156 = vmatprep.subr.mxu0 0.0
      %4157 = vmatpush1.msra.mxu0 0.0
      %4158 = vmatprep.subr.mxu0 0.0
      %4159 = vmatpush1.msra.mxu0 0.0
      %4160 = vmatprep.subr.mxu0 0.0
      %4161 = vmatpush1.msra.mxu0 0.0
      %4162 = vmatprep.subr.mxu0 0.0
      %4163 = vmatpush1.msra.mxu0 0.0
      %4164 = vmatprep.subr.mxu0 0.0
      %4165 = vmatpush1.msra.mxu0 0.0
      %4166 = vmatprep.subr.mxu0 0.0
      %4167 = vmatpush1.msra.mxu0 0.0
      %4168 = vmatprep.subr.mxu0 0.0
      %4169 = vmatpush1.msra.mxu0 0.0
      %4170 = vmatprep.subr.mxu0 0.0
      %4171 = vmatpush1.msra.mxu0 0.0
      %4172 = vmatprep.subr.mxu0 0.0
      %4173 = vmatpush1.msra.mxu0 0.0
      %4174 = vmatprep.subr.mxu0 0.0
      %4175 = vmatpush1.msra.mxu0 0.0
      %4176 = vmatprep.subr.mxu0 0.0
      %4177 = vmatpush1.msra.mxu0 0.0
      %4178 = vmatprep.subr.mxu0 0.0
      %4179 = vmatpush1.msra.mxu0 0.0
      %4180 = vmatprep.subr.mxu0 0.0
      %4181 = vmatpush1.msra.mxu0 0.0
      %4182 = vmatprep.subr.mxu0 0.0
      %4183 = vmatpush1.msra.mxu0 0.0
      %4184 = vmatprep.subr.mxu0 0.0
      %4185 = vmatpush1.msra.mxu0 0.0
      %4186 = vmatprep.subr.mxu0 0.0
      %4187 = vmatpush1.msra.mxu0 0.0
      %4188 = vmatprep.subr.mxu0 0.0
      %4189 = vmatpush1.msra.mxu0 0.0
      %4190 = vmatprep.subr.mxu0 0.0
      %4191 = vmatpush1.msra.mxu0 0.0
      %4192 = vmatprep.subr.mxu0 0.0
      %4193 = vmatpush1.msra.mxu0 0.0
      %4194 = vmatprep.subr.mxu0 0.0
      %4195 = vmatpush1.msra.mxu0 0.0
      %4196 = vmatprep.mubr.f32.mxu0 0.0
      %4197 = vmatmul.mubr.f32.gmra.mrb[0].mxu0 %v4122
      %v4198 = vpop.f32.mrb[0].mxu0
      %v4199 = vadd.f32 0.0, %v4198
      %v4200 = vpop.f32.mrb[0].mxu0
      %v4201 = vadd.f32 0.0, %v4200
      %4202 = vdwg.mxu0
      %4203 = vmatprep.subr.mxu0 %v4130
      %4204 = vmatpush1.msra.mxu0 %v4128
      %4205 = vmatprep.subr.mxu0 0.0
      %4206 = vmatpush1.msra.mxu0 0.0
      %4207 = vmatprep.subr.mxu0 0.0
      %4208 = vmatpush1.msra.mxu0 0.0
      %4209 = vmatprep.subr.mxu0 0.0
      %4210 = vmatpush1.msra.mxu0 0.0
      %4211 = vmatprep.subr.mxu0 0.0
      %4212 = vmatpush1.msra.mxu0 0.0
      %4213 = vmatprep.subr.mxu0 0.0
      %4214 = vmatpush1.msra.mxu0 0.0
      %4215 = vmatprep.subr.mxu0 0.0
      %4216 = vmatpush1.msra.mxu0 0.0
      %4217 = vmatprep.subr.mxu0 0.0
      %4218 = vmatpush1.msra.mxu0 0.0
      %4219 = vmatprep.subr.mxu0 0.0
      %4220 = vmatpush1.msra.mxu0 0.0
      %4221 = vmatprep.subr.mxu0 0.0
      %4222 = vmatpush1.msra.mxu0 0.0
      %4223 = vmatprep.subr.mxu0 0.0
      %4224 = vmatpush1.msra.mxu0 0.0
      %4225 = vmatprep.subr.mxu0 0.0
      %4226 = vmatpush1.msra.mxu0 0.0
      %4227 = vmatprep.subr.mxu0 0.0
      %4228 = vmatpush1.msra.mxu0 0.0
      %4229 = vmatprep.subr.mxu0 0.0
      %4230 = vmatpush1.msra.mxu0 0.0
      %4231 = vmatprep.subr.mxu0 0.0
      %4232 = vmatpush1.msra.mxu0 0.0
      %4233 = vmatprep.subr.mxu0 0.0
      %4234 = vmatpush1.msra.mxu0 0.0
      %4235 = vmatprep.subr.mxu0 0.0
      %4236 = vmatpush1.msra.mxu0 0.0
      %4237 = vmatprep.subr.mxu0 0.0
      %4238 = vmatpush1.msra.mxu0 0.0
      %4239 = vmatprep.subr.mxu0 0.0
      %4240 = vmatpush1.msra.mxu0 0.0
      %4241 = vmatprep.subr.mxu0 0.0
      %4242 = vmatpush1.msra.mxu0 0.0
      %4243 = vmatprep.subr.mxu0 0.0
      %4244 = vmatpush1.msra.mxu0 0.0
      %4245 = vmatprep.subr.mxu0 0.0
      %4246 = vmatpush1.msra.mxu0 0.0
      %4247 = vmatprep.subr.mxu0 0.0
      %4248 = vmatpush1.msra.mxu0 0.0
      %4249 = vmatprep.subr.mxu0 0.0
      %4250 = vmatpush1.msra.mxu0 0.0
      %4251 = vmatprep.subr.mxu0 0.0
      %4252 = vmatpush1.msra.mxu0 0.0
      %4253 = vmatprep.subr.mxu0 0.0
      %4254 = vmatpush1.msra.mxu0 0.0
      %4255 = vmatprep.subr.mxu0 0.0
      %4256 = vmatpush1.msra.mxu0 0.0
      %4257 = vmatprep.subr.mxu0 0.0
      %4258 = vmatpush1.msra.mxu0 0.0
      %4259 = vmatprep.subr.mxu0 0.0
      %4260 = vmatpush1.msra.mxu0 0.0
      %4261 = vmatprep.subr.mxu0 0.0
      %4262 = vmatpush1.msra.mxu0 0.0
      %4263 = vmatprep.subr.mxu0 0.0
      %4264 = vmatpush1.msra.mxu0 0.0
      %4265 = vmatprep.subr.mxu0 0.0
      %4266 = vmatpush1.msra.mxu0 0.0
      %4267 = vmatprep.mubr.f32.mxu0 0.0
      %4268 = vmatmul.mubr.f32.gmra.mrb[0].mxu0 %v4122
      %v4269 = vpop.f32.mrb[0].mxu0
      %v4270 = vadd.f32 0.0, %v4269
      %v4271 = vpop.f32.mrb[0].mxu0
      %v4272 = vadd.f32 0.0, %v4271
      %4273 = vdwg.mxu0
      %v4274 = vadd.f32 %v4059, %v4199
      %v4275 = vadd.f32 %v4060, %v4201
      %v4276 = vadd.f32 %v4061, %v4270
      %v4277 = vadd.f32 %v4062, %v4272
      %v4278 = vld [vmem:[#allocation2 + $0x4] sm:$0xff]
      %v4279 = vld [vmem:[#allocation2 + $0xc] sm:$0xff]
      %v4280 = vld [vmem:[#allocation2 + $0x14] sm:$0xf]
      %v4281 = vmul.f32 %v1952, %v1082
      %v4283 = vlaneseq
      %v4284 = vshrl.u32 %v4283, 7
      %v4285 = vsub.s32 0, %v4284
      %v4286 = vrot.slane %v4281, %v4285
      %v4287 = vlaneseq
      %v4288 = vshrl.u32 %v4287, 7
      %v4289 = vsub.s32 1, %v4288
      %v4290 = vrot.slane %v4281, %v4289
      %v4291 = vlaneseq
      %v4292 = vshrl.u32 %v4291, 7
      %v4293 = vsub.s32 2, %v4292
      %v4294 = vrot.slane %v4281, %v4293
      %v4295 = vlaneseq
      %v4296 = vshrl.u32 %v4295, 7
      %v4297 = vsub.s32 3, %v4296
      %v4298 = vrot.slane %v4281, %v4297
      %v4299 = vcombine.low %v4286, %v4290
      %v4300 = vcombine.low %v4294, %v4298
      %4301 = vrot.lane.b32.xlu0 %v4299, 9
      %v4302 = vpop.permute.xlu0 %4301
      %4303 = vrot.lane.b32.xlu0 %v4300, 9
      %v4304 = vpop.permute.xlu0 %4303
      %v4305 = vrot.slane %v4302, 4
      %v4306 = vrot.slane %v4304, 4
      %v4307 = vsel %vm2654, %v4305, %v4302
      %v4308 = vsel %vm595, %v4305, %v4306
      %v4309 = vsel %vm2654, %v4308, %v4304
      %v4313 = vmul.f32 %v4278, %v4307
      %v4314 = vmul.f32 %v4279, %v4309
      %v4315 = vmul.f32 %v4280, %v4306
      %s4316 = scalar_lea.vmem %s4, 68
      %v4317 = vld [vmem:[%s4316] sm:$0xf]
      %v4321 = vcombine.high %v4313, %v4313
      %v4322 = vcombine.high %v4314, %v4314
      %4323 = vrot.lane.b32.xlu0 %v4313, 119
      %v4324 = vpop.permute.xlu0 %4323
      %4325 = vrot.lane.b32.xlu0 %v4321, 119
      %v4326 = vpop.permute.xlu0 %4325
      %4327 = vrot.lane.b32.xlu0 %v4314, 119
      %v4328 = vpop.permute.xlu0 %4327
      %4329 = vrot.lane.b32.xlu0 %v4322, 119
      %v4330 = vpop.permute.xlu0 %4329
      %4331 = vrot.lane.b32.xlu0 %v4315, 119
      %v4332 = vpop.permute.xlu0 %4331
      %v4333 = vsel %vm2627, %v4324, %v4326
      %v4334 = vsel %vm2627, %v4326, %v4328
      %v4335 = vsel %vm2627, %v4328, %v4330
      %v4336 = vsel %vm2627, %v4330, %v4332
      %v4338 = vsel %vm751, %v4317, 0
      %v4340 = vsel %vm595, %v4333, 0
      %v4342 = vsel %vm595, %v4334, 0
      %v4344 = vsel %vm595, %v4335, 0
      %v4346 = vsel %vm595, %v4336, 0
      %4348 = vmatprep.subr.mxu0 %v4342
      %4349 = vmatpush1.msra.mxu0 %v4340
      %4350 = vmatprep.subr.mxu0 0.0
      %4351 = vmatpush1.msra.mxu0 0.0
      %4352 = vmatprep.subr.mxu0 0.0
      %4353 = vmatpush1.msra.mxu0 0.0
      %4354 = vmatprep.subr.mxu0 0.0
      %4355 = vmatpush1.msra.mxu0 0.0
      %4356 = vmatprep.subr.mxu0 0.0
      %4357 = vmatpush1.msra.mxu0 0.0
      %4358 = vmatprep.subr.mxu0 0.0
      %4359 = vmatpush1.msra.mxu0 0.0
      %4360 = vmatprep.subr.mxu0 0.0
      %4361 = vmatpush1.msra.mxu0 0.0
      %4362 = vmatprep.subr.mxu0 0.0
      %4363 = vmatpush1.msra.mxu0 0.0
      %4364 = vmatprep.subr.mxu0 0.0
      %4365 = vmatpush1.msra.mxu0 0.0
      %4366 = vmatprep.subr.mxu0 0.0
      %4367 = vmatpush1.msra.mxu0 0.0
      %4368 = vmatprep.subr.mxu0 0.0
      %4369 = vmatpush1.msra.mxu0 0.0
      %4370 = vmatprep.subr.mxu0 0.0
      %4371 = vmatpush1.msra.mxu0 0.0
      %4372 = vmatprep.subr.mxu0 0.0
      %4373 = vmatpush1.msra.mxu0 0.0
      %4374 = vmatprep.subr.mxu0 0.0
      %4375 = vmatpush1.msra.mxu0 0.0
      %4376 = vmatprep.subr.mxu0 0.0
      %4377 = vmatpush1.msra.mxu0 0.0
      %4378 = vmatprep.subr.mxu0 0.0
      %4379 = vmatpush1.msra.mxu0 0.0
      %4380 = vmatprep.subr.mxu0 0.0
      %4381 = vmatpush1.msra.mxu0 0.0
      %4382 = vmatprep.subr.mxu0 0.0
      %4383 = vmatpush1.msra.mxu0 0.0
      %4384 = vmatprep.subr.mxu0 0.0
      %4385 = vmatpush1.msra.mxu0 0.0
      %4386 = vmatprep.subr.mxu0 0.0
      %4387 = vmatpush1.msra.mxu0 0.0
      %4388 = vmatprep.subr.mxu0 0.0
      %4389 = vmatpush1.msra.mxu0 0.0
      %4390 = vmatprep.subr.mxu0 0.0
      %4391 = vmatpush1.msra.mxu0 0.0
      %4392 = vmatprep.subr.mxu0 0.0
      %4393 = vmatpush1.msra.mxu0 0.0
      %4394 = vmatprep.subr.mxu0 0.0
      %4395 = vmatpush1.msra.mxu0 0.0
      %4396 = vmatprep.subr.mxu0 0.0
      %4397 = vmatpush1.msra.mxu0 0.0
      %4398 = vmatprep.subr.mxu0 0.0
      %4399 = vmatpush1.msra.mxu0 0.0
      %4400 = vmatprep.subr.mxu0 0.0
      %4401 = vmatpush1.msra.mxu0 0.0
      %4402 = vmatprep.subr.mxu0 0.0
      %4403 = vmatpush1.msra.mxu0 0.0
      %4404 = vmatprep.subr.mxu0 0.0
      %4405 = vmatpush1.msra.mxu0 0.0
      %4406 = vmatprep.subr.mxu0 0.0
      %4407 = vmatpush1.msra.mxu0 0.0
      %4408 = vmatprep.subr.mxu0 0.0
      %4409 = vmatpush1.msra.mxu0 0.0
      %4410 = vmatprep.subr.mxu0 0.0
      %4411 = vmatpush1.msra.mxu0 0.0
      %4412 = vmatprep.mubr.f32.mxu0 0.0
      %4413 = vmatmul.mubr.f32.gmra.mrb[0].mxu0 %v4338
      %v4414 = vpop.f32.mrb[0].mxu0
      %v4415 = vadd.f32 0.0, %v4414
      %v4416 = vpop.f32.mrb[0].mxu0
      %v4417 = vadd.f32 0.0, %v4416
      %4418 = vdwg.mxu0
      %4419 = vmatprep.subr.mxu0 %v4346
      %4420 = vmatpush1.msra.mxu0 %v4344
      %4421 = vmatprep.subr.mxu0 0.0
      %4422 = vmatpush1.msra.mxu0 0.0
      %4423 = vmatprep.subr.mxu0 0.0
      %4424 = vmatpush1.msra.mxu0 0.0
      %4425 = vmatprep.subr.mxu0 0.0
      %4426 = vmatpush1.msra.mxu0 0.0
      %4427 = vmatprep.subr.mxu0 0.0
      %4428 = vmatpush1.msra.mxu0 0.0
      %4429 = vmatprep.subr.mxu0 0.0
      %4430 = vmatpush1.msra.mxu0 0.0
      %4431 = vmatprep.subr.mxu0 0.0
      %4432 = vmatpush1.msra.mxu0 0.0
      %4433 = vmatprep.subr.mxu0 0.0
      %4434 = vmatpush1.msra.mxu0 0.0
      %4435 = vmatprep.subr.mxu0 0.0
      %4436 = vmatpush1.msra.mxu0 0.0
      %4437 = vmatprep.subr.mxu0 0.0
      %4438 = vmatpush1.msra.mxu0 0.0
      %4439 = vmatprep.subr.mxu0 0.0
      %4440 = vmatpush1.msra.mxu0 0.0
      %4441 = vmatprep.subr.mxu0 0.0
      %4442 = vmatpush1.msra.mxu0 0.0
      %4443 = vmatprep.subr.mxu0 0.0
      %4444 = vmatpush1.msra.mxu0 0.0
      %4445 = vmatprep.subr.mxu0 0.0
      %4446 = vmatpush1.msra.mxu0 0.0
      %4447 = vmatprep.subr.mxu0 0.0
      %4448 = vmatpush1.msra.mxu0 0.0
      %4449 = vmatprep.subr.mxu0 0.0
      %4450 = vmatpush1.msra.mxu0 0.0
      %4451 = vmatprep.subr.mxu0 0.0
      %4452 = vmatpush1.msra.mxu0 0.0
      %4453 = vmatprep.subr.mxu0 0.0
      %4454 = vmatpush1.msra.mxu0 0.0
      %4455 = vmatprep.subr.mxu0 0.0
      %4456 = vmatpush1.msra.mxu0 0.0
      %4457 = vmatprep.subr.mxu0 0.0
      %4458 = vmatpush1.msra.mxu0 0.0
      %4459 = vmatprep.subr.mxu0 0.0
      %4460 = vmatpush1.msra.mxu0 0.0
      %4461 = vmatprep.subr.mxu0 0.0
      %4462 = vmatpush1.msra.mxu0 0.0
      %4463 = vmatprep.subr.mxu0 0.0
      %4464 = vmatpush1.msra.mxu0 0.0
      %4465 = vmatprep.subr.mxu0 0.0
      %4466 = vmatpush1.msra.mxu0 0.0
      %4467 = vmatprep.subr.mxu0 0.0
      %4468 = vmatpush1.msra.mxu0 0.0
      %4469 = vmatprep.subr.mxu0 0.0
      %4470 = vmatpush1.msra.mxu0 0.0
      %4471 = vmatprep.subr.mxu0 0.0
      %4472 = vmatpush1.msra.mxu0 0.0
      %4473 = vmatprep.subr.mxu0 0.0
      %4474 = vmatpush1.msra.mxu0 0.0
      %4475 = vmatprep.subr.mxu0 0.0
      %4476 = vmatpush1.msra.mxu0 0.0
      %4477 = vmatprep.subr.mxu0 0.0
      %4478 = vmatpush1.msra.mxu0 0.0
      %4479 = vmatprep.subr.mxu0 0.0
      %4480 = vmatpush1.msra.mxu0 0.0
      %4481 = vmatprep.subr.mxu0 0.0
      %4482 = vmatpush1.msra.mxu0 0.0
      %4483 = vmatprep.mubr.f32.mxu0 0.0
      %4484 = vmatmul.mubr.f32.gmra.mrb[0].mxu0 %v4338
      %v4485 = vpop.f32.mrb[0].mxu0
      %v4486 = vadd.f32 0.0, %v4485
      %v4487 = vpop.f32.mrb[0].mxu0
      %v4488 = vadd.f32 0.0, %v4487
      %4489 = vdwg.mxu0
      %v4490 = vadd.f32 %v4274, %v4415
      %v4491 = vadd.f32 %v4275, %v4417
      %v4492 = vadd.f32 %v4276, %v4486
      %v4493 = vadd.f32 %v4277, %v4488
      %v4494 = vld [vmem:[#allocation2 + $0x4] sm:$0xff]
      %v4495 = vld [vmem:[#allocation2 + $0xc] sm:$0xff]
      %v4496 = vld [vmem:[#allocation2 + $0x14] sm:$0xf]
      %s4497 = scalar_lea.vmem %s6, 1
      %v4498 = vld [vmem:[%s4497] ss:$8 sm:$0xf]
      %v4499 = vmul.f32 %v4498, %v653
      %v4500 = vmul.f32 %v4499, %v656
      %v4502 = vlaneseq
      %v4503 = vshrl.u32 %v4502, 7
      %v4504 = vsub.s32 0, %v4503
      %v4505 = vrot.slane %v4500, %v4504
      %v4506 = vlaneseq
      %v4507 = vshrl.u32 %v4506, 7
      %v4508 = vsub.s32 1, %v4507
      %v4509 = vrot.slane %v4500, %v4508
      %v4510 = vlaneseq
      %v4511 = vshrl.u32 %v4510, 7
      %v4512 = vsub.s32 2, %v4511
      %v4513 = vrot.slane %v4500, %v4512
      %v4514 = vlaneseq
      %v4515 = vshrl.u32 %v4514, 7
      %v4516 = vsub.s32 3, %v4515
      %v4517 = vrot.slane %v4500, %v4516
      %v4518 = vcombine.low %v4505, %v4509
      %v4519 = vcombine.low %v4513, %v4517
      %4520 = vrot.lane.b32.xlu0 %v4518, 55
      %v4521 = vpop.permute.xlu0 %4520
      %4522 = vrot.lane.b32.xlu0 %v4519, 55
      %v4523 = vpop.permute.xlu0 %4522
      %v4524 = vrot.slane %v4521, 4
      %v4525 = vrot.slane %v4523, 4
      %v4526 = vsel %vm683, %v4524, %v4521
      %v4527 = vsel %vm595, %v4524, %v4525
      %v4528 = vsel %vm683, %v4527, %v4523
      %v4532 = vmul.f32 %v4494, %v4526
      %v4533 = vmul.f32 %v4495, %v4528
      %v4534 = vmul.f32 %v4496, %v4525
      %s4535 = scalar_lea.vmem %s4, 72
      %v4536 = vld [vmem:[%s4535] sm:$0xf]
      %v4540 = vcombine.high %v4532, %v4532
      %v4541 = vcombine.high %v4533, %v4533
      %4542 = vrot.lane.b32.xlu0 %v4532, 73
      %v4543 = vpop.permute.xlu0 %4542
      %4544 = vrot.lane.b32.xlu0 %v4540, 73
      %v4545 = vpop.permute.xlu0 %4544
      %4546 = vrot.lane.b32.xlu0 %v4533, 73
      %v4547 = vpop.permute.xlu0 %4546
      %4548 = vrot.lane.b32.xlu0 %v4541, 73
      %v4549 = vpop.permute.xlu0 %4548
      %4550 = vrot.lane.b32.xlu0 %v4534, 73
      %v4551 = vpop.permute.xlu0 %4550
      %v4552 = vsel %vm920, %v4543, %v4545
      %v4553 = vsel %vm920, %v4545, %v4547
      %v4554 = vsel %vm920, %v4547, %v4549
      %v4555 = vsel %vm920, %v4549, %v4551
      %v4557 = vsel %vm751, %v4536, 0
      %v4559 = vsel %vm595, %v4552, 0
      %v4561 = vsel %vm595, %v4553, 0
      %v4563 = vsel %vm595, %v4554, 0
      %v4565 = vsel %vm595, %v4555, 0
      %4567 = vmatprep.subr.mxu0 %v4561
      %4568 = vmatpush1.msra.mxu0 %v4559
      %4569 = vmatprep.subr.mxu0 0.0
      %4570 = vmatpush1.msra.mxu0 0.0
      %4571 = vmatprep.subr.mxu0 0.0
      %4572 = vmatpush1.msra.mxu0 0.0
      %4573 = vmatprep.subr.mxu0 0.0
      %4574 = vmatpush1.msra.mxu0 0.0
      %4575 = vmatprep.subr.mxu0 0.0
      %4576 = vmatpush1.msra.mxu0 0.0
      %4577 = vmatprep.subr.mxu0 0.0
      %4578 = vmatpush1.msra.mxu0 0.0
      %4579 = vmatprep.subr.mxu0 0.0
      %4580 = vmatpush1.msra.mxu0 0.0
      %4581 = vmatprep.subr.mxu0 0.0
      %4582 = vmatpush1.msra.mxu0 0.0
      %4583 = vmatprep.subr.mxu0 0.0
      %4584 = vmatpush1.msra.mxu0 0.0
      %4585 = vmatprep.subr.mxu0 0.0
      %4586 = vmatpush1.msra.mxu0 0.0
      %4587 = vmatprep.subr.mxu0 0.0
      %4588 = vmatpush1.msra.mxu0 0.0
      %4589 = vmatprep.subr.mxu0 0.0
      %4590 = vmatpush1.msra.mxu0 0.0
      %4591 = vmatprep.subr.mxu0 0.0
      %4592 = vmatpush1.msra.mxu0 0.0
      %4593 = vmatprep.subr.mxu0 0.0
      %4594 = vmatpush1.msra.mxu0 0.0
      %4595 = vmatprep.subr.mxu0 0.0
      %4596 = vmatpush1.msra.mxu0 0.0
      %4597 = vmatprep.subr.mxu0 0.0
      %4598 = vmatpush1.msra.mxu0 0.0
      %4599 = vmatprep.subr.mxu0 0.0
      %4600 = vmatpush1.msra.mxu0 0.0
      %4601 = vmatprep.subr.mxu0 0.0
      %4602 = vmatpush1.msra.mxu0 0.0
      %4603 = vmatprep.subr.mxu0 0.0
      %4604 = vmatpush1.msra.mxu0 0.0
      %4605 = vmatprep.subr.mxu0 0.0
      %4606 = vmatpush1.msra.mxu0 0.0
      %4607 = vmatprep.subr.mxu0 0.0
      %4608 = vmatpush1.msra.mxu0 0.0
      %4609 = vmatprep.subr.mxu0 0.0
      %4610 = vmatpush1.msra.mxu0 0.0
      %4611 = vmatprep.subr.mxu0 0.0
      %4612 = vmatpush1.msra.mxu0 0.0
      %4613 = vmatprep.subr.mxu0 0.0
      %4614 = vmatpush1.msra.mxu0 0.0
      %4615 = vmatprep.subr.mxu0 0.0
      %4616 = vmatpush1.msra.mxu0 0.0
      %4617 = vmatprep.subr.mxu0 0.0
      %4618 = vmatpush1.msra.mxu0 0.0
      %4619 = vmatprep.subr.mxu0 0.0
      %4620 = vmatpush1.msra.mxu0 0.0
      %4621 = vmatprep.subr.mxu0 0.0
      %4622 = vmatpush1.msra.mxu0 0.0
      %4623 = vmatprep.subr.mxu0 0.0
      %4624 = vmatpush1.msra.mxu0 0.0
      %4625 = vmatprep.subr.mxu0 0.0
      %4626 = vmatpush1.msra.mxu0 0.0
      %4627 = vmatprep.subr.mxu0 0.0
      %4628 = vmatpush1.msra.mxu0 0.0
      %4629 = vmatprep.subr.mxu0 0.0
      %4630 = vmatpush1.msra.mxu0 0.0
      %4631 = vmatprep.mubr.f32.mxu0 0.0
      %4632 = vmatmul.mubr.f32.gmra.mrb[0].mxu0 %v4557
      %v4633 = vpop.f32.mrb[0].mxu0
      %v4634 = vadd.f32 0.0, %v4633
      %v4635 = vpop.f32.mrb[0].mxu0
      %v4636 = vadd.f32 0.0, %v4635
      %4637 = vdwg.mxu0
      %4638 = vmatprep.subr.mxu0 %v4565
      %4639 = vmatpush1.msra.mxu0 %v4563
      %4640 = vmatprep.subr.mxu0 0.0
      %4641 = vmatpush1.msra.mxu0 0.0
      %4642 = vmatprep.subr.mxu0 0.0
      %4643 = vmatpush1.msra.mxu0 0.0
      %4644 = vmatprep.subr.mxu0 0.0
      %4645 = vmatpush1.msra.mxu0 0.0
      %4646 = vmatprep.subr.mxu0 0.0
      %4647 = vmatpush1.msra.mxu0 0.0
      %4648 = vmatprep.subr.mxu0 0.0
      %4649 = vmatpush1.msra.mxu0 0.0
      %4650 = vmatprep.subr.mxu0 0.0
      %4651 = vmatpush1.msra.mxu0 0.0
      %4652 = vmatprep.subr.mxu0 0.0
      %4653 = vmatpush1.msra.mxu0 0.0
      %4654 = vmatprep.subr.mxu0 0.0
      %4655 = vmatpush1.msra.mxu0 0.0
      %4656 = vmatprep.subr.mxu0 0.0
      %4657 = vmatpush1.msra.mxu0 0.0
      %4658 = vmatprep.subr.mxu0 0.0
      %4659 = vmatpush1.msra.mxu0 0.0
      %4660 = vmatprep.subr.mxu0 0.0
      %4661 = vmatpush1.msra.mxu0 0.0
      %4662 = vmatprep.subr.mxu0 0.0
      %4663 = vmatpush1.msra.mxu0 0.0
      %4664 = vmatprep.subr.mxu0 0.0
      %4665 = vmatpush1.msra.mxu0 0.0
      %4666 = vmatprep.subr.mxu0 0.0
      %4667 = vmatpush1.msra.mxu0 0.0
      %4668 = vmatprep.subr.mxu0 0.0
      %4669 = vmatpush1.msra.mxu0 0.0
      %4670 = vmatprep.subr.mxu0 0.0
      %4671 = vmatpush1.msra.mxu0 0.0
      %4672 = vmatprep.subr.mxu0 0.0
      %4673 = vmatpush1.msra.mxu0 0.0
      %4674 = vmatprep.subr.mxu0 0.0
      %4675 = vmatpush1.msra.mxu0 0.0
      %4676 = vmatprep.subr.mxu0 0.0
      %4677 = vmatpush1.msra.mxu0 0.0
      %4678 = vmatprep.subr.mxu0 0.0
      %4679 = vmatpush1.msra.mxu0 0.0
      %4680 = vmatprep.subr.mxu0 0.0
      %4681 = vmatpush1.msra.mxu0 0.0
      %4682 = vmatprep.subr.mxu0 0.0
      %4683 = vmatpush1.msra.mxu0 0.0
      %4684 = vmatprep.subr.mxu0 0.0
      %4685 = vmatpush1.msra.mxu0 0.0
      %4686 = vmatprep.subr.mxu0 0.0
      %4687 = vmatpush1.msra.mxu0 0.0
      %4688 = vmatprep.subr.mxu0 0.0
      %4689 = vmatpush1.msra.mxu0 0.0
      %4690 = vmatprep.subr.mxu0 0.0
      %4691 = vmatpush1.msra.mxu0 0.0
      %4692 = vmatprep.subr.mxu0 0.0
      %4693 = vmatpush1.msra.mxu0 0.0
      %4694 = vmatprep.subr.mxu0 0.0
      %4695 = vmatpush1.msra.mxu0 0.0
      %4696 = vmatprep.subr.mxu0 0.0
      %4697 = vmatpush1.msra.mxu0 0.0
      %4698 = vmatprep.subr.mxu0 0.0
      %4699 = vmatpush1.msra.mxu0 0.0
      %4700 = vmatprep.subr.mxu0 0.0
      %4701 = vmatpush1.msra.mxu0 0.0
      %4702 = vmatprep.mubr.f32.mxu0 0.0
      %4703 = vmatmul.mubr.f32.gmra.mrb[0].mxu0 %v4557
      %v4704 = vpop.f32.mrb[0].mxu0
      %v4705 = vadd.f32 0.0, %v4704
      %v4706 = vpop.f32.mrb[0].mxu0
      %v4707 = vadd.f32 0.0, %v4706
      %4708 = vdwg.mxu0
      %v4709 = vadd.f32 %v4490, %v4634
      %v4710 = vadd.f32 %v4491, %v4636
      %v4711 = vadd.f32 %v4492, %v4705
      %v4712 = vadd.f32 %v4493, %v4707
      %v4713 = vld [vmem:[#allocation2 + $0x4] sm:$0xff]
      %v4714 = vld [vmem:[#allocation2 + $0xc] sm:$0xff]
      %v4715 = vld [vmem:[#allocation2 + $0x14] sm:$0xf]
      %v4717 = vlaneseq
      %v4718 = vshrl.u32 %v4717, 7
      %v4719 = vsub.s32 0, %v4718
      %v4720 = vrot.slane %v4499, %v4719
      %v4721 = vlaneseq
      %v4722 = vshrl.u32 %v4721, 7
      %v4723 = vsub.s32 1, %v4722
      %v4724 = vrot.slane %v4499, %v4723
      %v4725 = vlaneseq
      %v4726 = vshrl.u32 %v4725, 7
      %v4727 = vsub.s32 2, %v4726
      %v4728 = vrot.slane %v4499, %v4727
      %v4729 = vlaneseq
      %v4730 = vshrl.u32 %v4729, 7
      %v4731 = vsub.s32 3, %v4730
      %v4732 = vrot.slane %v4499, %v4731
      %v4733 = vcombine.low %v4720, %v4724
      %v4734 = vcombine.low %v4728, %v4732
      %4735 = vrot.lane.b32.xlu0 %v4733, 56
      %v4736 = vpop.permute.xlu0 %4735
      %4737 = vrot.lane.b32.xlu0 %v4734, 56
      %v4738 = vpop.permute.xlu0 %4737
      %v4739 = vrot.slane %v4736, 4
      %v4740 = vrot.slane %v4738, 4
      %v4741 = vsel %vm719, %v4739, %v4736
      %v4742 = vsel %vm595, %v4739, %v4740
      %v4743 = vsel %vm719, %v4742, %v4738
      %v4747 = vmul.f32 %v4713, %v4741
      %v4748 = vmul.f32 %v4714, %v4743
      %v4749 = vmul.f32 %v4715, %v4740
      %s4750 = scalar_lea.vmem %s4, 76
      %v4751 = vld [vmem:[%s4750] sm:$0xf]
      %v4755 = vcombine.high %v4747, %v4747
      %v4756 = vcombine.high %v4748, %v4748
      %4757 = vrot.lane.b32.xlu0 %v4747, 72
      %v4758 = vpop.permute.xlu0 %4757
      %4759 = vrot.lane.b32.xlu0 %v4755, 72
      %v4760 = vpop.permute.xlu0 %4759
      %4761 = vrot.lane.b32.xlu0 %v4748, 72
      %v4762 = vpop.permute.xlu0 %4761
      %4763 = vrot.lane.b32.xlu0 %v4756, 72
      %v4764 = vpop.permute.xlu0 %4763
      %4765 = vrot.lane.b32.xlu0 %v4749, 72
      %v4766 = vpop.permute.xlu0 %4765
      %v4767 = vsel %vm746, %v4758, %v4760
      %v4768 = vsel %vm746, %v4760, %v4762
      %v4769 = vsel %vm746, %v4762, %v4764
      %v4770 = vsel %vm746, %v4764, %v4766
      %v4772 = vsel %vm751, %v4751, 0
      %v4774 = vsel %vm595, %v4767, 0
      %v4776 = vsel %vm595, %v4768, 0
      %v4778 = vsel %vm595, %v4769, 0
      %v4780 = vsel %vm595, %v4770, 0
      %4782 = vmatprep.subr.mxu0 %v4776
      %4783 = vmatpush1.msra.mxu0 %v4774
      %4784 = vmatprep.subr.mxu0 0.0
      %4785 = vmatpush1.msra.mxu0 0.0
      %4786 = vmatprep.subr.mxu0 0.0
      %4787 = vmatpush1.msra.mxu0 0.0
      %4788 = vmatprep.subr.mxu0 0.0
      %4789 = vmatpush1.msra.mxu0 0.0
      %4790 = vmatprep.subr.mxu0 0.0
      %4791 = vmatpush1.msra.mxu0 0.0
      %4792 = vmatprep.subr.mxu0 0.0
      %4793 = vmatpush1.msra.mxu0 0.0
      %4794 = vmatprep.subr.mxu0 0.0
      %4795 = vmatpush1.msra.mxu0 0.0
      %4796 = vmatprep.subr.mxu0 0.0
      %4797 = vmatpush1.msra.mxu0 0.0
      %4798 = vmatprep.subr.mxu0 0.0
      %4799 = vmatpush1.msra.mxu0 0.0
      %4800 = vmatprep.subr.mxu0 0.0
      %4801 = vmatpush1.msra.mxu0 0.0
      %4802 = vmatprep.subr.mxu0 0.0
      %4803 = vmatpush1.msra.mxu0 0.0
      %4804 = vmatprep.subr.mxu0 0.0
      %4805 = vmatpush1.msra.mxu0 0.0
      %4806 = vmatprep.subr.mxu0 0.0
      %4807 = vmatpush1.msra.mxu0 0.0
      %4808 = vmatprep.subr.mxu0 0.0
      %4809 = vmatpush1.msra.mxu0 0.0
      %4810 = vmatprep.subr.mxu0 0.0
      %4811 = vmatpush1.msra.mxu0 0.0
      %4812 = vmatprep.subr.mxu0 0.0
      %4813 = vmatpush1.msra.mxu0 0.0
      %4814 = vmatprep.subr.mxu0 0.0
      %4815 = vmatpush1.msra.mxu0 0.0
      %4816 = vmatprep.subr.mxu0 0.0
      %4817 = vmatpush1.msra.mxu0 0.0
      %4818 = vmatprep.subr.mxu0 0.0
      %4819 = vmatpush1.msra.mxu0 0.0
      %4820 = vmatprep.subr.mxu0 0.0
      %4821 = vmatpush1.msra.mxu0 0.0
      %4822 = vmatprep.subr.mxu0 0.0
      %4823 = vmatpush1.msra.mxu0 0.0
      %4824 = vmatprep.subr.mxu0 0.0
      %4825 = vmatpush1.msra.mxu0 0.0
      %4826 = vmatprep.subr.mxu0 0.0
      %4827 = vmatpush1.msra.mxu0 0.0
      %4828 = vmatprep.subr.mxu0 0.0
      %4829 = vmatpush1.msra.mxu0 0.0
      %4830 = vmatprep.subr.mxu0 0.0
      %4831 = vmatpush1.msra.mxu0 0.0
      %4832 = vmatprep.subr.mxu0 0.0
      %4833 = vmatpush1.msra.mxu0 0.0
      %4834 = vmatprep.subr.mxu0 0.0
      %4835 = vmatpush1.msra.mxu0 0.0
      %4836 = vmatprep.subr.mxu0 0.0
      %4837 = vmatpush1.msra.mxu0 0.0
      %4838 = vmatprep.subr.mxu0 0.0
      %4839 = vmatpush1.msra.mxu0 0.0
      %4840 = vmatprep.subr.mxu0 0.0
      %4841 = vmatpush1.msra.mxu0 0.0
      %4842 = vmatprep.subr.mxu0 0.0
      %4843 = vmatpush1.msra.mxu0 0.0
      %4844 = vmatprep.subr.mxu0 0.0
      %4845 = vmatpush1.msra.mxu0 0.0
      %4846 = vmatprep.mubr.f32.mxu0 0.0
      %4847 = vmatmul.mubr.f32.gmra.mrb[0].mxu0 %v4772
      %v4848 = vpop.f32.mrb[0].mxu0
      %v4849 = vadd.f32 0.0, %v4848
      %v4850 = vpop.f32.mrb[0].mxu0
      %v4851 = vadd.f32 0.0, %v4850
      %4852 = vdwg.mxu0
      %4853 = vmatprep.subr.mxu0 %v4780
      %4854 = vmatpush1.msra.mxu0 %v4778
      %4855 = vmatprep.subr.mxu0 0.0
      %4856 = vmatpush1.msra.mxu0 0.0
      %4857 = vmatprep.subr.mxu0 0.0
      %4858 = vmatpush1.msra.mxu0 0.0
      %4859 = vmatprep.subr.mxu0 0.0
      %4860 = vmatpush1.msra.mxu0 0.0
      %4861 = vmatprep.subr.mxu0 0.0
      %4862 = vmatpush1.msra.mxu0 0.0
      %4863 = vmatprep.subr.mxu0 0.0
      %4864 = vmatpush1.msra.mxu0 0.0
      %4865 = vmatprep.subr.mxu0 0.0
      %4866 = vmatpush1.msra.mxu0 0.0
      %4867 = vmatprep.subr.mxu0 0.0
      %4868 = vmatpush1.msra.mxu0 0.0
      %4869 = vmatprep.subr.mxu0 0.0
      %4870 = vmatpush1.msra.mxu0 0.0
      %4871 = vmatprep.subr.mxu0 0.0
      %4872 = vmatpush1.msra.mxu0 0.0
      %4873 = vmatprep.subr.mxu0 0.0
      %4874 = vmatpush1.msra.mxu0 0.0
      %4875 = vmatprep.subr.mxu0 0.0
      %4876 = vmatpush1.msra.mxu0 0.0
      %4877 = vmatprep.subr.mxu0 0.0
      %4878 = vmatpush1.msra.mxu0 0.0
      %4879 = vmatprep.subr.mxu0 0.0
      %4880 = vmatpush1.msra.mxu0 0.0
      %4881 = vmatprep.subr.mxu0 0.0
      %4882 = vmatpush1.msra.mxu0 0.0
      %4883 = vmatprep.subr.mxu0 0.0
      %4884 = vmatpush1.msra.mxu0 0.0
      %4885 = vmatprep.subr.mxu0 0.0
      %4886 = vmatpush1.msra.mxu0 0.0
      %4887 = vmatprep.subr.mxu0 0.0
      %4888 = vmatpush1.msra.mxu0 0.0
      %4889 = vmatprep.subr.mxu0 0.0
      %4890 = vmatpush1.msra.mxu0 0.0
      %4891 = vmatprep.subr.mxu0 0.0
      %4892 = vmatpush1.msra.mxu0 0.0
      %4893 = vmatprep.subr.mxu0 0.0
      %4894 = vmatpush1.msra.mxu0 0.0
      %4895 = vmatprep.subr.mxu0 0.0
      %4896 = vmatpush1.msra.mxu0 0.0
      %4897 = vmatprep.subr.mxu0 0.0
      %4898 = vmatpush1.msra.mxu0 0.0
      %4899 = vmatprep.subr.mxu0 0.0
      %4900 = vmatpush1.msra.mxu0 0.0
      %4901 = vmatprep.subr.mxu0 0.0
      %4902 = vmatpush1.msra.mxu0 0.0
      %4903 = vmatprep.subr.mxu0 0.0
      %4904 = vmatpush1.msra.mxu0 0.0
      %4905 = vmatprep.subr.mxu0 0.0
      %4906 = vmatpush1.msra.mxu0 0.0
      %4907 = vmatprep.subr.mxu0 0.0
      %4908 = vmatpush1.msra.mxu0 0.0
      %4909 = vmatprep.subr.mxu0 0.0
      %4910 = vmatpush1.msra.mxu0 0.0
      %4911 = vmatprep.subr.mxu0 0.0
      %4912 = vmatpush1.msra.mxu0 0.0
      %4913 = vmatprep.subr.mxu0 0.0
      %4914 = vmatpush1.msra.mxu0 0.0
      %4915 = vmatprep.subr.mxu0 0.0
      %4916 = vmatpush1.msra.mxu0 0.0
      %4917 = vmatprep.mubr.f32.mxu0 0.0
      %4918 = vmatmul.mubr.f32.gmra.mrb[0].mxu0 %v4772
      %v4919 = vpop.f32.mrb[0].mxu0
      %v4920 = vadd.f32 0.0, %v4919
      %v4921 = vpop.f32.mrb[0].mxu0
      %v4922 = vadd.f32 0.0, %v4921
      %4923 = vdwg.mxu0
      %v4924 = vadd.f32 %v4709, %v4849
      %v4925 = vadd.f32 %v4710, %v4851
      %v4926 = vadd.f32 %v4711, %v4920
      %v4927 = vadd.f32 %v4712, %v4922
      %v4928 = vld [vmem:[#allocation2 + $0x4] sm:$0xff]
      %v4929 = vld [vmem:[#allocation2 + $0xc] sm:$0xff]
      %v4930 = vld [vmem:[#allocation2 + $0x14] sm:$0xf]
      %v4931 = vmul.f32 %v4499, %v1082
      %v4933 = vlaneseq
      %v4934 = vshrl.u32 %v4933, 7
      %v4935 = vsub.s32 0, %v4934
      %v4936 = vrot.slane %v4931, %v4935
      %v4937 = vlaneseq
      %v4938 = vshrl.u32 %v4937, 7
      %v4939 = vsub.s32 1, %v4938
      %v4940 = vrot.slane %v4931, %v4939
      %v4941 = vlaneseq
      %v4942 = vshrl.u32 %v4941, 7
      %v4943 = vsub.s32 2, %v4942
      %v4944 = vrot.slane %v4931, %v4943
      %v4945 = vlaneseq
      %v4946 = vshrl.u32 %v4945, 7
      %v4947 = vsub.s32 3, %v4946
      %v4948 = vrot.slane %v4931, %v4947
      %v4949 = vcombine.low %v4936, %v4940
      %v4950 = vcombine.low %v4944, %v4948
      %4951 = vrot.lane.b32.xlu0 %v4949, 57
      %v4952 = vpop.permute.xlu0 %4951
      %4953 = vrot.lane.b32.xlu0 %v4950, 57
      %v4954 = vpop.permute.xlu0 %4953
      %v4955 = vrot.slane %v4952, 4
      %v4956 = vrot.slane %v4954, 4
      %v4957 = vsel %vm1109, %v4955, %v4952
      %v4958 = vsel %vm595, %v4955, %v4956
      %v4959 = vsel %vm1109, %v4958, %v4954
      %v4963 = vmul.f32 %v4928, %v4957
      %v4964 = vmul.f32 %v4929, %v4959
      %v4965 = vmul.f32 %v4930, %v4956
      %s4966 = scalar_lea.vmem %s4, 80
      %v4967 = vld [vmem:[%s4966] sm:$0xf]
      %v4971 = vcombine.high %v4963, %v4963
      %v4972 = vcombine.high %v4964, %v4964
      %4973 = vrot.lane.b32.xlu0 %v4963, 71
      %v4974 = vpop.permute.xlu0 %4973
      %4975 = vrot.lane.b32.xlu0 %v4971, 71
      %v4976 = vpop.permute.xlu0 %4975
      %4977 = vrot.lane.b32.xlu0 %v4964, 71
      %v4978 = vpop.permute.xlu0 %4977
      %4979 = vrot.lane.b32.xlu0 %v4972, 71
      %v4980 = vpop.permute.xlu0 %4979
      %4981 = vrot.lane.b32.xlu0 %v4965, 71
      %v4982 = vpop.permute.xlu0 %4981
      %v4983 = vsel %vm1136, %v4974, %v4976
      %v4984 = vsel %vm1136, %v4976, %v4978
      %v4985 = vsel %vm1136, %v4978, %v4980
      %v4986 = vsel %vm1136, %v4980, %v4982
      %v4988 = vsel %vm751, %v4967, 0
      %v4990 = vsel %vm595, %v4983, 0
      %v4992 = vsel %vm595, %v4984, 0
      %v4994 = vsel %vm595, %v4985, 0
      %v4996 = vsel %vm595, %v4986, 0
      %4998 = vmatprep.subr.mxu0 %v4992
      %4999 = vmatpush1.msra.mxu0 %v4990
      %5000 = vmatprep.subr.mxu0 0.0
      %5001 = vmatpush1.msra.mxu0 0.0
      %5002 = vmatprep.subr.mxu0 0.0
      %5003 = vmatpush1.msra.mxu0 0.0
      %5004 = vmatprep.subr.mxu0 0.0
      %5005 = vmatpush1.msra.mxu0 0.0
      %5006 = vmatprep.subr.mxu0 0.0
      %5007 = vmatpush1.msra.mxu0 0.0
      %5008 = vmatprep.subr.mxu0 0.0
      %5009 = vmatpush1.msra.mxu0 0.0
      %5010 = vmatprep.subr.mxu0 0.0
      %5011 = vmatpush1.msra.mxu0 0.0
      %5012 = vmatprep.subr.mxu0 0.0
      %5013 = vmatpush1.msra.mxu0 0.0
      %5014 = vmatprep.subr.mxu0 0.0
      %5015 = vmatpush1.msra.mxu0 0.0
      %5016 = vmatprep.subr.mxu0 0.0
      %5017 = vmatpush1.msra.mxu0 0.0
      %5018 = vmatprep.subr.mxu0 0.0
      %5019 = vmatpush1.msra.mxu0 0.0
      %5020 = vmatprep.subr.mxu0 0.0
      %5021 = vmatpush1.msra.mxu0 0.0
      %5022 = vmatprep.subr.mxu0 0.0
      %5023 = vmatpush1.msra.mxu0 0.0
      %5024 = vmatprep.subr.mxu0 0.0
      %5025 = vmatpush1.msra.mxu0 0.0
      %5026 = vmatprep.subr.mxu0 0.0
      %5027 = vmatpush1.msra.mxu0 0.0
      %5028 = vmatprep.subr.mxu0 0.0
      %5029 = vmatpush1.msra.mxu0 0.0
      %5030 = vmatprep.subr.mxu0 0.0
      %5031 = vmatpush1.msra.mxu0 0.0
      %5032 = vmatprep.subr.mxu0 0.0
      %5033 = vmatpush1.msra.mxu0 0.0
      %5034 = vmatprep.subr.mxu0 0.0
      %5035 = vmatpush1.msra.mxu0 0.0
      %5036 = vmatprep.subr.mxu0 0.0
      %5037 = vmatpush1.msra.mxu0 0.0
      %5038 = vmatprep.subr.mxu0 0.0
      %5039 = vmatpush1.msra.mxu0 0.0
      %5040 = vmatprep.subr.mxu0 0.0
      %5041 = vmatpush1.msra.mxu0 0.0
      %5042 = vmatprep.subr.mxu0 0.0
      %5043 = vmatpush1.msra.mxu0 0.0
      %5044 = vmatprep.subr.mxu0 0.0
      %5045 = vmatpush1.msra.mxu0 0.0
      %5046 = vmatprep.subr.mxu0 0.0
      %5047 = vmatpush1.msra.mxu0 0.0
      %5048 = vmatprep.subr.mxu0 0.0
      %5049 = vmatpush1.msra.mxu0 0.0
      %5050 = vmatprep.subr.mxu0 0.0
      %5051 = vmatpush1.msra.mxu0 0.0
      %5052 = vmatprep.subr.mxu0 0.0
      %5053 = vmatpush1.msra.mxu0 0.0
      %5054 = vmatprep.subr.mxu0 0.0
      %5055 = vmatpush1.msra.mxu0 0.0
      %5056 = vmatprep.subr.mxu0 0.0
      %5057 = vmatpush1.msra.mxu0 0.0
      %5058 = vmatprep.subr.mxu0 0.0
      %5059 = vmatpush1.msra.mxu0 0.0
      %5060 = vmatprep.subr.mxu0 0.0
      %5061 = vmatpush1.msra.mxu0 0.0
      %5062 = vmatprep.mubr.f32.mxu0 0.0
      %5063 = vmatmul.mubr.f32.gmra.mrb[0].mxu0 %v4988
      %v5064 = vpop.f32.mrb[0].mxu0
      %v5065 = vadd.f32 0.0, %v5064
      %v5066 = vpop.f32.mrb[0].mxu0
      %v5067 = vadd.f32 0.0, %v5066
      %5068 = vdwg.mxu0
      %5069 = vmatprep.subr.mxu0 %v4996
      %5070 = vmatpush1.msra.mxu0 %v4994
      %5071 = vmatprep.subr.mxu0 0.0
      %5072 = vmatpush1.msra.mxu0 0.0
      %5073 = vmatprep.subr.mxu0 0.0
      %5074 = vmatpush1.msra.mxu0 0.0
      %5075 = vmatprep.subr.mxu0 0.0
      %5076 = vmatpush1.msra.mxu0 0.0
      %5077 = vmatprep.subr.mxu0 0.0
      %5078 = vmatpush1.msra.mxu0 0.0
      %5079 = vmatprep.subr.mxu0 0.0
      %5080 = vmatpush1.msra.mxu0 0.0
      %5081 = vmatprep.subr.mxu0 0.0
      %5082 = vmatpush1.msra.mxu0 0.0
      %5083 = vmatprep.subr.mxu0 0.0
      %5084 = vmatpush1.msra.mxu0 0.0
      %5085 = vmatprep.subr.mxu0 0.0
      %5086 = vmatpush1.msra.mxu0 0.0
      %5087 = vmatprep.subr.mxu0 0.0
      %5088 = vmatpush1.msra.mxu0 0.0
      %5089 = vmatprep.subr.mxu0 0.0
      %5090 = vmatpush1.msra.mxu0 0.0
      %5091 = vmatprep.subr.mxu0 0.0
      %5092 = vmatpush1.msra.mxu0 0.0
      %5093 = vmatprep.subr.mxu0 0.0
      %5094 = vmatpush1.msra.mxu0 0.0
      %5095 = vmatprep.subr.mxu0 0.0
      %5096 = vmatpush1.msra.mxu0 0.0
      %5097 = vmatprep.subr.mxu0 0.0
      %5098 = vmatpush1.msra.mxu0 0.0
      %5099 = vmatprep.subr.mxu0 0.0
      %5100 = vmatpush1.msra.mxu0 0.0
      %5101 = vmatprep.subr.mxu0 0.0
      %5102 = vmatpush1.msra.mxu0 0.0
      %5103 = vmatprep.subr.mxu0 0.0
      %5104 = vmatpush1.msra.mxu0 0.0
      %5105 = vmatprep.subr.mxu0 0.0
      %5106 = vmatpush1.msra.mxu0 0.0
      %5107 = vmatprep.subr.mxu0 0.0
      %5108 = vmatpush1.msra.mxu0 0.0
      %5109 = vmatprep.subr.mxu0 0.0
      %5110 = vmatpush1.msra.mxu0 0.0
      %5111 = vmatprep.subr.mxu0 0.0
      %5112 = vmatpush1.msra.mxu0 0.0
      %5113 = vmatprep.subr.mxu0 0.0
      %5114 = vmatpush1.msra.mxu0 0.0
      %5115 = vmatprep.subr.mxu0 0.0
      %5116 = vmatpush1.msra.mxu0 0.0
      %5117 = vmatprep.subr.mxu0 0.0
      %5118 = vmatpush1.msra.mxu0 0.0
      %5119 = vmatprep.subr.mxu0 0.0
      %5120 = vmatpush1.msra.mxu0 0.0
      %5121 = vmatprep.subr.mxu0 0.0
      %5122 = vmatpush1.msra.mxu0 0.0
      %5123 = vmatprep.subr.mxu0 0.0
      %5124 = vmatpush1.msra.mxu0 0.0
      %5125 = vmatprep.subr.mxu0 0.0
      %5126 = vmatpush1.msra.mxu0 0.0
      %5127 = vmatprep.subr.mxu0 0.0
      %5128 = vmatpush1.msra.mxu0 0.0
      %5129 = vmatprep.subr.mxu0 0.0
      %5130 = vmatpush1.msra.mxu0 0.0
      %5131 = vmatprep.subr.mxu0 0.0
      %5132 = vmatpush1.msra.mxu0 0.0
      %5133 = vmatprep.mubr.f32.mxu0 0.0
      %5134 = vmatmul.mubr.f32.gmra.mrb[0].mxu0 %v4988
      %v5135 = vpop.f32.mrb[0].mxu0
      %v5136 = vadd.f32 0.0, %v5135
      %v5137 = vpop.f32.mrb[0].mxu0
      %v5138 = vadd.f32 0.0, %v5137
      %5139 = vdwg.mxu0
      %v5140 = vadd.f32 %v4924, %v5065
      %v5141 = vadd.f32 %v4925, %v5067
      %v5142 = vadd.f32 %v4926, %v5136
      %v5143 = vadd.f32 %v4927, %v5138
      %v5144 = vld [vmem:[#allocation2 + $0x4] sm:$0xff]
      %v5145 = vld [vmem:[#allocation2 + $0xc] sm:$0xff]
      %v5146 = vld [vmem:[#allocation2 + $0x14] sm:$0xf]
      %v5147 = vmul.f32 %v4498, %v656
      %v5149 = vlaneseq
      %v5150 = vshrl.u32 %v5149, 7
      %v5151 = vsub.s32 0, %v5150
      %v5152 = vrot.slane %v5147, %v5151
      %v5153 = vlaneseq
      %v5154 = vshrl.u32 %v5153, 7
      %v5155 = vsub.s32 1, %v5154
      %v5156 = vrot.slane %v5147, %v5155
      %v5157 = vlaneseq
      %v5158 = vshrl.u32 %v5157, 7
      %v5159 = vsub.s32 2, %v5158
      %v5160 = vrot.slane %v5147, %v5159
      %v5161 = vlaneseq
      %v5162 = vshrl.u32 %v5161, 7
      %v5163 = vsub.s32 3, %v5162
      %v5164 = vrot.slane %v5147, %v5163
      %v5165 = vcombine.low %v5152, %v5156
      %v5166 = vcombine.low %v5160, %v5164
      %5167 = vrot.lane.b32.xlu0 %v5165, 63
      %v5168 = vpop.permute.xlu0 %5167
      %5169 = vrot.lane.b32.xlu0 %v5166, 63
      %v5170 = vpop.permute.xlu0 %5169
      %v5171 = vrot.slane %v5168, 4
      %v5172 = vrot.slane %v5170, 4
      %v5173 = vsel %vm1327, %v5171, %v5168
      %v5174 = vsel %vm595, %v5171, %v5172
      %v5175 = vsel %vm1327, %v5174, %v5170
      %v5179 = vmul.f32 %v5144, %v5173
      %v5180 = vmul.f32 %v5145, %v5175
      %v5181 = vmul.f32 %v5146, %v5172
      %s5182 = scalar_lea.vmem %s4, 84
      %v5183 = vld [vmem:[%s5182] sm:$0xf]
      %v5187 = vcombine.high %v5179, %v5179
      %v5188 = vcombine.high %v5180, %v5180
      %5189 = vrot.lane.b32.xlu0 %v5179, 65
      %v5190 = vpop.permute.xlu0 %5189
      %5191 = vrot.lane.b32.xlu0 %v5187, 65
      %v5192 = vpop.permute.xlu0 %5191
      %5193 = vrot.lane.b32.xlu0 %v5180, 65
      %v5194 = vpop.permute.xlu0 %5193
      %5195 = vrot.lane.b32.xlu0 %v5188, 65
      %v5196 = vpop.permute.xlu0 %5195
      %5197 = vrot.lane.b32.xlu0 %v5181, 65
      %v5198 = vpop.permute.xlu0 %5197
      %v5199 = vsel %vm1354, %v5190, %v5192
      %v5200 = vsel %vm1354, %v5192, %v5194
      %v5201 = vsel %vm1354, %v5194, %v5196
      %v5202 = vsel %vm1354, %v5196, %v5198
      %v5204 = vsel %vm751, %v5183, 0
      %v5206 = vsel %vm595, %v5199, 0
      %v5208 = vsel %vm595, %v5200, 0
      %v5210 = vsel %vm595, %v5201, 0
      %v5212 = vsel %vm595, %v5202, 0
      %5214 = vmatprep.subr.mxu0 %v5208
      %5215 = vmatpush1.msra.mxu0 %v5206
      %5216 = vmatprep.subr.mxu0 0.0
      %5217 = vmatpush1.msra.mxu0 0.0
      %5218 = vmatprep.subr.mxu0 0.0
      %5219 = vmatpush1.msra.mxu0 0.0
      %5220 = vmatprep.subr.mxu0 0.0
      %5221 = vmatpush1.msra.mxu0 0.0
      %5222 = vmatprep.subr.mxu0 0.0
      %5223 = vmatpush1.msra.mxu0 0.0
      %5224 = vmatprep.subr.mxu0 0.0
      %5225 = vmatpush1.msra.mxu0 0.0
      %5226 = vmatprep.subr.mxu0 0.0
      %5227 = vmatpush1.msra.mxu0 0.0
      %5228 = vmatprep.subr.mxu0 0.0
      %5229 = vmatpush1.msra.mxu0 0.0
      %5230 = vmatprep.subr.mxu0 0.0
      %5231 = vmatpush1.msra.mxu0 0.0
      %5232 = vmatprep.subr.mxu0 0.0
      %5233 = vmatpush1.msra.mxu0 0.0
      %5234 = vmatprep.subr.mxu0 0.0
      %5235 = vmatpush1.msra.mxu0 0.0
      %5236 = vmatprep.subr.mxu0 0.0
      %5237 = vmatpush1.msra.mxu0 0.0
      %5238 = vmatprep.subr.mxu0 0.0
      %5239 = vmatpush1.msra.mxu0 0.0
      %5240 = vmatprep.subr.mxu0 0.0
      %5241 = vmatpush1.msra.mxu0 0.0
      %5242 = vmatprep.subr.mxu0 0.0
      %5243 = vmatpush1.msra.mxu0 0.0
      %5244 = vmatprep.subr.mxu0 0.0
      %5245 = vmatpush1.msra.mxu0 0.0
      %5246 = vmatprep.subr.mxu0 0.0
      %5247 = vmatpush1.msra.mxu0 0.0
      %5248 = vmatprep.subr.mxu0 0.0
      %5249 = vmatpush1.msra.mxu0 0.0
      %5250 = vmatprep.subr.mxu0 0.0
      %5251 = vmatpush1.msra.mxu0 0.0
      %5252 = vmatprep.subr.mxu0 0.0
      %5253 = vmatpush1.msra.mxu0 0.0
      %5254 = vmatprep.subr.mxu0 0.0
      %5255 = vmatpush1.msra.mxu0 0.0
      %5256 = vmatprep.subr.mxu0 0.0
      %5257 = vmatpush1.msra.mxu0 0.0
      %5258 = vmatprep.subr.mxu0 0.0
      %5259 = vmatpush1.msra.mxu0 0.0
      %5260 = vmatprep.subr.mxu0 0.0
      %5261 = vmatpush1.msra.mxu0 0.0
      %5262 = vmatprep.subr.mxu0 0.0
      %5263 = vmatpush1.msra.mxu0 0.0
      %5264 = vmatprep.subr.mxu0 0.0
      %5265 = vmatpush1.msra.mxu0 0.0
      %5266 = vmatprep.subr.mxu0 0.0
      %5267 = vmatpush1.msra.mxu0 0.0
      %5268 = vmatprep.subr.mxu0 0.0
      %5269 = vmatpush1.msra.mxu0 0.0
      %5270 = vmatprep.subr.mxu0 0.0
      %5271 = vmatpush1.msra.mxu0 0.0
      %5272 = vmatprep.subr.mxu0 0.0
      %5273 = vmatpush1.msra.mxu0 0.0
      %5274 = vmatprep.subr.mxu0 0.0
      %5275 = vmatpush1.msra.mxu0 0.0
      %5276 = vmatprep.subr.mxu0 0.0
      %5277 = vmatpush1.msra.mxu0 0.0
      %5278 = vmatprep.mubr.f32.mxu0 0.0
      %5279 = vmatmul.mubr.f32.gmra.mrb[0].mxu0 %v5204
      %v5280 = vpop.f32.mrb[0].mxu0
      %v5281 = vadd.f32 0.0, %v5280
      %v5282 = vpop.f32.mrb[0].mxu0
      %v5283 = vadd.f32 0.0, %v5282
      %5284 = vdwg.mxu0
      %5285 = vmatprep.subr.mxu0 %v5212
      %5286 = vmatpush1.msra.mxu0 %v5210
      %5287 = vmatprep.subr.mxu0 0.0
      %5288 = vmatpush1.msra.mxu0 0.0
      %5289 = vmatprep.subr.mxu0 0.0
      %5290 = vmatpush1.msra.mxu0 0.0
      %5291 = vmatprep.subr.mxu0 0.0
      %5292 = vmatpush1.msra.mxu0 0.0
      %5293 = vmatprep.subr.mxu0 0.0
      %5294 = vmatpush1.msra.mxu0 0.0
      %5295 = vmatprep.subr.mxu0 0.0
      %5296 = vmatpush1.msra.mxu0 0.0
      %5297 = vmatprep.subr.mxu0 0.0
      %5298 = vmatpush1.msra.mxu0 0.0
      %5299 = vmatprep.subr.mxu0 0.0
      %5300 = vmatpush1.msra.mxu0 0.0
      %5301 = vmatprep.subr.mxu0 0.0
      %5302 = vmatpush1.msra.mxu0 0.0
      %5303 = vmatprep.subr.mxu0 0.0
      %5304 = vmatpush1.msra.mxu0 0.0
      %5305 = vmatprep.subr.mxu0 0.0
      %5306 = vmatpush1.msra.mxu0 0.0
      %5307 = vmatprep.subr.mxu0 0.0
      %5308 = vmatpush1.msra.mxu0 0.0
      %5309 = vmatprep.subr.mxu0 0.0
      %5310 = vmatpush1.msra.mxu0 0.0
      %5311 = vmatprep.subr.mxu0 0.0
      %5312 = vmatpush1.msra.mxu0 0.0
      %5313 = vmatprep.subr.mxu0 0.0
      %5314 = vmatpush1.msra.mxu0 0.0
      %5315 = vmatprep.subr.mxu0 0.0
      %5316 = vmatpush1.msra.mxu0 0.0
      %5317 = vmatprep.subr.mxu0 0.0
      %5318 = vmatpush1.msra.mxu0 0.0
      %5319 = vmatprep.subr.mxu0 0.0
      %5320 = vmatpush1.msra.mxu0 0.0
      %5321 = vmatprep.subr.mxu0 0.0
      %5322 = vmatpush1.msra.mxu0 0.0
      %5323 = vmatprep.subr.mxu0 0.0
      %5324 = vmatpush1.msra.mxu0 0.0
      %5325 = vmatprep.subr.mxu0 0.0
      %5326 = vmatpush1.msra.mxu0 0.0
      %5327 = vmatprep.subr.mxu0 0.0
      %5328 = vmatpush1.msra.mxu0 0.0
      %5329 = vmatprep.subr.mxu0 0.0
      %5330 = vmatpush1.msra.mxu0 0.0
      %5331 = vmatprep.subr.mxu0 0.0
      %5332 = vmatpush1.msra.mxu0 0.0
      %5333 = vmatprep.subr.mxu0 0.0
      %5334 = vmatpush1.msra.mxu0 0.0
      %5335 = vmatprep.subr.mxu0 0.0
      %5336 = vmatpush1.msra.mxu0 0.0
      %5337 = vmatprep.subr.mxu0 0.0
      %5338 = vmatpush1.msra.mxu0 0.0
      %5339 = vmatprep.subr.mxu0 0.0
      %5340 = vmatpush1.msra.mxu0 0.0
      %5341 = vmatprep.subr.mxu0 0.0
      %5342 = vmatpush1.msra.mxu0 0.0
      %5343 = vmatprep.subr.mxu0 0.0
      %5344 = vmatpush1.msra.mxu0 0.0
      %5345 = vmatprep.subr.mxu0 0.0
      %5346 = vmatpush1.msra.mxu0 0.0
      %5347 = vmatprep.subr.mxu0 0.0
      %5348 = vmatpush1.msra.mxu0 0.0
      %5349 = vmatprep.mubr.f32.mxu0 0.0
      %5350 = vmatmul.mubr.f32.gmra.mrb[0].mxu0 %v5204
      %v5351 = vpop.f32.mrb[0].mxu0
      %v5352 = vadd.f32 0.0, %v5351
      %v5353 = vpop.f32.mrb[0].mxu0
      %v5354 = vadd.f32 0.0, %v5353
      %5355 = vdwg.mxu0
      %v5356 = vadd.f32 %v5140, %v5281
      %v5357 = vadd.f32 %v5141, %v5283
      %v5358 = vadd.f32 %v5142, %v5352
      %v5359 = vadd.f32 %v5143, %v5354
      %v5360 = vld [vmem:[#allocation2 + $0x4] sm:$0xff]
      %v5361 = vld [vmem:[#allocation2 + $0xc] sm:$0xff]
      %v5362 = vld [vmem:[#allocation2 + $0x14] sm:$0xf]
      %v5364 = vlaneseq
      %v5365 = vshrl.u32 %v5364, 7
      %v5366 = vsub.s32 0, %v5365
      %v5367 = vrot.slane %v4498, %v5366
      %v5368 = vlaneseq
      %v5369 = vshrl.u32 %v5368, 7
      %v5370 = vsub.s32 1, %v5369
      %v5371 = vrot.slane %v4498, %v5370
      %v5372 = vlaneseq
      %v5373 = vshrl.u32 %v5372, 7
      %v5374 = vsub.s32 2, %v5373
      %v5375 = vrot.slane %v4498, %v5374
      %v5376 = vlaneseq
      %v5377 = vshrl.u32 %v5376, 7
      %v5378 = vsub.s32 3, %v5377
      %v5379 = vrot.slane %v4498, %v5378
      %v5380 = vcombine.low %v5367, %v5371
      %v5381 = vcombine.low %v5375, %v5379
      %5382 = vrot.lane.b32.xlu0 %v5380, 64
      %v5383 = vpop.permute.xlu0 %5382
      %5384 = vrot.lane.b32.xlu0 %v5381, 64
      %v5385 = vpop.permute.xlu0 %5384
      %v5386 = vrot.slane %v5383, 4
      %v5387 = vrot.slane %v5385, 4
      %v5388 = vsel %vm1544, %v5386, %v5383
      %v5389 = vsel %vm595, %v5386, %v5387
      %v5390 = vsel %vm1544, %v5389, %v5385
      %v5394 = vmul.f32 %v5360, %v5388
      %v5395 = vmul.f32 %v5361, %v5390
      %v5396 = vmul.f32 %v5362, %v5387
      %s5397 = scalar_lea.vmem %s4, 88
      %v5398 = vld [vmem:[%s5397] sm:$0xf]
      %v5402 = vcombine.high %v5394, %v5394
      %v5403 = vcombine.high %v5395, %v5395
      %5404 = vrot.lane.b32.xlu0 %v5394, 64
      %v5405 = vpop.permute.xlu0 %5404
      %5406 = vrot.lane.b32.xlu0 %v5402, 64
      %v5407 = vpop.permute.xlu0 %5406
      %5408 = vrot.lane.b32.xlu0 %v5395, 64
      %v5409 = vpop.permute.xlu0 %5408
      %5410 = vrot.lane.b32.xlu0 %v5403, 64
      %v5411 = vpop.permute.xlu0 %5410
      %5412 = vrot.lane.b32.xlu0 %v5396, 64
      %v5413 = vpop.permute.xlu0 %5412
      %v5414 = vsel %vm1544, %v5405, %v5407
      %v5415 = vsel %vm1544, %v5407, %v5409
      %v5416 = vsel %vm1544, %v5409, %v5411
      %v5417 = vsel %vm1544, %v5411, %v5413
      %v5419 = vsel %vm751, %v5398, 0
      %v5421 = vsel %vm595, %v5414, 0
      %v5423 = vsel %vm595, %v5415, 0
      %v5425 = vsel %vm595, %v5416, 0
      %v5427 = vsel %vm595, %v5417, 0
      %5429 = vmatprep.subr.mxu0 %v5423
      %5430 = vmatpush1.msra.mxu0 %v5421
      %5431 = vmatprep.subr.mxu0 0.0
      %5432 = vmatpush1.msra.mxu0 0.0
      %5433 = vmatprep.subr.mxu0 0.0
      %5434 = vmatpush1.msra.mxu0 0.0
      %5435 = vmatprep.subr.mxu0 0.0
      %5436 = vmatpush1.msra.mxu0 0.0
      %5437 = vmatprep.subr.mxu0 0.0
      %5438 = vmatpush1.msra.mxu0 0.0
      %5439 = vmatprep.subr.mxu0 0.0
      %5440 = vmatpush1.msra.mxu0 0.0
      %5441 = vmatprep.subr.mxu0 0.0
      %5442 = vmatpush1.msra.mxu0 0.0
      %5443 = vmatprep.subr.mxu0 0.0
      %5444 = vmatpush1.msra.mxu0 0.0
      %5445 = vmatprep.subr.mxu0 0.0
      %5446 = vmatpush1.msra.mxu0 0.0
      %5447 = vmatprep.subr.mxu0 0.0
      %5448 = vmatpush1.msra.mxu0 0.0
      %5449 = vmatprep.subr.mxu0 0.0
      %5450 = vmatpush1.msra.mxu0 0.0
      %5451 = vmatprep.subr.mxu0 0.0
      %5452 = vmatpush1.msra.mxu0 0.0
      %5453 = vmatprep.subr.mxu0 0.0
      %5454 = vmatpush1.msra.mxu0 0.0
      %5455 = vmatprep.subr.mxu0 0.0
      %5456 = vmatpush1.msra.mxu0 0.0
      %5457 = vmatprep.subr.mxu0 0.0
      %5458 = vmatpush1.msra.mxu0 0.0
      %5459 = vmatprep.subr.mxu0 0.0
      %5460 = vmatpush1.msra.mxu0 0.0
      %5461 = vmatprep.subr.mxu0 0.0
      %5462 = vmatpush1.msra.mxu0 0.0
      %5463 = vmatprep.subr.mxu0 0.0
      %5464 = vmatpush1.msra.mxu0 0.0
      %5465 = vmatprep.subr.mxu0 0.0
      %5466 = vmatpush1.msra.mxu0 0.0
      %5467 = vmatprep.subr.mxu0 0.0
      %5468 = vmatpush1.msra.mxu0 0.0
      %5469 = vmatprep.subr.mxu0 0.0
      %5470 = vmatpush1.msra.mxu0 0.0
      %5471 = vmatprep.subr.mxu0 0.0
      %5472 = vmatpush1.msra.mxu0 0.0
      %5473 = vmatprep.subr.mxu0 0.0
      %5474 = vmatpush1.msra.mxu0 0.0
      %5475 = vmatprep.subr.mxu0 0.0
      %5476 = vmatpush1.msra.mxu0 0.0
      %5477 = vmatprep.subr.mxu0 0.0
      %5478 = vmatpush1.msra.mxu0 0.0
      %5479 = vmatprep.subr.mxu0 0.0
      %5480 = vmatpush1.msra.mxu0 0.0
      %5481 = vmatprep.subr.mxu0 0.0
      %5482 = vmatpush1.msra.mxu0 0.0
      %5483 = vmatprep.subr.mxu0 0.0
      %5484 = vmatpush1.msra.mxu0 0.0
      %5485 = vmatprep.subr.mxu0 0.0
      %5486 = vmatpush1.msra.mxu0 0.0
      %5487 = vmatprep.subr.mxu0 0.0
      %5488 = vmatpush1.msra.mxu0 0.0
      %5489 = vmatprep.subr.mxu0 0.0
      %5490 = vmatpush1.msra.mxu0 0.0
      %5491 = vmatprep.subr.mxu0 0.0
      %5492 = vmatpush1.msra.mxu0 0.0
      %5493 = vmatprep.mubr.f32.mxu0 0.0
      %5494 = vmatmul.mubr.f32.gmra.mrb[0].mxu0 %v5419
      %v5495 = vpop.f32.mrb[0].mxu0
      %v5496 = vadd.f32 0.0, %v5495
      %v5497 = vpop.f32.mrb[0].mxu0
      %v5498 = vadd.f32 0.0, %v5497
      %5499 = vdwg.mxu0
      %5500 = vmatprep.subr.mxu0 %v5427
      %5501 = vmatpush1.msra.mxu0 %v5425
      %5502 = vmatprep.subr.mxu0 0.0
      %5503 = vmatpush1.msra.mxu0 0.0
      %5504 = vmatprep.subr.mxu0 0.0
      %5505 = vmatpush1.msra.mxu0 0.0
      %5506 = vmatprep.subr.mxu0 0.0
      %5507 = vmatpush1.msra.mxu0 0.0
      %5508 = vmatprep.subr.mxu0 0.0
      %5509 = vmatpush1.msra.mxu0 0.0
      %5510 = vmatprep.subr.mxu0 0.0
      %5511 = vmatpush1.msra.mxu0 0.0
      %5512 = vmatprep.subr.mxu0 0.0
      %5513 = vmatpush1.msra.mxu0 0.0
      %5514 = vmatprep.subr.mxu0 0.0
      %5515 = vmatpush1.msra.mxu0 0.0
      %5516 = vmatprep.subr.mxu0 0.0
      %5517 = vmatpush1.msra.mxu0 0.0
      %5518 = vmatprep.subr.mxu0 0.0
      %5519 = vmatpush1.msra.mxu0 0.0
      %5520 = vmatprep.subr.mxu0 0.0
      %5521 = vmatpush1.msra.mxu0 0.0
      %5522 = vmatprep.subr.mxu0 0.0
      %5523 = vmatpush1.msra.mxu0 0.0
      %5524 = vmatprep.subr.mxu0 0.0
      %5525 = vmatpush1.msra.mxu0 0.0
      %5526 = vmatprep.subr.mxu0 0.0
      %5527 = vmatpush1.msra.mxu0 0.0
      %5528 = vmatprep.subr.mxu0 0.0
      %5529 = vmatpush1.msra.mxu0 0.0
      %5530 = vmatprep.subr.mxu0 0.0
      %5531 = vmatpush1.msra.mxu0 0.0
      %5532 = vmatprep.subr.mxu0 0.0
      %5533 = vmatpush1.msra.mxu0 0.0
      %5534 = vmatprep.subr.mxu0 0.0
      %5535 = vmatpush1.msra.mxu0 0.0
      %5536 = vmatprep.subr.mxu0 0.0
      %5537 = vmatpush1.msra.mxu0 0.0
      %5538 = vmatprep.subr.mxu0 0.0
      %5539 = vmatpush1.msra.mxu0 0.0
      %5540 = vmatprep.subr.mxu0 0.0
      %5541 = vmatpush1.msra.mxu0 0.0
      %5542 = vmatprep.subr.mxu0 0.0
      %5543 = vmatpush1.msra.mxu0 0.0
      %5544 = vmatprep.subr.mxu0 0.0
      %5545 = vmatpush1.msra.mxu0 0.0
      %5546 = vmatprep.subr.mxu0 0.0
      %5547 = vmatpush1.msra.mxu0 0.0
      %5548 = vmatprep.subr.mxu0 0.0
      %5549 = vmatpush1.msra.mxu0 0.0
      %5550 = vmatprep.subr.mxu0 0.0
      %5551 = vmatpush1.msra.mxu0 0.0
      %5552 = vmatprep.subr.mxu0 0.0
      %5553 = vmatpush1.msra.mxu0 0.0
      %5554 = vmatprep.subr.mxu0 0.0
      %5555 = vmatpush1.msra.mxu0 0.0
      %5556 = vmatprep.subr.mxu0 0.0
      %5557 = vmatpush1.msra.mxu0 0.0
      %5558 = vmatprep.subr.mxu0 0.0
      %5559 = vmatpush1.msra.mxu0 0.0
      %5560 = vmatprep.subr.mxu0 0.0
      %5561 = vmatpush1.msra.mxu0 0.0
      %5562 = vmatprep.subr.mxu0 0.0
      %5563 = vmatpush1.msra.mxu0 0.0
      %5564 = vmatprep.mubr.f32.mxu0 0.0
      %5565 = vmatmul.mubr.f32.gmra.mrb[0].mxu0 %v5419
      %v5566 = vpop.f32.mrb[0].mxu0
      %v5567 = vadd.f32 0.0, %v5566
      %v5568 = vpop.f32.mrb[0].mxu0
      %v5569 = vadd.f32 0.0, %v5568
      %5570 = vdwg.mxu0
      %v5571 = vadd.f32 %v5356, %v5496
      %v5572 = vadd.f32 %v5357, %v5498
      %v5573 = vadd.f32 %v5358, %v5567
      %v5574 = vadd.f32 %v5359, %v5569
      %v5575 = vld [vmem:[#allocation2 + $0x4] sm:$0xff]
      %v5576 = vld [vmem:[#allocation2 + $0xc] sm:$0xff]
      %v5577 = vld [vmem:[#allocation2 + $0x14] sm:$0xf]
      %v5578 = vmul.f32 %v4498, %v1082
      %v5580 = vlaneseq
      %v5581 = vshrl.u32 %v5580, 7
      %v5582 = vsub.s32 0, %v5581
      %v5583 = vrot.slane %v5578, %v5582
      %v5584 = vlaneseq
      %v5585 = vshrl.u32 %v5584, 7
      %v5586 = vsub.s32 1, %v5585
      %v5587 = vrot.slane %v5578, %v5586
      %v5588 = vlaneseq
      %v5589 = vshrl.u32 %v5588, 7
      %v5590 = vsub.s32 2, %v5589
      %v5591 = vrot.slane %v5578, %v5590
      %v5592 = vlaneseq
      %v5593 = vshrl.u32 %v5592, 7
      %v5594 = vsub.s32 3, %v5593
      %v5595 = vrot.slane %v5578, %v5594
      %v5596 = vcombine.low %v5583, %v5587
      %v5597 = vcombine.low %v5591, %v5595
      %5598 = vrot.lane.b32.xlu0 %v5596, 65
      %v5599 = vpop.permute.xlu0 %5598
      %5600 = vrot.lane.b32.xlu0 %v5597, 65
      %v5601 = vpop.permute.xlu0 %5600
      %v5602 = vrot.slane %v5599, 4
      %v5603 = vrot.slane %v5601, 4
      %v5604 = vsel %vm1354, %v5602, %v5599
      %v5605 = vsel %vm595, %v5602, %v5603
      %v5606 = vsel %vm1354, %v5605, %v5601
      %v5610 = vmul.f32 %v5575, %v5604
      %v5611 = vmul.f32 %v5576, %v5606
      %v5612 = vmul.f32 %v5577, %v5603
      %s5613 = scalar_lea.vmem %s4, 92
      %v5614 = vld [vmem:[%s5613] sm:$0xf]
      %v5618 = vcombine.high %v5610, %v5610
      %v5619 = vcombine.high %v5611, %v5611
      %5620 = vrot.lane.b32.xlu0 %v5610, 63
      %v5621 = vpop.permute.xlu0 %5620
      %5622 = vrot.lane.b32.xlu0 %v5618, 63
      %v5623 = vpop.permute.xlu0 %5622
      %5624 = vrot.lane.b32.xlu0 %v5611, 63
      %v5625 = vpop.permute.xlu0 %5624
      %5626 = vrot.lane.b32.xlu0 %v5619, 63
      %v5627 = vpop.permute.xlu0 %5626
      %5628 = vrot.lane.b32.xlu0 %v5612, 63
      %v5629 = vpop.permute.xlu0 %5628
      %v5630 = vsel %vm1327, %v5621, %v5623
      %v5631 = vsel %vm1327, %v5623, %v5625
      %v5632 = vsel %vm1327, %v5625, %v5627
      %v5633 = vsel %vm1327, %v5627, %v5629
      %v5635 = vsel %vm751, %v5614, 0
      %v5637 = vsel %vm595, %v5630, 0
      %v5639 = vsel %vm595, %v5631, 0
      %v5641 = vsel %vm595, %v5632, 0
      %v5643 = vsel %vm595, %v5633, 0
      %5645 = vmatprep.subr.mxu0 %v5639
      %5646 = vmatpush1.msra.mxu0 %v5637
      %5647 = vmatprep.subr.mxu0 0.0
      %5648 = vmatpush1.msra.mxu0 0.0
      %5649 = vmatprep.subr.mxu0 0.0
      %5650 = vmatpush1.msra.mxu0 0.0
      %5651 = vmatprep.subr.mxu0 0.0
      %5652 = vmatpush1.msra.mxu0 0.0
      %5653 = vmatprep.subr.mxu0 0.0
      %5654 = vmatpush1.msra.mxu0 0.0
      %5655 = vmatprep.subr.mxu0 0.0
      %5656 = vmatpush1.msra.mxu0 0.0
      %5657 = vmatprep.subr.mxu0 0.0
      %5658 = vmatpush1.msra.mxu0 0.0
      %5659 = vmatprep.subr.mxu0 0.0
      %5660 = vmatpush1.msra.mxu0 0.0
      %5661 = vmatprep.subr.mxu0 0.0
      %5662 = vmatpush1.msra.mxu0 0.0
      %5663 = vmatprep.subr.mxu0 0.0
      %5664 = vmatpush1.msra.mxu0 0.0
      %5665 = vmatprep.subr.mxu0 0.0
      %5666 = vmatpush1.msra.mxu0 0.0
      %5667 = vmatprep.subr.mxu0 0.0
      %5668 = vmatpush1.msra.mxu0 0.0
      %5669 = vmatprep.subr.mxu0 0.0
      %5670 = vmatpush1.msra.mxu0 0.0
      %5671 = vmatprep.subr.mxu0 0.0
      %5672 = vmatpush1.msra.mxu0 0.0
      %5673 = vmatprep.subr.mxu0 0.0
      %5674 = vmatpush1.msra.mxu0 0.0
      %5675 = vmatprep.subr.mxu0 0.0
      %5676 = vmatpush1.msra.mxu0 0.0
      %5677 = vmatprep.subr.mxu0 0.0
      %5678 = vmatpush1.msra.mxu0 0.0
      %5679 = vmatprep.subr.mxu0 0.0
      %5680 = vmatpush1.msra.mxu0 0.0
      %5681 = vmatprep.subr.mxu0 0.0
      %5682 = vmatpush1.msra.mxu0 0.0
      %5683 = vmatprep.subr.mxu0 0.0
      %5684 = vmatpush1.msra.mxu0 0.0
      %5685 = vmatprep.subr.mxu0 0.0
      %5686 = vmatpush1.msra.mxu0 0.0
      %5687 = vmatprep.subr.mxu0 0.0
      %5688 = vmatpush1.msra.mxu0 0.0
      %5689 = vmatprep.subr.mxu0 0.0
      %5690 = vmatpush1.msra.mxu0 0.0
      %5691 = vmatprep.subr.mxu0 0.0
      %5692 = vmatpush1.msra.mxu0 0.0
      %5693 = vmatprep.subr.mxu0 0.0
      %5694 = vmatpush1.msra.mxu0 0.0
      %5695 = vmatprep.subr.mxu0 0.0
      %5696 = vmatpush1.msra.mxu0 0.0
      %5697 = vmatprep.subr.mxu0 0.0
      %5698 = vmatpush1.msra.mxu0 0.0
      %5699 = vmatprep.subr.mxu0 0.0
      %5700 = vmatpush1.msra.mxu0 0.0
      %5701 = vmatprep.subr.mxu0 0.0
      %5702 = vmatpush1.msra.mxu0 0.0
      %5703 = vmatprep.subr.mxu0 0.0
      %5704 = vmatpush1.msra.mxu0 0.0
      %5705 = vmatprep.subr.mxu0 0.0
      %5706 = vmatpush1.msra.mxu0 0.0
      %5707 = vmatprep.subr.mxu0 0.0
      %5708 = vmatpush1.msra.mxu0 0.0
      %5709 = vmatprep.mubr.f32.mxu0 0.0
      %5710 = vmatmul.mubr.f32.gmra.mrb[0].mxu0 %v5635
      %v5711 = vpop.f32.mrb[0].mxu0
      %v5712 = vadd.f32 0.0, %v5711
      %v5713 = vpop.f32.mrb[0].mxu0
      %v5714 = vadd.f32 0.0, %v5713
      %5715 = vdwg.mxu0
      %5716 = vmatprep.subr.mxu0 %v5643
      %5717 = vmatpush1.msra.mxu0 %v5641
      %5718 = vmatprep.subr.mxu0 0.0
      %5719 = vmatpush1.msra.mxu0 0.0
      %5720 = vmatprep.subr.mxu0 0.0
      %5721 = vmatpush1.msra.mxu0 0.0
      %5722 = vmatprep.subr.mxu0 0.0
      %5723 = vmatpush1.msra.mxu0 0.0
      %5724 = vmatprep.subr.mxu0 0.0
      %5725 = vmatpush1.msra.mxu0 0.0
      %5726 = vmatprep.subr.mxu0 0.0
      %5727 = vmatpush1.msra.mxu0 0.0
      %5728 = vmatprep.subr.mxu0 0.0
      %5729 = vmatpush1.msra.mxu0 0.0
      %5730 = vmatprep.subr.mxu0 0.0
      %5731 = vmatpush1.msra.mxu0 0.0
      %5732 = vmatprep.subr.mxu0 0.0
      %5733 = vmatpush1.msra.mxu0 0.0
      %5734 = vmatprep.subr.mxu0 0.0
      %5735 = vmatpush1.msra.mxu0 0.0
      %5736 = vmatprep.subr.mxu0 0.0
      %5737 = vmatpush1.msra.mxu0 0.0
      %5738 = vmatprep.subr.mxu0 0.0
      %5739 = vmatpush1.msra.mxu0 0.0
      %5740 = vmatprep.subr.mxu0 0.0
      %5741 = vmatpush1.msra.mxu0 0.0
      %5742 = vmatprep.subr.mxu0 0.0
      %5743 = vmatpush1.msra.mxu0 0.0
      %5744 = vmatprep.subr.mxu0 0.0
      %5745 = vmatpush1.msra.mxu0 0.0
      %5746 = vmatprep.subr.mxu0 0.0
      %5747 = vmatpush1.msra.mxu0 0.0
      %5748 = vmatprep.subr.mxu0 0.0
      %5749 = vmatpush1.msra.mxu0 0.0
      %5750 = vmatprep.subr.mxu0 0.0
      %5751 = vmatpush1.msra.mxu0 0.0
      %5752 = vmatprep.subr.mxu0 0.0
      %5753 = vmatpush1.msra.mxu0 0.0
      %5754 = vmatprep.subr.mxu0 0.0
      %5755 = vmatpush1.msra.mxu0 0.0
      %5756 = vmatprep.subr.mxu0 0.0
      %5757 = vmatpush1.msra.mxu0 0.0
      %5758 = vmatprep.subr.mxu0 0.0
      %5759 = vmatpush1.msra.mxu0 0.0
      %5760 = vmatprep.subr.mxu0 0.0
      %5761 = vmatpush1.msra.mxu0 0.0
      %5762 = vmatprep.subr.mxu0 0.0
      %5763 = vmatpush1.msra.mxu0 0.0
      %5764 = vmatprep.subr.mxu0 0.0
      %5765 = vmatpush1.msra.mxu0 0.0
      %5766 = vmatprep.subr.mxu0 0.0
      %5767 = vmatpush1.msra.mxu0 0.0
      %5768 = vmatprep.subr.mxu0 0.0
      %5769 = vmatpush1.msra.mxu0 0.0
      %5770 = vmatprep.subr.mxu0 0.0
      %5771 = vmatpush1.msra.mxu0 0.0
      %5772 = vmatprep.subr.mxu0 0.0
      %5773 = vmatpush1.msra.mxu0 0.0
      %5774 = vmatprep.subr.mxu0 0.0
      %5775 = vmatpush1.msra.mxu0 0.0
      %5776 = vmatprep.subr.mxu0 0.0
      %5777 = vmatpush1.msra.mxu0 0.0
      %5778 = vmatprep.subr.mxu0 0.0
      %5779 = vmatpush1.msra.mxu0 0.0
      %5780 = vmatprep.mubr.f32.mxu0 0.0
      %5781 = vmatmul.mubr.f32.gmra.mrb[0].mxu0 %v5635
      %v5782 = vpop.f32.mrb[0].mxu0
      %v5783 = vadd.f32 0.0, %v5782
      %v5784 = vpop.f32.mrb[0].mxu0
      %v5785 = vadd.f32 0.0, %v5784
      %5786 = vdwg.mxu0
      %v5787 = vadd.f32 %v5571, %v5712
      %v5788 = vadd.f32 %v5572, %v5714
      %v5789 = vadd.f32 %v5573, %v5783
      %v5790 = vadd.f32 %v5574, %v5785
      %v5791 = vld [vmem:[#allocation2 + $0x4] sm:$0xff]
      %v5792 = vld [vmem:[#allocation2 + $0xc] sm:$0xff]
      %v5793 = vld [vmem:[#allocation2 + $0x14] sm:$0xf]
      %v5794 = vmul.f32 %v4498, %v1952
      %v5795 = vmul.f32 %v5794, %v656
      %v5797 = vlaneseq
      %v5798 = vshrl.u32 %v5797, 7
      %v5799 = vsub.s32 0, %v5798
      %v5800 = vrot.slane %v5795, %v5799
      %v5801 = vlaneseq
      %v5802 = vshrl.u32 %v5801, 7
      %v5803 = vsub.s32 1, %v5802
      %v5804 = vrot.slane %v5795, %v5803
      %v5805 = vlaneseq
      %v5806 = vshrl.u32 %v5805, 7
      %v5807 = vsub.s32 2, %v5806
      %v5808 = vrot.slane %v5795, %v5807
      %v5809 = vlaneseq
      %v5810 = vshrl.u32 %v5809, 7
      %v5811 = vsub.s32 3, %v5810
      %v5812 = vrot.slane %v5795, %v5811
      %v5813 = vcombine.low %v5800, %v5804
      %v5814 = vcombine.low %v5808, %v5812
      %5815 = vrot.lane.b32.xlu0 %v5813, 71
      %v5816 = vpop.permute.xlu0 %5815
      %5817 = vrot.lane.b32.xlu0 %v5814, 71
      %v5818 = vpop.permute.xlu0 %5817
      %v5819 = vrot.slane %v5816, 4
      %v5820 = vrot.slane %v5818, 4
      %v5821 = vsel %vm1136, %v5819, %v5816
      %v5822 = vsel %vm595, %v5819, %v5820
      %v5823 = vsel %vm1136, %v5822, %v5818
      %v5827 = vmul.f32 %v5791, %v5821
      %v5828 = vmul.f32 %v5792, %v5823
      %v5829 = vmul.f32 %v5793, %v5820
      %s5830 = scalar_lea.vmem %s4, 96
      %v5831 = vld [vmem:[%s5830] sm:$0xf]
      %v5835 = vcombine.high %v5827, %v5827
      %v5836 = vcombine.high %v5828, %v5828
      %5837 = vrot.lane.b32.xlu0 %v5827, 57
      %v5838 = vpop.permute.xlu0 %5837
      %5839 = vrot.lane.b32.xlu0 %v5835, 57
      %v5840 = vpop.permute.xlu0 %5839
      %5841 = vrot.lane.b32.xlu0 %v5828, 57
      %v5842 = vpop.permute.xlu0 %5841
      %5843 = vrot.lane.b32.xlu0 %v5836, 57
      %v5844 = vpop.permute.xlu0 %5843
      %5845 = vrot.lane.b32.xlu0 %v5829, 57
      %v5846 = vpop.permute.xlu0 %5845
      %v5847 = vsel %vm1109, %v5838, %v5840
      %v5848 = vsel %vm1109, %v5840, %v5842
      %v5849 = vsel %vm1109, %v5842, %v5844
      %v5850 = vsel %vm1109, %v5844, %v5846
      %v5852 = vsel %vm751, %v5831, 0
      %v5854 = vsel %vm595, %v5847, 0
      %v5856 = vsel %vm595, %v5848, 0
      %v5858 = vsel %vm595, %v5849, 0
      %v5860 = vsel %vm595, %v5850, 0
      %5862 = vmatprep.subr.mxu0 %v5856
      %5863 = vmatpush1.msra.mxu0 %v5854
      %5864 = vmatprep.subr.mxu0 0.0
      %5865 = vmatpush1.msra.mxu0 0.0
      %5866 = vmatprep.subr.mxu0 0.0
      %5867 = vmatpush1.msra.mxu0 0.0
      %5868 = vmatprep.subr.mxu0 0.0
      %5869 = vmatpush1.msra.mxu0 0.0
      %5870 = vmatprep.subr.mxu0 0.0
      %5871 = vmatpush1.msra.mxu0 0.0
      %5872 = vmatprep.subr.mxu0 0.0
      %5873 = vmatpush1.msra.mxu0 0.0
      %5874 = vmatprep.subr.mxu0 0.0
      %5875 = vmatpush1.msra.mxu0 0.0
      %5876 = vmatprep.subr.mxu0 0.0
      %5877 = vmatpush1.msra.mxu0 0.0
      %5878 = vmatprep.subr.mxu0 0.0
      %5879 = vmatpush1.msra.mxu0 0.0
      %5880 = vmatprep.subr.mxu0 0.0
      %5881 = vmatpush1.msra.mxu0 0.0
      %5882 = vmatprep.subr.mxu0 0.0
      %5883 = vmatpush1.msra.mxu0 0.0
      %5884 = vmatprep.subr.mxu0 0.0
      %5885 = vmatpush1.msra.mxu0 0.0
      %5886 = vmatprep.subr.mxu0 0.0
      %5887 = vmatpush1.msra.mxu0 0.0
      %5888 = vmatprep.subr.mxu0 0.0
      %5889 = vmatpush1.msra.mxu0 0.0
      %5890 = vmatprep.subr.mxu0 0.0
      %5891 = vmatpush1.msra.mxu0 0.0
      %5892 = vmatprep.subr.mxu0 0.0
      %5893 = vmatpush1.msra.mxu0 0.0
      %5894 = vmatprep.subr.mxu0 0.0
      %5895 = vmatpush1.msra.mxu0 0.0
      %5896 = vmatprep.subr.mxu0 0.0
      %5897 = vmatpush1.msra.mxu0 0.0
      %5898 = vmatprep.subr.mxu0 0.0
      %5899 = vmatpush1.msra.mxu0 0.0
      %5900 = vmatprep.subr.mxu0 0.0
      %5901 = vmatpush1.msra.mxu0 0.0
      %5902 = vmatprep.subr.mxu0 0.0
      %5903 = vmatpush1.msra.mxu0 0.0
      %5904 = vmatprep.subr.mxu0 0.0
      %5905 = vmatpush1.msra.mxu0 0.0
      %5906 = vmatprep.subr.mxu0 0.0
      %5907 = vmatpush1.msra.mxu0 0.0
      %5908 = vmatprep.subr.mxu0 0.0
      %5909 = vmatpush1.msra.mxu0 0.0
      %5910 = vmatprep.subr.mxu0 0.0
      %5911 = vmatpush1.msra.mxu0 0.0
      %5912 = vmatprep.subr.mxu0 0.0
      %5913 = vmatpush1.msra.mxu0 0.0
      %5914 = vmatprep.subr.mxu0 0.0
      %5915 = vmatpush1.msra.mxu0 0.0
      %5916 = vmatprep.subr.mxu0 0.0
      %5917 = vmatpush1.msra.mxu0 0.0
      %5918 = vmatprep.subr.mxu0 0.0
      %5919 = vmatpush1.msra.mxu0 0.0
      %5920 = vmatprep.subr.mxu0 0.0
      %5921 = vmatpush1.msra.mxu0 0.0
      %5922 = vmatprep.subr.mxu0 0.0
      %5923 = vmatpush1.msra.mxu0 0.0
      %5924 = vmatprep.subr.mxu0 0.0
      %5925 = vmatpush1.msra.mxu0 0.0
      %5926 = vmatprep.mubr.f32.mxu0 0.0
      %5927 = vmatmul.mubr.f32.gmra.mrb[0].mxu0 %v5852
      %v5928 = vpop.f32.mrb[0].mxu0
      %v5929 = vadd.f32 0.0, %v5928
      %v5930 = vpop.f32.mrb[0].mxu0
      %v5931 = vadd.f32 0.0, %v5930
      %5932 = vdwg.mxu0
      %5933 = vmatprep.subr.mxu0 %v5860
      %5934 = vmatpush1.msra.mxu0 %v5858
      %5935 = vmatprep.subr.mxu0 0.0
      %5936 = vmatpush1.msra.mxu0 0.0
      %5937 = vmatprep.subr.mxu0 0.0
      %5938 = vmatpush1.msra.mxu0 0.0
      %5939 = vmatprep.subr.mxu0 0.0
      %5940 = vmatpush1.msra.mxu0 0.0
      %5941 = vmatprep.subr.mxu0 0.0
      %5942 = vmatpush1.msra.mxu0 0.0
      %5943 = vmatprep.subr.mxu0 0.0
      %5944 = vmatpush1.msra.mxu0 0.0
      %5945 = vmatprep.subr.mxu0 0.0
      %5946 = vmatpush1.msra.mxu0 0.0
      %5947 = vmatprep.subr.mxu0 0.0
      %5948 = vmatpush1.msra.mxu0 0.0
      %5949 = vmatprep.subr.mxu0 0.0
      %5950 = vmatpush1.msra.mxu0 0.0
      %5951 = vmatprep.subr.mxu0 0.0
      %5952 = vmatpush1.msra.mxu0 0.0
      %5953 = vmatprep.subr.mxu0 0.0
      %5954 = vmatpush1.msra.mxu0 0.0
      %5955 = vmatprep.subr.mxu0 0.0
      %5956 = vmatpush1.msra.mxu0 0.0
      %5957 = vmatprep.subr.mxu0 0.0
      %5958 = vmatpush1.msra.mxu0 0.0
      %5959 = vmatprep.subr.mxu0 0.0
      %5960 = vmatpush1.msra.mxu0 0.0
      %5961 = vmatprep.subr.mxu0 0.0
      %5962 = vmatpush1.msra.mxu0 0.0
      %5963 = vmatprep.subr.mxu0 0.0
      %5964 = vmatpush1.msra.mxu0 0.0
      %5965 = vmatprep.subr.mxu0 0.0
      %5966 = vmatpush1.msra.mxu0 0.0
      %5967 = vmatprep.subr.mxu0 0.0
      %5968 = vmatpush1.msra.mxu0 0.0
      %5969 = vmatprep.subr.mxu0 0.0
      %5970 = vmatpush1.msra.mxu0 0.0
      %5971 = vmatprep.subr.mxu0 0.0
      %5972 = vmatpush1.msra.mxu0 0.0
      %5973 = vmatprep.subr.mxu0 0.0
      %5974 = vmatpush1.msra.mxu0 0.0
      %5975 = vmatprep.subr.mxu0 0.0
      %5976 = vmatpush1.msra.mxu0 0.0
      %5977 = vmatprep.subr.mxu0 0.0
      %5978 = vmatpush1.msra.mxu0 0.0
      %5979 = vmatprep.subr.mxu0 0.0
      %5980 = vmatpush1.msra.mxu0 0.0
      %5981 = vmatprep.subr.mxu0 0.0
      %5982 = vmatpush1.msra.mxu0 0.0
      %5983 = vmatprep.subr.mxu0 0.0
      %5984 = vmatpush1.msra.mxu0 0.0
      %5985 = vmatprep.subr.mxu0 0.0
      %5986 = vmatpush1.msra.mxu0 0.0
      %5987 = vmatprep.subr.mxu0 0.0
      %5988 = vmatpush1.msra.mxu0 0.0
      %5989 = vmatprep.subr.mxu0 0.0
      %5990 = vmatpush1.msra.mxu0 0.0
      %5991 = vmatprep.subr.mxu0 0.0
      %5992 = vmatpush1.msra.mxu0 0.0
      %5993 = vmatprep.subr.mxu0 0.0
      %5994 = vmatpush1.msra.mxu0 0.0
      %5995 = vmatprep.subr.mxu0 0.0
      %5996 = vmatpush1.msra.mxu0 0.0
      %5997 = vmatprep.mubr.f32.mxu0 0.0
      %5998 = vmatmul.mubr.f32.gmra.mrb[0].mxu0 %v5852
      %v5999 = vpop.f32.mrb[0].mxu0
      %v6000 = vadd.f32 0.0, %v5999
      %v6001 = vpop.f32.mrb[0].mxu0
      %v6002 = vadd.f32 0.0, %v6001
      %6003 = vdwg.mxu0
      %v6004 = vadd.f32 %v5787, %v5929
      %v6005 = vadd.f32 %v5788, %v5931
      %v6006 = vadd.f32 %v5789, %v6000
      %v6007 = vadd.f32 %v5790, %v6002
      %v6008 = vld [vmem:[#allocation2 + $0x4] sm:$0xff]
      %v6009 = vld [vmem:[#allocation2 + $0xc] sm:$0xff]
      %v6010 = vld [vmem:[#allocation2 + $0x14] sm:$0xf]
      %v6012 = vlaneseq
      %v6013 = vshrl.u32 %v6012, 7
      %v6014 = vsub.s32 0, %v6013
      %v6015 = vrot.slane %v5794, %v6014
      %v6016 = vlaneseq
      %v6017 = vshrl.u32 %v6016, 7
      %v6018 = vsub.s32 1, %v6017
      %v6019 = vrot.slane %v5794, %v6018
      %v6020 = vlaneseq
      %v6021 = vshrl.u32 %v6020, 7
      %v6022 = vsub.s32 2, %v6021
      %v6023 = vrot.slane %v5794, %v6022
      %v6024 = vlaneseq
      %v6025 = vshrl.u32 %v6024, 7
      %v6026 = vsub.s32 3, %v6025
      %v6027 = vrot.slane %v5794, %v6026
      %v6028 = vcombine.low %v6015, %v6019
      %v6029 = vcombine.low %v6023, %v6027
      %6030 = vrot.lane.b32.xlu0 %v6028, 72
      %v6031 = vpop.permute.xlu0 %6030
      %6032 = vrot.lane.b32.xlu0 %v6029, 72
      %v6033 = vpop.permute.xlu0 %6032
      %v6034 = vrot.slane %v6031, 4
      %v6035 = vrot.slane %v6033, 4
      %v6036 = vsel %vm746, %v6034, %v6031
      %v6037 = vsel %vm595, %v6034, %v6035
      %v6038 = vsel %vm746, %v6037, %v6033
      %v6042 = vmul.f32 %v6008, %v6036
      %v6043 = vmul.f32 %v6009, %v6038
      %v6044 = vmul.f32 %v6010, %v6035
      %s6045 = scalar_lea.vmem %s4, 100
      %v6046 = vld [vmem:[%s6045] sm:$0xf]
      %v6050 = vcombine.high %v6042, %v6042
      %v6051 = vcombine.high %v6043, %v6043
      %6052 = vrot.lane.b32.xlu0 %v6042, 56
      %v6053 = vpop.permute.xlu0 %6052
      %6054 = vrot.lane.b32.xlu0 %v6050, 56
      %v6055 = vpop.permute.xlu0 %6054
      %6056 = vrot.lane.b32.xlu0 %v6043, 56
      %v6057 = vpop.permute.xlu0 %6056
      %6058 = vrot.lane.b32.xlu0 %v6051, 56
      %v6059 = vpop.permute.xlu0 %6058
      %6060 = vrot.lane.b32.xlu0 %v6044, 56
      %v6061 = vpop.permute.xlu0 %6060
      %v6062 = vsel %vm719, %v6053, %v6055
      %v6063 = vsel %vm719, %v6055, %v6057
      %v6064 = vsel %vm719, %v6057, %v6059
      %v6065 = vsel %vm719, %v6059, %v6061
      %v6067 = vsel %vm751, %v6046, 0
      %v6069 = vsel %vm595, %v6062, 0
      %v6071 = vsel %vm595, %v6063, 0
      %v6073 = vsel %vm595, %v6064, 0
      %v6075 = vsel %vm595, %v6065, 0
      %6077 = vmatprep.subr.mxu0 %v6071
      %6078 = vmatpush1.msra.mxu0 %v6069
      %6079 = vmatprep.subr.mxu0 0.0
      %6080 = vmatpush1.msra.mxu0 0.0
      %6081 = vmatprep.subr.mxu0 0.0
      %6082 = vmatpush1.msra.mxu0 0.0
      %6083 = vmatprep.subr.mxu0 0.0
      %6084 = vmatpush1.msra.mxu0 0.0
      %6085 = vmatprep.subr.mxu0 0.0
      %6086 = vmatpush1.msra.mxu0 0.0
      %6087 = vmatprep.subr.mxu0 0.0
      %6088 = vmatpush1.msra.mxu0 0.0
      %6089 = vmatprep.subr.mxu0 0.0
      %6090 = vmatpush1.msra.mxu0 0.0
      %6091 = vmatprep.subr.mxu0 0.0
      %6092 = vmatpush1.msra.mxu0 0.0
      %6093 = vmatprep.subr.mxu0 0.0
      %6094 = vmatpush1.msra.mxu0 0.0
      %6095 = vmatprep.subr.mxu0 0.0
      %6096 = vmatpush1.msra.mxu0 0.0
      %6097 = vmatprep.subr.mxu0 0.0
      %6098 = vmatpush1.msra.mxu0 0.0
      %6099 = vmatprep.subr.mxu0 0.0
      %6100 = vmatpush1.msra.mxu0 0.0
      %6101 = vmatprep.subr.mxu0 0.0
      %6102 = vmatpush1.msra.mxu0 0.0
      %6103 = vmatprep.subr.mxu0 0.0
      %6104 = vmatpush1.msra.mxu0 0.0
      %6105 = vmatprep.subr.mxu0 0.0
      %6106 = vmatpush1.msra.mxu0 0.0
      %6107 = vmatprep.subr.mxu0 0.0
      %6108 = vmatpush1.msra.mxu0 0.0
      %6109 = vmatprep.subr.mxu0 0.0
      %6110 = vmatpush1.msra.mxu0 0.0
      %6111 = vmatprep.subr.mxu0 0.0
      %6112 = vmatpush1.msra.mxu0 0.0
      %6113 = vmatprep.subr.mxu0 0.0
      %6114 = vmatpush1.msra.mxu0 0.0
      %6115 = vmatprep.subr.mxu0 0.0
      %6116 = vmatpush1.msra.mxu0 0.0
      %6117 = vmatprep.subr.mxu0 0.0
      %6118 = vmatpush1.msra.mxu0 0.0
      %6119 = vmatprep.subr.mxu0 0.0
      %6120 = vmatpush1.msra.mxu0 0.0
      %6121 = vmatprep.subr.mxu0 0.0
      %6122 = vmatpush1.msra.mxu0 0.0
      %6123 = vmatprep.subr.mxu0 0.0
      %6124 = vmatpush1.msra.mxu0 0.0
      %6125 = vmatprep.subr.mxu0 0.0
      %6126 = vmatpush1.msra.mxu0 0.0
      %6127 = vmatprep.subr.mxu0 0.0
      %6128 = vmatpush1.msra.mxu0 0.0
      %6129 = vmatprep.subr.mxu0 0.0
      %6130 = vmatpush1.msra.mxu0 0.0
      %6131 = vmatprep.subr.mxu0 0.0
      %6132 = vmatpush1.msra.mxu0 0.0
      %6133 = vmatprep.subr.mxu0 0.0
      %6134 = vmatpush1.msra.mxu0 0.0
      %6135 = vmatprep.subr.mxu0 0.0
      %6136 = vmatpush1.msra.mxu0 0.0
      %6137 = vmatprep.subr.mxu0 0.0
      %6138 = vmatpush1.msra.mxu0 0.0
      %6139 = vmatprep.subr.mxu0 0.0
      %6140 = vmatpush1.msra.mxu0 0.0
      %6141 = vmatprep.mubr.f32.mxu0 0.0
      %6142 = vmatmul.mubr.f32.gmra.mrb[0].mxu0 %v6067
      %v6143 = vpop.f32.mrb[0].mxu0
      %v6144 = vadd.f32 0.0, %v6143
      %v6145 = vpop.f32.mrb[0].mxu0
      %v6146 = vadd.f32 0.0, %v6145
      %6147 = vdwg.mxu0
      %6148 = vmatprep.subr.mxu0 %v6075
      %6149 = vmatpush1.msra.mxu0 %v6073
      %6150 = vmatprep.subr.mxu0 0.0
      %6151 = vmatpush1.msra.mxu0 0.0
      %6152 = vmatprep.subr.mxu0 0.0
      %6153 = vmatpush1.msra.mxu0 0.0
      %6154 = vmatprep.subr.mxu0 0.0
      %6155 = vmatpush1.msra.mxu0 0.0
      %6156 = vmatprep.subr.mxu0 0.0
      %6157 = vmatpush1.msra.mxu0 0.0
      %6158 = vmatprep.subr.mxu0 0.0
      %6159 = vmatpush1.msra.mxu0 0.0
      %6160 = vmatprep.subr.mxu0 0.0
      %6161 = vmatpush1.msra.mxu0 0.0
      %6162 = vmatprep.subr.mxu0 0.0
      %6163 = vmatpush1.msra.mxu0 0.0
      %6164 = vmatprep.subr.mxu0 0.0
      %6165 = vmatpush1.msra.mxu0 0.0
      %6166 = vmatprep.subr.mxu0 0.0
      %6167 = vmatpush1.msra.mxu0 0.0
      %6168 = vmatprep.subr.mxu0 0.0
      %6169 = vmatpush1.msra.mxu0 0.0
      %6170 = vmatprep.subr.mxu0 0.0
      %6171 = vmatpush1.msra.mxu0 0.0
      %6172 = vmatprep.subr.mxu0 0.0
      %6173 = vmatpush1.msra.mxu0 0.0
      %6174 = vmatprep.subr.mxu0 0.0
      %6175 = vmatpush1.msra.mxu0 0.0
      %6176 = vmatprep.subr.mxu0 0.0
      %6177 = vmatpush1.msra.mxu0 0.0
      %6178 = vmatprep.subr.mxu0 0.0
      %6179 = vmatpush1.msra.mxu0 0.0
      %6180 = vmatprep.subr.mxu0 0.0
      %6181 = vmatpush1.msra.mxu0 0.0
      %6182 = vmatprep.subr.mxu0 0.0
      %6183 = vmatpush1.msra.mxu0 0.0
      %6184 = vmatprep.subr.mxu0 0.0
      %6185 = vmatpush1.msra.mxu0 0.0
      %6186 = vmatprep.subr.mxu0 0.0
      %6187 = vmatpush1.msra.mxu0 0.0
      %6188 = vmatprep.subr.mxu0 0.0
      %6189 = vmatpush1.msra.mxu0 0.0
      %6190 = vmatprep.subr.mxu0 0.0
      %6191 = vmatpush1.msra.mxu0 0.0
      %6192 = vmatprep.subr.mxu0 0.0
      %6193 = vmatpush1.msra.mxu0 0.0
      %6194 = vmatprep.subr.mxu0 0.0
      %6195 = vmatpush1.msra.mxu0 0.0
      %6196 = vmatprep.subr.mxu0 0.0
      %6197 = vmatpush1.msra.mxu0 0.0
      %6198 = vmatprep.subr.mxu0 0.0
      %6199 = vmatpush1.msra.mxu0 0.0
      %6200 = vmatprep.subr.mxu0 0.0
      %6201 = vmatpush1.msra.mxu0 0.0
      %6202 = vmatprep.subr.mxu0 0.0
      %6203 = vmatpush1.msra.mxu0 0.0
      %6204 = vmatprep.subr.mxu0 0.0
      %6205 = vmatpush1.msra.mxu0 0.0
      %6206 = vmatprep.subr.mxu0 0.0
      %6207 = vmatpush1.msra.mxu0 0.0
      %6208 = vmatprep.subr.mxu0 0.0
      %6209 = vmatpush1.msra.mxu0 0.0
      %6210 = vmatprep.subr.mxu0 0.0
      %6211 = vmatpush1.msra.mxu0 0.0
      %6212 = vmatprep.mubr.f32.mxu0 0.0
      %6213 = vmatmul.mubr.f32.gmra.mrb[0].mxu0 %v6067
      %v6214 = vpop.f32.mrb[0].mxu0
      %v6215 = vadd.f32 0.0, %v6214
      %v6216 = vpop.f32.mrb[0].mxu0
      %v6217 = vadd.f32 0.0, %v6216
      %6218 = vdwg.mxu0
      %v6219 = vadd.f32 %v6004, %v6144
      %v6220 = vadd.f32 %v6005, %v6146
      %v6221 = vadd.f32 %v6006, %v6215
      %v6222 = vadd.f32 %v6007, %v6217
      %v6223 = vld [vmem:[#allocation2 + $0x4] sm:$0xff]
      %v6224 = vld [vmem:[#allocation2 + $0xc] sm:$0xff]
      %v6225 = vld [vmem:[#allocation2 + $0x14] sm:$0xf]
      %v6226 = vmul.f32 %v5794, %v1082
      %v6228 = vlaneseq
      %v6229 = vshrl.u32 %v6228, 7
      %v6230 = vsub.s32 0, %v6229
      %v6231 = vrot.slane %v6226, %v6230
      %v6232 = vlaneseq
      %v6233 = vshrl.u32 %v6232, 7
      %v6234 = vsub.s32 1, %v6233
      %v6235 = vrot.slane %v6226, %v6234
      %v6236 = vlaneseq
      %v6237 = vshrl.u32 %v6236, 7
      %v6238 = vsub.s32 2, %v6237
      %v6239 = vrot.slane %v6226, %v6238
      %v6240 = vlaneseq
      %v6241 = vshrl.u32 %v6240, 7
      %v6242 = vsub.s32 3, %v6241
      %v6243 = vrot.slane %v6226, %v6242
      %v6244 = vcombine.low %v6231, %v6235
      %v6245 = vcombine.low %v6239, %v6243
      %6246 = vrot.lane.b32.xlu0 %v6244, 73
      %v6247 = vpop.permute.xlu0 %6246
      %6248 = vrot.lane.b32.xlu0 %v6245, 73
      %v6249 = vpop.permute.xlu0 %6248
      %v6250 = vrot.slane %v6247, 4
      %v6251 = vrot.slane %v6249, 4
      %v6252 = vsel %vm920, %v6250, %v6247
      %v6253 = vsel %vm595, %v6250, %v6251
      %v6254 = vsel %vm920, %v6253, %v6249
      %v6258 = vmul.f32 %v6223, %v6252
      %v6259 = vmul.f32 %v6224, %v6254
      %v6260 = vmul.f32 %v6225, %v6251
      %s6261 = scalar_lea.vmem %s4, 104
      %v6262 = vld [vmem:[%s6261] sm:$0xf]
      %v6266 = vcombine.high %v6258, %v6258
      %v6267 = vcombine.high %v6259, %v6259
      %6268 = vrot.lane.b32.xlu0 %v6258, 55
      %v6269 = vpop.permute.xlu0 %6268
      %6270 = vrot.lane.b32.xlu0 %v6266, 55
      %v6271 = vpop.permute.xlu0 %6270
      %6272 = vrot.lane.b32.xlu0 %v6259, 55
      %v6273 = vpop.permute.xlu0 %6272
      %6274 = vrot.lane.b32.xlu0 %v6267, 55
      %v6275 = vpop.permute.xlu0 %6274
      %6276 = vrot.lane.b32.xlu0 %v6260, 55
      %v6277 = vpop.permute.xlu0 %6276
      %v6278 = vsel %vm683, %v6269, %v6271
      %v6279 = vsel %vm683, %v6271, %v6273
      %v6280 = vsel %vm683, %v6273, %v6275
      %v6281 = vsel %vm683, %v6275, %v6277
      %v6283 = vsel %vm751, %v6262, 0
      %v6285 = vsel %vm595, %v6278, 0
      %v6287 = vsel %vm595, %v6279, 0
      %v6289 = vsel %vm595, %v6280, 0
      %v6291 = vsel %vm595, %v6281, 0
      %6293 = vmatprep.subr.mxu0 %v6287
      %6294 = vmatpush1.msra.mxu0 %v6285
      %6295 = vmatprep.subr.mxu0 0.0
      %6296 = vmatpush1.msra.mxu0 0.0
      %6297 = vmatprep.subr.mxu0 0.0
      %6298 = vmatpush1.msra.mxu0 0.0
      %6299 = vmatprep.subr.mxu0 0.0
      %6300 = vmatpush1.msra.mxu0 0.0
      %6301 = vmatprep.subr.mxu0 0.0
      %6302 = vmatpush1.msra.mxu0 0.0
      %6303 = vmatprep.subr.mxu0 0.0
      %6304 = vmatpush1.msra.mxu0 0.0
      %6305 = vmatprep.subr.mxu0 0.0
      %6306 = vmatpush1.msra.mxu0 0.0
      %6307 = vmatprep.subr.mxu0 0.0
      %6308 = vmatpush1.msra.mxu0 0.0
      %6309 = vmatprep.subr.mxu0 0.0
      %6310 = vmatpush1.msra.mxu0 0.0
      %6311 = vmatprep.subr.mxu0 0.0
      %6312 = vmatpush1.msra.mxu0 0.0
      %6313 = vmatprep.subr.mxu0 0.0
      %6314 = vmatpush1.msra.mxu0 0.0
      %6315 = vmatprep.subr.mxu0 0.0
      %6316 = vmatpush1.msra.mxu0 0.0
      %6317 = vmatprep.subr.mxu0 0.0
      %6318 = vmatpush1.msra.mxu0 0.0
      %6319 = vmatprep.subr.mxu0 0.0
      %6320 = vmatpush1.msra.mxu0 0.0
      %6321 = vmatprep.subr.mxu0 0.0
      %6322 = vmatpush1.msra.mxu0 0.0
      %6323 = vmatprep.subr.mxu0 0.0
      %6324 = vmatpush1.msra.mxu0 0.0
      %6325 = vmatprep.subr.mxu0 0.0
      %6326 = vmatpush1.msra.mxu0 0.0
      %6327 = vmatprep.subr.mxu0 0.0
      %6328 = vmatpush1.msra.mxu0 0.0
      %6329 = vmatprep.subr.mxu0 0.0
      %6330 = vmatpush1.msra.mxu0 0.0
      %6331 = vmatprep.subr.mxu0 0.0
      %6332 = vmatpush1.msra.mxu0 0.0
      %6333 = vmatprep.subr.mxu0 0.0
      %6334 = vmatpush1.msra.mxu0 0.0
      %6335 = vmatprep.subr.mxu0 0.0
      %6336 = vmatpush1.msra.mxu0 0.0
      %6337 = vmatprep.subr.mxu0 0.0
      %6338 = vmatpush1.msra.mxu0 0.0
      %6339 = vmatprep.subr.mxu0 0.0
      %6340 = vmatpush1.msra.mxu0 0.0
      %6341 = vmatprep.subr.mxu0 0.0
      %6342 = vmatpush1.msra.mxu0 0.0
      %6343 = vmatprep.subr.mxu0 0.0
      %6344 = vmatpush1.msra.mxu0 0.0
      %6345 = vmatprep.subr.mxu0 0.0
      %6346 = vmatpush1.msra.mxu0 0.0
      %6347 = vmatprep.subr.mxu0 0.0
      %6348 = vmatpush1.msra.mxu0 0.0
      %6349 = vmatprep.subr.mxu0 0.0
      %6350 = vmatpush1.msra.mxu0 0.0
      %6351 = vmatprep.subr.mxu0 0.0
      %6352 = vmatpush1.msra.mxu0 0.0
      %6353 = vmatprep.subr.mxu0 0.0
      %6354 = vmatpush1.msra.mxu0 0.0
      %6355 = vmatprep.subr.mxu0 0.0
      %6356 = vmatpush1.msra.mxu0 0.0
      %6357 = vmatprep.mubr.f32.mxu0 0.0
      %6358 = vmatmul.mubr.f32.gmra.mrb[0].mxu0 %v6283
      %v6359 = vpop.f32.mrb[0].mxu0
      %v6360 = vadd.f32 0.0, %v6359
      %v6361 = vpop.f32.mrb[0].mxu0
      %v6362 = vadd.f32 0.0, %v6361
      %6363 = vdwg.mxu0
      %6364 = vmatprep.subr.mxu0 %v6291
      %6365 = vmatpush1.msra.mxu0 %v6289
      %6366 = vmatprep.subr.mxu0 0.0
      %6367 = vmatpush1.msra.mxu0 0.0
      %6368 = vmatprep.subr.mxu0 0.0
      %6369 = vmatpush1.msra.mxu0 0.0
      %6370 = vmatprep.subr.mxu0 0.0
      %6371 = vmatpush1.msra.mxu0 0.0
      %6372 = vmatprep.subr.mxu0 0.0
      %6373 = vmatpush1.msra.mxu0 0.0
      %6374 = vmatprep.subr.mxu0 0.0
      %6375 = vmatpush1.msra.mxu0 0.0
      %6376 = vmatprep.subr.mxu0 0.0
      %6377 = vmatpush1.msra.mxu0 0.0
      %6378 = vmatprep.subr.mxu0 0.0
      %6379 = vmatpush1.msra.mxu0 0.0
      %6380 = vmatprep.subr.mxu0 0.0
      %6381 = vmatpush1.msra.mxu0 0.0
      %6382 = vmatprep.subr.mxu0 0.0
      %6383 = vmatpush1.msra.mxu0 0.0
      %6384 = vmatprep.subr.mxu0 0.0
      %6385 = vmatpush1.msra.mxu0 0.0
      %6386 = vmatprep.subr.mxu0 0.0
      %6387 = vmatpush1.msra.mxu0 0.0
      %6388 = vmatprep.subr.mxu0 0.0
      %6389 = vmatpush1.msra.mxu0 0.0
      %6390 = vmatprep.subr.mxu0 0.0
      %6391 = vmatpush1.msra.mxu0 0.0
      %6392 = vmatprep.subr.mxu0 0.0
      %6393 = vmatpush1.msra.mxu0 0.0
      %6394 = vmatprep.subr.mxu0 0.0
      %6395 = vmatpush1.msra.mxu0 0.0
      %6396 = vmatprep.subr.mxu0 0.0
      %6397 = vmatpush1.msra.mxu0 0.0
      %6398 = vmatprep.subr.mxu0 0.0
      %6399 = vmatpush1.msra.mxu0 0.0
      %6400 = vmatprep.subr.mxu0 0.0
      %6401 = vmatpush1.msra.mxu0 0.0
      %6402 = vmatprep.subr.mxu0 0.0
      %6403 = vmatpush1.msra.mxu0 0.0
      %6404 = vmatprep.subr.mxu0 0.0
      %6405 = vmatpush1.msra.mxu0 0.0
      %6406 = vmatprep.subr.mxu0 0.0
      %6407 = vmatpush1.msra.mxu0 0.0
      %6408 = vmatprep.subr.mxu0 0.0
      %6409 = vmatpush1.msra.mxu0 0.0
      %6410 = vmatprep.subr.mxu0 0.0
      %6411 = vmatpush1.msra.mxu0 0.0
      %6412 = vmatprep.subr.mxu0 0.0
      %6413 = vmatpush1.msra.mxu0 0.0
      %6414 = vmatprep.subr.mxu0 0.0
      %6415 = vmatpush1.msra.mxu0 0.0
      %6416 = vmatprep.subr.mxu0 0.0
      %6417 = vmatpush1.msra.mxu0 0.0
      %6418 = vmatprep.subr.mxu0 0.0
      %6419 = vmatpush1.msra.mxu0 0.0
      %6420 = vmatprep.subr.mxu0 0.0
      %6421 = vmatpush1.msra.mxu0 0.0
      %6422 = vmatprep.subr.mxu0 0.0
      %6423 = vmatpush1.msra.mxu0 0.0
      %6424 = vmatprep.subr.mxu0 0.0
      %6425 = vmatpush1.msra.mxu0 0.0
      %6426 = vmatprep.subr.mxu0 0.0
      %6427 = vmatpush1.msra.mxu0 0.0
      %6428 = vmatprep.mubr.f32.mxu0 0.0
      %6429 = vmatmul.mubr.f32.gmra.mrb[0].mxu0 %v6283
      %v6430 = vpop.f32.mrb[0].mxu0
      %v6431 = vadd.f32 0.0, %v6430
      %v6432 = vpop.f32.mrb[0].mxu0
      %v6433 = vadd.f32 0.0, %v6432
      %6434 = vdwg.mxu0
      %v6435 = vadd.f32 %v6219, %v6360
      %v6436 = vadd.f32 %v6220, %v6362
      %v6437 = vadd.f32 %v6221, %v6431
      %v6438 = vadd.f32 %v6222, %v6433
      %v6439 = vsel %vm595, %v6435, 0.0
      %v6440 = vsel %vm595, %v6436, 0.0
      %v6441 = vadd.f32 %v6439, %v6440
      %v6442 = vsel %vm595, %v6437, 0.0
      %v6443 = vadd.f32 %v6441, %v6442
      %v6444 = vsel %vm595, %v6438, 0.0
      %v6445 = vadd.f32 %v6443, %v6444
      %6446 = vadd.xlane.f32.xlu0 %v6445
      %v6447 = vpop.xlane.xlu0 %6446
      %v6448 = vmul.f32 %v6447, %v605
      %v6449 = vsub.f32 %v6435, %v6448
      %v6450 = vsub.f32 %v6436, %v6448
      %v6451 = vsub.f32 %v6437, %v6448
      %v6452 = vsub.f32 %v6438, %v6448
      %v6453 = vmul.f32 %v6449, %v6449
      %v6454 = vmul.f32 %v6450, %v6450
      %v6455 = vmul.f32 %v6451, %v6451
      %v6456 = vmul.f32 %v6452, %v6452
      %v6457 = vsel %vm595, %v6453, 0.0
      %v6458 = vsel %vm595, %v6454, 0.0
      %v6459 = vadd.f32 %v6457, %v6458
      %v6460 = vsel %vm595, %v6455, 0.0
      %v6461 = vadd.f32 %v6459, %v6460
      %v6462 = vsel %vm595, %v6456, 0.0
      %v6463 = vadd.f32 %v6461, %v6462
      %6464 = vadd.xlane.f32.xlu0 %v6463
      %v6465 = vpop.xlane.xlu0 %6464
      %v6466 = vmul.f32 %v6465, %v605
      %v6467 = vadd.f32 %v6466, 1e-05
      %v6468 = vrsqrt.pop %v6467
      %v6469 = vmul.f32 %v6449, %v6468
      %v6470 = vmul.f32 %v6450, %v6468
      %v6471 = vmul.f32 %v6451, %v6468
      %v6472 = vmul.f32 %v6452, %v6468
      %v6473 = vmax.f32 %v6469, 0.0
      %v6474 = vmax.f32 %v6470, 0.0
      %v6475 = vmax.f32 %v6471, 0.0
      %v6476 = vmax.f32 %v6472, 0.0
      %v6477 = vld [vmem:[%s5] sm:$0xff]
      %v6479 = vsel %vm751, %v6477, 0
      %v6482 = vsel %vm595, %v6473, 0
      %v6485 = vsel %vm595, %v6474, 0
      %v6488 = vsel %vm595, %v6475, 0
      %v6491 = vsel %vm595, %v6476, 0
      %6493 = vmatprep.subr.mxu0 %v6485
      %6494 = vmatpush1.msra.mxu0 %v6482
      %6495 = vmatprep.subr.mxu0 0.0
      %6496 = vmatpush1.msra.mxu0 0.0
      %6497 = vmatprep.subr.mxu0 0.0
      %6498 = vmatpush1.msra.mxu0 0.0
      %6499 = vmatprep.subr.mxu0 0.0
      %6500 = vmatpush1.msra.mxu0 0.0
      %6501 = vmatprep.subr.mxu0 0.0
      %6502 = vmatpush1.msra.mxu0 0.0
      %6503 = vmatprep.subr.mxu0 0.0
      %6504 = vmatpush1.msra.mxu0 0.0
      %6505 = vmatprep.subr.mxu0 0.0
      %6506 = vmatpush1.msra.mxu0 0.0
      %6507 = vmatprep.subr.mxu0 0.0
      %6508 = vmatpush1.msra.mxu0 0.0
      %6509 = vmatprep.subr.mxu0 0.0
      %6510 = vmatpush1.msra.mxu0 0.0
      %6511 = vmatprep.subr.mxu0 0.0
      %6512 = vmatpush1.msra.mxu0 0.0
      %6513 = vmatprep.subr.mxu0 0.0
      %6514 = vmatpush1.msra.mxu0 0.0
      %6515 = vmatprep.subr.mxu0 0.0
      %6516 = vmatpush1.msra.mxu0 0.0
      %6517 = vmatprep.subr.mxu0 0.0
      %6518 = vmatpush1.msra.mxu0 0.0
      %6519 = vmatprep.subr.mxu0 0.0
      %6520 = vmatpush1.msra.mxu0 0.0
      %6521 = vmatprep.subr.mxu0 0.0
      %6522 = vmatpush1.msra.mxu0 0.0
      %6523 = vmatprep.subr.mxu0 0.0
      %6524 = vmatpush1.msra.mxu0 0.0
      %6525 = vmatprep.subr.mxu0 0.0
      %6526 = vmatpush1.msra.mxu0 0.0
      %6527 = vmatprep.subr.mxu0 0.0
      %6528 = vmatpush1.msra.mxu0 0.0
      %6529 = vmatprep.subr.mxu0 0.0
      %6530 = vmatpush1.msra.mxu0 0.0
      %6531 = vmatprep.subr.mxu0 0.0
      %6532 = vmatpush1.msra.mxu0 0.0
      %6533 = vmatprep.subr.mxu0 0.0
      %6534 = vmatpush1.msra.mxu0 0.0
      %6535 = vmatprep.subr.mxu0 0.0
      %6536 = vmatpush1.msra.mxu0 0.0
      %6537 = vmatprep.subr.mxu0 0.0
      %6538 = vmatpush1.msra.mxu0 0.0
      %6539 = vmatprep.subr.mxu0 0.0
      %6540 = vmatpush1.msra.mxu0 0.0
      %6541 = vmatprep.subr.mxu0 0.0
      %6542 = vmatpush1.msra.mxu0 0.0
      %6543 = vmatprep.subr.mxu0 0.0
      %6544 = vmatpush1.msra.mxu0 0.0
      %6545 = vmatprep.subr.mxu0 0.0
      %6546 = vmatpush1.msra.mxu0 0.0
      %6547 = vmatprep.subr.mxu0 0.0
      %6548 = vmatpush1.msra.mxu0 0.0
      %6549 = vmatprep.subr.mxu0 0.0
      %6550 = vmatpush1.msra.mxu0 0.0
      %6551 = vmatprep.subr.mxu0 0.0
      %6552 = vmatpush1.msra.mxu0 0.0
      %6553 = vmatprep.subr.mxu0 0.0
      %6554 = vmatpush1.msra.mxu0 0.0
      %6555 = vmatprep.subr.mxu0 0.0
      %6556 = vmatpush1.msra.mxu0 0.0
      %6557 = vmatprep.mubr.f32.mxu0 0.0
      %6558 = vmatmul.mubr.f32.gmra.mrb[0].mxu0 %v6479
      %v6559 = vpop.f32.mrb[0].mxu0
      %v6560 = vadd.f32 0.0, %v6559
      %v6561 = vpop.f32.mrb[0].mxu0
      %v6562 = vadd.f32 0.0, %v6561
      %6563 = vdwg.mxu0
      %6564 = vmatprep.subr.mxu0 %v6491
      %6565 = vmatpush1.msra.mxu0 %v6488
      %6566 = vmatprep.subr.mxu0 0.0
      %6567 = vmatpush1.msra.mxu0 0.0
      %6568 = vmatprep.subr.mxu0 0.0
      %6569 = vmatpush1.msra.mxu0 0.0
      %6570 = vmatprep.subr.mxu0 0.0
      %6571 = vmatpush1.msra.mxu0 0.0
      %6572 = vmatprep.subr.mxu0 0.0
      %6573 = vmatpush1.msra.mxu0 0.0
      %6574 = vmatprep.subr.mxu0 0.0
      %6575 = vmatpush1.msra.mxu0 0.0
      %6576 = vmatprep.subr.mxu0 0.0
      %6577 = vmatpush1.msra.mxu0 0.0
      %6578 = vmatprep.subr.mxu0 0.0
      %6579 = vmatpush1.msra.mxu0 0.0
      %6580 = vmatprep.subr.mxu0 0.0
      %6581 = vmatpush1.msra.mxu0 0.0
      %6582 = vmatprep.subr.mxu0 0.0
      %6583 = vmatpush1.msra.mxu0 0.0
      %6584 = vmatprep.subr.mxu0 0.0
      %6585 = vmatpush1.msra.mxu0 0.0
      %6586 = vmatprep.subr.mxu0 0.0
      %6587 = vmatpush1.msra.mxu0 0.0
      %6588 = vmatprep.subr.mxu0 0.0
      %6589 = vmatpush1.msra.mxu0 0.0
      %6590 = vmatprep.subr.mxu0 0.0
      %6591 = vmatpush1.msra.mxu0 0.0
      %6592 = vmatprep.subr.mxu0 0.0
      %6593 = vmatpush1.msra.mxu0 0.0
      %6594 = vmatprep.subr.mxu0 0.0
      %6595 = vmatpush1.msra.mxu0 0.0
      %6596 = vmatprep.subr.mxu0 0.0
      %6597 = vmatpush1.msra.mxu0 0.0
      %6598 = vmatprep.subr.mxu0 0.0
      %6599 = vmatpush1.msra.mxu0 0.0
      %6600 = vmatprep.subr.mxu0 0.0
      %6601 = vmatpush1.msra.mxu0 0.0
      %6602 = vmatprep.subr.mxu0 0.0
      %6603 = vmatpush1.msra.mxu0 0.0
      %6604 = vmatprep.subr.mxu0 0.0
      %6605 = vmatpush1.msra.mxu0 0.0
      %6606 = vmatprep.subr.mxu0 0.0
      %6607 = vmatpush1.msra.mxu0 0.0
      %6608 = vmatprep.subr.mxu0 0.0
      %6609 = vmatpush1.msra.mxu0 0.0
      %6610 = vmatprep.subr.mxu0 0.0
      %6611 = vmatpush1.msra.mxu0 0.0
      %6612 = vmatprep.subr.mxu0 0.0
      %6613 = vmatpush1.msra.mxu0 0.0
      %6614 = vmatprep.subr.mxu0 0.0
      %6615 = vmatpush1.msra.mxu0 0.0
      %6616 = vmatprep.subr.mxu0 0.0
      %6617 = vmatpush1.msra.mxu0 0.0
      %6618 = vmatprep.subr.mxu0 0.0
      %6619 = vmatpush1.msra.mxu0 0.0
      %6620 = vmatprep.subr.mxu0 0.0
      %6621 = vmatpush1.msra.mxu0 0.0
      %6622 = vmatprep.subr.mxu0 0.0
      %6623 = vmatpush1.msra.mxu0 0.0
      %6624 = vmatprep.subr.mxu0 0.0
      %6625 = vmatpush1.msra.mxu0 0.0
      %6626 = vmatprep.subr.mxu0 0.0
      %6627 = vmatpush1.msra.mxu0 0.0
      %6628 = vmatprep.mubr.f32.mxu0 0.0
      %6629 = vmatmul.mubr.f32.gmra.mrb[0].mxu0 %v6479
      %v6630 = vpop.f32.mrb[0].mxu0
      %v6631 = vadd.f32 0.0, %v6630
      %v6632 = vpop.f32.mrb[0].mxu0
      %v6633 = vadd.f32 0.0, %v6632
      %6634 = vdwg.mxu0
      %v6635 = vadd.f32 %v6560, %v6562
      %v6636 = vadd.f32 %v6635, %v6631
      %v6637 = vadd.f32 %v6636, %v6633
      %6638 = vadd.xlane.f32.xlu0 %v6637
      %v6639 = vpop.xlane.xlu0 %6638
      %v6640 = vmul.f32 %v6639, %v605
      %v6641 = vsub.f32 %v6560, %v6640
      %v6642 = vsub.f32 %v6562, %v6640
      %v6643 = vsub.f32 %v6631, %v6640
      %v6644 = vsub.f32 %v6633, %v6640
      %v6645 = vmul.f32 %v6641, %v6641
      %v6646 = vmul.f32 %v6642, %v6642
      %v6647 = vmul.f32 %v6643, %v6643
      %v6648 = vmul.f32 %v6644, %v6644
      %v6649 = vadd.f32 %v6645, %v6646
      %v6650 = vadd.f32 %v6649, %v6647
      %v6651 = vadd.f32 %v6650, %v6648
      %6652 = vadd.xlane.f32.xlu0 %v6651
      %v6653 = vpop.xlane.xlu0 %6652
      %v6654 = vmul.f32 %v6653, %v605
      %v6655 = vadd.f32 %v6654, 1e-05
      %v6656 = vrsqrt.pop %v6655
      %v6657 = vmul.f32 %v6641, %v6656
      %v6658 = vmul.f32 %v6642, %v6656
      %v6659 = vmul.f32 %v6643, %v6656
      %v6660 = vmul.f32 %v6644, %v6656
      %v6661 = vadd.f32 %v6657, %v373
      %v6662 = vadd.f32 %v6658, %v375
      %v6663 = vadd.f32 %v6659, %v444
      %v6664 = vadd.f32 %v6660, %v446
      %v6665 = vmax.f32 %v6661, 0.0
      %v6666 = vmax.f32 %v6662, 0.0
      %v6667 = vmax.f32 %v6663, 0.0
      %v6668 = vmax.f32 %v6664, 0.0
      %6669 = vst [vmem:[%s278] sm:$0xff] %v6665
      %6670 = vst [vmem:[%s278 + $0x8] sm:$0xff] %v6666
      %6671 = vst [vmem:[%s278 + $0x10] sm:$0xff] %v6667
      %6672 = vst [vmem:[%s278 + $0x18] sm:$0xff] %v6668
      %p6673 = scmp.lt.s32.totalorder %s18, 1
      %s6674 = scalar_select %p6673, %s18, 1
      %s6675 = smul.addr %s6674, 4
      %s6676 = smul.addr %s6675, 8
      %s6677 = scalar_lea.vmem %s7, %s6676
      // Predicated region
      $region49: #{residual_block_down_forward.1} parent=47 // pred_check
        %p6678 = pneg %p188
      $region50: #{residual_block_down_forward.1} parent=47 // pred_check_branch
        %6680 = sbr.rel (%p6678) target = $region52
      $region51: #{residual_block_down_forward.1} parent=47 // pred_region
        _
      $region52: #{residual_block_down_forward.1} parent=47 // pred_fallthru
        _
    $region48: #{residual_block_down_forward.1} parent=5 // pred_fallthru
      _
    %p6681 = scmp.le.s32.totalorder 2, %s13
    // Predicated region
    $region53: #{residual_block_down_forward.1} parent=5 // pred_check
      %p6682 = pneg %p6681
    $region54: #{residual_block_down_forward.1} parent=5 // pred_check_branch
      %6684 = sbr.rel (%p6682) target = $region56
    $region55: #{residual_block_down_forward.1} parent=5 // pred_region
      %s6685 = ssub.s32 %s13, 2
      // Predicated region
      $region57: #{residual_block_down_forward.1} parent=55 // pred_check
        %p6686 = pneg %p194
      $region58: #{residual_block_down_forward.1} parent=55 // pred_check_branch
        %6688 = sbr.rel (%p6686) target = $region60
      $region59: #{residual_block_down_forward.1} parent=55 // pred_region
        %p6689 = scmp.lt.s32.totalorder %s19, 1
        %s6690 = scalar_select %p6689, %s19, 1
        %s6691 = smul.addr %s6690, 4
        %s6692 = smul.addr %s6691, 8
        %s6693 = scalar_lea.vmem %s7, %s6692
      $region60: #{residual_block_down_forward.1} parent=55 // pred_fallthru
        _
    $region56: #{residual_block_down_forward.1} parent=5 // pred_fallthru
      _
  $region6: #{residual_block_down_forward.1} parent=0 // loop_footer
    %s17 = sadd.s32 1, %s13
  $region7: #{residual_block_down_forward.1} parent=0 // loop_footer_branch
    %12 = sbr.rel target = $region3
  $region8: #{residual_block_down_forward.1} parent=0 // loop_exit
    _

</llo_original>
